<compile_context>
chip_gen: v7x
topology: tpu7x:2x2x1
jax: 0.10.0
libtpu: 0.0.40
codegen_flags: <defaults>
</compile_context>

<pallas_src>
import math
import functools

import jax
import jax.numpy as jnp
from jax import lax
from jax.experimental import pallas as pl
from jax.experimental.pallas import tpu as pltpu


_NEG_INF = float("-inf")
_INT_MAX = 2 ** 31 - 1


def _round_up(x, m):
    return ((x + m - 1) // m) * m


def _vmem_limit_bytes():
    """Per-generation scoped-VMEM budget (v7x only has 64 MiB physical)."""
    try:
        cap = int(pltpu.get_tpu_info().vmem_capacity_bytes)
    except Exception:
        cap = 64 * 1024 * 1024
    return max(32 * 1024 * 1024, min(cap * 3 // 4, 96 * 1024 * 1024))


# ----------------------------------------------------------------------------
# Kernel 1: fused correlation + streaming top-k.
#   scores[n1, n2] = sum_c f1[n1, c] * f2[c, n2]      (bf16 in, f32 acc, MXU)
#   running (tm, k) top-k over n2 kept in VMEM scratch; emitted at last N2 tile.
# ----------------------------------------------------------------------------
def _corr_topk_kernel(f1_ref, f2_ref, vals_ref, idx_ref, vtop_ref, itop_ref,
                      *, k, block_n, n2_valid, inv_sqrt_c):
    j = pl.program_id(2)

    @pl.when(j == 0)
    def _():
        vtop_ref[...] = jnp.full(vtop_ref.shape, _NEG_INF, jnp.float32)
        itop_ref[...] = jnp.zeros(itop_ref.shape, jnp.int32)

    # (tm, C) @ (C, tn) — plain MXU matmul (LHS was pre-transposed in HBM).
    scores = lax.dot_general(f1_ref[0], f2_ref[0], (((1,), (0,)), ((), ())),
                             preferred_element_type=jnp.float32)     # (tm, tn)
    col = j * block_n + lax.broadcasted_iota(jnp.int32, scores.shape, 1)
    if n2_valid is not None:                 # static: -inf-mask padded columns
        scores = jnp.where(col < n2_valid, scores, _NEG_INF)

    # Early-out: if nothing in this tile can beat the running minimum of any
    # row, skip the whole merge (pay only the matmul + two scalar reductions).
    tile_max = jnp.max(scores)
    run_min = jnp.min(vtop_ref[...])

    @pl.when(tile_max > run_min)
    def _():
        # ---- Phase A: tile-local top-k on the lane-aligned (tm, tn) scores.
        # 2 cross-lane reductions per iteration (max, then min-index); the
        # selected entry is (m, gi) directly — no iota argmin / one-hot gather.
        cur = scores
        loc_v, loc_i = [], []
        for _ in range(k):
            m = jnp.max(cur, axis=-1, keepdims=True)                  # (tm, 1)
            gi = jnp.min(jnp.where(cur == m, col, _INT_MAX),
                         axis=-1, keepdims=True)                      # (tm, 1)
            loc_v.append(m)
            loc_i.append(gi)
            cur = jnp.where(col == gi, _NEG_INF, cur)
        loc_v = jnp.concatenate(loc_v, axis=-1)                       # (tm, k)
        loc_i = jnp.concatenate(loc_i, axis=-1)                       # (tm, k)

        # ---- Phase B: merge with the running top-k over a tiny 2k-wide array.
        # Indices are unique across the concat (running entries come from
        # earlier tiles), so index-equality selects exactly one live element.
        cand_v = jnp.concatenate([vtop_ref[...], loc_v], axis=-1)     # (tm, 2k)
        cand_i = jnp.concatenate([itop_ref[...], loc_i], axis=-1)
        new_v, new_i = [], []
        for _ in range(k):
            m = jnp.max(cand_v, axis=-1, keepdims=True)
            gi = jnp.min(jnp.where(cand_v == m, cand_i, _INT_MAX),
                         axis=-1, keepdims=True)
            new_v.append(m)
            new_i.append(gi)
            cand_v = jnp.where(cand_i == gi, _NEG_INF, cand_v)
        vtop_ref[...] = jnp.concatenate(new_v, axis=-1)
        itop_ref[...] = jnp.concatenate(new_i, axis=-1)

    @pl.when(j == pl.num_programs(2) - 1)
    def _():
        vals_ref[0] = vtop_ref[...] * inv_sqrt_c
        idx_ref[0] = itop_ref[...]


def corr_topk(f1t, f2, k, *, n2_valid, inv_sqrt_c, block_m, block_n,
              vmem_limit_bytes=None):
    """f1t: (B, N1p, C), f2: (B, C, N2p) -> (values (B, N1p, k), indices (B, N1p, k))."""
    B, N1p, C = f1t.shape
    N2p = f2.shape[2]
    tm, tn = block_m, block_n
    assert N1p % tm == 0 and N2p % tn == 0
    assert tm % 8 == 0 and tn % 128 == 0
    assert k <= tn and (n2_valid is None or n2_valid >= k)
    if vmem_limit_bytes is None:
        vmem_limit_bytes = _vmem_limit_bytes()

    grid = (B, N1p // tm, N2p // tn)
    vals, idx = pl.pallas_call(
        functools.partial(_corr_topk_kernel, k=k, block_n=tn,
                          n2_valid=n2_valid, inv_sqrt_c=inv_sqrt_c),
        out_shape=(jax.ShapeDtypeStruct((B, N1p, k), jnp.float32),
                   jax.ShapeDtypeStruct((B, N1p, k), jnp.int32)),
        grid_spec=pltpu.PrefetchScalarGridSpec(
            num_scalar_prefetch=0,
            grid=grid,
            in_specs=[pl.BlockSpec((1, tm, C), lambda b, i, j: (b, i, 0)),
                      pl.BlockSpec((1, C, tn), lambda b, i, j: (b, 0, j))],
            out_specs=[pl.BlockSpec((1, tm, k), lambda b, i, j: (b, i, 0)),
                       pl.BlockSpec((1, tm, k), lambda b, i, j: (b, i, 0))],
            scratch_shapes=[pltpu.VMEM((tm, k), jnp.float32),
                            pltpu.VMEM((tm, k), jnp.int32)]),
        compiler_params=pltpu.CompilerParams(
            dimension_semantics=("parallel", "parallel", "arbitrary"),
            vmem_limit_bytes=vmem_limit_bytes),
    )(f1t, f2)
    return vals, idx


# ----------------------------------------------------------------------------
# compute_sparse_corr — faithful port of the torch function (fused top-k path).
# ----------------------------------------------------------------------------
def compute_sparse_corr(fmap1, fmap2, k=32, compute_dtype=jnp.bfloat16,
                        block_m=None, block_n=None):
    B, C, H1, W1 = fmap1.shape
    H2, W2 = fmap2.shape[2], fmap2.shape[3]
    N1, N2 = H1 * W1, H2 * W2
    assert N2 >= k

    # Tile selection + padding to lane/sublane-aligned tile multiples.
    tm = block_m or min(256, _round_up(N1, 8))
    tn = block_n or min(256, _round_up(N2, 128))
    tm = _round_up(tm, 8)
    tn = _round_up(tn, 128)
    N1p = _round_up(N1, tm)
    N2p = _round_up(N2, tn)

    # LHS pre-transposed once in HBM so the per-tile dot is (tm,C)@(C,tn) with
    # no per-tile XLU transpose competing with the top-k merge.
    f1t = jnp.transpose(fmap1.reshape(B, C, N1), (0, 2, 1)).astype(compute_dtype)
    f2c = fmap2.reshape(B, C, N2).astype(compute_dtype)
    if N1p != N1:
        f1t = jnp.pad(f1t, ((0, 0), (0, N1p - N1), (0, 0)))
    if N2p != N2:
        f2c = jnp.pad(f2c, ((0, 0), (0, 0), (0, N2p - N2)))

    inv_sqrt_c = 1.0 / math.sqrt(float(C))
    vals, idx = corr_topk(f1t, f2c, k,
                          n2_valid=(N2 if N2p != N2 else None),
                          inv_sqrt_c=inv_sqrt_c, block_m=tm, block_n=tn)
    vals = vals[:, :N1]
    idx = idx[:, :N1]

    corr_sp = jnp.transpose(vals, (0, 2, 1))           # (B, k, N1) == einsum/sqrt(C)
    idx_t = jnp.transpose(idx, (0, 2, 1))              # (B, k, N1) torch "indices"

    # coords_grid_y_first: channel 0 = y (row), channel 1 = x (col).
    # Pure index arithmetic — no gather, no (B,2,k,N) gathered intermediate.
    pos = jnp.arange(N2, dtype=jnp.int32)
    qy_full = (pos // W2).astype(jnp.float32)
    qx_full = (pos % W2).astype(jnp.float32)
    coords0 = jnp.broadcast_to(
        jnp.stack([qy_full, qx_full], 0).reshape(1, 2, 1, N2), (B, 2, k, N2))

    q = jnp.arange(N1, dtype=jnp.int32)
    qy = (q // W2).astype(jnp.float32)
    qx = (q % W2).astype(jnp.float32)
    ty = (idx_t // W2).astype(jnp.float32)              # (B, k, N1)
    tx = (idx_t % W2).astype(jnp.float32)
    coords1 = jnp.stack([ty - qy[None, None, :],
                         tx - qx[None, None, :]], axis=1)   # (B, 2, k, N1)

    batch_index = jnp.broadcast_to(
        jnp.arange(B, dtype=coords1.dtype).reshape(B, 1, 1, 1), (B, 1, k, N1))
    return corr_sp, coords0, coords1, batch_index


# ----------------------------------------------------------------------------
# Kernel 2: convex 8x flow upsampling (LLcvNetEighth.upsample_flow), lane-dense.
#   mask: (N, 576, HW) = (N, 9, 64, HW); softmax over the 9 neighbours,
#   weighted sum of the 3x3-unfolded (8*flow), channel-major flow (N, 2, 9, HW).
# ----------------------------------------------------------------------------
def _upsample_kernel(mask_ref, flow_ref, out_ref, *, sub):
    t = out_ref.shape[2]
    m = mask_ref[0].astype(jnp.float32).reshape(9, sub, t)      # (9, 64, t)
    m = m - jnp.max(m, axis=0, keepdims=True)
    e = jnp.exp(m)
    w = e * pl.reciprocal(jnp.sum(e, axis=0, keepdims=True),
                          approx=False)                         # softmax over 9
    f = flow_ref[0]                                             # (2, 9, t), = 8*flow
    acc_x = jnp.zeros((sub, t), jnp.float32)
    acc_y = jnp.zeros((sub, t), jnp.float32)
    for j in range(9):
        wj = w[j]                                               # (64, t)
        acc_x = acc_x + wj * f[0, j][None, :]
        acc_y = acc_y + wj * f[1, j][None, :]
    out_ref[0] = jnp.concatenate([acc_x, acc_y], axis=0)        # channel = c*64+i8*8+j8


def upsample_flow_eighth(flow, mask, block_hw=None, vmem_limit_bytes=None):
    N, _, H, W = flow.shape
    HW = H * W
    factor, sub = 8, 64
    nb = 9 * sub                                                # 576
    assert mask.shape == (N, nb, H, W)

    # 3x3 zero-padded unfold of 8*flow (tiny), channel-major: (N, 2, 9, HW).
    fpad = jnp.pad(float(factor) * flow.astype(jnp.float32),
                   ((0, 0), (0, 0), (1, 1), (1, 1)))
    shifts = jnp.stack([fpad[:, :, dy:dy + H, dx:dx + W]
                        for dy in range(3) for dx in range(3)], axis=2)
    flow_unf = shifts.reshape(N, 2, 9, HW)
    # Mask is read exactly once — stream it in its native dtype (no wrapper cast).
    mask_flat = mask.reshape(N, nb, HW)

    t = block_hw or min(1024, _round_up(HW, 128))
    t = _round_up(t, 128)
    HWp = _round_up(HW, t)
    if HWp != HW:
        mask_flat = jnp.pad(mask_flat, ((0, 0), (0, 0), (0, HWp - HW)))
        flow_unf = jnp.pad(flow_unf, ((0, 0), (0, 0), (0, 0), (0, HWp - HW)))
    if vmem_limit_bytes is None:
        vmem_limit_bytes = _vmem_limit_bytes()

    grid = (N, HWp // t)
    out = pl.pallas_call(
        functools.partial(_upsample_kernel, sub=sub),
        out_shape=jax.ShapeDtypeStruct((N, 2 * sub, HWp), jnp.float32),
        grid_spec=pltpu.PrefetchScalarGridSpec(
            num_scalar_prefetch=0,
            grid=grid,
            in_specs=[pl.BlockSpec((1, nb, t), lambda n, s: (n, 0, s)),
                      pl.BlockSpec((1, 2, 9, t), lambda n, s: (n, 0, 0, s))],
            out_specs=pl.BlockSpec((1, 2 * sub, t), lambda n, s: (n, 0, s))),
        compiler_params=pltpu.CompilerParams(
            dimension_semantics=("parallel", "parallel"),
            vmem_limit_bytes=vmem_limit_bytes),
    )(mask_flat, flow_unf)

    out = out[:, :, :HW]
    up = out.reshape(N, 2, factor, factor, H, W)
    up = jnp.transpose(up, (0, 1, 4, 2, 5, 3))                  # (N, 2, H, 8, W, 8)
    return up.reshape(N, 2, factor * H, factor * W)


# ----------------------------------------------------------------------------
if __name__ == "__main__":
    key = jax.random.PRNGKey(0)
    # H=W=12 -> N=144: deliberately NOT a multiple of 128, exercising the
    # padding path; block 128 forces a multi-tile N2 sweep (streaming merge).
    B, C, H, W, num_k = 2, 64, 12, 12, 8
    N = H * W
    k1, k2, k3, k4 = jax.random.split(key, 4)

    fmap1 = jax.random.normal(k1, (B, C, H, W), jnp.float32)
    fmap2 = jax.random.normal(k2, (B, C, H, W), jnp.float32)

    corr_sp, coords0, coords1, batch_index = compute_sparse_corr(
        fmap1, fmap2, k=num_k, block_m=128, block_n=128)
    jax.block_until_ready((corr_sp, coords0, coords1, batch_index))
    assert corr_sp.shape == (B, num_k, N)
    assert coords0.shape == (B, 2, num_k, N)
    assert coords1.shape == (B, 2, num_k, N)
    assert batch_index.shape == (B, 1, num_k, N)

    # Reference with the same bf16-input / f32-accumulation semantics.
    f1b = fmap1.reshape(B, C, -1).astype(jnp.bfloat16).astype(jnp.float32)
    f2b = fmap2.reshape(B, C, -1).astype(jnp.bfloat16).astype(jnp.float32)
    corr_full = jnp.einsum("bcn,bcm->bnm", f1b, f2b)
    ref_vals, ref_idx = lax.top_k(corr_full, num_k)              # (B, N, k)
    ref_corr_sp = jnp.transpose(ref_vals, (0, 2, 1)) / math.sqrt(float(C))
    assert jnp.allclose(corr_sp, ref_corr_sp, atol=1e-2, rtol=1e-2)

    # Index recall vs the reference ranking (robust to near-ties).
    kernel_idx = jnp.round((coords1 + coords0)[:, 0] * W
                           + (coords1 + coords0)[:, 1]).astype(jnp.int32)
    ref_idx_t = jnp.transpose(ref_idx, (0, 2, 1)).astype(jnp.int32)
    recall = jnp.mean((kernel_idx == ref_idx_t).astype(jnp.float32))
    assert float(recall) > 0.95
    assert jnp.all(batch_index[:, 0, 0, 0] == jnp.arange(B))

    # Convex 8x upsampling (upsample_flow) on synthetic flow / up_mask.
    flow = jax.random.normal(k3, (B, 2, H, W), jnp.float32)
    up_mask = jax.random.normal(k4, (B, 9 * 64, H, W), jnp.float32)
    flow_up = upsample_flow_eighth(flow, up_mask)
    jax.block_until_ready(flow_up)
    assert flow_up.shape == (B, 2, 8 * H, 8 * W)

    # Pure-JAX reference of the PyTorch upsample_flow.
    mask_r = up_mask.reshape(B, 1, 9, 8, 8, H, W)
    mask_sm = jax.nn.softmax(mask_r, axis=2)
    fpad = jnp.pad(8.0 * flow, ((0, 0), (0, 0), (1, 1), (1, 1)))
    shifts = jnp.stack([fpad[:, :, dy:dy + H, dx:dx + W]
                        for dy in range(3) for dx in range(3)], axis=2)
    up_ref = jnp.sum(mask_sm * shifts[:, :, :, None, None, :, :], axis=2)
    up_ref = jnp.transpose(up_ref, (0, 1, 4, 2, 5, 3)).reshape(B, 2, 8 * H, 8 * W)
    assert jnp.allclose(flow_up, up_ref, atol=1e-3, rtol=1e-3)

    print("KERNEL_OK")
</pallas_src>

<mosaic_0001>
module attributes {stable_mosaic.version = 11 : i64} {
  func.func @_corr_topk_kernel(%arg0: i32, %arg1: i32, %arg2: i32, %arg3: memref<1x128x64xbf16, #tpu.memory_space<vmem>>, %arg4: memref<1x64x128xbf16, #tpu.memory_space<vmem>>, %arg5: memref<1x128x8xf32, #tpu.memory_space<vmem>>, %arg6: memref<1x128x8xi32, #tpu.memory_space<vmem>>, %arg7: memref<128x8xf32, #tpu.memory_space<vmem>>, %arg8: memref<128x8xi32, #tpu.memory_space<vmem>>) attributes {dimension_semantics = [#tpu.dimension_semantics<parallel>, #tpu.dimension_semantics<parallel>, #tpu.dimension_semantics<arbitrary>], iteration_bounds = array<i64: 2, 2, 2>, scalar_prefetch = 0 : i64, scratch_operands = 2 : i64, tpu.core_type = #tpu.core_type<tc>, window_params = [{transform_indices = @transform_0, window_bounds = array<i64: 1, 128, 64>}, {transform_indices = @transform_1, window_bounds = array<i64: 1, 64, 128>}, {transform_indices = @transform_2, window_bounds = array<i64: 1, 128, 8>}, {transform_indices = @transform_3, window_bounds = array<i64: 1, 128, 8>}]} {
    %c0_i32 = arith.constant 0 : i32
    %0 = arith.cmpi eq, %arg2, %c0_i32 : i32
    %1 = arith.extui %0 : i1 to i32
    %c0_i32_0 = arith.constant 0 : i32
    %2 = arith.cmpi ne, %1, %c0_i32_0 : i32
    scf.if %2 {
      %cst_13 = arith.constant 0xFF800000 : f32
      %31 = vector.broadcast %cst_13 : f32 to vector<128x8xf32>
      %c0_14 = arith.constant 0 : index
      %c0_15 = arith.constant 0 : index
      %32 = vector.load %arg7[%c0_14, %c0_15] : memref<128x8xf32, #tpu.memory_space<vmem>>, vector<128x8xf32>
      tpu.vector_store %arg7[%c0_14, %c0_15], %31 {strides = array<i32>} : memref<128x8xf32, #tpu.memory_space<vmem>>, vector<128x8xf32>,
      %c0_i32_16 = arith.constant 0 : i32
      %33 = vector.broadcast %c0_i32_16 : i32 to vector<128x8xi32>
      %c0_17 = arith.constant 0 : index
      %c0_18 = arith.constant 0 : index
      %34 = vector.load %arg8[%c0_17, %c0_18] : memref<128x8xi32, #tpu.memory_space<vmem>>, vector<128x8xi32>
      tpu.vector_store %arg8[%c0_17, %c0_18], %33 {strides = array<i32>} : memref<128x8xi32, #tpu.memory_space<vmem>>, vector<128x8xi32>,
    } else {
    }
    %c0 = arith.constant 0 : index
    %c0_1 = arith.constant 0 : index
    %c0_2 = arith.constant 0 : index
    %3 = vector.load %arg3[%c0, %c0_1, %c0_2] : memref<1x128x64xbf16, #tpu.memory_space<vmem>>, vector<1x128x64xbf16>
    %4 = vector.shape_cast %3 : vector<1x128x64xbf16> to vector<128x64xbf16>
    %c0_3 = arith.constant 0 : index
    %c0_4 = arith.constant 0 : index
    %c0_5 = arith.constant 0 : index
    %5 = vector.load %arg4[%c0_3, %c0_4, %c0_5] : memref<1x64x128xbf16, #tpu.memory_space<vmem>>, vector<1x64x128xbf16>
    %6 = vector.shape_cast %5 : vector<1x64x128xbf16> to vector<64x128xbf16>
    %cst = arith.constant dense<0.000000e+00> : vector<128x128xf32>
    %7 = tpu.matmul %4, %6, %cst {dimension_numbers = #tpu.dot_dimension_numbers<[1], [0], [0], [1], [0, 0, 1, 1], [], []>} : vector<128x64xbf16>, vector<64x128xbf16>, vector<128x128xf32> -> vector<128x128xf32>
    %c128_i32 = arith.constant 128 : i32
    %8 = arith.muli %arg2, %c128_i32 : i32
    %9 = tpu.iota {dimensions = array<i32: 1>} : vector<128x128xi32>
    %10 = vector.broadcast %8 : i32 to vector<128x128xi32>
    %11 = arith.addi %10, %9 : vector<128x128xi32>
    %c144_i32 = arith.constant 144 : i32
    %12 = vector.broadcast %c144_i32 : i32 to vector<128x128xi32>
    %13 = arith.cmpi slt, %11, %12 : vector<128x128xi32>
    %cst_6 = arith.constant 0xFF800000 : f32
    %14 = vector.broadcast %cst_6 : f32 to vector<128x128xf32>
    %15 = arith.select %13, %7, %14 : vector<128x128xi1>, vector<128x128xf32>
    %16 = vector.shape_cast %15 : vector<128x128xf32> to vector<1x128x128xf32>
    %cst_7 = arith.constant dense<0xFF800000> : vector<1xf32>
    %17 = vector.multi_reduction <maximumf>, %16, %cst_7 [1, 2] : vector<1x128x128xf32> to vector<1xf32>
    %18 = vector.shape_cast %17 : vector<1xf32> to vector<1x1x1xf32>
    %19 = vector.extract %18[0, 0, 0] : f32 from vector<1x1x1xf32>
    %c0_8 = arith.constant 0 : index
    %c0_9 = arith.constant 0 : index
    %20 = vector.load %arg7[%c0_8, %c0_9] : memref<128x8xf32, #tpu.memory_space<vmem>>, vector<128x8xf32>
    %21 = vector.shape_cast %20 : vector<128x8xf32> to vector<1x128x8xf32>
    %cst_10 = arith.constant dense<0x7F800000> : vector<1xf32>
    %22 = vector.multi_reduction <minimumf>, %21, %cst_10 [1, 2] : vector<1x128x8xf32> to vector<1xf32>
    %23 = vector.shape_cast %22 : vector<1xf32> to vector<1x1x1xf32>
    %24 = vector.extract %23[0, 0, 0] : f32 from vector<1x1x1xf32>
    %25 = arith.cmpf ogt, %19, %24 : f32
    %26 = arith.extui %25 : i1 to i32
    %c0_i32_11 = arith.constant 0 : i32
    %27 = arith.cmpi ne, %26, %c0_i32_11 : i32
    scf.if %27 {
      %cst_13 = arith.constant dense<0xFF800000> : vector<128xf32>
      %31 = vector.multi_reduction <maximumf>, %15, %cst_13 [1] : vector<128x128xf32> to vector<128xf32>
      %32 = vector.shape_cast %31 : vector<128xf32> to vector<128x1xf32>
      %33 = vector.broadcast %32 : vector<128x1xf32> to vector<128x128xf32>
      %34 = arith.cmpf oeq, %15, %33 : vector<128x128xf32>
      %c2147483647_i32 = arith.constant 2147483647 : i32
      %35 = vector.broadcast %c2147483647_i32 : i32 to vector<128x128xi32>
      %36 = arith.select %34, %11, %35 : vector<128x128xi1>, vector<128x128xi32>
      %cst_14 = arith.constant dense<2147483647> : vector<128xi32>
      %37 = vector.multi_reduction <minsi>, %36, %cst_14 [1] : vector<128x128xi32> to vector<128xi32>
      %38 = vector.shape_cast %37 : vector<128xi32> to vector<128x1xi32>
      %39 = vector.broadcast %38 : vector<128x1xi32> to vector<128x128xi32>
      %40 = arith.cmpi eq, %11, %39 : vector<128x128xi32>
      %cst_15 = arith.constant 0xFF800000 : f32
      %41 = vector.broadcast %cst_15 : f32 to vector<128x128xf32>
      %42 = arith.select %40, %41, %15 : vector<128x128xi1>, vector<128x128xf32>
      %cst_16 = arith.constant dense<0xFF800000> : vector<128xf32>
      %43 = vector.multi_reduction <maximumf>, %42, %cst_16 [1] : vector<128x128xf32> to vector<128xf32>
      %44 = vector.shape_cast %43 : vector<128xf32> to vector<128x1xf32>
      %45 = vector.broadcast %44 : vector<128x1xf32> to vector<128x128xf32>
      %46 = arith.cmpf oeq, %42, %45 : vector<128x128xf32>
      %c2147483647_i32_17 = arith.constant 2147483647 : i32
      %47 = vector.broadcast %c2147483647_i32_17 : i32 to vector<128x128xi32>
      %48 = arith.select %46, %11, %47 : vector<128x128xi1>, vector<128x128xi32>
      %cst_18 = arith.constant dense<2147483647> : vector<128xi32>
      %49 = vector.multi_reduction <minsi>, %48, %cst_18 [1] : vector<128x128xi32> to vector<128xi32>
      %50 = vector.shape_cast %49 : vector<128xi32> to vector<128x1xi32>
      %51 = vector.broadcast %50 : vector<128x1xi32> to vector<128x128xi32>
      %52 = arith.cmpi eq, %11, %51 : vector<128x128xi32>
      %cst_19 = arith.constant 0xFF800000 : f32
      %53 = vector.broadcast %cst_19 : f32 to vector<128x128xf32>
      %54 = arith.select %52, %53, %42 : vector<128x128xi1>, vector<128x128xf32>
      %cst_20 = arith.constant dense<0xFF800000> : vector<128xf32>
      %55 = vector.multi_reduction <maximumf>, %54, %cst_20 [1] : vector<128x128xf32> to vector<128xf32>
      %56 = vector.shape_cast %55 : vector<128xf32> to vector<128x1xf32>
      %57 = vector.broadcast %56 : vector<128x1xf32> to vector<128x128xf32>
      %58 = arith.cmpf oeq, %54, %57 : vector<128x128xf32>
      %c2147483647_i32_21 = arith.constant 2147483647 : i32
      %59 = vector.broadcast %c2147483647_i32_21 : i32 to vector<128x128xi32>
      %60 = arith.select %58, %11, %59 : vector<128x128xi1>, vector<128x128xi32>
      %cst_22 = arith.constant dense<2147483647> : vector<128xi32>
      %61 = vector.multi_reduction <minsi>, %60, %cst_22 [1] : vector<128x128xi32> to vector<128xi32>
      %62 = vector.shape_cast %61 : vector<128xi32> to vector<128x1xi32>
      %63 = vector.broadcast %62 : vector<128x1xi32> to vector<128x128xi32>
      %64 = arith.cmpi eq, %11, %63 : vector<128x128xi32>
      %cst_23 = arith.constant 0xFF800000 : f32
      %65 = vector.broadcast %cst_23 : f32 to vector<128x128xf32>
      %66 = arith.select %64, %65, %54 : vector<128x128xi1>, vector<128x128xf32>
      %cst_24 = arith.constant dense<0xFF800000> : vector<128xf32>
      %67 = vector.multi_reduction <maximumf>, %66, %cst_24 [1] : vector<128x128xf32> to vector<128xf32>
      %68 = vector.shape_cast %67 : vector<128xf32> to vector<128x1xf32>
      %69 = vector.broadcast %68 : vector<128x1xf32> to vector<128x128xf32>
      %70 = arith.cmpf oeq, %66, %69 : vector<128x128xf32>
      %c2147483647_i32_25 = arith.constant 2147483647 : i32
      %71 = vector.broadcast %c2147483647_i32_25 : i32 to vector<128x128xi32>
      %72 = arith.select %70, %11, %71 : vector<128x128xi1>, vector<128x128xi32>
      %cst_26 = arith.constant dense<2147483647> : vector<128xi32>
      %73 = vector.multi_reduction <minsi>, %72, %cst_26 [1] : vector<128x128xi32> to vector<128xi32>
      %74 = vector.shape_cast %73 : vector<128xi32> to vector<128x1xi32>
      %75 = vector.broadcast %74 : vector<128x1xi32> to vector<128x128xi32>
      %76 = arith.cmpi eq, %11, %75 : vector<128x128xi32>
      %cst_27 = arith.constant 0xFF800000 : f32
      %77 = vector.broadcast %cst_27 : f32 to vector<128x128xf32>
      %78 = arith.select %76, %77, %66 : vector<128x128xi1>, vector<128x128xf32>
      %cst_28 = arith.constant dense<0xFF800000> : vector<128xf32>
      %79 = vector.multi_reduction <maximumf>, %78, %cst_28 [1] : vector<128x128xf32> to vector<128xf32>
      %80 = vector.shape_cast %79 : vector<128xf32> to vector<128x1xf32>
      %81 = vector.broadcast %80 : vector<128x1xf32> to vector<128x128xf32>
      %82 = arith.cmpf oeq, %78, %81 : vector<128x128xf32>
      %c2147483647_i32_29 = arith.constant 2147483647 : i32
      %83 = vector.broadcast %c2147483647_i32_29 : i32 to vector<128x128xi32>
      %84 = arith.select %82, %11, %83 : vector<128x128xi1>, vector<128x128xi32>
      %cst_30 = arith.constant dense<2147483647> : vector<128xi32>
      %85 = vector.multi_reduction <minsi>, %84, %cst_30 [1] : vector<128x128xi32> to vector<128xi32>
      %86 = vector.shape_cast %85 : vector<128xi32> to vector<128x1xi32>
      %87 = vector.broadcast %86 : vector<128x1xi32> to vector<128x128xi32>
      %88 = arith.cmpi eq, %11, %87 : vector<128x128xi32>
      %cst_31 = arith.constant 0xFF800000 : f32
      %89 = vector.broadcast %cst_31 : f32 to vector<128x128xf32>
      %90 = arith.select %88, %89, %78 : vector<128x128xi1>, vector<128x128xf32>
      %cst_32 = arith.constant dense<0xFF800000> : vector<128xf32>
      %91 = vector.multi_reduction <maximumf>, %90, %cst_32 [1] : vector<128x128xf32> to vector<128xf32>
      %92 = vector.shape_cast %91 : vector<128xf32> to vector<128x1xf32>
      %93 = vector.broadcast %92 : vector<128x1xf32> to vector<128x128xf32>
      %94 = arith.cmpf oeq, %90, %93 : vector<128x128xf32>
      %c2147483647_i32_33 = arith.constant 2147483647 : i32
      %95 = vector.broadcast %c2147483647_i32_33 : i32 to vector<128x128xi32>
      %96 = arith.select %94, %11, %95 : vector<128x128xi1>, vector<128x128xi32>
      %cst_34 = arith.constant dense<2147483647> : vector<128xi32>
      %97 = vector.multi_reduction <minsi>, %96, %cst_34 [1] : vector<128x128xi32> to vector<128xi32>
      %98 = vector.shape_cast %97 : vector<128xi32> to vector<128x1xi32>
      %99 = vector.broadcast %98 : vector<128x1xi32> to vector<128x128xi32>
      %100 = arith.cmpi eq, %11, %99 : vector<128x128xi32>
      %cst_35 = arith.constant 0xFF800000 : f32
      %101 = vector.broadcast %cst_35 : f32 to vector<128x128xf32>
      %102 = arith.select %100, %101, %90 : vector<128x128xi1>, vector<128x128xf32>
      %cst_36 = arith.constant dense<0xFF800000> : vector<128xf32>
      %103 = vector.multi_reduction <maximumf>, %102, %cst_36 [1] : vector<128x128xf32> to vector<128xf32>
      %104 = vector.shape_cast %103 : vector<128xf32> to vector<128x1xf32>
      %105 = vector.broadcast %104 : vector<128x1xf32> to vector<128x128xf32>
      %106 = arith.cmpf oeq, %102, %105 : vector<128x128xf32>
      %c2147483647_i32_37 = arith.constant 2147483647 : i32
      %107 = vector.broadcast %c2147483647_i32_37 : i32 to vector<128x128xi32>
      %108 = arith.select %106, %11, %107 : vector<128x128xi1>, vector<128x128xi32>
      %cst_38 = arith.constant dense<2147483647> : vector<128xi32>
      %109 = vector.multi_reduction <minsi>, %108, %cst_38 [1] : vector<128x128xi32> to vector<128xi32>
      %110 = vector.shape_cast %109 : vector<128xi32> to vector<128x1xi32>
      %111 = vector.broadcast %110 : vector<128x1xi32> to vector<128x128xi32>
      %112 = arith.cmpi eq, %11, %111 : vector<128x128xi32>
      %cst_39 = arith.constant 0xFF800000 : f32
      %113 = vector.broadcast %cst_39 : f32 to vector<128x128xf32>
      %114 = arith.select %112, %113, %102 : vector<128x128xi1>, vector<128x128xf32>
      %cst_40 = arith.constant dense<0xFF800000> : vector<128xf32>
      %115 = vector.multi_reduction <maximumf>, %114, %cst_40 [1] : vector<128x128xf32> to vector<128xf32>
      %116 = vector.shape_cast %115 : vector<128xf32> to vector<128x1xf32>
      %117 = vector.broadcast %116 : vector<128x1xf32> to vector<128x128xf32>
      %118 = arith.cmpf oeq, %114, %117 : vector<128x128xf32>
      %c2147483647_i32_41 = arith.constant 2147483647 : i32
      %119 = vector.broadcast %c2147483647_i32_41 : i32 to vector<128x128xi32>
      %120 = arith.select %118, %11, %119 : vector<128x128xi1>, vector<128x128xi32>
      %cst_42 = arith.constant dense<2147483647> : vector<128xi32>
      %121 = vector.multi_reduction <minsi>, %120, %cst_42 [1] : vector<128x128xi32> to vector<128xi32>
      %122 = vector.shape_cast %121 : vector<128xi32> to vector<128x1xi32>
      %123 = tpu.concatenate %32, %44, %56, %68, %80, %92, %104, %116 in 1 : vector<128x1xf32>, vector<128x1xf32>, vector<128x1xf32>, vector<128x1xf32>, vector<128x1xf32>, vector<128x1xf32>, vector<128x1xf32>, vector<128x1xf32> -> vector<128x8xf32>
      %124 = tpu.concatenate %38, %50, %62, %74, %86, %98, %110, %122 in 1 : vector<128x1xi32>, vector<128x1xi32>, vector<128x1xi32>, vector<128x1xi32>, vector<128x1xi32>, vector<128x1xi32>, vector<128x1xi32>, vector<128x1xi32> -> vector<128x8xi32>
      %c0_43 = arith.constant 0 : index
      %c0_44 = arith.constant 0 : index
      %125 = vector.load %arg7[%c0_43, %c0_44] : memref<128x8xf32, #tpu.memory_space<vmem>>, vector<128x8xf32>
      %126 = tpu.concatenate %125, %123 in 1 : vector<128x8xf32>, vector<128x8xf32> -> vector<128x16xf32>
      %c0_45 = arith.constant 0 : index
      %c0_46 = arith.constant 0 : index
      %127 = vector.load %arg8[%c0_45, %c0_46] : memref<128x8xi32, #tpu.memory_space<vmem>>, vector<128x8xi32>
      %128 = tpu.concatenate %127, %124 in 1 : vector<128x8xi32>, vector<128x8xi32> -> vector<128x16xi32>
      %cst_47 = arith.constant dense<0xFF800000> : vector<128xf32>
      %129 = vector.multi_reduction <maximumf>, %126, %cst_47 [1] : vector<128x16xf32> to vector<128xf32>
      %130 = vector.shape_cast %129 : vector<128xf32> to vector<128x1xf32>
      %131 = vector.broadcast %130 : vector<128x1xf32> to vector<128x16xf32>
      %132 = arith.cmpf oeq, %126, %131 : vector<128x16xf32>
      %c2147483647_i32_48 = arith.constant 2147483647 : i32
      %133 = vector.broadcast %c2147483647_i32_48 : i32 to vector<128x16xi32>
      %134 = arith.select %132, %128, %133 : vector<128x16xi1>, vector<128x16xi32>
      %cst_49 = arith.constant dense<2147483647> : vector<128xi32>
      %135 = vector.multi_reduction <minsi>, %134, %cst_49 [1] : vector<128x16xi32> to vector<128xi32>
      %136 = vector.shape_cast %135 : vector<128xi32> to vector<128x1xi32>
      %137 = vector.broadcast %136 : vector<128x1xi32> to vector<128x16xi32>
      %138 = arith.cmpi eq, %128, %137 : vector<128x16xi32>
      %cst_50 = arith.constant 0xFF800000 : f32
      %139 = vector.broadcast %cst_50 : f32 to vector<128x16xf32>
      %140 = arith.select %138, %139, %126 : vector<128x16xi1>, vector<128x16xf32>
      %cst_51 = arith.constant dense<0xFF800000> : vector<128xf32>
      %141 = vector.multi_reduction <maximumf>, %140, %cst_51 [1] : vector<128x16xf32> to vector<128xf32>
      %142 = vector.shape_cast %141 : vector<128xf32> to vector<128x1xf32>
      %143 = vector.broadcast %142 : vector<128x1xf32> to vector<128x16xf32>
      %144 = arith.cmpf oeq, %140, %143 : vector<128x16xf32>
      %c2147483647_i32_52 = arith.constant 2147483647 : i32
      %145 = vector.broadcast %c2147483647_i32_52 : i32 to vector<128x16xi32>
      %146 = arith.select %144, %128, %145 : vector<128x16xi1>, vector<128x16xi32>
      %cst_53 = arith.constant dense<2147483647> : vector<128xi32>
      %147 = vector.multi_reduction <minsi>, %146, %cst_53 [1] : vector<128x16xi32> to vector<128xi32>
      %148 = vector.shape_cast %147 : vector<128xi32> to vector<128x1xi32>
      %149 = vector.broadcast %148 : vector<128x1xi32> to vector<128x16xi32>
      %150 = arith.cmpi eq, %128, %149 : vector<128x16xi32>
      %cst_54 = arith.constant 0xFF800000 : f32
      %151 = vector.broadcast %cst_54 : f32 to vector<128x16xf32>
      %152 = arith.select %150, %151, %140 : vector<128x16xi1>, vector<128x16xf32>
      %cst_55 = arith.constant dense<0xFF800000> : vector<128xf32>
      %153 = vector.multi_reduction <maximumf>, %152, %cst_55 [1] : vector<128x16xf32> to vector<128xf32>
      %154 = vector.shape_cast %153 : vector<128xf32> to vector<128x1xf32>
      %155 = vector.broadcast %154 : vector<128x1xf32> to vector<128x16xf32>
      %156 = arith.cmpf oeq, %152, %155 : vector<128x16xf32>
      %c2147483647_i32_56 = arith.constant 2147483647 : i32
      %157 = vector.broadcast %c2147483647_i32_56 : i32 to vector<128x16xi32>
      %158 = arith.select %156, %128, %157 : vector<128x16xi1>, vector<128x16xi32>
      %cst_57 = arith.constant dense<2147483647> : vector<128xi32>
      %159 = vector.multi_reduction <minsi>, %158, %cst_57 [1] : vector<128x16xi32> to vector<128xi32>
      %160 = vector.shape_cast %159 : vector<128xi32> to vector<128x1xi32>
      %161 = vector.broadcast %160 : vector<128x1xi32> to vector<128x16xi32>
      %162 = arith.cmpi eq, %128, %161 : vector<128x16xi32>
      %cst_58 = arith.constant 0xFF800000 : f32
      %163 = vector.broadcast %cst_58 : f32 to vector<128x16xf32>
      %164 = arith.select %162, %163, %152 : vector<128x16xi1>, vector<128x16xf32>
      %cst_59 = arith.constant dense<0xFF800000> : vector<128xf32>
      %165 = vector.multi_reduction <maximumf>, %164, %cst_59 [1] : vector<128x16xf32> to vector<128xf32>
      %166 = vector.shape_cast %165 : vector<128xf32> to vector<128x1xf32>
      %167 = vector.broadcast %166 : vector<128x1xf32> to vector<128x16xf32>
      %168 = arith.cmpf oeq, %164, %167 : vector<128x16xf32>
      %c2147483647_i32_60 = arith.constant 2147483647 : i32
      %169 = vector.broadcast %c2147483647_i32_60 : i32 to vector<128x16xi32>
      %170 = arith.select %168, %128, %169 : vector<128x16xi1>, vector<128x16xi32>
      %cst_61 = arith.constant dense<2147483647> : vector<128xi32>
      %171 = vector.multi_reduction <minsi>, %170, %cst_61 [1] : vector<128x16xi32> to vector<128xi32>
      %172 = vector.shape_cast %171 : vector<128xi32> to vector<128x1xi32>
      %173 = vector.broadcast %172 : vector<128x1xi32> to vector<128x16xi32>
      %174 = arith.cmpi eq, %128, %173 : vector<128x16xi32>
      %cst_62 = arith.constant 0xFF800000 : f32
      %175 = vector.broadcast %cst_62 : f32 to vector<128x16xf32>
      %176 = arith.select %174, %175, %164 : vector<128x16xi1>, vector<128x16xf32>
      %cst_63 = arith.constant dense<0xFF800000> : vector<128xf32>
      %177 = vector.multi_reduction <maximumf>, %176, %cst_63 [1] : vector<128x16xf32> to vector<128xf32>
      %178 = vector.shape_cast %177 : vector<128xf32> to vector<128x1xf32>
      %179 = vector.broadcast %178 : vector<128x1xf32> to vector<128x16xf32>
      %180 = arith.cmpf oeq, %176, %179 : vector<128x16xf32>
      %c2147483647_i32_64 = arith.constant 2147483647 : i32
      %181 = vector.broadcast %c2147483647_i32_64 : i32 to vector<128x16xi32>
      %182 = arith.select %180, %128, %181 : vector<128x16xi1>, vector<128x16xi32>
      %cst_65 = arith.constant dense<2147483647> : vector<128xi32>
      %183 = vector.multi_reduction <minsi>, %182, %cst_65 [1] : vector<128x16xi32> to vector<128xi32>
      %184 = vector.shape_cast %183 : vector<128xi32> to vector<128x1xi32>
      %185 = vector.broadcast %184 : vector<128x1xi32> to vector<128x16xi32>
      %186 = arith.cmpi eq, %128, %185 : vector<128x16xi32>
      %cst_66 = arith.constant 0xFF800000 : f32
      %187 = vector.broadcast %cst_66 : f32 to vector<128x16xf32>
      %188 = arith.select %186, %187, %176 : vector<128x16xi1>, vector<128x16xf32>
      %cst_67 = arith.constant dense<0xFF800000> : vector<128xf32>
      %189 = vector.multi_reduction <maximumf>, %188, %cst_67 [1] : vector<128x16xf32> to vector<128xf32>
      %190 = vector.shape_cast %189 : vector<128xf32> to vector<128x1xf32>
      %191 = vector.broadcast %190 : vector<128x1xf32> to vector<128x16xf32>
      %192 = arith.cmpf oeq, %188, %191 : vector<128x16xf32>
      %c2147483647_i32_68 = arith.constant 2147483647 : i32
      %193 = vector.broadcast %c2147483647_i32_68 : i32 to vector<128x16xi32>
      %194 = arith.select %192, %128, %193 : vector<128x16xi1>, vector<128x16xi32>
      %cst_69 = arith.constant dense<2147483647> : vector<128xi32>
      %195 = vector.multi_reduction <minsi>, %194, %cst_69 [1] : vector<128x16xi32> to vector<128xi32>
      %196 = vector.shape_cast %195 : vector<128xi32> to vector<128x1xi32>
      %197 = vector.broadcast %196 : vector<128x1xi32> to vector<128x16xi32>
      %198 = arith.cmpi eq, %128, %197 : vector<128x16xi32>
      %cst_70 = arith.constant 0xFF800000 : f32
      %199 = vector.broadcast %cst_70 : f32 to vector<128x16xf32>
      %200 = arith.select %198, %199, %188 : vector<128x16xi1>, vector<128x16xf32>
      %cst_71 = arith.constant dense<0xFF800000> : vector<128xf32>
      %201 = vector.multi_reduction <maximumf>, %200, %cst_71 [1] : vector<128x16xf32> to vector<128xf32>
      %202 = vector.shape_cast %201 : vector<128xf32> to vector<128x1xf32>
      %203 = vector.broadcast %202 : vector<128x1xf32> to vector<128x16xf32>
      %204 = arith.cmpf oeq, %200, %203 : vector<128x16xf32>
      %c2147483647_i32_72 = arith.constant 2147483647 : i32
      %205 = vector.broadcast %c2147483647_i32_72 : i32 to vector<128x16xi32>
      %206 = arith.select %204, %128, %205 : vector<128x16xi1>, vector<128x16xi32>
      %cst_73 = arith.constant dense<2147483647> : vector<128xi32>
      %207 = vector.multi_reduction <minsi>, %206, %cst_73 [1] : vector<128x16xi32> to vector<128xi32>
      %208 = vector.shape_cast %207 : vector<128xi32> to vector<128x1xi32>
      %209 = vector.broadcast %208 : vector<128x1xi32> to vector<128x16xi32>
      %210 = arith.cmpi eq, %128, %209 : vector<128x16xi32>
      %cst_74 = arith.constant 0xFF800000 : f32
      %211 = vector.broadcast %cst_74 : f32 to vector<128x16xf32>
      %212 = arith.select %210, %211, %200 : vector<128x16xi1>, vector<128x16xf32>
      %cst_75 = arith.constant dense<0xFF800000> : vector<128xf32>
      %213 = vector.multi_reduction <maximumf>, %212, %cst_75 [1] : vector<128x16xf32> to vector<128xf32>
      %214 = vector.shape_cast %213 : vector<128xf32> to vector<128x1xf32>
      %215 = vector.broadcast %214 : vector<128x1xf32> to vector<128x16xf32>
      %216 = arith.cmpf oeq, %212, %215 : vector<128x16xf32>
      %c2147483647_i32_76 = arith.constant 2147483647 : i32
      %217 = vector.broadcast %c2147483647_i32_76 : i32 to vector<128x16xi32>
      %218 = arith.select %216, %128, %217 : vector<128x16xi1>, vector<128x16xi32>
      %cst_77 = arith.constant dense<2147483647> : vector<128xi32>
      %219 = vector.multi_reduction <minsi>, %218, %cst_77 [1] : vector<128x16xi32> to vector<128xi32>
      %220 = vector.shape_cast %219 : vector<128xi32> to vector<128x1xi32>
      %221 = tpu.concatenate %130, %142, %154, %166, %178, %190, %202, %214 in 1 : vector<128x1xf32>, vector<128x1xf32>, vector<128x1xf32>, vector<128x1xf32>, vector<128x1xf32>, vector<128x1xf32>, vector<128x1xf32>, vector<128x1xf32> -> vector<128x8xf32>
      %c0_78 = arith.constant 0 : index
      %c0_79 = arith.constant 0 : index
      %222 = vector.load %arg7[%c0_78, %c0_79] : memref<128x8xf32, #tpu.memory_space<vmem>>, vector<128x8xf32>
      tpu.vector_store %arg7[%c0_78, %c0_79], %221 {strides = array<i32>} : memref<128x8xf32, #tpu.memory_space<vmem>>, vector<128x8xf32>,
      %223 = tpu.concatenate %136, %148, %160, %172, %184, %196, %208, %220 in 1 : vector<128x1xi32>, vector<128x1xi32>, vector<128x1xi32>, vector<128x1xi32>, vector<128x1xi32>, vector<128x1xi32>, vector<128x1xi32>, vector<128x1xi32> -> vector<128x8xi32>
      %c0_80 = arith.constant 0 : index
      %c0_81 = arith.constant 0 : index
      %224 = vector.load %arg8[%c0_80, %c0_81] : memref<128x8xi32, #tpu.memory_space<vmem>>, vector<128x8xi32>
      tpu.vector_store %arg8[%c0_80, %c0_81], %223 {strides = array<i32>} : memref<128x8xi32, #tpu.memory_space<vmem>>, vector<128x8xi32>,
    } else {
    }
    %c1_i32 = arith.constant 1 : i32
    %28 = arith.cmpi eq, %arg2, %c1_i32 : i32
    %29 = arith.extui %28 : i1 to i32
    %c0_i32_12 = arith.constant 0 : i32
    %30 = arith.cmpi ne, %29, %c0_i32_12 : i32
    scf.if %30 {
      %c0_13 = arith.constant 0 : index
      %c0_14 = arith.constant 0 : index
      %31 = vector.load %arg7[%c0_13, %c0_14] : memref<128x8xf32, #tpu.memory_space<vmem>>, vector<128x8xf32>
      %cst_15 = arith.constant 1.250000e-01 : f32
      %32 = vector.broadcast %cst_15 : f32 to vector<128x8xf32>
      %33 = arith.mulf %31, %32 : vector<128x8xf32>
      %c0_16 = arith.constant 0 : index
      %c0_17 = arith.constant 0 : index
      %c0_18 = arith.constant 0 : index
      %34 = vector.load %arg5[%c0_16, %c0_17, %c0_18] : memref<1x128x8xf32, #tpu.memory_space<vmem>>, vector<1x128x8xf32>
      %35 = vector.shape_cast %34 : vector<1x128x8xf32> to vector<128x8xf32>
      %36 = vector.shape_cast %33 : vector<128x8xf32> to vector<1x128x8xf32>
      tpu.vector_store %arg5[%c0_16, %c0_17, %c0_18], %36 {strides = array<i32>} : memref<1x128x8xf32, #tpu.memory_space<vmem>>, vector<1x128x8xf32>,
      %c0_19 = arith.constant 0 : index
      %c0_20 = arith.constant 0 : index
      %37 = vector.load %arg8[%c0_19, %c0_20] : memref<128x8xi32, #tpu.memory_space<vmem>>, vector<128x8xi32>
      %c0_21 = arith.constant 0 : index
      %c0_22 = arith.constant 0 : index
      %c0_23 = arith.constant 0 : index
      %38 = vector.load %arg6[%c0_21, %c0_22, %c0_23] : memref<1x128x8xi32, #tpu.memory_space<vmem>>, vector<1x128x8xi32>
      %39 = vector.shape_cast %38 : vector<1x128x8xi32> to vector<128x8xi32>
      %40 = vector.shape_cast %37 : vector<128x8xi32> to vector<1x128x8xi32>
      tpu.vector_store %arg6[%c0_21, %c0_22, %c0_23], %40 {strides = array<i32>} : memref<1x128x8xi32, #tpu.memory_space<vmem>>, vector<1x128x8xi32>,
    } else {
    }
    return
  }
  func.func @transform_0(%arg0: i32, %arg1: i32, %arg2: i32) -> (i32, i32, i32) {
    %c0_i32 = arith.constant 0 : i32
    %c0_i32_0 = arith.constant 0 : i32
    return %arg0, %arg1, %c0_i32 : i32, i32, i32
  }
  func.func @transform_1(%arg0: i32, %arg1: i32, %arg2: i32) -> (i32, i32, i32) {
    %c0_i32 = arith.constant 0 : i32
    %c0_i32_0 = arith.constant 0 : i32
    return %arg0, %c0_i32, %arg2 : i32, i32, i32
  }
  func.func @transform_2(%arg0: i32, %arg1: i32, %arg2: i32) -> (i32, i32, i32) {
    %c0_i32 = arith.constant 0 : i32
    %c0_i32_0 = arith.constant 0 : i32
    return %arg0, %arg1, %c0_i32 : i32, i32, i32
  }
  func.func @transform_3(%arg0: i32, %arg1: i32, %arg2: i32) -> (i32, i32, i32) {
    %c0_i32 = arith.constant 0 : i32
    %c0_i32_0 = arith.constant 0 : i32
    return %arg0, %arg1, %c0_i32 : i32, i32, i32
  }
}

</mosaic_0001>

<llo_original>
// kernel: tpu_custom_call.1
$region0: #{tpu_custom_call.1}
  #allocation0 [shape = 'u32[]', space=smem, size = 0x4, offset = 0x4, fixed_abs, tag = 'smem constant byte address 0x4 - core index']
  #allocation1 [shape = 'u32[144,128]{1,0:T(1,128)}', space=vmem, size = 0x12000, scoped, tag = 'internal scratch']
  #allocation2 [shape = 'f32[128,8]{1,0:T(8,128)}', space=vmem, size = 0x10000, scoped, tag = 'scratch operand']
  #allocation3 [shape = 's32[128,8]{1,0:T(8,128)}', space=vmem, size = 0x10000, scoped, tag = 'scratch operand']
  %s0 = inlined_call_operand.vmem [shape: bf16[2,256,64], index: 0, kind: input, shape index: {}]
  %s1 = inlined_call_operand.vmem [shape: bf16[2,64,256], index: 1, kind: input, shape index: {}]
  %s2 = inlined_call_operand.vmem [shape: f32[2,256,8], index: 2, kind: output, shape index: {0}]
  %s3 = inlined_call_operand.vmem [shape: s32[2,256,8], index: 3, kind: output, shape index: {1}]
  %4 = xla_tuple %s2, %s3
  %s5 = sld [smem:[#allocation0]]
  $region102: #{tpu_custom_call.1} parent=0
    _
  %s7 = ssub.s32 1, %s5
  %s8 = scalar_select 0, %s7, %s5
  $region1: #{tpu_custom_call.1} parent=0
    #allocation4 [shape = 'u8[32768]{0}', space=vmem, size = 0x8000, scoped, tag = 'input window, operand 1']
    loop: start=0, step=1, limit=10
    $region2: #{tpu_custom_call.1} parent=1 // loop_pre_header
      _
    $region3: #{tpu_custom_call.1} parent=1 // loop_header
      %s10 = sphi 0, %s14
      %p11 = scmp.ge.s32.totalorder %s10, 10
      %s17 = sphi 0, %s36
      %s18 = sphi 0, %s32
      %s19 = sphi 0, %s28
      %s20 = sphi 0, %s17
      %s21 = sphi 0, %s18
      %s22 = sphi 0, %s19
      %s23 = sphi 0, %s20
      %s24 = sphi 0, %s21
      %s25 = sphi 0, %s22
      %s41 = sphi 0, %s43
      %s44 = sphi 0, %s41
      %s45 = sphi 0, %s44
      %s61 = sphi 0, %s45
      %s69 = sphi 0, %s71
      %s72 = sphi 0, %s69
      %s73 = sphi 0, %s72
      %s89 = sphi 0, %s73
      %s97 = sphi 0, %s99
      %s100 = sphi 0, %s97
      %s101 = sphi 0, %s100
      %s117 = sphi 0, %s101
      %s125 = sphi 0, %s127
      %s128 = sphi 0, %s125
      %s129 = sphi 0, %s128
      %s145 = sphi 0, %s129
    $region4: #{tpu_custom_call.1} parent=1 // loop_header_branch
      %13 = sbr.rel (%p11) target = $region8
    $region5: #{tpu_custom_call.1} parent=1 // loop_body
      %s15 = ssub.s32 %s10, 1
      %s16 = ssub.s32 %s10, 2
      %s26 = sadd.s32 1, %s19
      %p27 = scmp.ge.s32.totalorder %s26, 2
      %s28 = scalar_select %p27, 0, %s26
      %s29 = sadd.s32 1, %s18
      %s30 = scalar_select %p27, %s29, %s18
      %p31 = scmp.ge.s32.totalorder %s30, 2
      %s32 = scalar_select %p31, 0, %s30
      %s33 = sadd.s32 1, %s17
      %s34 = scalar_select %p31, %s33, %s17
      %p35 = scmp.ge.s32.totalorder %s34, 2
      %s36 = scalar_select %p35, 0, %s34
      %s37 = ssub.s32 %s17, %s36
      %s38 = ssub.s32 %s18, %s32
      %s39 = sor.u32 %s37, %s38
      %p40 = scmp.eq.s32.totalorder %s39, 0
      %s42 = sadd.s32 %s41, 1
      %s43 = scalar_select %p40, %s41, %s42
      %p46 = pneg %p40
      %p47 = scmp.eq.s32.totalorder %s10, 7
      %p48 = por %p46, %p47
      %p49 = scmp.ne.s32.totalorder %s41, %s44
      %p50 = scmp.eq.s32.totalorder %s10, 0
      %p51 = por %p49, %p50
      %p52 = scmp.ne.s32.totalorder %s41, %s44
      %p53 = scmp.eq.s32.totalorder %s15, 7
      %p54 = por %p52, %p53
      %p55 = scmp.ne.s32.totalorder %s44, %s45
      %p56 = scmp.eq.s32.totalorder %s15, 0
      %p57 = por %p55, %p56
      %p58 = scmp.ne.s32.totalorder %s44, %s45
      %p59 = scmp.eq.s32.totalorder %s16, 7
      %p60 = por %p58, %p59
      %p62 = scmp.ne.s32.totalorder %s45, %s61
      %p63 = scmp.eq.s32.totalorder %s16, 0
      %p64 = por %p62, %p63
      %s65 = ssub.s32 %s17, %s36
      %s66 = ssub.s32 %s19, %s28
      %s67 = sor.u32 %s65, %s66
      %p68 = scmp.eq.s32.totalorder %s67, 0
      %s70 = sadd.s32 %s69, 1
      %s71 = scalar_select %p68, %s69, %s70
      %p74 = pneg %p68
      %p75 = scmp.eq.s32.totalorder %s10, 7
      %p76 = por %p74, %p75
      %p77 = scmp.ne.s32.totalorder %s69, %s72
      %p78 = scmp.eq.s32.totalorder %s10, 0
      %p79 = por %p77, %p78
      %p80 = scmp.ne.s32.totalorder %s69, %s72
      %p81 = scmp.eq.s32.totalorder %s15, 7
      %p82 = por %p80, %p81
      %p83 = scmp.ne.s32.totalorder %s72, %s73
      %p84 = scmp.eq.s32.totalorder %s15, 0
      %p85 = por %p83, %p84
      %p86 = scmp.ne.s32.totalorder %s72, %s73
      %p87 = scmp.eq.s32.totalorder %s16, 7
      %p88 = por %p86, %p87
      %p90 = scmp.ne.s32.totalorder %s73, %s89
      %p91 = scmp.eq.s32.totalorder %s16, 0
      %p92 = por %p90, %p91
      %s93 = ssub.s32 %s17, %s36
      %s94 = ssub.s32 %s18, %s32
      %s95 = sor.u32 %s93, %s94
      %p96 = scmp.eq.s32.totalorder %s95, 0
      %s98 = sadd.s32 %s97, 1
      %s99 = scalar_select %p96, %s97, %s98
      %p102 = pneg %p96
      %p103 = scmp.eq.s32.totalorder %s10, 7
      %p104 = por %p102, %p103
      %p105 = scmp.ne.s32.totalorder %s97, %s100
      %p106 = scmp.eq.s32.totalorder %s10, 0
      %p107 = por %p105, %p106
      %p108 = scmp.ne.s32.totalorder %s97, %s100
      %p109 = scmp.eq.s32.totalorder %s15, 7
      %p110 = por %p108, %p109
      %p111 = scmp.ne.s32.totalorder %s100, %s101
      %p112 = scmp.eq.s32.totalorder %s15, 0
      %p113 = por %p111, %p112
      %p114 = scmp.ne.s32.totalorder %s100, %s101
      %p115 = scmp.eq.s32.totalorder %s16, 7
      %p116 = por %p114, %p115
      %p118 = scmp.ne.s32.totalorder %s101, %s117
      %p119 = scmp.eq.s32.totalorder %s16, 0
      %p120 = por %p118, %p119
      %s121 = ssub.s32 %s17, %s36
      %s122 = ssub.s32 %s18, %s32
      %s123 = sor.u32 %s121, %s122
      %p124 = scmp.eq.s32.totalorder %s123, 0
      %s126 = sadd.s32 %s125, 1
      %s127 = scalar_select %p124, %s125, %s126
      %p130 = pneg %p124
      %p131 = scmp.eq.s32.totalorder %s10, 7
      %p132 = por %p130, %p131
      %p133 = scmp.ne.s32.totalorder %s125, %s128
      %p134 = scmp.eq.s32.totalorder %s10, 0
      %p135 = por %p133, %p134
      %p136 = scmp.ne.s32.totalorder %s125, %s128
      %p137 = scmp.eq.s32.totalorder %s15, 7
      %p138 = por %p136, %p137
      %p139 = scmp.ne.s32.totalorder %s128, %s129
      %p140 = scmp.eq.s32.totalorder %s15, 0
      %p141 = por %p139, %p140
      %p142 = scmp.ne.s32.totalorder %s128, %s129
      %p143 = scmp.eq.s32.totalorder %s16, 7
      %p144 = por %p142, %p143
      %p146 = scmp.ne.s32.totalorder %s129, %s145
      %p147 = scmp.eq.s32.totalorder %s16, 0
      %p148 = por %p146, %p147
      %p149 = scmp.le.s32.totalorder 1, %s10
      %p150 = scmp.lt.s32.totalorder %s10, 9
      %p151 = pnand %p149, %p150
      %p152 = pneg %p151
      // Predicated region
      $region9: #{tpu_custom_call.1} parent=5 // pred_check
        _
      $region10: #{tpu_custom_call.1} parent=5 // pred_check_branch
        %154 = sbr.rel (%p151) target = $region12
      $region11: #{tpu_custom_call.1} parent=5 // pred_region
        %s155 = ssub.s32 %s10, 1
      $region12: #{tpu_custom_call.1} parent=5 // pred_fallthru
        _
      %p156 = scmp.lt.s32.totalorder %s10, 8
      // Predicated region
      $region13: #{tpu_custom_call.1} parent=5 // pred_check
        %p157 = pneg %p156
      $region14: #{tpu_custom_call.1} parent=5 // pred_check_branch
        %159 = sbr.rel (%p157) target = $region16
      $region15: #{tpu_custom_call.1} parent=5 // pred_region
        // Predicated region
        $region17: #{tpu_custom_call.1} parent=15 // pred_check
          %p160 = pneg %p51
        $region18: #{tpu_custom_call.1} parent=15 // pred_check_branch
          %162 = sbr.rel (%p160) target = $region20
        $region19: #{tpu_custom_call.1} parent=15 // pred_region
          %s163 = smul.u32 16, %s18
          %p164 = scmp.lt.s32.totalorder %s17, 1
          %s165 = scalar_select %p164, %s17, 1
          %p166 = scmp.lt.s32.totalorder %s163, 31
          %s167 = scalar_select %p166, %s163, 31
          %s168 = smul.addr %s165, 32
          %s169 = sadd.s32 %s167, %s168
          %s170 = smul.addr %s169, 4
          %s171 = scalar_lea.vmem %s0, %s170
          %s172 = smul.u32 16, %s18
        $region20: #{tpu_custom_call.1} parent=15 // pred_fallthru
          _
        // Predicated region
        $region21: #{tpu_custom_call.1} parent=15 // pred_check
          %p173 = pneg %p79
        $region22: #{tpu_custom_call.1} parent=15 // pred_check_branch
          %175 = sbr.rel (%p173) target = $region24
        $region23: #{tpu_custom_call.1} parent=15 // pred_region
          %s176 = sand.u32 %s69, 1
          %s177 = sand.u32 %s69, 1
          %s178 = smul.addr %s177, 32
          %s179 = scalar_lea.vmem [#allocation4], %s178
          %s180 = smul.addr %s17, 16
          %s181 = sadd.s32 %s19, %s180
          %s182 = smul.addr %s181, 4
          %s183 = scalar_lea.vmem %s1, %s182
          // Predicated region
          $region25: #{tpu_custom_call.1} parent=23 // pred_check
            _
          $region26: #{tpu_custom_call.1} parent=23 // pred_check_branch
            %185 = sbr.rel (0) target = $region28
          $region27: #{tpu_custom_call.1} parent=23 // pred_region
            // Predicated region
            $region29: #{tpu_custom_call.1} parent=27 // pred_check
              _
            $region30: #{tpu_custom_call.1} parent=27 // pred_check_branch
              %187 = sbr.rel target = $region32
            $region31: #{tpu_custom_call.1} parent=27 // pred_region
              // Predicated region
              $region44: #{tpu_custom_call.1} parent=31 // pred_check
                _
              $region45: #{tpu_custom_call.1} parent=31 // pred_check_branch
                %216 = sbr.rel (0) target = $region47
              $region46: #{tpu_custom_call.1} parent=31 // pred_region
                loop: start=0, step=1, limit=1
                $region48: #{tpu_custom_call.1} parent=46 // loop_pre_header
                  _
                $region49: #{tpu_custom_call.1} parent=46 // loop_header
                  %s218 = sphi 0, %s222
                  %p219 = scmp.ge.s32.totalorder %s218, 1
                  %s223 = sphi %s183, %s183
                  %s224 = sphi %s179, %s179
                $region50: #{tpu_custom_call.1} parent=46 // loop_header_branch
                  %221 = sbr.rel (%p219) target = $region54
                $region51: #{tpu_custom_call.1} parent=46 // loop_body
                  _
                $region52: #{tpu_custom_call.1} parent=46 // loop_footer
                  %s222 = sadd.s32 1, %s218
                $region53: #{tpu_custom_call.1} parent=46 // loop_footer_branch
                  %217 = sbr.rel target = $region49
                $region54: #{tpu_custom_call.1} parent=46 // loop_exit
                  _
                loop: start=0, step=1, limit=1
                $region55: #{tpu_custom_call.1} parent=46 // loop_pre_header
                  _
                $region56: #{tpu_custom_call.1} parent=46 // loop_header
                  %s227 = sphi 0, %s231
                  %p228 = scmp.ge.s32.totalorder %s227, 1
                  %s232 = sphi %s183, %s183
                  %s233 = sphi %s179, %s179
                $region57: #{tpu_custom_call.1} parent=46 // loop_header_branch
                  %230 = sbr.rel (%p228) target = $region61
                $region58: #{tpu_custom_call.1} parent=46 // loop_body
                  %v234 = vld [vmem:[%s232] sm:$0xf]
                  %235 = vst [vmem:[%s233] sm:$0xf] %v234
                  %v236 = vld [vmem:[%s232 + $0x8] sm:$0xf]
                  %237 = vst [vmem:[%s233 + $0x4] sm:$0xf] %v236
                  %v238 = vld [vmem:[%s232 + $0x10] sm:$0xf]
                  %239 = vst [vmem:[%s233 + $0x8] sm:$0xf] %v238
                  %v240 = vld [vmem:[%s232 + $0x18] sm:$0xf]
                  %241 = vst [vmem:[%s233 + $0xc] sm:$0xf] %v240
                  %v242 = vld [vmem:[%s232 + $0x20] sm:$0xf]
                  %243 = vst [vmem:[%s233 + $0x10] sm:$0xf] %v242
                  %v244 = vld [vmem:[%s232 + $0x28] sm:$0xf]
                  %245 = vst [vmem:[%s233 + $0x14] sm:$0xf] %v244
                  %v246 = vld [vmem:[%s232 + $0x30] sm:$0xf]
                  %247 = vst [vmem:[%s233 + $0x18] sm:$0xf] %v246
                  %v248 = vld [vmem:[%s232 + $0x38] sm:$0xf]
                  %249 = vst [vmem:[%s233 + $0x1c] sm:$0xf] %v248
                $region59: #{tpu_custom_call.1} parent=46 // loop_footer
                  %s231 = sadd.s32 1, %s227
                $region60: #{tpu_custom_call.1} parent=46 // loop_footer_branch
                  %226 = sbr.rel target = $region56
                $region61: #{tpu_custom_call.1} parent=46 // loop_exit
                  _
              $region47: #{tpu_custom_call.1} parent=31 // pred_fallthru
                _
            $region32: #{tpu_custom_call.1} parent=27 // pred_fallthru
              _
            // Predicated region
            $region33: #{tpu_custom_call.1} parent=27 // pred_check
              _
            $region34: #{tpu_custom_call.1} parent=27 // pred_check_branch
              %189 = sbr.rel (0) target = $region36
            $region35: #{tpu_custom_call.1} parent=27 // pred_region
              loop: start=0, step=1, limit=1
              $region37: #{tpu_custom_call.1} parent=35 // loop_pre_header
                _
              $region38: #{tpu_custom_call.1} parent=35 // loop_header
                %s192 = sphi 0, %s196
                %p193 = scmp.ge.s32.totalorder %s192, 1
                %s197 = sphi %s183, %s183
                %s198 = sphi %s179, %s179
              $region39: #{tpu_custom_call.1} parent=35 // loop_header_branch
                %195 = sbr.rel (%p193) target = $region43
              $region40: #{tpu_custom_call.1} parent=35 // loop_body
                %v199 = vld [vmem:[%s197] sm:$0xf]
                %200 = vst [vmem:[%s198] sm:$0xf] %v199
                %v201 = vld [vmem:[%s197 + $0x8] sm:$0xf]
                %202 = vst [vmem:[%s198 + $0x4] sm:$0xf] %v201
                %v203 = vld [vmem:[%s197 + $0x10] sm:$0xf]
                %204 = vst [vmem:[%s198 + $0x8] sm:$0xf] %v203
                %v205 = vld [vmem:[%s197 + $0x18] sm:$0xf]
                %206 = vst [vmem:[%s198 + $0xc] sm:$0xf] %v205
                %v207 = vld [vmem:[%s197 + $0x20] sm:$0xf]
                %208 = vst [vmem:[%s198 + $0x10] sm:$0xf] %v207
                %v209 = vld [vmem:[%s197 + $0x28] sm:$0xf]
                %210 = vst [vmem:[%s198 + $0x14] sm:$0xf] %v209
                %v211 = vld [vmem:[%s197 + $0x30] sm:$0xf]
                %212 = vst [vmem:[%s198 + $0x18] sm:$0xf] %v211
                %v213 = vld [vmem:[%s197 + $0x38] sm:$0xf]
                %214 = vst [vmem:[%s198 + $0x1c] sm:$0xf] %v213
              $region41: #{tpu_custom_call.1} parent=35 // loop_footer
                %s196 = sadd.s32 1, %s192
              $region42: #{tpu_custom_call.1} parent=35 // loop_footer_branch
                %191 = sbr.rel target = $region38
              $region43: #{tpu_custom_call.1} parent=35 // loop_exit
                _
            $region36: #{tpu_custom_call.1} parent=27 // pred_fallthru
              _
          $region28: #{tpu_custom_call.1} parent=23 // pred_fallthru
            _
          %250 = vnop
        $region24: #{tpu_custom_call.1} parent=15 // pred_fallthru
          _
      $region16: #{tpu_custom_call.1} parent=5 // pred_fallthru
        _
      %p251 = scmp.le.s32.totalorder 1, %s10
      %p252 = scmp.lt.s32.totalorder %s10, 9
      %p253 = pnand %p251, %p252
      %p254 = pneg %p253
      // Predicated region
      $region62: #{tpu_custom_call.1} parent=5 // pred_check
        _
      $region63: #{tpu_custom_call.1} parent=5 // pred_check_branch
        %256 = sbr.rel (%p253) target = $region65
      $region64: #{tpu_custom_call.1} parent=5 // pred_region
        %s257 = ssub.s32 %s10, 1
        %s258 = sand.u32 %s72, 1
        %s259 = sand.u32 %s72, 1
        %s260 = smul.addr %s259, 32
        %s261 = scalar_lea.vmem [#allocation4], %s260
        // Predicated region
        $region66: #{tpu_custom_call.1} parent=64 // pred_check
          %p262 = pneg %p85
        $region67: #{tpu_custom_call.1} parent=64 // pred_check_branch
          %264 = sbr.rel (%p262) target = $region69
        $region68: #{tpu_custom_call.1} parent=64 // pred_region
          _
        $region69: #{tpu_custom_call.1} parent=64 // pred_fallthru
          _
        %s265 = smul.u32 16, %s21
        %p266 = scmp.lt.s32.totalorder %s20, 1
        %s267 = scalar_select %p266, %s20, 1
        %p268 = scmp.lt.s32.totalorder %s265, 31
        %s269 = scalar_select %p268, %s265, 31
        %s270 = smul.addr %s267, 32
        %s271 = sadd.s32 %s269, %s270
        %s272 = smul.addr %s271, 4
        %s273 = scalar_lea.vmem %s0, %s272
        %p274 = pneg %p57
        %p275 = pneg %p54
        %s276 = sand.u32 %s72, 1
        %s277 = sand.u32 %s72, 1
        %s278 = smul.addr %s277, 32
        %s279 = scalar_lea.vmem [#allocation4], %s278
        %p280 = pneg %p85
        %p281 = pneg %p82
        %p282 = pneg %p113
        %p283 = pneg %p110
        %s284 = smul.u32 16, %s21
        %p285 = scmp.lt.s32.totalorder %s20, 1
        %s286 = scalar_select %p285, %s20, 1
        %p287 = scmp.lt.s32.totalorder %s284, 31
        %s288 = scalar_select %p287, %s284, 31
        %s289 = smul.addr %s286, 32
        %s290 = sadd.s32 %s288, %s289
        %s291 = smul.addr %s290, 8
        %s292 = scalar_lea.vmem %s2, %s291
        %p293 = pneg %p141
        %p294 = pneg %p138
        %s295 = smul.u32 16, %s21
        %p296 = scmp.lt.s32.totalorder %s20, 1
        %s297 = scalar_select %p296, %s20, 1
        %p298 = scmp.lt.s32.totalorder %s295, 31
        %s299 = scalar_select %p298, %s295, 31
        %s300 = smul.addr %s297, 32
        %s301 = sadd.s32 %s299, %s300
        %s302 = smul.addr %s301, 8
        %s303 = scalar_lea.vmem %s3, %s302
        %s304 = smul.u32 16, %s21
        %p305 = scmp.lt.s32.totalorder %s20, 1
        %s306 = scalar_select %p305, %s20, 1
        %p307 = scmp.lt.s32.totalorder %s304, 31
        %s308 = scalar_select %p307, %s304, 31
        %s309 = smul.addr %s306, 32
        %s310 = sadd.s32 %s308, %s309
        %s311 = smul.addr %s310, 4
        %s312 = scalar_lea.vmem %s0, %s311
        %s313 = smul.u32 16, %s21
        %s314 = smul.u32 16, %s21
        %p315 = scmp.lt.s32.totalorder %s20, 1
        %s316 = scalar_select %p315, %s20, 1
        %p317 = scmp.lt.s32.totalorder %s314, 31
        %s318 = scalar_select %p317, %s314, 31
        %s319 = smul.addr %s316, 32
        %s320 = sadd.s32 %s318, %s319
        %s321 = smul.addr %s320, 8
        %s322 = scalar_lea.vmem %s2, %s321
        %s323 = smul.u32 16, %s21
        %s324 = smul.u32 16, %s21
        %p325 = scmp.lt.s32.totalorder %s20, 1
        %s326 = scalar_select %p325, %s20, 1
        %p327 = scmp.lt.s32.totalorder %s324, 31
        %s328 = scalar_select %p327, %s324, 31
        %s329 = smul.addr %s326, 32
        %s330 = sadd.s32 %s328, %s329
        %s331 = smul.addr %s330, 8
        %s332 = scalar_lea.vmem %s3, %s331
        %s333 = smul.u32 16, %s21
        %p335 = scmp.eq.s32.totalorder %s22, 0
        // Predicated region
        $region70: #{tpu_custom_call.1} parent=64 // pred_check
          %p336 = pneg %p335
        $region71: #{tpu_custom_call.1} parent=64 // pred_check_branch
          %338 = sbr.rel (%p336) target = $region73
        $region72: #{tpu_custom_call.1} parent=64 // pred_region
          %vm339 = vcmask 64512
          %340 = vst.msk [vmem:[#allocation2] sm:$0xff] %vm339, -inf
          %341 = vst.msk [vmem:[#allocation2 + $0x8] sm:$0xff] %vm339, -inf
          %342 = vst.msk [vmem:[#allocation2 + $0x10] sm:$0xff] %vm339, -inf
          %343 = vst.msk [vmem:[#allocation2 + $0x18] sm:$0xff] %vm339, -inf
          %344 = vst.msk [vmem:[#allocation2 + $0x20] sm:$0xff] %vm339, -inf
          %345 = vst.msk [vmem:[#allocation2 + $0x28] sm:$0xff] %vm339, -inf
          %346 = vst.msk [vmem:[#allocation2 + $0x30] sm:$0xff] %vm339, -inf
          %347 = vst.msk [vmem:[#allocation2 + $0x38] sm:$0xff] %vm339, -inf
          %348 = vst.msk [vmem:[#allocation2 + $0x40] sm:$0xff] %vm339, -inf
          %349 = vst.msk [vmem:[#allocation2 + $0x48] sm:$0xff] %vm339, -inf
          %350 = vst.msk [vmem:[#allocation2 + $0x50] sm:$0xff] %vm339, -inf
          %351 = vst.msk [vmem:[#allocation2 + $0x58] sm:$0xff] %vm339, -inf
          %352 = vst.msk [vmem:[#allocation2 + $0x60] sm:$0xff] %vm339, -inf
          %353 = vst.msk [vmem:[#allocation2 + $0x68] sm:$0xff] %vm339, -inf
          %354 = vst.msk [vmem:[#allocation2 + $0x70] sm:$0xff] %vm339, -inf
          %355 = vst.msk [vmem:[#allocation2 + $0x78] sm:$0xff] %vm339, -inf
          %356 = vst.msk [vmem:[#allocation3] sm:$0xff] %vm339, 0
          %357 = vst.msk [vmem:[#allocation3 + $0x8] sm:$0xff] %vm339, 0
          %358 = vst.msk [vmem:[#allocation3 + $0x10] sm:$0xff] %vm339, 0
          %359 = vst.msk [vmem:[#allocation3 + $0x18] sm:$0xff] %vm339, 0
          %360 = vst.msk [vmem:[#allocation3 + $0x20] sm:$0xff] %vm339, 0
          %361 = vst.msk [vmem:[#allocation3 + $0x28] sm:$0xff] %vm339, 0
          %362 = vst.msk [vmem:[#allocation3 + $0x30] sm:$0xff] %vm339, 0
          %363 = vst.msk [vmem:[#allocation3 + $0x38] sm:$0xff] %vm339, 0
          %364 = vst.msk [vmem:[#allocation3 + $0x40] sm:$0xff] %vm339, 0
          %365 = vst.msk [vmem:[#allocation3 + $0x48] sm:$0xff] %vm339, 0
          %366 = vst.msk [vmem:[#allocation3 + $0x50] sm:$0xff] %vm339, 0
          %367 = vst.msk [vmem:[#allocation3 + $0x58] sm:$0xff] %vm339, 0
          %368 = vst.msk [vmem:[#allocation3 + $0x60] sm:$0xff] %vm339, 0
          %369 = vst.msk [vmem:[#allocation3 + $0x68] sm:$0xff] %vm339, 0
          %370 = vst.msk [vmem:[#allocation3 + $0x70] sm:$0xff] %vm339, 0
          %371 = vst.msk [vmem:[#allocation3 + $0x78] sm:$0xff] %vm339, 0
        $region73: #{tpu_custom_call.1} parent=64 // pred_fallthru
          _
        %v372 = vld [vmem:[%s312] sm:$0xf]
        %v373 = vld [vmem:[%s312 + $0x4] sm:$0xf]
        %v374 = vld [vmem:[%s312 + $0x8] sm:$0xf]
        %v375 = vld [vmem:[%s312 + $0xc] sm:$0xf]
        %v376 = vld [vmem:[%s312 + $0x10] sm:$0xf]
        %v377 = vld [vmem:[%s312 + $0x14] sm:$0xf]
        %v378 = vld [vmem:[%s312 + $0x18] sm:$0xf]
        %v379 = vld [vmem:[%s312 + $0x1c] sm:$0xf]
        %v380 = vld [vmem:[%s312 + $0x20] sm:$0xf]
        %v381 = vld [vmem:[%s312 + $0x24] sm:$0xf]
        %v382 = vld [vmem:[%s312 + $0x28] sm:$0xf]
        %v383 = vld [vmem:[%s312 + $0x2c] sm:$0xf]
        %v384 = vld [vmem:[%s312 + $0x30] sm:$0xf]
        %v385 = vld [vmem:[%s312 + $0x34] sm:$0xf]
        %v386 = vld [vmem:[%s312 + $0x38] sm:$0xf]
        %v387 = vld [vmem:[%s312 + $0x3c] sm:$0xf]
        %v388 = vld [vmem:[%s261] sm:$0xf]
        %v389 = vld [vmem:[%s261 + $0x4] sm:$0xf]
        %v390 = vld [vmem:[%s261 + $0x8] sm:$0xf]
        %v391 = vld [vmem:[%s261 + $0xc] sm:$0xf]
        %v392 = vld [vmem:[%s261 + $0x10] sm:$0xf]
        %v393 = vld [vmem:[%s261 + $0x14] sm:$0xf]
        %v394 = vld [vmem:[%s261 + $0x18] sm:$0xf]
        %v395 = vld [vmem:[%s261 + $0x1c] sm:$0xf]
        %v412 = vunpack.c.l.b16 %v372
        %v413 = vunpack.c.l.b16 %v373
        %v414 = vunpack.c.l.b16 %v374
        %v415 = vunpack.c.l.b16 %v375
        %v416 = vunpack.c.l.b16 %v376
        %v417 = vunpack.c.l.b16 %v377
        %v418 = vunpack.c.l.b16 %v378
        %v419 = vunpack.c.l.b16 %v379
        %v420 = vunpack.c.l.b16 %v380
        %v421 = vunpack.c.l.b16 %v381
        %v422 = vunpack.c.l.b16 %v382
        %v423 = vunpack.c.l.b16 %v383
        %v424 = vunpack.c.l.b16 %v384
        %v425 = vunpack.c.l.b16 %v385
        %v426 = vunpack.c.l.b16 %v386
        %v427 = vunpack.c.l.b16 %v387
        %v428 = vpack.c.b16 %v413, %v412
        %v429 = vpack.c.b16 %v415, %v414
        %v430 = vpack.c.b16 %v417, %v416
        %v431 = vpack.c.b16 %v419, %v418
        %v432 = vpack.c.b16 %v421, %v420
        %v433 = vpack.c.b16 %v423, %v422
        %v434 = vpack.c.b16 %v425, %v424
        %v435 = vpack.c.b16 %v427, %v426
        %v444 = vunpack.c.l.b16 %v388
        %v445 = vunpack.c.l.b16 %v389
        %v446 = vunpack.c.l.b16 %v390
        %v447 = vunpack.c.l.b16 %v391
        %v448 = vunpack.c.l.b16 %v392
        %v449 = vunpack.c.l.b16 %v393
        %v450 = vunpack.c.l.b16 %v394
        %v451 = vunpack.c.l.b16 %v395
        %v452 = vpack.c.b16 %v445, %v444
        %v453 = vpack.c.b16 %v447, %v446
        %v454 = vpack.c.b16 %v449, %v448
        %v455 = vpack.c.b16 %v451, %v450
        %vm460 = vcmask 523264
        %v462 = vsel %vm460, %v428, 0
        %v465 = vsel %vm460, %v429, 0
        %v468 = vsel %vm460, %v430, 0
        %v471 = vsel %vm460, %v431, 0
        %v474 = vsel %vm460, %v432, 0
        %v477 = vsel %vm460, %v433, 0
        %v480 = vsel %vm460, %v434, 0
        %v483 = vsel %vm460, %v435, 0
        %485 = vmatprep.subr.bf16.mxu0 0
        %486 = vmatpush1.bf16.msra.mxu0 %v452
        %487 = vmatprep.subr.bf16.mxu0 0
        %488 = vmatpush1.bf16.msra.mxu0 %v453
        %489 = vmatprep.subr.bf16.mxu0 0
        %490 = vmatpush1.bf16.msra.mxu0 %v454
        %491 = vmatprep.subr.bf16.mxu0 0
        %492 = vmatpush1.bf16.msra.mxu0 %v455
        %493 = vmatprep.subr.bf16.mxu0 0
        %494 = vmatpush1.bf16.msra.mxu0 0
        %495 = vmatprep.subr.bf16.mxu0 0
        %496 = vmatpush1.bf16.msra.mxu0 0
        %497 = vmatprep.subr.bf16.mxu0 0
        %498 = vmatpush1.bf16.msra.mxu0 0
        %499 = vmatprep.subr.bf16.mxu0 0
        %500 = vmatpush1.bf16.msra.mxu0 0
        %501 = vmatprep.subr.bf16.mxu0 0
        %502 = vmatpush1.bf16.msra.mxu0 0
        %503 = vmatprep.subr.bf16.mxu0 0
        %504 = vmatpush1.bf16.msra.mxu0 0
        %505 = vmatprep.subr.bf16.mxu0 0
        %506 = vmatpush1.bf16.msra.mxu0 0
        %507 = vmatprep.subr.bf16.mxu0 0
        %508 = vmatpush1.bf16.msra.mxu0 0
        %509 = vmatprep.subr.bf16.mxu0 0
        %510 = vmatpush1.bf16.msra.mxu0 0
        %511 = vmatprep.subr.bf16.mxu0 0
        %512 = vmatpush1.bf16.msra.mxu0 0
        %513 = vmatprep.subr.bf16.mxu0 0
        %514 = vmatpush1.bf16.msra.mxu0 0
        %515 = vmatprep.subr.bf16.mxu0 0
        %516 = vmatpush1.bf16.msra.mxu0 0
        %517 = vmatprep.mubr.bf16.mxu0 0
        %518 = vmatmul.mubr.bf16.gmra.mrb[0].mxu0 %v462
        %v519 = vpop.f32.mrb[0].mxu0
        %v520 = vadd.f32 0.0, %v519
        %v521 = vpop.f32.mrb[0].mxu0
        %v522 = vpop.f32.mrb[0].mxu0
        %v523 = vadd.f32 0.0, %v522
        %v524 = vpop.f32.mrb[0].mxu0
        %525 = vmatprep.mubr.bf16.mxu0 0
        %526 = vmatmul.mubr.bf16.gmra.mrb[0].mxu0 %v465
        %v527 = vpop.f32.mrb[0].mxu0
        %v528 = vadd.f32 0.0, %v527
        %v529 = vpop.f32.mrb[0].mxu0
        %v530 = vpop.f32.mrb[0].mxu0
        %v531 = vadd.f32 0.0, %v530
        %v532 = vpop.f32.mrb[0].mxu0
        %533 = vmatprep.mubr.bf16.mxu0 0
        %534 = vmatmul.mubr.bf16.gmra.mrb[0].mxu0 %v468
        %v535 = vpop.f32.mrb[0].mxu0
        %v536 = vadd.f32 0.0, %v535
        %v537 = vpop.f32.mrb[0].mxu0
        %v538 = vpop.f32.mrb[0].mxu0
        %v539 = vadd.f32 0.0, %v538
        %v540 = vpop.f32.mrb[0].mxu0
        %541 = vmatprep.mubr.bf16.mxu0 0
        %542 = vmatmul.mubr.bf16.gmra.mrb[0].mxu0 %v471
        %v543 = vpop.f32.mrb[0].mxu0
        %v544 = vadd.f32 0.0, %v543
        %v545 = vpop.f32.mrb[0].mxu0
        %v546 = vpop.f32.mrb[0].mxu0
        %v547 = vadd.f32 0.0, %v546
        %v548 = vpop.f32.mrb[0].mxu0
        %549 = vmatprep.mubr.bf16.mxu0 0
        %550 = vmatmul.mubr.bf16.gmra.mrb[0].mxu0 %v474
        %v551 = vpop.f32.mrb[0].mxu0
        %v552 = vadd.f32 0.0, %v551
        %v553 = vpop.f32.mrb[0].mxu0
        %v554 = vpop.f32.mrb[0].mxu0
        %v555 = vadd.f32 0.0, %v554
        %v556 = vpop.f32.mrb[0].mxu0
        %557 = vmatprep.mubr.bf16.mxu0 0
        %558 = vmatmul.mubr.bf16.gmra.mrb[0].mxu0 %v477
        %v559 = vpop.f32.mrb[0].mxu0
        %v560 = vadd.f32 0.0, %v559
        %v561 = vpop.f32.mrb[0].mxu0
        %v562 = vpop.f32.mrb[0].mxu0
        %v563 = vadd.f32 0.0, %v562
        %v564 = vpop.f32.mrb[0].mxu0
        %565 = vmatprep.mubr.bf16.mxu0 0
        %566 = vmatmul.mubr.bf16.gmra.mrb[0].mxu0 %v480
        %v567 = vpop.f32.mrb[0].mxu0
        %v568 = vadd.f32 0.0, %v567
        %v569 = vpop.f32.mrb[0].mxu0
        %v570 = vpop.f32.mrb[0].mxu0
        %v571 = vadd.f32 0.0, %v570
        %v572 = vpop.f32.mrb[0].mxu0
        %573 = vmatprep.mubr.bf16.mxu0 0
        %574 = vmatmul.mubr.bf16.gmra.mrb[0].mxu0 %v483
        %v575 = vpop.f32.mrb[0].mxu0
        %v576 = vadd.f32 0.0, %v575
        %v577 = vpop.f32.mrb[0].mxu0
        %v578 = vpop.f32.mrb[0].mxu0
        %v579 = vadd.f32 0.0, %v578
        %v580 = vpop.f32.mrb[0].mxu0
        %581 = vdwg.mxu0
        %s582 = smul.u32 %s22, 128
        %v583 = vlaneseq
        %v584 = vand.u32 %v583, 127
        %v585 = vstv %s582
        %v586 = vadd.s32 %v585, %v584
        %vm587 = vcmp.lt.s32.totalorder %v586, 144
        %v588 = vsel %vm587, %v520, -inf
        %v589 = vsel %vm587, %v523, -inf
        %v590 = vsel %vm587, %v528, -inf
        %v591 = vsel %vm587, %v531, -inf
        %v592 = vsel %vm587, %v536, -inf
        %v593 = vsel %vm587, %v539, -inf
        %v594 = vsel %vm587, %v544, -inf
        %v595 = vsel %vm587, %v547, -inf
        %v596 = vsel %vm587, %v552, -inf
        %v597 = vsel %vm587, %v555, -inf
        %v598 = vsel %vm587, %v560, -inf
        %v599 = vsel %vm587, %v563, -inf
        %v600 = vsel %vm587, %v568, -inf
        %v601 = vsel %vm587, %v571, -inf
        %v602 = vsel %vm587, %v576, -inf
        %v603 = vsel %vm587, %v579, -inf
        %v604 = vmax.f32 %v588, %v592
        %v605 = vmax.f32 %v589, %v593
        %v606 = vmax.f32 %v590, %v594
        %v607 = vmax.f32 %v591, %v595
        %v608 = vmax.f32 %v604, %v596
        %v609 = vmax.f32 %v605, %v597
        %v610 = vmax.f32 %v606, %v598
        %v611 = vmax.f32 %v607, %v599
        %v612 = vmax.f32 %v608, %v600
        %v613 = vmax.f32 %v609, %v601
        %v614 = vmax.f32 %v610, %v602
        %v615 = vmax.f32 %v611, %v603
        %v616 = vmax.f32 %v612, %v613
        %v617 = vmax.f32 %v614, %v615
        %v618 = vmax.f32 %v616, %v617
        %619 = vmax.xlane.f32.xlu0 %v618
        %v620 = vpop.xlane.xlu0 %619
        %v621 = vrot.slane %v620, 4
        %v622 = vmax.f32 %v620, %v621
        %v623 = vrot.slane %v622, 2
        %v624 = vmax.f32 %v622, %v623
        %v625 = vrot.slane %v624, 1
        %v626 = vmax.f32 %v624, %v625
        %s627 = vtos %v626
        %v628 = vld [vmem:[#allocation2] sm:$0xff]
        %v629 = vld [vmem:[#allocation2 + $0x8] sm:$0xff]
        %v630 = vld [vmem:[#allocation2 + $0x10] sm:$0xff]
        %v631 = vld [vmem:[#allocation2 + $0x18] sm:$0xff]
        %v632 = vld [vmem:[#allocation2 + $0x20] sm:$0xff]
        %v633 = vld [vmem:[#allocation2 + $0x28] sm:$0xff]
        %v634 = vld [vmem:[#allocation2 + $0x30] sm:$0xff]
        %v635 = vld [vmem:[#allocation2 + $0x38] sm:$0xff]
        %v636 = vld [vmem:[#allocation2 + $0x40] sm:$0xff]
        %v637 = vld [vmem:[#allocation2 + $0x48] sm:$0xff]
        %v638 = vld [vmem:[#allocation2 + $0x50] sm:$0xff]
        %v639 = vld [vmem:[#allocation2 + $0x58] sm:$0xff]
        %v640 = vld [vmem:[#allocation2 + $0x60] sm:$0xff]
        %v641 = vld [vmem:[#allocation2 + $0x68] sm:$0xff]
        %v642 = vld [vmem:[#allocation2 + $0x70] sm:$0xff]
        %v643 = vld [vmem:[#allocation2 + $0x78] sm:$0xff]
        %vm644 = vcmask 64512
        %v645 = vsel %vm644, %v628, inf
        %v646 = vsel %vm644, %v629, inf
        %v647 = vsel %vm644, %v630, inf
        %v648 = vsel %vm644, %v631, inf
        %v649 = vsel %vm644, %v632, inf
        %v650 = vmin.f32 %v645, %v649
        %v651 = vsel %vm644, %v633, inf
        %v652 = vmin.f32 %v646, %v651
        %v653 = vsel %vm644, %v634, inf
        %v654 = vmin.f32 %v647, %v653
        %v655 = vsel %vm644, %v635, inf
        %v656 = vmin.f32 %v648, %v655
        %v657 = vsel %vm644, %v636, inf
        %v658 = vmin.f32 %v650, %v657
        %v659 = vsel %vm644, %v637, inf
        %v660 = vmin.f32 %v652, %v659
        %v661 = vsel %vm644, %v638, inf
        %v662 = vmin.f32 %v654, %v661
        %v663 = vsel %vm644, %v639, inf
        %v664 = vmin.f32 %v656, %v663
        %v665 = vsel %vm644, %v640, inf
        %v666 = vmin.f32 %v658, %v665
        %v667 = vsel %vm644, %v641, inf
        %v668 = vmin.f32 %v660, %v667
        %v669 = vsel %vm644, %v642, inf
        %v670 = vmin.f32 %v662, %v669
        %v671 = vsel %vm644, %v643, inf
        %v672 = vmin.f32 %v664, %v671
        %v673 = vmin.f32 %v666, %v668
        %v674 = vmin.f32 %v670, %v672
        %v675 = vmin.f32 %v673, %v674
        %676 = vmin.xlane.f32.xlu0 %v675
        %v677 = vpop.xlane.xlu0 %676
        %v678 = vrot.slane %v677, 4
        %v679 = vmin.f32 %v677, %v678
        %v680 = vrot.slane %v679, 2
        %v681 = vmin.f32 %v679, %v680
        %v682 = vrot.slane %v681, 1
        %v683 = vmin.f32 %v681, %v682
        %s684 = vtos %v683
        %p685 = scmp.gt.f32.partialorder %s627, %s684
        // Predicated region
        $region74: #{tpu_custom_call.1} parent=64 // pred_check
          %p686 = pneg %p685
        $region75: #{tpu_custom_call.1} parent=64 // pred_check_branch
          %688 = sbr.rel (%p686) target = $region77
        $region76: #{tpu_custom_call.1} parent=64 // pred_region
          %689 = vmax.xlane.f32.xlu0 %v588
          %v690 = vpop.xlane.xlu0 %689
          %691 = vmax.xlane.f32.xlu0 %v589
          %v692 = vpop.xlane.xlu0 %691
          %693 = vmax.xlane.f32.xlu0 %v590
          %v694 = vpop.xlane.xlu0 %693
          %695 = vmax.xlane.f32.xlu0 %v591
          %v696 = vpop.xlane.xlu0 %695
          %697 = vmax.xlane.f32.xlu0 %v592
          %v698 = vpop.xlane.xlu0 %697
          %699 = vmax.xlane.f32.xlu0 %v593
          %v700 = vpop.xlane.xlu0 %699
          %701 = vmax.xlane.f32.xlu0 %v594
          %v702 = vpop.xlane.xlu0 %701
          %703 = vmax.xlane.f32.xlu0 %v595
          %v704 = vpop.xlane.xlu0 %703
          %705 = vmax.xlane.f32.xlu0 %v596
          %v706 = vpop.xlane.xlu0 %705
          %707 = vmax.xlane.f32.xlu0 %v597
          %v708 = vpop.xlane.xlu0 %707
          %709 = vmax.xlane.f32.xlu0 %v598
          %v710 = vpop.xlane.xlu0 %709
          %711 = vmax.xlane.f32.xlu0 %v599
          %v712 = vpop.xlane.xlu0 %711
          %713 = vmax.xlane.f32.xlu0 %v600
          %v714 = vpop.xlane.xlu0 %713
          %715 = vmax.xlane.f32.xlu0 %v601
          %v716 = vpop.xlane.xlu0 %715
          %717 = vmax.xlane.f32.xlu0 %v602
          %v718 = vpop.xlane.xlu0 %717
          %719 = vmax.xlane.f32.xlu0 %v603
          %v720 = vpop.xlane.xlu0 %719
          %vm721 = vcmp.eq.f32.partialorder %v588, %v690
          %vm722 = vcmp.eq.f32.partialorder %v589, %v692
          %vm723 = vcmp.eq.f32.partialorder %v590, %v694
          %vm724 = vcmp.eq.f32.partialorder %v591, %v696
          %vm725 = vcmp.eq.f32.partialorder %v592, %v698
          %vm726 = vcmp.eq.f32.partialorder %v593, %v700
          %vm727 = vcmp.eq.f32.partialorder %v594, %v702
          %vm728 = vcmp.eq.f32.partialorder %v595, %v704
          %vm729 = vcmp.eq.f32.partialorder %v596, %v706
          %vm730 = vcmp.eq.f32.partialorder %v597, %v708
          %vm731 = vcmp.eq.f32.partialorder %v598, %v710
          %vm732 = vcmp.eq.f32.partialorder %v599, %v712
          %vm733 = vcmp.eq.f32.partialorder %v600, %v714
          %vm734 = vcmp.eq.f32.partialorder %v601, %v716
          %vm735 = vcmp.eq.f32.partialorder %v602, %v718
          %vm736 = vcmp.eq.f32.partialorder %v603, %v720
          %v737 = vsel %vm721, %v586, 2147483647
          %v738 = vsel %vm722, %v586, 2147483647
          %v739 = vsel %vm723, %v586, 2147483647
          %v740 = vsel %vm724, %v586, 2147483647
          %v741 = vsel %vm725, %v586, 2147483647
          %v742 = vsel %vm726, %v586, 2147483647
          %v743 = vsel %vm727, %v586, 2147483647
          %v744 = vsel %vm728, %v586, 2147483647
          %v745 = vsel %vm729, %v586, 2147483647
          %v746 = vsel %vm730, %v586, 2147483647
          %v747 = vsel %vm731, %v586, 2147483647
          %v748 = vsel %vm732, %v586, 2147483647
          %v749 = vsel %vm733, %v586, 2147483647
          %v750 = vsel %vm734, %v586, 2147483647
          %v751 = vsel %vm735, %v586, 2147483647
          %v752 = vsel %vm736, %v586, 2147483647
          %v753 = vand.u32 %v737, 65535
          %v754 = vshra.s32 %v737, 16
          %v755 = vcvt.s32.f32 %v753
          %v756 = vcvt.s32.f32 %v754
          %757 = vmin.xlane.f32.xlu0 %v756
          %v758 = vpop.xlane.xlu0 %757
          %vm759 = vcmp.eq.f32.partialorder %v756, %v758
          %v760 = vsel %vm759, %v755, inf
          %761 = vmin.xlane.f32.xlu0 %v760
          %v762 = vpop.xlane.xlu0 %761
          %v763 = vcvt.f32.s32 %v762
          %v764 = vcvt.f32.s32 %v758
          %v765 = vshll.u32 %v764, 16
          %v766 = vadd.s32 %v765, %v763
          %v767 = vand.u32 %v738, 65535
          %v768 = vshra.s32 %v738, 16
          %v769 = vcvt.s32.f32 %v767
          %v770 = vcvt.s32.f32 %v768
          %771 = vmin.xlane.f32.xlu0 %v770
          %v772 = vpop.xlane.xlu0 %771
          %vm773 = vcmp.eq.f32.partialorder %v770, %v772
          %v774 = vsel %vm773, %v769, inf
          %775 = vmin.xlane.f32.xlu0 %v774
          %v776 = vpop.xlane.xlu0 %775
          %v777 = vcvt.f32.s32 %v776
          %v778 = vcvt.f32.s32 %v772
          %v779 = vshll.u32 %v778, 16
          %v780 = vadd.s32 %v779, %v777
          %v781 = vand.u32 %v739, 65535
          %v782 = vshra.s32 %v739, 16
          %v783 = vcvt.s32.f32 %v781
          %v784 = vcvt.s32.f32 %v782
          %785 = vmin.xlane.f32.xlu0 %v784
          %v786 = vpop.xlane.xlu0 %785
          %vm787 = vcmp.eq.f32.partialorder %v784, %v786
          %v788 = vsel %vm787, %v783, inf
          %789 = vmin.xlane.f32.xlu0 %v788
          %v790 = vpop.xlane.xlu0 %789
          %v791 = vcvt.f32.s32 %v790
          %v792 = vcvt.f32.s32 %v786
          %v793 = vshll.u32 %v792, 16
          %v794 = vadd.s32 %v793, %v791
          %v795 = vand.u32 %v740, 65535
          %v796 = vshra.s32 %v740, 16
          %v797 = vcvt.s32.f32 %v795
          %v798 = vcvt.s32.f32 %v796
          %799 = vmin.xlane.f32.xlu0 %v798
          %v800 = vpop.xlane.xlu0 %799
          %vm801 = vcmp.eq.f32.partialorder %v798, %v800
          %v802 = vsel %vm801, %v797, inf
          %803 = vmin.xlane.f32.xlu0 %v802
          %v804 = vpop.xlane.xlu0 %803
          %v805 = vcvt.f32.s32 %v804
          %v806 = vcvt.f32.s32 %v800
          %v807 = vshll.u32 %v806, 16
          %v808 = vadd.s32 %v807, %v805
          %v809 = vand.u32 %v741, 65535
          %v810 = vshra.s32 %v741, 16
          %v811 = vcvt.s32.f32 %v809
          %v812 = vcvt.s32.f32 %v810
          %813 = vmin.xlane.f32.xlu0 %v812
          %v814 = vpop.xlane.xlu0 %813
          %vm815 = vcmp.eq.f32.partialorder %v812, %v814
          %v816 = vsel %vm815, %v811, inf
          %817 = vmin.xlane.f32.xlu0 %v816
          %v818 = vpop.xlane.xlu0 %817
          %v819 = vcvt.f32.s32 %v818
          %v820 = vcvt.f32.s32 %v814
          %v821 = vshll.u32 %v820, 16
          %v822 = vadd.s32 %v821, %v819
          %v823 = vand.u32 %v742, 65535
          %v824 = vshra.s32 %v742, 16
          %v825 = vcvt.s32.f32 %v823
          %v826 = vcvt.s32.f32 %v824
          %827 = vmin.xlane.f32.xlu0 %v826
          %v828 = vpop.xlane.xlu0 %827
          %vm829 = vcmp.eq.f32.partialorder %v826, %v828
          %v830 = vsel %vm829, %v825, inf
          %831 = vmin.xlane.f32.xlu0 %v830
          %v832 = vpop.xlane.xlu0 %831
          %v833 = vcvt.f32.s32 %v832
          %v834 = vcvt.f32.s32 %v828
          %v835 = vshll.u32 %v834, 16
          %v836 = vadd.s32 %v835, %v833
          %v837 = vand.u32 %v743, 65535
          %v838 = vshra.s32 %v743, 16
          %v839 = vcvt.s32.f32 %v837
          %v840 = vcvt.s32.f32 %v838
          %841 = vmin.xlane.f32.xlu0 %v840
          %v842 = vpop.xlane.xlu0 %841
          %vm843 = vcmp.eq.f32.partialorder %v840, %v842
          %v844 = vsel %vm843, %v839, inf
          %845 = vmin.xlane.f32.xlu0 %v844
          %v846 = vpop.xlane.xlu0 %845
          %v847 = vcvt.f32.s32 %v846
          %v848 = vcvt.f32.s32 %v842
          %v849 = vshll.u32 %v848, 16
          %v850 = vadd.s32 %v849, %v847
          %v851 = vand.u32 %v744, 65535
          %v852 = vshra.s32 %v744, 16
          %v853 = vcvt.s32.f32 %v851
          %v854 = vcvt.s32.f32 %v852
          %855 = vmin.xlane.f32.xlu0 %v854
          %v856 = vpop.xlane.xlu0 %855
          %vm857 = vcmp.eq.f32.partialorder %v854, %v856
          %v858 = vsel %vm857, %v853, inf
          %859 = vmin.xlane.f32.xlu0 %v858
          %v860 = vpop.xlane.xlu0 %859
          %v861 = vcvt.f32.s32 %v860
          %v862 = vcvt.f32.s32 %v856
          %v863 = vshll.u32 %v862, 16
          %v864 = vadd.s32 %v863, %v861
          %v865 = vand.u32 %v745, 65535
          %v866 = vshra.s32 %v745, 16
          %v867 = vcvt.s32.f32 %v865
          %v868 = vcvt.s32.f32 %v866
          %869 = vmin.xlane.f32.xlu0 %v868
          %v870 = vpop.xlane.xlu0 %869
          %vm871 = vcmp.eq.f32.partialorder %v868, %v870
          %v872 = vsel %vm871, %v867, inf
          %873 = vmin.xlane.f32.xlu0 %v872
          %v874 = vpop.xlane.xlu0 %873
          %v875 = vcvt.f32.s32 %v874
          %v876 = vcvt.f32.s32 %v870
          %v877 = vshll.u32 %v876, 16
          %v878 = vadd.s32 %v877, %v875
          %v879 = vand.u32 %v746, 65535
          %v880 = vshra.s32 %v746, 16
          %v881 = vcvt.s32.f32 %v879
          %v882 = vcvt.s32.f32 %v880
          %883 = vmin.xlane.f32.xlu0 %v882
          %v884 = vpop.xlane.xlu0 %883
          %vm885 = vcmp.eq.f32.partialorder %v882, %v884
          %v886 = vsel %vm885, %v881, inf
          %887 = vmin.xlane.f32.xlu0 %v886
          %v888 = vpop.xlane.xlu0 %887
          %v889 = vcvt.f32.s32 %v888
          %v890 = vcvt.f32.s32 %v884
          %v891 = vshll.u32 %v890, 16
          %v892 = vadd.s32 %v891, %v889
          %v893 = vand.u32 %v747, 65535
          %v894 = vshra.s32 %v747, 16
          %v895 = vcvt.s32.f32 %v893
          %v896 = vcvt.s32.f32 %v894
          %897 = vmin.xlane.f32.xlu0 %v896
          %v898 = vpop.xlane.xlu0 %897
          %vm899 = vcmp.eq.f32.partialorder %v896, %v898
          %v900 = vsel %vm899, %v895, inf
          %901 = vmin.xlane.f32.xlu0 %v900
          %v902 = vpop.xlane.xlu0 %901
          %v903 = vcvt.f32.s32 %v902
          %v904 = vcvt.f32.s32 %v898
          %v905 = vshll.u32 %v904, 16
          %v906 = vadd.s32 %v905, %v903
          %v907 = vand.u32 %v748, 65535
          %v908 = vshra.s32 %v748, 16
          %v909 = vcvt.s32.f32 %v907
          %v910 = vcvt.s32.f32 %v908
          %911 = vmin.xlane.f32.xlu0 %v910
          %v912 = vpop.xlane.xlu0 %911
          %vm913 = vcmp.eq.f32.partialorder %v910, %v912
          %v914 = vsel %vm913, %v909, inf
          %915 = vmin.xlane.f32.xlu0 %v914
          %v916 = vpop.xlane.xlu0 %915
          %v917 = vcvt.f32.s32 %v916
          %v918 = vcvt.f32.s32 %v912
          %v919 = vshll.u32 %v918, 16
          %v920 = vadd.s32 %v919, %v917
          %v921 = vand.u32 %v749, 65535
          %v922 = vshra.s32 %v749, 16
          %v923 = vcvt.s32.f32 %v921
          %v924 = vcvt.s32.f32 %v922
          %925 = vmin.xlane.f32.xlu0 %v924
          %v926 = vpop.xlane.xlu0 %925
          %vm927 = vcmp.eq.f32.partialorder %v924, %v926
          %v928 = vsel %vm927, %v923, inf
          %929 = vmin.xlane.f32.xlu0 %v928
          %v930 = vpop.xlane.xlu0 %929
          %v931 = vcvt.f32.s32 %v930
          %v932 = vcvt.f32.s32 %v926
          %v933 = vshll.u32 %v932, 16
          %v934 = vadd.s32 %v933, %v931
          %v935 = vand.u32 %v750, 65535
          %v936 = vshra.s32 %v750, 16
          %v937 = vcvt.s32.f32 %v935
          %v938 = vcvt.s32.f32 %v936
          %939 = vmin.xlane.f32.xlu0 %v938
          %v940 = vpop.xlane.xlu0 %939
          %vm941 = vcmp.eq.f32.partialorder %v938, %v940
          %v942 = vsel %vm941, %v937, inf
          %943 = vmin.xlane.f32.xlu0 %v942
          %v944 = vpop.xlane.xlu0 %943
          %v945 = vcvt.f32.s32 %v944
          %v946 = vcvt.f32.s32 %v940
          %v947 = vshll.u32 %v946, 16
          %v948 = vadd.s32 %v947, %v945
          %v949 = vand.u32 %v751, 65535
          %v950 = vshra.s32 %v751, 16
          %v951 = vcvt.s32.f32 %v949
          %v952 = vcvt.s32.f32 %v950
          %953 = vmin.xlane.f32.xlu0 %v952
          %v954 = vpop.xlane.xlu0 %953
          %vm955 = vcmp.eq.f32.partialorder %v952, %v954
          %v956 = vsel %vm955, %v951, inf
          %957 = vmin.xlane.f32.xlu0 %v956
          %v958 = vpop.xlane.xlu0 %957
          %v959 = vcvt.f32.s32 %v958
          %v960 = vcvt.f32.s32 %v954
          %v961 = vshll.u32 %v960, 16
          %v962 = vadd.s32 %v961, %v959
          %v963 = vand.u32 %v752, 65535
          %v964 = vshra.s32 %v752, 16
          %v965 = vcvt.s32.f32 %v963
          %v966 = vcvt.s32.f32 %v964
          %967 = vmin.xlane.f32.xlu0 %v966
          %v968 = vpop.xlane.xlu0 %967
          %vm969 = vcmp.eq.f32.partialorder %v966, %v968
          %v970 = vsel %vm969, %v965, inf
          %971 = vmin.xlane.f32.xlu0 %v970
          %v972 = vpop.xlane.xlu0 %971
          %v973 = vcvt.f32.s32 %v972
          %v974 = vcvt.f32.s32 %v968
          %v975 = vshll.u32 %v974, 16
          %v976 = vadd.s32 %v975, %v973
          %vm977 = vcmp.eq.s32.totalorder %v586, %v766
          %vm978 = vcmp.eq.s32.totalorder %v586, %v780
          %vm979 = vcmp.eq.s32.totalorder %v586, %v794
          %vm980 = vcmp.eq.s32.totalorder %v586, %v808
          %vm981 = vcmp.eq.s32.totalorder %v586, %v822
          %vm982 = vcmp.eq.s32.totalorder %v586, %v836
          %vm983 = vcmp.eq.s32.totalorder %v586, %v850
          %vm984 = vcmp.eq.s32.totalorder %v586, %v864
          %vm985 = vcmp.eq.s32.totalorder %v586, %v878
          %vm986 = vcmp.eq.s32.totalorder %v586, %v892
          %vm987 = vcmp.eq.s32.totalorder %v586, %v906
          %vm988 = vcmp.eq.s32.totalorder %v586, %v920
          %vm989 = vcmp.eq.s32.totalorder %v586, %v934
          %vm990 = vcmp.eq.s32.totalorder %v586, %v948
          %vm991 = vcmp.eq.s32.totalorder %v586, %v962
          %vm992 = vcmp.eq.s32.totalorder %v586, %v976
          %v993 = vsel %vm977, -inf, %v588
          %v994 = vsel %vm978, -inf, %v589
          %v995 = vsel %vm979, -inf, %v590
          %v996 = vsel %vm980, -inf, %v591
          %v997 = vsel %vm981, -inf, %v592
          %v998 = vsel %vm982, -inf, %v593
          %v999 = vsel %vm983, -inf, %v594
          %v1000 = vsel %vm984, -inf, %v595
          %v1001 = vsel %vm985, -inf, %v596
          %v1002 = vsel %vm986, -inf, %v597
          %v1003 = vsel %vm987, -inf, %v598
          %v1004 = vsel %vm988, -inf, %v599
          %v1005 = vsel %vm989, -inf, %v600
          %v1006 = vsel %vm990, -inf, %v601
          %v1007 = vsel %vm991, -inf, %v602
          %v1008 = vsel %vm992, -inf, %v603
          %1009 = vmax.xlane.f32.xlu0 %v993
          %v1010 = vpop.xlane.xlu0 %1009
          %1011 = vmax.xlane.f32.xlu0 %v994
          %v1012 = vpop.xlane.xlu0 %1011
          %1013 = vmax.xlane.f32.xlu0 %v995
          %v1014 = vpop.xlane.xlu0 %1013
          %1015 = vmax.xlane.f32.xlu0 %v996
          %v1016 = vpop.xlane.xlu0 %1015
          %1017 = vmax.xlane.f32.xlu0 %v997
          %v1018 = vpop.xlane.xlu0 %1017
          %1019 = vmax.xlane.f32.xlu0 %v998
          %v1020 = vpop.xlane.xlu0 %1019
          %1021 = vmax.xlane.f32.xlu0 %v999
          %v1022 = vpop.xlane.xlu0 %1021
          %1023 = vmax.xlane.f32.xlu0 %v1000
          %v1024 = vpop.xlane.xlu0 %1023
          %1025 = vmax.xlane.f32.xlu0 %v1001
          %v1026 = vpop.xlane.xlu0 %1025
          %1027 = vmax.xlane.f32.xlu0 %v1002
          %v1028 = vpop.xlane.xlu0 %1027
          %1029 = vmax.xlane.f32.xlu0 %v1003
          %v1030 = vpop.xlane.xlu0 %1029
          %1031 = vmax.xlane.f32.xlu0 %v1004
          %v1032 = vpop.xlane.xlu0 %1031
          %1033 = vmax.xlane.f32.xlu0 %v1005
          %v1034 = vpop.xlane.xlu0 %1033
          %1035 = vmax.xlane.f32.xlu0 %v1006
          %v1036 = vpop.xlane.xlu0 %1035
          %1037 = vmax.xlane.f32.xlu0 %v1007
          %v1038 = vpop.xlane.xlu0 %1037
          %1039 = vmax.xlane.f32.xlu0 %v1008
          %v1040 = vpop.xlane.xlu0 %1039
          %vm1041 = vcmp.eq.f32.partialorder %v993, %v1010
          %vm1042 = vcmp.eq.f32.partialorder %v994, %v1012
          %vm1043 = vcmp.eq.f32.partialorder %v995, %v1014
          %vm1044 = vcmp.eq.f32.partialorder %v996, %v1016
          %vm1045 = vcmp.eq.f32.partialorder %v997, %v1018
          %vm1046 = vcmp.eq.f32.partialorder %v998, %v1020
          %vm1047 = vcmp.eq.f32.partialorder %v999, %v1022
          %vm1048 = vcmp.eq.f32.partialorder %v1000, %v1024
          %vm1049 = vcmp.eq.f32.partialorder %v1001, %v1026
          %vm1050 = vcmp.eq.f32.partialorder %v1002, %v1028
          %vm1051 = vcmp.eq.f32.partialorder %v1003, %v1030
          %vm1052 = vcmp.eq.f32.partialorder %v1004, %v1032
          %vm1053 = vcmp.eq.f32.partialorder %v1005, %v1034
          %vm1054 = vcmp.eq.f32.partialorder %v1006, %v1036
          %vm1055 = vcmp.eq.f32.partialorder %v1007, %v1038
          %vm1056 = vcmp.eq.f32.partialorder %v1008, %v1040
          %v1057 = vsel %vm1041, %v586, 2147483647
          %v1058 = vsel %vm1042, %v586, 2147483647
          %v1059 = vsel %vm1043, %v586, 2147483647
          %v1060 = vsel %vm1044, %v586, 2147483647
          %v1061 = vsel %vm1045, %v586, 2147483647
          %v1062 = vsel %vm1046, %v586, 2147483647
          %v1063 = vsel %vm1047, %v586, 2147483647
          %v1064 = vsel %vm1048, %v586, 2147483647
          %v1065 = vsel %vm1049, %v586, 2147483647
          %v1066 = vsel %vm1050, %v586, 2147483647
          %v1067 = vsel %vm1051, %v586, 2147483647
          %v1068 = vsel %vm1052, %v586, 2147483647
          %v1069 = vsel %vm1053, %v586, 2147483647
          %v1070 = vsel %vm1054, %v586, 2147483647
          %v1071 = vsel %vm1055, %v586, 2147483647
          %v1072 = vsel %vm1056, %v586, 2147483647
          %v1073 = vand.u32 %v1057, 65535
          %v1074 = vshra.s32 %v1057, 16
          %v1075 = vcvt.s32.f32 %v1073
          %v1076 = vcvt.s32.f32 %v1074
          %1077 = vmin.xlane.f32.xlu0 %v1076
          %v1078 = vpop.xlane.xlu0 %1077
          %vm1079 = vcmp.eq.f32.partialorder %v1076, %v1078
          %v1080 = vsel %vm1079, %v1075, inf
          %1081 = vmin.xlane.f32.xlu0 %v1080
          %v1082 = vpop.xlane.xlu0 %1081
          %v1083 = vcvt.f32.s32 %v1082
          %v1084 = vcvt.f32.s32 %v1078
          %v1085 = vshll.u32 %v1084, 16
          %v1086 = vadd.s32 %v1085, %v1083
          %v1087 = vand.u32 %v1058, 65535
          %v1088 = vshra.s32 %v1058, 16
          %v1089 = vcvt.s32.f32 %v1087
          %v1090 = vcvt.s32.f32 %v1088
          %1091 = vmin.xlane.f32.xlu0 %v1090
          %v1092 = vpop.xlane.xlu0 %1091
          %vm1093 = vcmp.eq.f32.partialorder %v1090, %v1092
          %v1094 = vsel %vm1093, %v1089, inf
          %1095 = vmin.xlane.f32.xlu0 %v1094
          %v1096 = vpop.xlane.xlu0 %1095
          %v1097 = vcvt.f32.s32 %v1096
          %v1098 = vcvt.f32.s32 %v1092
          %v1099 = vshll.u32 %v1098, 16
          %v1100 = vadd.s32 %v1099, %v1097
          %v1101 = vand.u32 %v1059, 65535
          %v1102 = vshra.s32 %v1059, 16
          %v1103 = vcvt.s32.f32 %v1101
          %v1104 = vcvt.s32.f32 %v1102
          %1105 = vmin.xlane.f32.xlu0 %v1104
          %v1106 = vpop.xlane.xlu0 %1105
          %vm1107 = vcmp.eq.f32.partialorder %v1104, %v1106
          %v1108 = vsel %vm1107, %v1103, inf
          %1109 = vmin.xlane.f32.xlu0 %v1108
          %v1110 = vpop.xlane.xlu0 %1109
          %v1111 = vcvt.f32.s32 %v1110
          %v1112 = vcvt.f32.s32 %v1106
          %v1113 = vshll.u32 %v1112, 16
          %v1114 = vadd.s32 %v1113, %v1111
          %v1115 = vand.u32 %v1060, 65535
          %v1116 = vshra.s32 %v1060, 16
          %v1117 = vcvt.s32.f32 %v1115
          %v1118 = vcvt.s32.f32 %v1116
          %1119 = vmin.xlane.f32.xlu0 %v1118
          %v1120 = vpop.xlane.xlu0 %1119
          %vm1121 = vcmp.eq.f32.partialorder %v1118, %v1120
          %v1122 = vsel %vm1121, %v1117, inf
          %1123 = vmin.xlane.f32.xlu0 %v1122
          %v1124 = vpop.xlane.xlu0 %1123
          %v1125 = vcvt.f32.s32 %v1124
          %v1126 = vcvt.f32.s32 %v1120
          %v1127 = vshll.u32 %v1126, 16
          %v1128 = vadd.s32 %v1127, %v1125
          %v1129 = vand.u32 %v1061, 65535
          %v1130 = vshra.s32 %v1061, 16
          %v1131 = vcvt.s32.f32 %v1129
          %v1132 = vcvt.s32.f32 %v1130
          %1133 = vmin.xlane.f32.xlu0 %v1132
          %v1134 = vpop.xlane.xlu0 %1133
          %vm1135 = vcmp.eq.f32.partialorder %v1132, %v1134
          %v1136 = vsel %vm1135, %v1131, inf
          %1137 = vmin.xlane.f32.xlu0 %v1136
          %v1138 = vpop.xlane.xlu0 %1137
          %v1139 = vcvt.f32.s32 %v1138
          %v1140 = vcvt.f32.s32 %v1134
          %v1141 = vshll.u32 %v1140, 16
          %v1142 = vadd.s32 %v1141, %v1139
          %v1143 = vand.u32 %v1062, 65535
          %v1144 = vshra.s32 %v1062, 16
          %v1145 = vcvt.s32.f32 %v1143
          %v1146 = vcvt.s32.f32 %v1144
          %1147 = vmin.xlane.f32.xlu0 %v1146
          %v1148 = vpop.xlane.xlu0 %1147
          %vm1149 = vcmp.eq.f32.partialorder %v1146, %v1148
          %v1150 = vsel %vm1149, %v1145, inf
          %1151 = vmin.xlane.f32.xlu0 %v1150
          %v1152 = vpop.xlane.xlu0 %1151
          %v1153 = vcvt.f32.s32 %v1152
          %v1154 = vcvt.f32.s32 %v1148
          %v1155 = vshll.u32 %v1154, 16
          %v1156 = vadd.s32 %v1155, %v1153
          %v1157 = vand.u32 %v1063, 65535
          %v1158 = vshra.s32 %v1063, 16
          %v1159 = vcvt.s32.f32 %v1157
          %v1160 = vcvt.s32.f32 %v1158
          %1161 = vmin.xlane.f32.xlu0 %v1160
          %v1162 = vpop.xlane.xlu0 %1161
          %vm1163 = vcmp.eq.f32.partialorder %v1160, %v1162
          %v1164 = vsel %vm1163, %v1159, inf
          %1165 = vmin.xlane.f32.xlu0 %v1164
          %v1166 = vpop.xlane.xlu0 %1165
          %v1167 = vcvt.f32.s32 %v1166
          %v1168 = vcvt.f32.s32 %v1162
          %v1169 = vshll.u32 %v1168, 16
          %v1170 = vadd.s32 %v1169, %v1167
          %v1171 = vand.u32 %v1064, 65535
          %v1172 = vshra.s32 %v1064, 16
          %v1173 = vcvt.s32.f32 %v1171
          %v1174 = vcvt.s32.f32 %v1172
          %1175 = vmin.xlane.f32.xlu0 %v1174
          %v1176 = vpop.xlane.xlu0 %1175
          %vm1177 = vcmp.eq.f32.partialorder %v1174, %v1176
          %v1178 = vsel %vm1177, %v1173, inf
          %1179 = vmin.xlane.f32.xlu0 %v1178
          %v1180 = vpop.xlane.xlu0 %1179
          %v1181 = vcvt.f32.s32 %v1180
          %v1182 = vcvt.f32.s32 %v1176
          %v1183 = vshll.u32 %v1182, 16
          %v1184 = vadd.s32 %v1183, %v1181
          %v1185 = vand.u32 %v1065, 65535
          %v1186 = vshra.s32 %v1065, 16
          %v1187 = vcvt.s32.f32 %v1185
          %v1188 = vcvt.s32.f32 %v1186
          %1189 = vmin.xlane.f32.xlu0 %v1188
          %v1190 = vpop.xlane.xlu0 %1189
          %vm1191 = vcmp.eq.f32.partialorder %v1188, %v1190
          %v1192 = vsel %vm1191, %v1187, inf
          %1193 = vmin.xlane.f32.xlu0 %v1192
          %v1194 = vpop.xlane.xlu0 %1193
          %v1195 = vcvt.f32.s32 %v1194
          %v1196 = vcvt.f32.s32 %v1190
          %v1197 = vshll.u32 %v1196, 16
          %v1198 = vadd.s32 %v1197, %v1195
          %v1199 = vand.u32 %v1066, 65535
          %v1200 = vshra.s32 %v1066, 16
          %v1201 = vcvt.s32.f32 %v1199
          %v1202 = vcvt.s32.f32 %v1200
          %1203 = vmin.xlane.f32.xlu0 %v1202
          %v1204 = vpop.xlane.xlu0 %1203
          %vm1205 = vcmp.eq.f32.partialorder %v1202, %v1204
          %v1206 = vsel %vm1205, %v1201, inf
          %1207 = vmin.xlane.f32.xlu0 %v1206
          %v1208 = vpop.xlane.xlu0 %1207
          %v1209 = vcvt.f32.s32 %v1208
          %v1210 = vcvt.f32.s32 %v1204
          %v1211 = vshll.u32 %v1210, 16
          %v1212 = vadd.s32 %v1211, %v1209
          %v1213 = vand.u32 %v1067, 65535
          %v1214 = vshra.s32 %v1067, 16
          %v1215 = vcvt.s32.f32 %v1213
          %v1216 = vcvt.s32.f32 %v1214
          %1217 = vmin.xlane.f32.xlu0 %v1216
          %v1218 = vpop.xlane.xlu0 %1217
          %vm1219 = vcmp.eq.f32.partialorder %v1216, %v1218
          %v1220 = vsel %vm1219, %v1215, inf
          %1221 = vmin.xlane.f32.xlu0 %v1220
          %v1222 = vpop.xlane.xlu0 %1221
          %v1223 = vcvt.f32.s32 %v1222
          %v1224 = vcvt.f32.s32 %v1218
          %v1225 = vshll.u32 %v1224, 16
          %v1226 = vadd.s32 %v1225, %v1223
          %v1227 = vand.u32 %v1068, 65535
          %v1228 = vshra.s32 %v1068, 16
          %v1229 = vcvt.s32.f32 %v1227
          %v1230 = vcvt.s32.f32 %v1228
          %1231 = vmin.xlane.f32.xlu0 %v1230
          %v1232 = vpop.xlane.xlu0 %1231
          %vm1233 = vcmp.eq.f32.partialorder %v1230, %v1232
          %v1234 = vsel %vm1233, %v1229, inf
          %1235 = vmin.xlane.f32.xlu0 %v1234
          %v1236 = vpop.xlane.xlu0 %1235
          %v1237 = vcvt.f32.s32 %v1236
          %v1238 = vcvt.f32.s32 %v1232
          %v1239 = vshll.u32 %v1238, 16
          %v1240 = vadd.s32 %v1239, %v1237
          %v1241 = vand.u32 %v1069, 65535
          %v1242 = vshra.s32 %v1069, 16
          %v1243 = vcvt.s32.f32 %v1241
          %v1244 = vcvt.s32.f32 %v1242
          %1245 = vmin.xlane.f32.xlu0 %v1244
          %v1246 = vpop.xlane.xlu0 %1245
          %vm1247 = vcmp.eq.f32.partialorder %v1244, %v1246
          %v1248 = vsel %vm1247, %v1243, inf
          %1249 = vmin.xlane.f32.xlu0 %v1248
          %v1250 = vpop.xlane.xlu0 %1249
          %v1251 = vcvt.f32.s32 %v1250
          %v1252 = vcvt.f32.s32 %v1246
          %v1253 = vshll.u32 %v1252, 16
          %v1254 = vadd.s32 %v1253, %v1251
          %v1255 = vand.u32 %v1070, 65535
          %v1256 = vshra.s32 %v1070, 16
          %v1257 = vcvt.s32.f32 %v1255
          %v1258 = vcvt.s32.f32 %v1256
          %1259 = vmin.xlane.f32.xlu0 %v1258
          %v1260 = vpop.xlane.xlu0 %1259
          %vm1261 = vcmp.eq.f32.partialorder %v1258, %v1260
          %v1262 = vsel %vm1261, %v1257, inf
          %1263 = vmin.xlane.f32.xlu0 %v1262
          %v1264 = vpop.xlane.xlu0 %1263
          %v1265 = vcvt.f32.s32 %v1264
          %v1266 = vcvt.f32.s32 %v1260
          %v1267 = vshll.u32 %v1266, 16
          %v1268 = vadd.s32 %v1267, %v1265
          %v1269 = vand.u32 %v1071, 65535
          %v1270 = vshra.s32 %v1071, 16
          %v1271 = vcvt.s32.f32 %v1269
          %v1272 = vcvt.s32.f32 %v1270
          %1273 = vmin.xlane.f32.xlu0 %v1272
          %v1274 = vpop.xlane.xlu0 %1273
          %vm1275 = vcmp.eq.f32.partialorder %v1272, %v1274
          %v1276 = vsel %vm1275, %v1271, inf
          %1277 = vmin.xlane.f32.xlu0 %v1276
          %v1278 = vpop.xlane.xlu0 %1277
          %v1279 = vcvt.f32.s32 %v1278
          %v1280 = vcvt.f32.s32 %v1274
          %v1281 = vshll.u32 %v1280, 16
          %v1282 = vadd.s32 %v1281, %v1279
          %v1283 = vand.u32 %v1072, 65535
          %v1284 = vshra.s32 %v1072, 16
          %v1285 = vcvt.s32.f32 %v1283
          %v1286 = vcvt.s32.f32 %v1284
          %1287 = vmin.xlane.f32.xlu0 %v1286
          %v1288 = vpop.xlane.xlu0 %1287
          %vm1289 = vcmp.eq.f32.partialorder %v1286, %v1288
          %v1290 = vsel %vm1289, %v1285, inf
          %1291 = vmin.xlane.f32.xlu0 %v1290
          %v1292 = vpop.xlane.xlu0 %1291
          %v1293 = vcvt.f32.s32 %v1292
          %v1294 = vcvt.f32.s32 %v1288
          %v1295 = vshll.u32 %v1294, 16
          %v1296 = vadd.s32 %v1295, %v1293
          %vm1297 = vcmp.eq.s32.totalorder %v586, %v1086
          %vm1298 = vcmp.eq.s32.totalorder %v586, %v1100
          %vm1299 = vcmp.eq.s32.totalorder %v586, %v1114
          %vm1300 = vcmp.eq.s32.totalorder %v586, %v1128
          %vm1301 = vcmp.eq.s32.totalorder %v586, %v1142
          %vm1302 = vcmp.eq.s32.totalorder %v586, %v1156
          %vm1303 = vcmp.eq.s32.totalorder %v586, %v1170
          %vm1304 = vcmp.eq.s32.totalorder %v586, %v1184
          %vm1305 = vcmp.eq.s32.totalorder %v586, %v1198
          %vm1306 = vcmp.eq.s32.totalorder %v586, %v1212
          %vm1307 = vcmp.eq.s32.totalorder %v586, %v1226
          %vm1308 = vcmp.eq.s32.totalorder %v586, %v1240
          %vm1309 = vcmp.eq.s32.totalorder %v586, %v1254
          %vm1310 = vcmp.eq.s32.totalorder %v586, %v1268
          %vm1311 = vcmp.eq.s32.totalorder %v586, %v1282
          %vm1312 = vcmp.eq.s32.totalorder %v586, %v1296
          %v1313 = vsel %vm1297, -inf, %v993
          %v1314 = vsel %vm1298, -inf, %v994
          %v1315 = vsel %vm1299, -inf, %v995
          %v1316 = vsel %vm1300, -inf, %v996
          %v1317 = vsel %vm1301, -inf, %v997
          %v1318 = vsel %vm1302, -inf, %v998
          %v1319 = vsel %vm1303, -inf, %v999
          %v1320 = vsel %vm1304, -inf, %v1000
          %v1321 = vsel %vm1305, -inf, %v1001
          %v1322 = vsel %vm1306, -inf, %v1002
          %v1323 = vsel %vm1307, -inf, %v1003
          %v1324 = vsel %vm1308, -inf, %v1004
          %v1325 = vsel %vm1309, -inf, %v1005
          %v1326 = vsel %vm1310, -inf, %v1006
          %v1327 = vsel %vm1311, -inf, %v1007
          %v1328 = vsel %vm1312, -inf, %v1008
          %1329 = vmax.xlane.f32.xlu0 %v1313
          %v1330 = vpop.xlane.xlu0 %1329
          %1331 = vmax.xlane.f32.xlu0 %v1314
          %v1332 = vpop.xlane.xlu0 %1331
          %1333 = vmax.xlane.f32.xlu0 %v1315
          %v1334 = vpop.xlane.xlu0 %1333
          %1335 = vmax.xlane.f32.xlu0 %v1316
          %v1336 = vpop.xlane.xlu0 %1335
          %1337 = vmax.xlane.f32.xlu0 %v1317
          %v1338 = vpop.xlane.xlu0 %1337
          %1339 = vmax.xlane.f32.xlu0 %v1318
          %v1340 = vpop.xlane.xlu0 %1339
          %1341 = vmax.xlane.f32.xlu0 %v1319
          %v1342 = vpop.xlane.xlu0 %1341
          %1343 = vmax.xlane.f32.xlu0 %v1320
          %v1344 = vpop.xlane.xlu0 %1343
          %1345 = vmax.xlane.f32.xlu0 %v1321
          %v1346 = vpop.xlane.xlu0 %1345
          %1347 = vmax.xlane.f32.xlu0 %v1322
          %v1348 = vpop.xlane.xlu0 %1347
          %1349 = vmax.xlane.f32.xlu0 %v1323
          %v1350 = vpop.xlane.xlu0 %1349
          %1351 = vmax.xlane.f32.xlu0 %v1324
          %v1352 = vpop.xlane.xlu0 %1351
          %1353 = vmax.xlane.f32.xlu0 %v1325
          %v1354 = vpop.xlane.xlu0 %1353
          %1355 = vmax.xlane.f32.xlu0 %v1326
          %v1356 = vpop.xlane.xlu0 %1355
          %1357 = vmax.xlane.f32.xlu0 %v1327
          %v1358 = vpop.xlane.xlu0 %1357
          %1359 = vmax.xlane.f32.xlu0 %v1328
          %v1360 = vpop.xlane.xlu0 %1359
          %vm1361 = vcmp.eq.f32.partialorder %v1313, %v1330
          %vm1362 = vcmp.eq.f32.partialorder %v1314, %v1332
          %vm1363 = vcmp.eq.f32.partialorder %v1315, %v1334
          %vm1364 = vcmp.eq.f32.partialorder %v1316, %v1336
          %vm1365 = vcmp.eq.f32.partialorder %v1317, %v1338
          %vm1366 = vcmp.eq.f32.partialorder %v1318, %v1340
          %vm1367 = vcmp.eq.f32.partialorder %v1319, %v1342
          %vm1368 = vcmp.eq.f32.partialorder %v1320, %v1344
          %vm1369 = vcmp.eq.f32.partialorder %v1321, %v1346
          %vm1370 = vcmp.eq.f32.partialorder %v1322, %v1348
          %vm1371 = vcmp.eq.f32.partialorder %v1323, %v1350
          %vm1372 = vcmp.eq.f32.partialorder %v1324, %v1352
          %vm1373 = vcmp.eq.f32.partialorder %v1325, %v1354
          %vm1374 = vcmp.eq.f32.partialorder %v1326, %v1356
          %vm1375 = vcmp.eq.f32.partialorder %v1327, %v1358
          %vm1376 = vcmp.eq.f32.partialorder %v1328, %v1360
          %v1377 = vsel %vm1361, %v586, 2147483647
          %v1378 = vsel %vm1362, %v586, 2147483647
          %v1379 = vsel %vm1363, %v586, 2147483647
          %v1380 = vsel %vm1364, %v586, 2147483647
          %v1381 = vsel %vm1365, %v586, 2147483647
          %v1382 = vsel %vm1366, %v586, 2147483647
          %v1383 = vsel %vm1367, %v586, 2147483647
          %v1384 = vsel %vm1368, %v586, 2147483647
          %v1385 = vsel %vm1369, %v586, 2147483647
          %v1386 = vsel %vm1370, %v586, 2147483647
          %v1387 = vsel %vm1371, %v586, 2147483647
          %v1388 = vsel %vm1372, %v586, 2147483647
          %v1389 = vsel %vm1373, %v586, 2147483647
          %v1390 = vsel %vm1374, %v586, 2147483647
          %v1391 = vsel %vm1375, %v586, 2147483647
          %v1392 = vsel %vm1376, %v586, 2147483647
          %v1393 = vand.u32 %v1377, 65535
          %v1394 = vshra.s32 %v1377, 16
          %v1395 = vcvt.s32.f32 %v1393
          %v1396 = vcvt.s32.f32 %v1394
          %1397 = vmin.xlane.f32.xlu0 %v1396
          %v1398 = vpop.xlane.xlu0 %1397
          %vm1399 = vcmp.eq.f32.partialorder %v1396, %v1398
          %v1400 = vsel %vm1399, %v1395, inf
          %1401 = vmin.xlane.f32.xlu0 %v1400
          %v1402 = vpop.xlane.xlu0 %1401
          %v1403 = vcvt.f32.s32 %v1402
          %v1404 = vcvt.f32.s32 %v1398
          %v1405 = vshll.u32 %v1404, 16
          %v1406 = vadd.s32 %v1405, %v1403
          %v1407 = vand.u32 %v1378, 65535
          %v1408 = vshra.s32 %v1378, 16
          %v1409 = vcvt.s32.f32 %v1407
          %v1410 = vcvt.s32.f32 %v1408
          %1411 = vmin.xlane.f32.xlu0 %v1410
          %v1412 = vpop.xlane.xlu0 %1411
          %vm1413 = vcmp.eq.f32.partialorder %v1410, %v1412
          %v1414 = vsel %vm1413, %v1409, inf
          %1415 = vmin.xlane.f32.xlu0 %v1414
          %v1416 = vpop.xlane.xlu0 %1415
          %v1417 = vcvt.f32.s32 %v1416
          %v1418 = vcvt.f32.s32 %v1412
          %v1419 = vshll.u32 %v1418, 16
          %v1420 = vadd.s32 %v1419, %v1417
          %v1421 = vand.u32 %v1379, 65535
          %v1422 = vshra.s32 %v1379, 16
          %v1423 = vcvt.s32.f32 %v1421
          %v1424 = vcvt.s32.f32 %v1422
          %1425 = vmin.xlane.f32.xlu0 %v1424
          %v1426 = vpop.xlane.xlu0 %1425
          %vm1427 = vcmp.eq.f32.partialorder %v1424, %v1426
          %v1428 = vsel %vm1427, %v1423, inf
          %1429 = vmin.xlane.f32.xlu0 %v1428
          %v1430 = vpop.xlane.xlu0 %1429
          %v1431 = vcvt.f32.s32 %v1430
          %v1432 = vcvt.f32.s32 %v1426
          %v1433 = vshll.u32 %v1432, 16
          %v1434 = vadd.s32 %v1433, %v1431
          %v1435 = vand.u32 %v1380, 65535
          %v1436 = vshra.s32 %v1380, 16
          %v1437 = vcvt.s32.f32 %v1435
          %v1438 = vcvt.s32.f32 %v1436
          %1439 = vmin.xlane.f32.xlu0 %v1438
          %v1440 = vpop.xlane.xlu0 %1439
          %vm1441 = vcmp.eq.f32.partialorder %v1438, %v1440
          %v1442 = vsel %vm1441, %v1437, inf
          %1443 = vmin.xlane.f32.xlu0 %v1442
          %v1444 = vpop.xlane.xlu0 %1443
          %v1445 = vcvt.f32.s32 %v1444
          %v1446 = vcvt.f32.s32 %v1440
          %v1447 = vshll.u32 %v1446, 16
          %v1448 = vadd.s32 %v1447, %v1445
          %v1449 = vand.u32 %v1381, 65535
          %v1450 = vshra.s32 %v1381, 16
          %v1451 = vcvt.s32.f32 %v1449
          %v1452 = vcvt.s32.f32 %v1450
          %1453 = vmin.xlane.f32.xlu0 %v1452
          %v1454 = vpop.xlane.xlu0 %1453
          %vm1455 = vcmp.eq.f32.partialorder %v1452, %v1454
          %v1456 = vsel %vm1455, %v1451, inf
          %1457 = vmin.xlane.f32.xlu0 %v1456
          %v1458 = vpop.xlane.xlu0 %1457
          %v1459 = vcvt.f32.s32 %v1458
          %v1460 = vcvt.f32.s32 %v1454
          %v1461 = vshll.u32 %v1460, 16
          %v1462 = vadd.s32 %v1461, %v1459
          %v1463 = vand.u32 %v1382, 65535
          %v1464 = vshra.s32 %v1382, 16
          %v1465 = vcvt.s32.f32 %v1463
          %v1466 = vcvt.s32.f32 %v1464
          %1467 = vmin.xlane.f32.xlu0 %v1466
          %v1468 = vpop.xlane.xlu0 %1467
          %vm1469 = vcmp.eq.f32.partialorder %v1466, %v1468
          %v1470 = vsel %vm1469, %v1465, inf
          %1471 = vmin.xlane.f32.xlu0 %v1470
          %v1472 = vpop.xlane.xlu0 %1471
          %v1473 = vcvt.f32.s32 %v1472
          %v1474 = vcvt.f32.s32 %v1468
          %v1475 = vshll.u32 %v1474, 16
          %v1476 = vadd.s32 %v1475, %v1473
          %v1477 = vand.u32 %v1383, 65535
          %v1478 = vshra.s32 %v1383, 16
          %v1479 = vcvt.s32.f32 %v1477
          %v1480 = vcvt.s32.f32 %v1478
          %1481 = vmin.xlane.f32.xlu0 %v1480
          %v1482 = vpop.xlane.xlu0 %1481
          %vm1483 = vcmp.eq.f32.partialorder %v1480, %v1482
          %v1484 = vsel %vm1483, %v1479, inf
          %1485 = vmin.xlane.f32.xlu0 %v1484
          %v1486 = vpop.xlane.xlu0 %1485
          %v1487 = vcvt.f32.s32 %v1486
          %v1488 = vcvt.f32.s32 %v1482
          %v1489 = vshll.u32 %v1488, 16
          %v1490 = vadd.s32 %v1489, %v1487
          %v1491 = vand.u32 %v1384, 65535
          %v1492 = vshra.s32 %v1384, 16
          %v1493 = vcvt.s32.f32 %v1491
          %v1494 = vcvt.s32.f32 %v1492
          %1495 = vmin.xlane.f32.xlu0 %v1494
          %v1496 = vpop.xlane.xlu0 %1495
          %vm1497 = vcmp.eq.f32.partialorder %v1494, %v1496
          %v1498 = vsel %vm1497, %v1493, inf
          %1499 = vmin.xlane.f32.xlu0 %v1498
          %v1500 = vpop.xlane.xlu0 %1499
          %v1501 = vcvt.f32.s32 %v1500
          %v1502 = vcvt.f32.s32 %v1496
          %v1503 = vshll.u32 %v1502, 16
          %v1504 = vadd.s32 %v1503, %v1501
          %v1505 = vand.u32 %v1385, 65535
          %v1506 = vshra.s32 %v1385, 16
          %v1507 = vcvt.s32.f32 %v1505
          %v1508 = vcvt.s32.f32 %v1506
          %1509 = vmin.xlane.f32.xlu0 %v1508
          %v1510 = vpop.xlane.xlu0 %1509
          %vm1511 = vcmp.eq.f32.partialorder %v1508, %v1510
          %v1512 = vsel %vm1511, %v1507, inf
          %1513 = vmin.xlane.f32.xlu0 %v1512
          %v1514 = vpop.xlane.xlu0 %1513
          %v1515 = vcvt.f32.s32 %v1514
          %v1516 = vcvt.f32.s32 %v1510
          %v1517 = vshll.u32 %v1516, 16
          %v1518 = vadd.s32 %v1517, %v1515
          %v1519 = vand.u32 %v1386, 65535
          %v1520 = vshra.s32 %v1386, 16
          %v1521 = vcvt.s32.f32 %v1519
          %v1522 = vcvt.s32.f32 %v1520
          %1523 = vmin.xlane.f32.xlu0 %v1522
          %v1524 = vpop.xlane.xlu0 %1523
          %vm1525 = vcmp.eq.f32.partialorder %v1522, %v1524
          %v1526 = vsel %vm1525, %v1521, inf
          %1527 = vmin.xlane.f32.xlu0 %v1526
          %v1528 = vpop.xlane.xlu0 %1527
          %v1529 = vcvt.f32.s32 %v1528
          %v1530 = vcvt.f32.s32 %v1524
          %v1531 = vshll.u32 %v1530, 16
          %v1532 = vadd.s32 %v1531, %v1529
          %v1533 = vand.u32 %v1387, 65535
          %v1534 = vshra.s32 %v1387, 16
          %v1535 = vcvt.s32.f32 %v1533
          %v1536 = vcvt.s32.f32 %v1534
          %1537 = vmin.xlane.f32.xlu0 %v1536
          %v1538 = vpop.xlane.xlu0 %1537
          %vm1539 = vcmp.eq.f32.partialorder %v1536, %v1538
          %v1540 = vsel %vm1539, %v1535, inf
          %1541 = vmin.xlane.f32.xlu0 %v1540
          %v1542 = vpop.xlane.xlu0 %1541
          %v1543 = vcvt.f32.s32 %v1542
          %v1544 = vcvt.f32.s32 %v1538
          %v1545 = vshll.u32 %v1544, 16
          %v1546 = vadd.s32 %v1545, %v1543
          %v1547 = vand.u32 %v1388, 65535
          %v1548 = vshra.s32 %v1388, 16
          %v1549 = vcvt.s32.f32 %v1547
          %v1550 = vcvt.s32.f32 %v1548
          %1551 = vmin.xlane.f32.xlu0 %v1550
          %v1552 = vpop.xlane.xlu0 %1551
          %vm1553 = vcmp.eq.f32.partialorder %v1550, %v1552
          %v1554 = vsel %vm1553, %v1549, inf
          %1555 = vmin.xlane.f32.xlu0 %v1554
          %v1556 = vpop.xlane.xlu0 %1555
          %v1557 = vcvt.f32.s32 %v1556
          %v1558 = vcvt.f32.s32 %v1552
          %v1559 = vshll.u32 %v1558, 16
          %v1560 = vadd.s32 %v1559, %v1557
          %v1561 = vand.u32 %v1389, 65535
          %v1562 = vshra.s32 %v1389, 16
          %v1563 = vcvt.s32.f32 %v1561
          %v1564 = vcvt.s32.f32 %v1562
          %1565 = vmin.xlane.f32.xlu0 %v1564
          %v1566 = vpop.xlane.xlu0 %1565
          %vm1567 = vcmp.eq.f32.partialorder %v1564, %v1566
          %v1568 = vsel %vm1567, %v1563, inf
          %1569 = vmin.xlane.f32.xlu0 %v1568
          %v1570 = vpop.xlane.xlu0 %1569
          %v1571 = vcvt.f32.s32 %v1570
          %v1572 = vcvt.f32.s32 %v1566
          %v1573 = vshll.u32 %v1572, 16
          %v1574 = vadd.s32 %v1573, %v1571
          %v1575 = vand.u32 %v1390, 65535
          %v1576 = vshra.s32 %v1390, 16
          %v1577 = vcvt.s32.f32 %v1575
          %v1578 = vcvt.s32.f32 %v1576
          %1579 = vmin.xlane.f32.xlu0 %v1578
          %v1580 = vpop.xlane.xlu0 %1579
          %vm1581 = vcmp.eq.f32.partialorder %v1578, %v1580
          %v1582 = vsel %vm1581, %v1577, inf
          %1583 = vmin.xlane.f32.xlu0 %v1582
          %v1584 = vpop.xlane.xlu0 %1583
          %v1585 = vcvt.f32.s32 %v1584
          %v1586 = vcvt.f32.s32 %v1580
          %v1587 = vshll.u32 %v1586, 16
          %v1588 = vadd.s32 %v1587, %v1585
          %v1589 = vand.u32 %v1391, 65535
          %v1590 = vshra.s32 %v1391, 16
          %v1591 = vcvt.s32.f32 %v1589
          %v1592 = vcvt.s32.f32 %v1590
          %1593 = vmin.xlane.f32.xlu0 %v1592
          %v1594 = vpop.xlane.xlu0 %1593
          %vm1595 = vcmp.eq.f32.partialorder %v1592, %v1594
          %v1596 = vsel %vm1595, %v1591, inf
          %1597 = vmin.xlane.f32.xlu0 %v1596
          %v1598 = vpop.xlane.xlu0 %1597
          %v1599 = vcvt.f32.s32 %v1598
          %v1600 = vcvt.f32.s32 %v1594
          %v1601 = vshll.u32 %v1600, 16
          %v1602 = vadd.s32 %v1601, %v1599
          %v1603 = vand.u32 %v1392, 65535
          %v1604 = vshra.s32 %v1392, 16
          %v1605 = vcvt.s32.f32 %v1603
          %v1606 = vcvt.s32.f32 %v1604
          %1607 = vmin.xlane.f32.xlu0 %v1606
          %v1608 = vpop.xlane.xlu0 %1607
          %vm1609 = vcmp.eq.f32.partialorder %v1606, %v1608
          %v1610 = vsel %vm1609, %v1605, inf
          %1611 = vmin.xlane.f32.xlu0 %v1610
          %v1612 = vpop.xlane.xlu0 %1611
          %v1613 = vcvt.f32.s32 %v1612
          %v1614 = vcvt.f32.s32 %v1608
          %v1615 = vshll.u32 %v1614, 16
          %v1616 = vadd.s32 %v1615, %v1613
          %vm1617 = vcmp.eq.s32.totalorder %v586, %v1406
          %vm1618 = vcmp.eq.s32.totalorder %v586, %v1420
          %vm1619 = vcmp.eq.s32.totalorder %v586, %v1434
          %vm1620 = vcmp.eq.s32.totalorder %v586, %v1448
          %vm1621 = vcmp.eq.s32.totalorder %v586, %v1462
          %vm1622 = vcmp.eq.s32.totalorder %v586, %v1476
          %vm1623 = vcmp.eq.s32.totalorder %v586, %v1490
          %vm1624 = vcmp.eq.s32.totalorder %v586, %v1504
          %vm1625 = vcmp.eq.s32.totalorder %v586, %v1518
          %vm1626 = vcmp.eq.s32.totalorder %v586, %v1532
          %vm1627 = vcmp.eq.s32.totalorder %v586, %v1546
          %vm1628 = vcmp.eq.s32.totalorder %v586, %v1560
          %vm1629 = vcmp.eq.s32.totalorder %v586, %v1574
          %vm1630 = vcmp.eq.s32.totalorder %v586, %v1588
          %vm1631 = vcmp.eq.s32.totalorder %v586, %v1602
          %vm1632 = vcmp.eq.s32.totalorder %v586, %v1616
          %v1633 = vsel %vm1617, -inf, %v1313
          %v1634 = vsel %vm1618, -inf, %v1314
          %v1635 = vsel %vm1619, -inf, %v1315
          %v1636 = vsel %vm1620, -inf, %v1316
          %v1637 = vsel %vm1621, -inf, %v1317
          %v1638 = vsel %vm1622, -inf, %v1318
          %v1639 = vsel %vm1623, -inf, %v1319
          %v1640 = vsel %vm1624, -inf, %v1320
          %v1641 = vsel %vm1625, -inf, %v1321
          %v1642 = vsel %vm1626, -inf, %v1322
          %v1643 = vsel %vm1627, -inf, %v1323
          %v1644 = vsel %vm1628, -inf, %v1324
          %v1645 = vsel %vm1629, -inf, %v1325
          %v1646 = vsel %vm1630, -inf, %v1326
          %v1647 = vsel %vm1631, -inf, %v1327
          %v1648 = vsel %vm1632, -inf, %v1328
          %1649 = vmax.xlane.f32.xlu0 %v1633
          %v1650 = vpop.xlane.xlu0 %1649
          %1651 = vmax.xlane.f32.xlu0 %v1634
          %v1652 = vpop.xlane.xlu0 %1651
          %1653 = vmax.xlane.f32.xlu0 %v1635
          %v1654 = vpop.xlane.xlu0 %1653
          %1655 = vmax.xlane.f32.xlu0 %v1636
          %v1656 = vpop.xlane.xlu0 %1655
          %1657 = vmax.xlane.f32.xlu0 %v1637
          %v1658 = vpop.xlane.xlu0 %1657
          %1659 = vmax.xlane.f32.xlu0 %v1638
          %v1660 = vpop.xlane.xlu0 %1659
          %1661 = vmax.xlane.f32.xlu0 %v1639
          %v1662 = vpop.xlane.xlu0 %1661
          %1663 = vmax.xlane.f32.xlu0 %v1640
          %v1664 = vpop.xlane.xlu0 %1663
          %1665 = vmax.xlane.f32.xlu0 %v1641
          %v1666 = vpop.xlane.xlu0 %1665
          %1667 = vmax.xlane.f32.xlu0 %v1642
          %v1668 = vpop.xlane.xlu0 %1667
          %1669 = vmax.xlane.f32.xlu0 %v1643
          %v1670 = vpop.xlane.xlu0 %1669
          %1671 = vmax.xlane.f32.xlu0 %v1644
          %v1672 = vpop.xlane.xlu0 %1671
          %1673 = vmax.xlane.f32.xlu0 %v1645
          %v1674 = vpop.xlane.xlu0 %1673
          %1675 = vmax.xlane.f32.xlu0 %v1646
          %v1676 = vpop.xlane.xlu0 %1675
          %1677 = vmax.xlane.f32.xlu0 %v1647
          %v1678 = vpop.xlane.xlu0 %1677
          %1679 = vmax.xlane.f32.xlu0 %v1648
          %v1680 = vpop.xlane.xlu0 %1679
          %vm1681 = vcmp.eq.f32.partialorder %v1633, %v1650
          %vm1682 = vcmp.eq.f32.partialorder %v1634, %v1652
          %vm1683 = vcmp.eq.f32.partialorder %v1635, %v1654
          %vm1684 = vcmp.eq.f32.partialorder %v1636, %v1656
          %vm1685 = vcmp.eq.f32.partialorder %v1637, %v1658
          %vm1686 = vcmp.eq.f32.partialorder %v1638, %v1660
          %vm1687 = vcmp.eq.f32.partialorder %v1639, %v1662
          %vm1688 = vcmp.eq.f32.partialorder %v1640, %v1664
          %vm1689 = vcmp.eq.f32.partialorder %v1641, %v1666
          %vm1690 = vcmp.eq.f32.partialorder %v1642, %v1668
          %vm1691 = vcmp.eq.f32.partialorder %v1643, %v1670
          %vm1692 = vcmp.eq.f32.partialorder %v1644, %v1672
          %vm1693 = vcmp.eq.f32.partialorder %v1645, %v1674
          %vm1694 = vcmp.eq.f32.partialorder %v1646, %v1676
          %vm1695 = vcmp.eq.f32.partialorder %v1647, %v1678
          %vm1696 = vcmp.eq.f32.partialorder %v1648, %v1680
          %v1697 = vsel %vm1681, %v586, 2147483647
          %v1698 = vsel %vm1682, %v586, 2147483647
          %v1699 = vsel %vm1683, %v586, 2147483647
          %v1700 = vsel %vm1684, %v586, 2147483647
          %v1701 = vsel %vm1685, %v586, 2147483647
          %v1702 = vsel %vm1686, %v586, 2147483647
          %v1703 = vsel %vm1687, %v586, 2147483647
          %v1704 = vsel %vm1688, %v586, 2147483647
          %v1705 = vsel %vm1689, %v586, 2147483647
          %v1706 = vsel %vm1690, %v586, 2147483647
          %v1707 = vsel %vm1691, %v586, 2147483647
          %v1708 = vsel %vm1692, %v586, 2147483647
          %v1709 = vsel %vm1693, %v586, 2147483647
          %v1710 = vsel %vm1694, %v586, 2147483647
          %v1711 = vsel %vm1695, %v586, 2147483647
          %v1712 = vsel %vm1696, %v586, 2147483647
          %v1713 = vand.u32 %v1697, 65535
          %v1714 = vshra.s32 %v1697, 16
          %v1715 = vcvt.s32.f32 %v1713
          %v1716 = vcvt.s32.f32 %v1714
          %1717 = vmin.xlane.f32.xlu0 %v1716
          %v1718 = vpop.xlane.xlu0 %1717
          %vm1719 = vcmp.eq.f32.partialorder %v1716, %v1718
          %v1720 = vsel %vm1719, %v1715, inf
          %1721 = vmin.xlane.f32.xlu0 %v1720
          %v1722 = vpop.xlane.xlu0 %1721
          %v1723 = vcvt.f32.s32 %v1722
          %v1724 = vcvt.f32.s32 %v1718
          %v1725 = vshll.u32 %v1724, 16
          %v1726 = vadd.s32 %v1725, %v1723
          %v1727 = vand.u32 %v1698, 65535
          %v1728 = vshra.s32 %v1698, 16
          %v1729 = vcvt.s32.f32 %v1727
          %v1730 = vcvt.s32.f32 %v1728
          %1731 = vmin.xlane.f32.xlu0 %v1730
          %v1732 = vpop.xlane.xlu0 %1731
          %vm1733 = vcmp.eq.f32.partialorder %v1730, %v1732
          %v1734 = vsel %vm1733, %v1729, inf
          %1735 = vmin.xlane.f32.xlu0 %v1734
          %v1736 = vpop.xlane.xlu0 %1735
          %v1737 = vcvt.f32.s32 %v1736
          %v1738 = vcvt.f32.s32 %v1732
          %v1739 = vshll.u32 %v1738, 16
          %v1740 = vadd.s32 %v1739, %v1737
          %v1741 = vand.u32 %v1699, 65535
          %v1742 = vshra.s32 %v1699, 16
          %v1743 = vcvt.s32.f32 %v1741
          %v1744 = vcvt.s32.f32 %v1742
          %1745 = vmin.xlane.f32.xlu0 %v1744
          %v1746 = vpop.xlane.xlu0 %1745
          %vm1747 = vcmp.eq.f32.partialorder %v1744, %v1746
          %v1748 = vsel %vm1747, %v1743, inf
          %1749 = vmin.xlane.f32.xlu0 %v1748
          %v1750 = vpop.xlane.xlu0 %1749
          %v1751 = vcvt.f32.s32 %v1750
          %v1752 = vcvt.f32.s32 %v1746
          %v1753 = vshll.u32 %v1752, 16
          %v1754 = vadd.s32 %v1753, %v1751
          %v1755 = vand.u32 %v1700, 65535
          %v1756 = vshra.s32 %v1700, 16
          %v1757 = vcvt.s32.f32 %v1755
          %v1758 = vcvt.s32.f32 %v1756
          %1759 = vmin.xlane.f32.xlu0 %v1758
          %v1760 = vpop.xlane.xlu0 %1759
          %vm1761 = vcmp.eq.f32.partialorder %v1758, %v1760
          %v1762 = vsel %vm1761, %v1757, inf
          %1763 = vmin.xlane.f32.xlu0 %v1762
          %v1764 = vpop.xlane.xlu0 %1763
          %v1765 = vcvt.f32.s32 %v1764
          %v1766 = vcvt.f32.s32 %v1760
          %v1767 = vshll.u32 %v1766, 16
          %v1768 = vadd.s32 %v1767, %v1765
          %v1769 = vand.u32 %v1701, 65535
          %v1770 = vshra.s32 %v1701, 16
          %v1771 = vcvt.s32.f32 %v1769
          %v1772 = vcvt.s32.f32 %v1770
          %1773 = vmin.xlane.f32.xlu0 %v1772
          %v1774 = vpop.xlane.xlu0 %1773
          %vm1775 = vcmp.eq.f32.partialorder %v1772, %v1774
          %v1776 = vsel %vm1775, %v1771, inf
          %1777 = vmin.xlane.f32.xlu0 %v1776
          %v1778 = vpop.xlane.xlu0 %1777
          %v1779 = vcvt.f32.s32 %v1778
          %v1780 = vcvt.f32.s32 %v1774
          %v1781 = vshll.u32 %v1780, 16
          %v1782 = vadd.s32 %v1781, %v1779
          %v1783 = vand.u32 %v1702, 65535
          %v1784 = vshra.s32 %v1702, 16
          %v1785 = vcvt.s32.f32 %v1783
          %v1786 = vcvt.s32.f32 %v1784
          %1787 = vmin.xlane.f32.xlu0 %v1786
          %v1788 = vpop.xlane.xlu0 %1787
          %vm1789 = vcmp.eq.f32.partialorder %v1786, %v1788
          %v1790 = vsel %vm1789, %v1785, inf
          %1791 = vmin.xlane.f32.xlu0 %v1790
          %v1792 = vpop.xlane.xlu0 %1791
          %v1793 = vcvt.f32.s32 %v1792
          %v1794 = vcvt.f32.s32 %v1788
          %v1795 = vshll.u32 %v1794, 16
          %v1796 = vadd.s32 %v1795, %v1793
          %v1797 = vand.u32 %v1703, 65535
          %v1798 = vshra.s32 %v1703, 16
          %v1799 = vcvt.s32.f32 %v1797
          %v1800 = vcvt.s32.f32 %v1798
          %1801 = vmin.xlane.f32.xlu0 %v1800
          %v1802 = vpop.xlane.xlu0 %1801
          %vm1803 = vcmp.eq.f32.partialorder %v1800, %v1802
          %v1804 = vsel %vm1803, %v1799, inf
          %1805 = vmin.xlane.f32.xlu0 %v1804
          %v1806 = vpop.xlane.xlu0 %1805
          %v1807 = vcvt.f32.s32 %v1806
          %v1808 = vcvt.f32.s32 %v1802
          %v1809 = vshll.u32 %v1808, 16
          %v1810 = vadd.s32 %v1809, %v1807
          %v1811 = vand.u32 %v1704, 65535
          %v1812 = vshra.s32 %v1704, 16
          %v1813 = vcvt.s32.f32 %v1811
          %v1814 = vcvt.s32.f32 %v1812
          %1815 = vmin.xlane.f32.xlu0 %v1814
          %v1816 = vpop.xlane.xlu0 %1815
          %vm1817 = vcmp.eq.f32.partialorder %v1814, %v1816
          %v1818 = vsel %vm1817, %v1813, inf
          %1819 = vmin.xlane.f32.xlu0 %v1818
          %v1820 = vpop.xlane.xlu0 %1819
          %v1821 = vcvt.f32.s32 %v1820
          %v1822 = vcvt.f32.s32 %v1816
          %v1823 = vshll.u32 %v1822, 16
          %v1824 = vadd.s32 %v1823, %v1821
          %v1825 = vand.u32 %v1705, 65535
          %v1826 = vshra.s32 %v1705, 16
          %v1827 = vcvt.s32.f32 %v1825
          %v1828 = vcvt.s32.f32 %v1826
          %1829 = vmin.xlane.f32.xlu0 %v1828
          %v1830 = vpop.xlane.xlu0 %1829
          %vm1831 = vcmp.eq.f32.partialorder %v1828, %v1830
          %v1832 = vsel %vm1831, %v1827, inf
          %1833 = vmin.xlane.f32.xlu0 %v1832
          %v1834 = vpop.xlane.xlu0 %1833
          %v1835 = vcvt.f32.s32 %v1834
          %v1836 = vcvt.f32.s32 %v1830
          %v1837 = vshll.u32 %v1836, 16
          %v1838 = vadd.s32 %v1837, %v1835
          %v1839 = vand.u32 %v1706, 65535
          %v1840 = vshra.s32 %v1706, 16
          %v1841 = vcvt.s32.f32 %v1839
          %v1842 = vcvt.s32.f32 %v1840
          %1843 = vmin.xlane.f32.xlu0 %v1842
          %v1844 = vpop.xlane.xlu0 %1843
          %vm1845 = vcmp.eq.f32.partialorder %v1842, %v1844
          %v1846 = vsel %vm1845, %v1841, inf
          %1847 = vmin.xlane.f32.xlu0 %v1846
          %v1848 = vpop.xlane.xlu0 %1847
          %v1849 = vcvt.f32.s32 %v1848
          %v1850 = vcvt.f32.s32 %v1844
          %v1851 = vshll.u32 %v1850, 16
          %v1852 = vadd.s32 %v1851, %v1849
          %v1853 = vand.u32 %v1707, 65535
          %v1854 = vshra.s32 %v1707, 16
          %v1855 = vcvt.s32.f32 %v1853
          %v1856 = vcvt.s32.f32 %v1854
          %1857 = vmin.xlane.f32.xlu0 %v1856
          %v1858 = vpop.xlane.xlu0 %1857
          %vm1859 = vcmp.eq.f32.partialorder %v1856, %v1858
          %v1860 = vsel %vm1859, %v1855, inf
          %1861 = vmin.xlane.f32.xlu0 %v1860
          %v1862 = vpop.xlane.xlu0 %1861
          %v1863 = vcvt.f32.s32 %v1862
          %v1864 = vcvt.f32.s32 %v1858
          %v1865 = vshll.u32 %v1864, 16
          %v1866 = vadd.s32 %v1865, %v1863
          %v1867 = vand.u32 %v1708, 65535
          %v1868 = vshra.s32 %v1708, 16
          %v1869 = vcvt.s32.f32 %v1867
          %v1870 = vcvt.s32.f32 %v1868
          %1871 = vmin.xlane.f32.xlu0 %v1870
          %v1872 = vpop.xlane.xlu0 %1871
          %vm1873 = vcmp.eq.f32.partialorder %v1870, %v1872
          %v1874 = vsel %vm1873, %v1869, inf
          %1875 = vmin.xlane.f32.xlu0 %v1874
          %v1876 = vpop.xlane.xlu0 %1875
          %v1877 = vcvt.f32.s32 %v1876
          %v1878 = vcvt.f32.s32 %v1872
          %v1879 = vshll.u32 %v1878, 16
          %v1880 = vadd.s32 %v1879, %v1877
          %v1881 = vand.u32 %v1709, 65535
          %v1882 = vshra.s32 %v1709, 16
          %v1883 = vcvt.s32.f32 %v1881
          %v1884 = vcvt.s32.f32 %v1882
          %1885 = vmin.xlane.f32.xlu0 %v1884
          %v1886 = vpop.xlane.xlu0 %1885
          %vm1887 = vcmp.eq.f32.partialorder %v1884, %v1886
          %v1888 = vsel %vm1887, %v1883, inf
          %1889 = vmin.xlane.f32.xlu0 %v1888
          %v1890 = vpop.xlane.xlu0 %1889
          %v1891 = vcvt.f32.s32 %v1890
          %v1892 = vcvt.f32.s32 %v1886
          %v1893 = vshll.u32 %v1892, 16
          %v1894 = vadd.s32 %v1893, %v1891
          %v1895 = vand.u32 %v1710, 65535
          %v1896 = vshra.s32 %v1710, 16
          %v1897 = vcvt.s32.f32 %v1895
          %v1898 = vcvt.s32.f32 %v1896
          %1899 = vmin.xlane.f32.xlu0 %v1898
          %v1900 = vpop.xlane.xlu0 %1899
          %vm1901 = vcmp.eq.f32.partialorder %v1898, %v1900
          %v1902 = vsel %vm1901, %v1897, inf
          %1903 = vmin.xlane.f32.xlu0 %v1902
          %v1904 = vpop.xlane.xlu0 %1903
          %v1905 = vcvt.f32.s32 %v1904
          %v1906 = vcvt.f32.s32 %v1900
          %v1907 = vshll.u32 %v1906, 16
          %v1908 = vadd.s32 %v1907, %v1905
          %v1909 = vand.u32 %v1711, 65535
          %v1910 = vshra.s32 %v1711, 16
          %v1911 = vcvt.s32.f32 %v1909
          %v1912 = vcvt.s32.f32 %v1910
          %1913 = vmin.xlane.f32.xlu0 %v1912
          %v1914 = vpop.xlane.xlu0 %1913
          %vm1915 = vcmp.eq.f32.partialorder %v1912, %v1914
          %v1916 = vsel %vm1915, %v1911, inf
          %1917 = vmin.xlane.f32.xlu0 %v1916
          %v1918 = vpop.xlane.xlu0 %1917
          %v1919 = vcvt.f32.s32 %v1918
          %v1920 = vcvt.f32.s32 %v1914
          %v1921 = vshll.u32 %v1920, 16
          %v1922 = vadd.s32 %v1921, %v1919
          %v1923 = vand.u32 %v1712, 65535
          %v1924 = vshra.s32 %v1712, 16
          %v1925 = vcvt.s32.f32 %v1923
          %v1926 = vcvt.s32.f32 %v1924
          %1927 = vmin.xlane.f32.xlu0 %v1926
          %v1928 = vpop.xlane.xlu0 %1927
          %vm1929 = vcmp.eq.f32.partialorder %v1926, %v1928
          %v1930 = vsel %vm1929, %v1925, inf
          %1931 = vmin.xlane.f32.xlu0 %v1930
          %v1932 = vpop.xlane.xlu0 %1931
          %v1933 = vcvt.f32.s32 %v1932
          %v1934 = vcvt.f32.s32 %v1928
          %v1935 = vshll.u32 %v1934, 16
          %v1936 = vadd.s32 %v1935, %v1933
          %vm1937 = vcmp.eq.s32.totalorder %v586, %v1726
          %vm1938 = vcmp.eq.s32.totalorder %v586, %v1740
          %vm1939 = vcmp.eq.s32.totalorder %v586, %v1754
          %vm1940 = vcmp.eq.s32.totalorder %v586, %v1768
          %vm1941 = vcmp.eq.s32.totalorder %v586, %v1782
          %vm1942 = vcmp.eq.s32.totalorder %v586, %v1796
          %vm1943 = vcmp.eq.s32.totalorder %v586, %v1810
          %vm1944 = vcmp.eq.s32.totalorder %v586, %v1824
          %vm1945 = vcmp.eq.s32.totalorder %v586, %v1838
          %vm1946 = vcmp.eq.s32.totalorder %v586, %v1852
          %vm1947 = vcmp.eq.s32.totalorder %v586, %v1866
          %vm1948 = vcmp.eq.s32.totalorder %v586, %v1880
          %vm1949 = vcmp.eq.s32.totalorder %v586, %v1894
          %vm1950 = vcmp.eq.s32.totalorder %v586, %v1908
          %vm1951 = vcmp.eq.s32.totalorder %v586, %v1922
          %vm1952 = vcmp.eq.s32.totalorder %v586, %v1936
          %v1953 = vsel %vm1937, -inf, %v1633
          %v1954 = vsel %vm1938, -inf, %v1634
          %v1955 = vsel %vm1939, -inf, %v1635
          %v1956 = vsel %vm1940, -inf, %v1636
          %v1957 = vsel %vm1941, -inf, %v1637
          %v1958 = vsel %vm1942, -inf, %v1638
          %v1959 = vsel %vm1943, -inf, %v1639
          %v1960 = vsel %vm1944, -inf, %v1640
          %v1961 = vsel %vm1945, -inf, %v1641
          %v1962 = vsel %vm1946, -inf, %v1642
          %v1963 = vsel %vm1947, -inf, %v1643
          %v1964 = vsel %vm1948, -inf, %v1644
          %v1965 = vsel %vm1949, -inf, %v1645
          %v1966 = vsel %vm1950, -inf, %v1646
          %v1967 = vsel %vm1951, -inf, %v1647
          %v1968 = vsel %vm1952, -inf, %v1648
          %1969 = vmax.xlane.f32.xlu0 %v1953
          %v1970 = vpop.xlane.xlu0 %1969
          %1971 = vmax.xlane.f32.xlu0 %v1954
          %v1972 = vpop.xlane.xlu0 %1971
          %1973 = vmax.xlane.f32.xlu0 %v1955
          %v1974 = vpop.xlane.xlu0 %1973
          %1975 = vmax.xlane.f32.xlu0 %v1956
          %v1976 = vpop.xlane.xlu0 %1975
          %1977 = vmax.xlane.f32.xlu0 %v1957
          %v1978 = vpop.xlane.xlu0 %1977
          %1979 = vmax.xlane.f32.xlu0 %v1958
          %v1980 = vpop.xlane.xlu0 %1979
          %1981 = vmax.xlane.f32.xlu0 %v1959
          %v1982 = vpop.xlane.xlu0 %1981
          %1983 = vmax.xlane.f32.xlu0 %v1960
          %v1984 = vpop.xlane.xlu0 %1983
          %1985 = vmax.xlane.f32.xlu0 %v1961
          %v1986 = vpop.xlane.xlu0 %1985
          %1987 = vmax.xlane.f32.xlu0 %v1962
          %v1988 = vpop.xlane.xlu0 %1987
          %1989 = vmax.xlane.f32.xlu0 %v1963
          %v1990 = vpop.xlane.xlu0 %1989
          %1991 = vmax.xlane.f32.xlu0 %v1964
          %v1992 = vpop.xlane.xlu0 %1991
          %1993 = vmax.xlane.f32.xlu0 %v1965
          %v1994 = vpop.xlane.xlu0 %1993
          %1995 = vmax.xlane.f32.xlu0 %v1966
          %v1996 = vpop.xlane.xlu0 %1995
          %1997 = vmax.xlane.f32.xlu0 %v1967
          %v1998 = vpop.xlane.xlu0 %1997
          %1999 = vmax.xlane.f32.xlu0 %v1968
          %v2000 = vpop.xlane.xlu0 %1999
          %vm2001 = vcmp.eq.f32.partialorder %v1953, %v1970
          %vm2002 = vcmp.eq.f32.partialorder %v1954, %v1972
          %vm2003 = vcmp.eq.f32.partialorder %v1955, %v1974
          %vm2004 = vcmp.eq.f32.partialorder %v1956, %v1976
          %vm2005 = vcmp.eq.f32.partialorder %v1957, %v1978
          %vm2006 = vcmp.eq.f32.partialorder %v1958, %v1980
          %vm2007 = vcmp.eq.f32.partialorder %v1959, %v1982
          %vm2008 = vcmp.eq.f32.partialorder %v1960, %v1984
          %vm2009 = vcmp.eq.f32.partialorder %v1961, %v1986
          %vm2010 = vcmp.eq.f32.partialorder %v1962, %v1988
          %vm2011 = vcmp.eq.f32.partialorder %v1963, %v1990
          %vm2012 = vcmp.eq.f32.partialorder %v1964, %v1992
          %vm2013 = vcmp.eq.f32.partialorder %v1965, %v1994
          %vm2014 = vcmp.eq.f32.partialorder %v1966, %v1996
          %vm2015 = vcmp.eq.f32.partialorder %v1967, %v1998
          %vm2016 = vcmp.eq.f32.partialorder %v1968, %v2000
          %v2017 = vsel %vm2001, %v586, 2147483647
          %v2018 = vsel %vm2002, %v586, 2147483647
          %v2019 = vsel %vm2003, %v586, 2147483647
          %v2020 = vsel %vm2004, %v586, 2147483647
          %v2021 = vsel %vm2005, %v586, 2147483647
          %v2022 = vsel %vm2006, %v586, 2147483647
          %v2023 = vsel %vm2007, %v586, 2147483647
          %v2024 = vsel %vm2008, %v586, 2147483647
          %v2025 = vsel %vm2009, %v586, 2147483647
          %v2026 = vsel %vm2010, %v586, 2147483647
          %v2027 = vsel %vm2011, %v586, 2147483647
          %v2028 = vsel %vm2012, %v586, 2147483647
          %v2029 = vsel %vm2013, %v586, 2147483647
          %v2030 = vsel %vm2014, %v586, 2147483647
          %v2031 = vsel %vm2015, %v586, 2147483647
          %v2032 = vsel %vm2016, %v586, 2147483647
          %v2033 = vand.u32 %v2017, 65535
          %v2034 = vshra.s32 %v2017, 16
          %v2035 = vcvt.s32.f32 %v2033
          %v2036 = vcvt.s32.f32 %v2034
          %2037 = vmin.xlane.f32.xlu0 %v2036
          %v2038 = vpop.xlane.xlu0 %2037
          %vm2039 = vcmp.eq.f32.partialorder %v2036, %v2038
          %v2040 = vsel %vm2039, %v2035, inf
          %2041 = vmin.xlane.f32.xlu0 %v2040
          %v2042 = vpop.xlane.xlu0 %2041
          %v2043 = vcvt.f32.s32 %v2042
          %v2044 = vcvt.f32.s32 %v2038
          %v2045 = vshll.u32 %v2044, 16
          %v2046 = vadd.s32 %v2045, %v2043
          %v2047 = vand.u32 %v2018, 65535
          %v2048 = vshra.s32 %v2018, 16
          %v2049 = vcvt.s32.f32 %v2047
          %v2050 = vcvt.s32.f32 %v2048
          %2051 = vmin.xlane.f32.xlu0 %v2050
          %v2052 = vpop.xlane.xlu0 %2051
          %vm2053 = vcmp.eq.f32.partialorder %v2050, %v2052
          %v2054 = vsel %vm2053, %v2049, inf
          %2055 = vmin.xlane.f32.xlu0 %v2054
          %v2056 = vpop.xlane.xlu0 %2055
          %v2057 = vcvt.f32.s32 %v2056
          %v2058 = vcvt.f32.s32 %v2052
          %v2059 = vshll.u32 %v2058, 16
          %v2060 = vadd.s32 %v2059, %v2057
          %v2061 = vand.u32 %v2019, 65535
          %v2062 = vshra.s32 %v2019, 16
          %v2063 = vcvt.s32.f32 %v2061
          %v2064 = vcvt.s32.f32 %v2062
          %2065 = vmin.xlane.f32.xlu0 %v2064
          %v2066 = vpop.xlane.xlu0 %2065
          %vm2067 = vcmp.eq.f32.partialorder %v2064, %v2066
          %v2068 = vsel %vm2067, %v2063, inf
          %2069 = vmin.xlane.f32.xlu0 %v2068
          %v2070 = vpop.xlane.xlu0 %2069
          %v2071 = vcvt.f32.s32 %v2070
          %v2072 = vcvt.f32.s32 %v2066
          %v2073 = vshll.u32 %v2072, 16
          %v2074 = vadd.s32 %v2073, %v2071
          %v2075 = vand.u32 %v2020, 65535
          %v2076 = vshra.s32 %v2020, 16
          %v2077 = vcvt.s32.f32 %v2075
          %v2078 = vcvt.s32.f32 %v2076
          %2079 = vmin.xlane.f32.xlu0 %v2078
          %v2080 = vpop.xlane.xlu0 %2079
          %vm2081 = vcmp.eq.f32.partialorder %v2078, %v2080
          %v2082 = vsel %vm2081, %v2077, inf
          %2083 = vmin.xlane.f32.xlu0 %v2082
          %v2084 = vpop.xlane.xlu0 %2083
          %v2085 = vcvt.f32.s32 %v2084
          %v2086 = vcvt.f32.s32 %v2080
          %v2087 = vshll.u32 %v2086, 16
          %v2088 = vadd.s32 %v2087, %v2085
          %v2089 = vand.u32 %v2021, 65535
          %v2090 = vshra.s32 %v2021, 16
          %v2091 = vcvt.s32.f32 %v2089
          %v2092 = vcvt.s32.f32 %v2090
          %2093 = vmin.xlane.f32.xlu0 %v2092
          %v2094 = vpop.xlane.xlu0 %2093
          %vm2095 = vcmp.eq.f32.partialorder %v2092, %v2094
          %v2096 = vsel %vm2095, %v2091, inf
          %2097 = vmin.xlane.f32.xlu0 %v2096
          %v2098 = vpop.xlane.xlu0 %2097
          %v2099 = vcvt.f32.s32 %v2098
          %v2100 = vcvt.f32.s32 %v2094
          %v2101 = vshll.u32 %v2100, 16
          %v2102 = vadd.s32 %v2101, %v2099
          %v2103 = vand.u32 %v2022, 65535
          %v2104 = vshra.s32 %v2022, 16
          %v2105 = vcvt.s32.f32 %v2103
          %v2106 = vcvt.s32.f32 %v2104
          %2107 = vmin.xlane.f32.xlu0 %v2106
          %v2108 = vpop.xlane.xlu0 %2107
          %vm2109 = vcmp.eq.f32.partialorder %v2106, %v2108
          %v2110 = vsel %vm2109, %v2105, inf
          %2111 = vmin.xlane.f32.xlu0 %v2110
          %v2112 = vpop.xlane.xlu0 %2111
          %v2113 = vcvt.f32.s32 %v2112
          %v2114 = vcvt.f32.s32 %v2108
          %v2115 = vshll.u32 %v2114, 16
          %v2116 = vadd.s32 %v2115, %v2113
          %v2117 = vand.u32 %v2023, 65535
          %v2118 = vshra.s32 %v2023, 16
          %v2119 = vcvt.s32.f32 %v2117
          %v2120 = vcvt.s32.f32 %v2118
          %2121 = vmin.xlane.f32.xlu0 %v2120
          %v2122 = vpop.xlane.xlu0 %2121
          %vm2123 = vcmp.eq.f32.partialorder %v2120, %v2122
          %v2124 = vsel %vm2123, %v2119, inf
          %2125 = vmin.xlane.f32.xlu0 %v2124
          %v2126 = vpop.xlane.xlu0 %2125
          %v2127 = vcvt.f32.s32 %v2126
          %v2128 = vcvt.f32.s32 %v2122
          %v2129 = vshll.u32 %v2128, 16
          %v2130 = vadd.s32 %v2129, %v2127
          %v2131 = vand.u32 %v2024, 65535
          %v2132 = vshra.s32 %v2024, 16
          %v2133 = vcvt.s32.f32 %v2131
          %v2134 = vcvt.s32.f32 %v2132
          %2135 = vmin.xlane.f32.xlu0 %v2134
          %v2136 = vpop.xlane.xlu0 %2135
          %vm2137 = vcmp.eq.f32.partialorder %v2134, %v2136
          %v2138 = vsel %vm2137, %v2133, inf
          %2139 = vmin.xlane.f32.xlu0 %v2138
          %v2140 = vpop.xlane.xlu0 %2139
          %v2141 = vcvt.f32.s32 %v2140
          %v2142 = vcvt.f32.s32 %v2136
          %v2143 = vshll.u32 %v2142, 16
          %v2144 = vadd.s32 %v2143, %v2141
          %v2145 = vand.u32 %v2025, 65535
          %v2146 = vshra.s32 %v2025, 16
          %v2147 = vcvt.s32.f32 %v2145
          %v2148 = vcvt.s32.f32 %v2146
          %2149 = vmin.xlane.f32.xlu0 %v2148
          %v2150 = vpop.xlane.xlu0 %2149
          %vm2151 = vcmp.eq.f32.partialorder %v2148, %v2150
          %v2152 = vsel %vm2151, %v2147, inf
          %2153 = vmin.xlane.f32.xlu0 %v2152
          %v2154 = vpop.xlane.xlu0 %2153
          %v2155 = vcvt.f32.s32 %v2154
          %v2156 = vcvt.f32.s32 %v2150
          %v2157 = vshll.u32 %v2156, 16
          %v2158 = vadd.s32 %v2157, %v2155
          %v2159 = vand.u32 %v2026, 65535
          %v2160 = vshra.s32 %v2026, 16
          %v2161 = vcvt.s32.f32 %v2159
          %v2162 = vcvt.s32.f32 %v2160
          %2163 = vmin.xlane.f32.xlu0 %v2162
          %v2164 = vpop.xlane.xlu0 %2163
          %vm2165 = vcmp.eq.f32.partialorder %v2162, %v2164
          %v2166 = vsel %vm2165, %v2161, inf
          %2167 = vmin.xlane.f32.xlu0 %v2166
          %v2168 = vpop.xlane.xlu0 %2167
          %v2169 = vcvt.f32.s32 %v2168
          %v2170 = vcvt.f32.s32 %v2164
          %v2171 = vshll.u32 %v2170, 16
          %v2172 = vadd.s32 %v2171, %v2169
          %v2173 = vand.u32 %v2027, 65535
          %v2174 = vshra.s32 %v2027, 16
          %v2175 = vcvt.s32.f32 %v2173
          %v2176 = vcvt.s32.f32 %v2174
          %2177 = vmin.xlane.f32.xlu0 %v2176
          %v2178 = vpop.xlane.xlu0 %2177
          %vm2179 = vcmp.eq.f32.partialorder %v2176, %v2178
          %v2180 = vsel %vm2179, %v2175, inf
          %2181 = vmin.xlane.f32.xlu0 %v2180
          %v2182 = vpop.xlane.xlu0 %2181
          %v2183 = vcvt.f32.s32 %v2182
          %v2184 = vcvt.f32.s32 %v2178
          %v2185 = vshll.u32 %v2184, 16
          %v2186 = vadd.s32 %v2185, %v2183
          %v2187 = vand.u32 %v2028, 65535
          %v2188 = vshra.s32 %v2028, 16
          %v2189 = vcvt.s32.f32 %v2187
          %v2190 = vcvt.s32.f32 %v2188
          %2191 = vmin.xlane.f32.xlu0 %v2190
          %v2192 = vpop.xlane.xlu0 %2191
          %vm2193 = vcmp.eq.f32.partialorder %v2190, %v2192
          %v2194 = vsel %vm2193, %v2189, inf
          %2195 = vmin.xlane.f32.xlu0 %v2194
          %v2196 = vpop.xlane.xlu0 %2195
          %v2197 = vcvt.f32.s32 %v2196
          %v2198 = vcvt.f32.s32 %v2192
          %v2199 = vshll.u32 %v2198, 16
          %v2200 = vadd.s32 %v2199, %v2197
          %v2201 = vand.u32 %v2029, 65535
          %v2202 = vshra.s32 %v2029, 16
          %v2203 = vcvt.s32.f32 %v2201
          %v2204 = vcvt.s32.f32 %v2202
          %2205 = vmin.xlane.f32.xlu0 %v2204
          %v2206 = vpop.xlane.xlu0 %2205
          %vm2207 = vcmp.eq.f32.partialorder %v2204, %v2206
          %v2208 = vsel %vm2207, %v2203, inf
          %2209 = vmin.xlane.f32.xlu0 %v2208
          %v2210 = vpop.xlane.xlu0 %2209
          %v2211 = vcvt.f32.s32 %v2210
          %v2212 = vcvt.f32.s32 %v2206
          %v2213 = vshll.u32 %v2212, 16
          %v2214 = vadd.s32 %v2213, %v2211
          %v2215 = vand.u32 %v2030, 65535
          %v2216 = vshra.s32 %v2030, 16
          %v2217 = vcvt.s32.f32 %v2215
          %v2218 = vcvt.s32.f32 %v2216
          %2219 = vmin.xlane.f32.xlu0 %v2218
          %v2220 = vpop.xlane.xlu0 %2219
          %vm2221 = vcmp.eq.f32.partialorder %v2218, %v2220
          %v2222 = vsel %vm2221, %v2217, inf
          %2223 = vmin.xlane.f32.xlu0 %v2222
          %v2224 = vpop.xlane.xlu0 %2223
          %v2225 = vcvt.f32.s32 %v2224
          %v2226 = vcvt.f32.s32 %v2220
          %v2227 = vshll.u32 %v2226, 16
          %v2228 = vadd.s32 %v2227, %v2225
          %v2229 = vand.u32 %v2031, 65535
          %v2230 = vshra.s32 %v2031, 16
          %v2231 = vcvt.s32.f32 %v2229
          %v2232 = vcvt.s32.f32 %v2230
          %2233 = vmin.xlane.f32.xlu0 %v2232
          %v2234 = vpop.xlane.xlu0 %2233
          %vm2235 = vcmp.eq.f32.partialorder %v2232, %v2234
          %v2236 = vsel %vm2235, %v2231, inf
          %2237 = vmin.xlane.f32.xlu0 %v2236
          %v2238 = vpop.xlane.xlu0 %2237
          %v2239 = vcvt.f32.s32 %v2238
          %v2240 = vcvt.f32.s32 %v2234
          %v2241 = vshll.u32 %v2240, 16
          %v2242 = vadd.s32 %v2241, %v2239
          %v2243 = vand.u32 %v2032, 65535
          %v2244 = vshra.s32 %v2032, 16
          %v2245 = vcvt.s32.f32 %v2243
          %v2246 = vcvt.s32.f32 %v2244
          %2247 = vmin.xlane.f32.xlu0 %v2246
          %v2248 = vpop.xlane.xlu0 %2247
          %vm2249 = vcmp.eq.f32.partialorder %v2246, %v2248
          %v2250 = vsel %vm2249, %v2245, inf
          %2251 = vmin.xlane.f32.xlu0 %v2250
          %v2252 = vpop.xlane.xlu0 %2251
          %v2253 = vcvt.f32.s32 %v2252
          %v2254 = vcvt.f32.s32 %v2248
          %v2255 = vshll.u32 %v2254, 16
          %v2256 = vadd.s32 %v2255, %v2253
          %vm2257 = vcmp.eq.s32.totalorder %v586, %v2046
          %vm2258 = vcmp.eq.s32.totalorder %v586, %v2060
          %vm2259 = vcmp.eq.s32.totalorder %v586, %v2074
          %vm2260 = vcmp.eq.s32.totalorder %v586, %v2088
          %vm2261 = vcmp.eq.s32.totalorder %v586, %v2102
          %vm2262 = vcmp.eq.s32.totalorder %v586, %v2116
          %vm2263 = vcmp.eq.s32.totalorder %v586, %v2130
          %vm2264 = vcmp.eq.s32.totalorder %v586, %v2144
          %vm2265 = vcmp.eq.s32.totalorder %v586, %v2158
          %vm2266 = vcmp.eq.s32.totalorder %v586, %v2172
          %vm2267 = vcmp.eq.s32.totalorder %v586, %v2186
          %vm2268 = vcmp.eq.s32.totalorder %v586, %v2200
          %vm2269 = vcmp.eq.s32.totalorder %v586, %v2214
          %vm2270 = vcmp.eq.s32.totalorder %v586, %v2228
          %vm2271 = vcmp.eq.s32.totalorder %v586, %v2242
          %vm2272 = vcmp.eq.s32.totalorder %v586, %v2256
          %v2273 = vsel %vm2257, -inf, %v1953
          %v2274 = vsel %vm2258, -inf, %v1954
          %v2275 = vsel %vm2259, -inf, %v1955
          %v2276 = vsel %vm2260, -inf, %v1956
          %v2277 = vsel %vm2261, -inf, %v1957
          %v2278 = vsel %vm2262, -inf, %v1958
          %v2279 = vsel %vm2263, -inf, %v1959
          %v2280 = vsel %vm2264, -inf, %v1960
          %v2281 = vsel %vm2265, -inf, %v1961
          %v2282 = vsel %vm2266, -inf, %v1962
          %v2283 = vsel %vm2267, -inf, %v1963
          %v2284 = vsel %vm2268, -inf, %v1964
          %v2285 = vsel %vm2269, -inf, %v1965
          %v2286 = vsel %vm2270, -inf, %v1966
          %v2287 = vsel %vm2271, -inf, %v1967
          %v2288 = vsel %vm2272, -inf, %v1968
          %2289 = vmax.xlane.f32.xlu0 %v2273
          %v2290 = vpop.xlane.xlu0 %2289
          %2291 = vmax.xlane.f32.xlu0 %v2274
          %v2292 = vpop.xlane.xlu0 %2291
          %2293 = vmax.xlane.f32.xlu0 %v2275
          %v2294 = vpop.xlane.xlu0 %2293
          %2295 = vmax.xlane.f32.xlu0 %v2276
          %v2296 = vpop.xlane.xlu0 %2295
          %2297 = vmax.xlane.f32.xlu0 %v2277
          %v2298 = vpop.xlane.xlu0 %2297
          %2299 = vmax.xlane.f32.xlu0 %v2278
          %v2300 = vpop.xlane.xlu0 %2299
          %2301 = vmax.xlane.f32.xlu0 %v2279
          %v2302 = vpop.xlane.xlu0 %2301
          %2303 = vmax.xlane.f32.xlu0 %v2280
          %v2304 = vpop.xlane.xlu0 %2303
          %2305 = vmax.xlane.f32.xlu0 %v2281
          %v2306 = vpop.xlane.xlu0 %2305
          %2307 = vmax.xlane.f32.xlu0 %v2282
          %v2308 = vpop.xlane.xlu0 %2307
          %2309 = vmax.xlane.f32.xlu0 %v2283
          %v2310 = vpop.xlane.xlu0 %2309
          %2311 = vmax.xlane.f32.xlu0 %v2284
          %v2312 = vpop.xlane.xlu0 %2311
          %2313 = vmax.xlane.f32.xlu0 %v2285
          %v2314 = vpop.xlane.xlu0 %2313
          %2315 = vmax.xlane.f32.xlu0 %v2286
          %v2316 = vpop.xlane.xlu0 %2315
          %2317 = vmax.xlane.f32.xlu0 %v2287
          %v2318 = vpop.xlane.xlu0 %2317
          %2319 = vmax.xlane.f32.xlu0 %v2288
          %v2320 = vpop.xlane.xlu0 %2319
          %vm2321 = vcmp.eq.f32.partialorder %v2273, %v2290
          %vm2322 = vcmp.eq.f32.partialorder %v2274, %v2292
          %vm2323 = vcmp.eq.f32.partialorder %v2275, %v2294
          %vm2324 = vcmp.eq.f32.partialorder %v2276, %v2296
          %vm2325 = vcmp.eq.f32.partialorder %v2277, %v2298
          %vm2326 = vcmp.eq.f32.partialorder %v2278, %v2300
          %vm2327 = vcmp.eq.f32.partialorder %v2279, %v2302
          %vm2328 = vcmp.eq.f32.partialorder %v2280, %v2304
          %vm2329 = vcmp.eq.f32.partialorder %v2281, %v2306
          %vm2330 = vcmp.eq.f32.partialorder %v2282, %v2308
          %vm2331 = vcmp.eq.f32.partialorder %v2283, %v2310
          %vm2332 = vcmp.eq.f32.partialorder %v2284, %v2312
          %vm2333 = vcmp.eq.f32.partialorder %v2285, %v2314
          %vm2334 = vcmp.eq.f32.partialorder %v2286, %v2316
          %vm2335 = vcmp.eq.f32.partialorder %v2287, %v2318
          %vm2336 = vcmp.eq.f32.partialorder %v2288, %v2320
          %v2337 = vsel %vm2321, %v586, 2147483647
          %v2338 = vsel %vm2322, %v586, 2147483647
          %v2339 = vsel %vm2323, %v586, 2147483647
          %v2340 = vsel %vm2324, %v586, 2147483647
          %v2341 = vsel %vm2325, %v586, 2147483647
          %v2342 = vsel %vm2326, %v586, 2147483647
          %v2343 = vsel %vm2327, %v586, 2147483647
          %v2344 = vsel %vm2328, %v586, 2147483647
          %v2345 = vsel %vm2329, %v586, 2147483647
          %v2346 = vsel %vm2330, %v586, 2147483647
          %v2347 = vsel %vm2331, %v586, 2147483647
          %v2348 = vsel %vm2332, %v586, 2147483647
          %v2349 = vsel %vm2333, %v586, 2147483647
          %v2350 = vsel %vm2334, %v586, 2147483647
          %v2351 = vsel %vm2335, %v586, 2147483647
          %v2352 = vsel %vm2336, %v586, 2147483647
          %v2353 = vand.u32 %v2337, 65535
          %v2354 = vshra.s32 %v2337, 16
          %v2355 = vcvt.s32.f32 %v2353
          %v2356 = vcvt.s32.f32 %v2354
          %2357 = vmin.xlane.f32.xlu0 %v2356
          %v2358 = vpop.xlane.xlu0 %2357
          %vm2359 = vcmp.eq.f32.partialorder %v2356, %v2358
          %v2360 = vsel %vm2359, %v2355, inf
          %2361 = vmin.xlane.f32.xlu0 %v2360
          %v2362 = vpop.xlane.xlu0 %2361
          %v2363 = vcvt.f32.s32 %v2362
          %v2364 = vcvt.f32.s32 %v2358
          %v2365 = vshll.u32 %v2364, 16
          %v2366 = vadd.s32 %v2365, %v2363
          %v2367 = vand.u32 %v2338, 65535
          %v2368 = vshra.s32 %v2338, 16
          %v2369 = vcvt.s32.f32 %v2367
          %v2370 = vcvt.s32.f32 %v2368
          %2371 = vmin.xlane.f32.xlu0 %v2370
          %v2372 = vpop.xlane.xlu0 %2371
          %vm2373 = vcmp.eq.f32.partialorder %v2370, %v2372
          %v2374 = vsel %vm2373, %v2369, inf
          %2375 = vmin.xlane.f32.xlu0 %v2374
          %v2376 = vpop.xlane.xlu0 %2375
          %v2377 = vcvt.f32.s32 %v2376
          %v2378 = vcvt.f32.s32 %v2372
          %v2379 = vshll.u32 %v2378, 16
          %v2380 = vadd.s32 %v2379, %v2377
          %v2381 = vand.u32 %v2339, 65535
          %v2382 = vshra.s32 %v2339, 16
          %v2383 = vcvt.s32.f32 %v2381
          %v2384 = vcvt.s32.f32 %v2382
          %2385 = vmin.xlane.f32.xlu0 %v2384
          %v2386 = vpop.xlane.xlu0 %2385
          %vm2387 = vcmp.eq.f32.partialorder %v2384, %v2386
          %v2388 = vsel %vm2387, %v2383, inf
          %2389 = vmin.xlane.f32.xlu0 %v2388
          %v2390 = vpop.xlane.xlu0 %2389
          %v2391 = vcvt.f32.s32 %v2390
          %v2392 = vcvt.f32.s32 %v2386
          %v2393 = vshll.u32 %v2392, 16
          %v2394 = vadd.s32 %v2393, %v2391
          %v2395 = vand.u32 %v2340, 65535
          %v2396 = vshra.s32 %v2340, 16
          %v2397 = vcvt.s32.f32 %v2395
          %v2398 = vcvt.s32.f32 %v2396
          %2399 = vmin.xlane.f32.xlu0 %v2398
          %v2400 = vpop.xlane.xlu0 %2399
          %vm2401 = vcmp.eq.f32.partialorder %v2398, %v2400
          %v2402 = vsel %vm2401, %v2397, inf
          %2403 = vmin.xlane.f32.xlu0 %v2402
          %v2404 = vpop.xlane.xlu0 %2403
          %v2405 = vcvt.f32.s32 %v2404
          %v2406 = vcvt.f32.s32 %v2400
          %v2407 = vshll.u32 %v2406, 16
          %v2408 = vadd.s32 %v2407, %v2405
          %v2409 = vand.u32 %v2341, 65535
          %v2410 = vshra.s32 %v2341, 16
          %v2411 = vcvt.s32.f32 %v2409
          %v2412 = vcvt.s32.f32 %v2410
          %2413 = vmin.xlane.f32.xlu0 %v2412
          %v2414 = vpop.xlane.xlu0 %2413
          %vm2415 = vcmp.eq.f32.partialorder %v2412, %v2414
          %v2416 = vsel %vm2415, %v2411, inf
          %2417 = vmin.xlane.f32.xlu0 %v2416
          %v2418 = vpop.xlane.xlu0 %2417
          %v2419 = vcvt.f32.s32 %v2418
          %v2420 = vcvt.f32.s32 %v2414
          %v2421 = vshll.u32 %v2420, 16
          %v2422 = vadd.s32 %v2421, %v2419
          %v2423 = vand.u32 %v2342, 65535
          %v2424 = vshra.s32 %v2342, 16
          %v2425 = vcvt.s32.f32 %v2423
          %v2426 = vcvt.s32.f32 %v2424
          %2427 = vmin.xlane.f32.xlu0 %v2426
          %v2428 = vpop.xlane.xlu0 %2427
          %vm2429 = vcmp.eq.f32.partialorder %v2426, %v2428
          %v2430 = vsel %vm2429, %v2425, inf
          %2431 = vmin.xlane.f32.xlu0 %v2430
          %v2432 = vpop.xlane.xlu0 %2431
          %v2433 = vcvt.f32.s32 %v2432
          %v2434 = vcvt.f32.s32 %v2428
          %v2435 = vshll.u32 %v2434, 16
          %v2436 = vadd.s32 %v2435, %v2433
          %v2437 = vand.u32 %v2343, 65535
          %v2438 = vshra.s32 %v2343, 16
          %v2439 = vcvt.s32.f32 %v2437
          %v2440 = vcvt.s32.f32 %v2438
          %2441 = vmin.xlane.f32.xlu0 %v2440
          %v2442 = vpop.xlane.xlu0 %2441
          %vm2443 = vcmp.eq.f32.partialorder %v2440, %v2442
          %v2444 = vsel %vm2443, %v2439, inf
          %2445 = vmin.xlane.f32.xlu0 %v2444
          %v2446 = vpop.xlane.xlu0 %2445
          %v2447 = vcvt.f32.s32 %v2446
          %v2448 = vcvt.f32.s32 %v2442
          %v2449 = vshll.u32 %v2448, 16
          %v2450 = vadd.s32 %v2449, %v2447
          %v2451 = vand.u32 %v2344, 65535
          %v2452 = vshra.s32 %v2344, 16
          %v2453 = vcvt.s32.f32 %v2451
          %v2454 = vcvt.s32.f32 %v2452
          %2455 = vmin.xlane.f32.xlu0 %v2454
          %v2456 = vpop.xlane.xlu0 %2455
          %vm2457 = vcmp.eq.f32.partialorder %v2454, %v2456
          %v2458 = vsel %vm2457, %v2453, inf
          %2459 = vmin.xlane.f32.xlu0 %v2458
          %v2460 = vpop.xlane.xlu0 %2459
          %v2461 = vcvt.f32.s32 %v2460
          %v2462 = vcvt.f32.s32 %v2456
          %v2463 = vshll.u32 %v2462, 16
          %v2464 = vadd.s32 %v2463, %v2461
          %v2465 = vand.u32 %v2345, 65535
          %v2466 = vshra.s32 %v2345, 16
          %v2467 = vcvt.s32.f32 %v2465
          %v2468 = vcvt.s32.f32 %v2466
          %2469 = vmin.xlane.f32.xlu0 %v2468
          %v2470 = vpop.xlane.xlu0 %2469
          %vm2471 = vcmp.eq.f32.partialorder %v2468, %v2470
          %v2472 = vsel %vm2471, %v2467, inf
          %2473 = vmin.xlane.f32.xlu0 %v2472
          %v2474 = vpop.xlane.xlu0 %2473
          %v2475 = vcvt.f32.s32 %v2474
          %v2476 = vcvt.f32.s32 %v2470
          %v2477 = vshll.u32 %v2476, 16
          %v2478 = vadd.s32 %v2477, %v2475
          %v2479 = vand.u32 %v2346, 65535
          %v2480 = vshra.s32 %v2346, 16
          %v2481 = vcvt.s32.f32 %v2479
          %v2482 = vcvt.s32.f32 %v2480
          %2483 = vmin.xlane.f32.xlu0 %v2482
          %v2484 = vpop.xlane.xlu0 %2483
          %vm2485 = vcmp.eq.f32.partialorder %v2482, %v2484
          %v2486 = vsel %vm2485, %v2481, inf
          %2487 = vmin.xlane.f32.xlu0 %v2486
          %v2488 = vpop.xlane.xlu0 %2487
          %v2489 = vcvt.f32.s32 %v2488
          %v2490 = vcvt.f32.s32 %v2484
          %v2491 = vshll.u32 %v2490, 16
          %v2492 = vadd.s32 %v2491, %v2489
          %v2493 = vand.u32 %v2347, 65535
          %v2494 = vshra.s32 %v2347, 16
          %v2495 = vcvt.s32.f32 %v2493
          %v2496 = vcvt.s32.f32 %v2494
          %2497 = vmin.xlane.f32.xlu0 %v2496
          %v2498 = vpop.xlane.xlu0 %2497
          %vm2499 = vcmp.eq.f32.partialorder %v2496, %v2498
          %v2500 = vsel %vm2499, %v2495, inf
          %2501 = vmin.xlane.f32.xlu0 %v2500
          %v2502 = vpop.xlane.xlu0 %2501
          %v2503 = vcvt.f32.s32 %v2502
          %v2504 = vcvt.f32.s32 %v2498
          %v2505 = vshll.u32 %v2504, 16
          %v2506 = vadd.s32 %v2505, %v2503
          %v2507 = vand.u32 %v2348, 65535
          %v2508 = vshra.s32 %v2348, 16
          %v2509 = vcvt.s32.f32 %v2507
          %v2510 = vcvt.s32.f32 %v2508
          %2511 = vmin.xlane.f32.xlu0 %v2510
          %v2512 = vpop.xlane.xlu0 %2511
          %vm2513 = vcmp.eq.f32.partialorder %v2510, %v2512
          %v2514 = vsel %vm2513, %v2509, inf
          %2515 = vmin.xlane.f32.xlu0 %v2514
          %v2516 = vpop.xlane.xlu0 %2515
          %v2517 = vcvt.f32.s32 %v2516
          %v2518 = vcvt.f32.s32 %v2512
          %v2519 = vshll.u32 %v2518, 16
          %v2520 = vadd.s32 %v2519, %v2517
          %v2521 = vand.u32 %v2349, 65535
          %v2522 = vshra.s32 %v2349, 16
          %v2523 = vcvt.s32.f32 %v2521
          %v2524 = vcvt.s32.f32 %v2522
          %2525 = vmin.xlane.f32.xlu0 %v2524
          %v2526 = vpop.xlane.xlu0 %2525
          %vm2527 = vcmp.eq.f32.partialorder %v2524, %v2526
          %v2528 = vsel %vm2527, %v2523, inf
          %2529 = vmin.xlane.f32.xlu0 %v2528
          %v2530 = vpop.xlane.xlu0 %2529
          %v2531 = vcvt.f32.s32 %v2530
          %v2532 = vcvt.f32.s32 %v2526
          %v2533 = vshll.u32 %v2532, 16
          %v2534 = vadd.s32 %v2533, %v2531
          %v2535 = vand.u32 %v2350, 65535
          %v2536 = vshra.s32 %v2350, 16
          %v2537 = vcvt.s32.f32 %v2535
          %v2538 = vcvt.s32.f32 %v2536
          %2539 = vmin.xlane.f32.xlu0 %v2538
          %v2540 = vpop.xlane.xlu0 %2539
          %vm2541 = vcmp.eq.f32.partialorder %v2538, %v2540
          %v2542 = vsel %vm2541, %v2537, inf
          %2543 = vmin.xlane.f32.xlu0 %v2542
          %v2544 = vpop.xlane.xlu0 %2543
          %v2545 = vcvt.f32.s32 %v2544
          %v2546 = vcvt.f32.s32 %v2540
          %v2547 = vshll.u32 %v2546, 16
          %v2548 = vadd.s32 %v2547, %v2545
          %v2549 = vand.u32 %v2351, 65535
          %v2550 = vshra.s32 %v2351, 16
          %v2551 = vcvt.s32.f32 %v2549
          %v2552 = vcvt.s32.f32 %v2550
          %2553 = vmin.xlane.f32.xlu0 %v2552
          %v2554 = vpop.xlane.xlu0 %2553
          %vm2555 = vcmp.eq.f32.partialorder %v2552, %v2554
          %v2556 = vsel %vm2555, %v2551, inf
          %2557 = vmin.xlane.f32.xlu0 %v2556
          %v2558 = vpop.xlane.xlu0 %2557
          %v2559 = vcvt.f32.s32 %v2558
          %v2560 = vcvt.f32.s32 %v2554
          %v2561 = vshll.u32 %v2560, 16
          %v2562 = vadd.s32 %v2561, %v2559
          %v2563 = vand.u32 %v2352, 65535
          %v2564 = vshra.s32 %v2352, 16
          %v2565 = vcvt.s32.f32 %v2563
          %v2566 = vcvt.s32.f32 %v2564
          %2567 = vmin.xlane.f32.xlu0 %v2566
          %v2568 = vpop.xlane.xlu0 %2567
          %vm2569 = vcmp.eq.f32.partialorder %v2566, %v2568
          %v2570 = vsel %vm2569, %v2565, inf
          %2571 = vmin.xlane.f32.xlu0 %v2570
          %v2572 = vpop.xlane.xlu0 %2571
          %v2573 = vcvt.f32.s32 %v2572
          %v2574 = vcvt.f32.s32 %v2568
          %v2575 = vshll.u32 %v2574, 16
          %v2576 = vadd.s32 %v2575, %v2573
          %vm2577 = vcmp.eq.s32.totalorder %v586, %v2366
          %vm2578 = vcmp.eq.s32.totalorder %v586, %v2380
          %vm2579 = vcmp.eq.s32.totalorder %v586, %v2394
          %vm2580 = vcmp.eq.s32.totalorder %v586, %v2408
          %vm2581 = vcmp.eq.s32.totalorder %v586, %v2422
          %vm2582 = vcmp.eq.s32.totalorder %v586, %v2436
          %vm2583 = vcmp.eq.s32.totalorder %v586, %v2450
          %vm2584 = vcmp.eq.s32.totalorder %v586, %v2464
          %vm2585 = vcmp.eq.s32.totalorder %v586, %v2478
          %vm2586 = vcmp.eq.s32.totalorder %v586, %v2492
          %vm2587 = vcmp.eq.s32.totalorder %v586, %v2506
          %vm2588 = vcmp.eq.s32.totalorder %v586, %v2520
          %vm2589 = vcmp.eq.s32.totalorder %v586, %v2534
          %vm2590 = vcmp.eq.s32.totalorder %v586, %v2548
          %vm2591 = vcmp.eq.s32.totalorder %v586, %v2562
          %vm2592 = vcmp.eq.s32.totalorder %v586, %v2576
          %v2593 = vsel %vm2577, -inf, %v2273
          %v2594 = vsel %vm2578, -inf, %v2274
          %v2595 = vsel %vm2579, -inf, %v2275
          %v2596 = vsel %vm2580, -inf, %v2276
          %v2597 = vsel %vm2581, -inf, %v2277
          %v2598 = vsel %vm2582, -inf, %v2278
          %v2599 = vsel %vm2583, -inf, %v2279
          %v2600 = vsel %vm2584, -inf, %v2280
          %v2601 = vsel %vm2585, -inf, %v2281
          %v2602 = vsel %vm2586, -inf, %v2282
          %v2603 = vsel %vm2587, -inf, %v2283
          %v2604 = vsel %vm2588, -inf, %v2284
          %v2605 = vsel %vm2589, -inf, %v2285
          %v2606 = vsel %vm2590, -inf, %v2286
          %v2607 = vsel %vm2591, -inf, %v2287
          %v2608 = vsel %vm2592, -inf, %v2288
          %2609 = vmax.xlane.f32.xlu0 %v2593
          %v2610 = vpop.xlane.xlu0 %2609
          %2611 = vmax.xlane.f32.xlu0 %v2594
          %v2612 = vpop.xlane.xlu0 %2611
          %2613 = vmax.xlane.f32.xlu0 %v2595
          %v2614 = vpop.xlane.xlu0 %2613
          %2615 = vmax.xlane.f32.xlu0 %v2596
          %v2616 = vpop.xlane.xlu0 %2615
          %2617 = vmax.xlane.f32.xlu0 %v2597
          %v2618 = vpop.xlane.xlu0 %2617
          %2619 = vmax.xlane.f32.xlu0 %v2598
          %v2620 = vpop.xlane.xlu0 %2619
          %2621 = vmax.xlane.f32.xlu0 %v2599
          %v2622 = vpop.xlane.xlu0 %2621
          %2623 = vmax.xlane.f32.xlu0 %v2600
          %v2624 = vpop.xlane.xlu0 %2623
          %2625 = vmax.xlane.f32.xlu0 %v2601
          %v2626 = vpop.xlane.xlu0 %2625
          %2627 = vmax.xlane.f32.xlu0 %v2602
          %v2628 = vpop.xlane.xlu0 %2627
          %2629 = vmax.xlane.f32.xlu0 %v2603
          %v2630 = vpop.xlane.xlu0 %2629
          %2631 = vmax.xlane.f32.xlu0 %v2604
          %v2632 = vpop.xlane.xlu0 %2631
          %2633 = vmax.xlane.f32.xlu0 %v2605
          %v2634 = vpop.xlane.xlu0 %2633
          %2635 = vmax.xlane.f32.xlu0 %v2606
          %v2636 = vpop.xlane.xlu0 %2635
          %2637 = vmax.xlane.f32.xlu0 %v2607
          %v2638 = vpop.xlane.xlu0 %2637
          %2639 = vmax.xlane.f32.xlu0 %v2608
          %v2640 = vpop.xlane.xlu0 %2639
          %vm2641 = vcmp.eq.f32.partialorder %v2593, %v2610
          %vm2642 = vcmp.eq.f32.partialorder %v2594, %v2612
          %vm2643 = vcmp.eq.f32.partialorder %v2595, %v2614
          %vm2644 = vcmp.eq.f32.partialorder %v2596, %v2616
          %vm2645 = vcmp.eq.f32.partialorder %v2597, %v2618
          %vm2646 = vcmp.eq.f32.partialorder %v2598, %v2620
          %vm2647 = vcmp.eq.f32.partialorder %v2599, %v2622
          %vm2648 = vcmp.eq.f32.partialorder %v2600, %v2624
          %vm2649 = vcmp.eq.f32.partialorder %v2601, %v2626
          %vm2650 = vcmp.eq.f32.partialorder %v2602, %v2628
          %vm2651 = vcmp.eq.f32.partialorder %v2603, %v2630
          %vm2652 = vcmp.eq.f32.partialorder %v2604, %v2632
          %vm2653 = vcmp.eq.f32.partialorder %v2605, %v2634
          %vm2654 = vcmp.eq.f32.partialorder %v2606, %v2636
          %vm2655 = vcmp.eq.f32.partialorder %v2607, %v2638
          %vm2656 = vcmp.eq.f32.partialorder %v2608, %v2640
          %v2657 = vsel %vm2641, %v586, 2147483647
          %v2658 = vsel %vm2642, %v586, 2147483647
          %v2659 = vsel %vm2643, %v586, 2147483647
          %v2660 = vsel %vm2644, %v586, 2147483647
          %v2661 = vsel %vm2645, %v586, 2147483647
          %v2662 = vsel %vm2646, %v586, 2147483647
          %v2663 = vsel %vm2647, %v586, 2147483647
          %v2664 = vsel %vm2648, %v586, 2147483647
          %v2665 = vsel %vm2649, %v586, 2147483647
          %v2666 = vsel %vm2650, %v586, 2147483647
          %v2667 = vsel %vm2651, %v586, 2147483647
          %v2668 = vsel %vm2652, %v586, 2147483647
          %v2669 = vsel %vm2653, %v586, 2147483647
          %v2670 = vsel %vm2654, %v586, 2147483647
          %v2671 = vsel %vm2655, %v586, 2147483647
          %v2672 = vsel %vm2656, %v586, 2147483647
          %v2673 = vand.u32 %v2657, 65535
          %v2674 = vshra.s32 %v2657, 16
          %v2675 = vcvt.s32.f32 %v2673
          %v2676 = vcvt.s32.f32 %v2674
          %2677 = vmin.xlane.f32.xlu0 %v2676
          %v2678 = vpop.xlane.xlu0 %2677
          %vm2679 = vcmp.eq.f32.partialorder %v2676, %v2678
          %v2680 = vsel %vm2679, %v2675, inf
          %2681 = vmin.xlane.f32.xlu0 %v2680
          %v2682 = vpop.xlane.xlu0 %2681
          %v2683 = vcvt.f32.s32 %v2682
          %v2684 = vcvt.f32.s32 %v2678
          %v2685 = vshll.u32 %v2684, 16
          %v2686 = vadd.s32 %v2685, %v2683
          %v2687 = vand.u32 %v2658, 65535
          %v2688 = vshra.s32 %v2658, 16
          %v2689 = vcvt.s32.f32 %v2687
          %v2690 = vcvt.s32.f32 %v2688
          %2691 = vmin.xlane.f32.xlu0 %v2690
          %v2692 = vpop.xlane.xlu0 %2691
          %vm2693 = vcmp.eq.f32.partialorder %v2690, %v2692
          %v2694 = vsel %vm2693, %v2689, inf
          %2695 = vmin.xlane.f32.xlu0 %v2694
          %v2696 = vpop.xlane.xlu0 %2695
          %v2697 = vcvt.f32.s32 %v2696
          %v2698 = vcvt.f32.s32 %v2692
          %v2699 = vshll.u32 %v2698, 16
          %v2700 = vadd.s32 %v2699, %v2697
          %v2701 = vand.u32 %v2659, 65535
          %v2702 = vshra.s32 %v2659, 16
          %v2703 = vcvt.s32.f32 %v2701
          %v2704 = vcvt.s32.f32 %v2702
          %2705 = vmin.xlane.f32.xlu0 %v2704
          %v2706 = vpop.xlane.xlu0 %2705
          %vm2707 = vcmp.eq.f32.partialorder %v2704, %v2706
          %v2708 = vsel %vm2707, %v2703, inf
          %2709 = vmin.xlane.f32.xlu0 %v2708
          %v2710 = vpop.xlane.xlu0 %2709
          %v2711 = vcvt.f32.s32 %v2710
          %v2712 = vcvt.f32.s32 %v2706
          %v2713 = vshll.u32 %v2712, 16
          %v2714 = vadd.s32 %v2713, %v2711
          %v2715 = vand.u32 %v2660, 65535
          %v2716 = vshra.s32 %v2660, 16
          %v2717 = vcvt.s32.f32 %v2715
          %v2718 = vcvt.s32.f32 %v2716
          %2719 = vmin.xlane.f32.xlu0 %v2718
          %v2720 = vpop.xlane.xlu0 %2719
          %vm2721 = vcmp.eq.f32.partialorder %v2718, %v2720
          %v2722 = vsel %vm2721, %v2717, inf
          %2723 = vmin.xlane.f32.xlu0 %v2722
          %v2724 = vpop.xlane.xlu0 %2723
          %v2725 = vcvt.f32.s32 %v2724
          %v2726 = vcvt.f32.s32 %v2720
          %v2727 = vshll.u32 %v2726, 16
          %v2728 = vadd.s32 %v2727, %v2725
          %v2729 = vand.u32 %v2661, 65535
          %v2730 = vshra.s32 %v2661, 16
          %v2731 = vcvt.s32.f32 %v2729
          %v2732 = vcvt.s32.f32 %v2730
          %2733 = vmin.xlane.f32.xlu0 %v2732
          %v2734 = vpop.xlane.xlu0 %2733
          %vm2735 = vcmp.eq.f32.partialorder %v2732, %v2734
          %v2736 = vsel %vm2735, %v2731, inf
          %2737 = vmin.xlane.f32.xlu0 %v2736
          %v2738 = vpop.xlane.xlu0 %2737
          %v2739 = vcvt.f32.s32 %v2738
          %v2740 = vcvt.f32.s32 %v2734
          %v2741 = vshll.u32 %v2740, 16
          %v2742 = vadd.s32 %v2741, %v2739
          %v2743 = vand.u32 %v2662, 65535
          %v2744 = vshra.s32 %v2662, 16
          %v2745 = vcvt.s32.f32 %v2743
          %v2746 = vcvt.s32.f32 %v2744
          %2747 = vmin.xlane.f32.xlu0 %v2746
          %v2748 = vpop.xlane.xlu0 %2747
          %vm2749 = vcmp.eq.f32.partialorder %v2746, %v2748
          %v2750 = vsel %vm2749, %v2745, inf
          %2751 = vmin.xlane.f32.xlu0 %v2750
          %v2752 = vpop.xlane.xlu0 %2751
          %v2753 = vcvt.f32.s32 %v2752
          %v2754 = vcvt.f32.s32 %v2748
          %v2755 = vshll.u32 %v2754, 16
          %v2756 = vadd.s32 %v2755, %v2753
          %v2757 = vand.u32 %v2663, 65535
          %v2758 = vshra.s32 %v2663, 16
          %v2759 = vcvt.s32.f32 %v2757
          %v2760 = vcvt.s32.f32 %v2758
          %2761 = vmin.xlane.f32.xlu0 %v2760
          %v2762 = vpop.xlane.xlu0 %2761
          %vm2763 = vcmp.eq.f32.partialorder %v2760, %v2762
          %v2764 = vsel %vm2763, %v2759, inf
          %2765 = vmin.xlane.f32.xlu0 %v2764
          %v2766 = vpop.xlane.xlu0 %2765
          %v2767 = vcvt.f32.s32 %v2766
          %v2768 = vcvt.f32.s32 %v2762
          %v2769 = vshll.u32 %v2768, 16
          %v2770 = vadd.s32 %v2769, %v2767
          %v2771 = vand.u32 %v2664, 65535
          %v2772 = vshra.s32 %v2664, 16
          %v2773 = vcvt.s32.f32 %v2771
          %v2774 = vcvt.s32.f32 %v2772
          %2775 = vmin.xlane.f32.xlu0 %v2774
          %v2776 = vpop.xlane.xlu0 %2775
          %vm2777 = vcmp.eq.f32.partialorder %v2774, %v2776
          %v2778 = vsel %vm2777, %v2773, inf
          %2779 = vmin.xlane.f32.xlu0 %v2778
          %v2780 = vpop.xlane.xlu0 %2779
          %v2781 = vcvt.f32.s32 %v2780
          %v2782 = vcvt.f32.s32 %v2776
          %v2783 = vshll.u32 %v2782, 16
          %v2784 = vadd.s32 %v2783, %v2781
          %v2785 = vand.u32 %v2665, 65535
          %v2786 = vshra.s32 %v2665, 16
          %v2787 = vcvt.s32.f32 %v2785
          %v2788 = vcvt.s32.f32 %v2786
          %2789 = vmin.xlane.f32.xlu0 %v2788
          %v2790 = vpop.xlane.xlu0 %2789
          %vm2791 = vcmp.eq.f32.partialorder %v2788, %v2790
          %v2792 = vsel %vm2791, %v2787, inf
          %2793 = vmin.xlane.f32.xlu0 %v2792
          %v2794 = vpop.xlane.xlu0 %2793
          %v2795 = vcvt.f32.s32 %v2794
          %v2796 = vcvt.f32.s32 %v2790
          %v2797 = vshll.u32 %v2796, 16
          %v2798 = vadd.s32 %v2797, %v2795
          %v2799 = vand.u32 %v2666, 65535
          %v2800 = vshra.s32 %v2666, 16
          %v2801 = vcvt.s32.f32 %v2799
          %v2802 = vcvt.s32.f32 %v2800
          %2803 = vmin.xlane.f32.xlu0 %v2802
          %v2804 = vpop.xlane.xlu0 %2803
          %vm2805 = vcmp.eq.f32.partialorder %v2802, %v2804
          %v2806 = vsel %vm2805, %v2801, inf
          %2807 = vmin.xlane.f32.xlu0 %v2806
          %v2808 = vpop.xlane.xlu0 %2807
          %v2809 = vcvt.f32.s32 %v2808
          %v2810 = vcvt.f32.s32 %v2804
          %v2811 = vshll.u32 %v2810, 16
          %v2812 = vadd.s32 %v2811, %v2809
          %v2813 = vand.u32 %v2667, 65535
          %v2814 = vshra.s32 %v2667, 16
          %v2815 = vcvt.s32.f32 %v2813
          %v2816 = vcvt.s32.f32 %v2814
          %2817 = vmin.xlane.f32.xlu0 %v2816
          %v2818 = vpop.xlane.xlu0 %2817
          %vm2819 = vcmp.eq.f32.partialorder %v2816, %v2818
          %v2820 = vsel %vm2819, %v2815, inf
          %2821 = vmin.xlane.f32.xlu0 %v2820
          %v2822 = vpop.xlane.xlu0 %2821
          %v2823 = vcvt.f32.s32 %v2822
          %v2824 = vcvt.f32.s32 %v2818
          %v2825 = vshll.u32 %v2824, 16
          %v2826 = vadd.s32 %v2825, %v2823
          %v2827 = vand.u32 %v2668, 65535
          %v2828 = vshra.s32 %v2668, 16
          %v2829 = vcvt.s32.f32 %v2827
          %v2830 = vcvt.s32.f32 %v2828
          %2831 = vmin.xlane.f32.xlu0 %v2830
          %v2832 = vpop.xlane.xlu0 %2831
          %vm2833 = vcmp.eq.f32.partialorder %v2830, %v2832
          %v2834 = vsel %vm2833, %v2829, inf
          %2835 = vmin.xlane.f32.xlu0 %v2834
          %v2836 = vpop.xlane.xlu0 %2835
          %v2837 = vcvt.f32.s32 %v2836
          %v2838 = vcvt.f32.s32 %v2832
          %v2839 = vshll.u32 %v2838, 16
          %v2840 = vadd.s32 %v2839, %v2837
          %v2841 = vand.u32 %v2669, 65535
          %v2842 = vshra.s32 %v2669, 16
          %v2843 = vcvt.s32.f32 %v2841
          %v2844 = vcvt.s32.f32 %v2842
          %2845 = vmin.xlane.f32.xlu0 %v2844
          %v2846 = vpop.xlane.xlu0 %2845
          %vm2847 = vcmp.eq.f32.partialorder %v2844, %v2846
          %v2848 = vsel %vm2847, %v2843, inf
          %2849 = vmin.xlane.f32.xlu0 %v2848
          %v2850 = vpop.xlane.xlu0 %2849
          %v2851 = vcvt.f32.s32 %v2850
          %v2852 = vcvt.f32.s32 %v2846
          %v2853 = vshll.u32 %v2852, 16
          %v2854 = vadd.s32 %v2853, %v2851
          %v2855 = vand.u32 %v2670, 65535
          %v2856 = vshra.s32 %v2670, 16
          %v2857 = vcvt.s32.f32 %v2855
          %v2858 = vcvt.s32.f32 %v2856
          %2859 = vmin.xlane.f32.xlu0 %v2858
          %v2860 = vpop.xlane.xlu0 %2859
          %vm2861 = vcmp.eq.f32.partialorder %v2858, %v2860
          %v2862 = vsel %vm2861, %v2857, inf
          %2863 = vmin.xlane.f32.xlu0 %v2862
          %v2864 = vpop.xlane.xlu0 %2863
          %v2865 = vcvt.f32.s32 %v2864
          %v2866 = vcvt.f32.s32 %v2860
          %v2867 = vshll.u32 %v2866, 16
          %v2868 = vadd.s32 %v2867, %v2865
          %v2869 = vand.u32 %v2671, 65535
          %v2870 = vshra.s32 %v2671, 16
          %v2871 = vcvt.s32.f32 %v2869
          %v2872 = vcvt.s32.f32 %v2870
          %2873 = vmin.xlane.f32.xlu0 %v2872
          %v2874 = vpop.xlane.xlu0 %2873
          %vm2875 = vcmp.eq.f32.partialorder %v2872, %v2874
          %v2876 = vsel %vm2875, %v2871, inf
          %2877 = vmin.xlane.f32.xlu0 %v2876
          %v2878 = vpop.xlane.xlu0 %2877
          %v2879 = vcvt.f32.s32 %v2878
          %v2880 = vcvt.f32.s32 %v2874
          %v2881 = vshll.u32 %v2880, 16
          %v2882 = vadd.s32 %v2881, %v2879
          %v2883 = vand.u32 %v2672, 65535
          %v2884 = vshra.s32 %v2672, 16
          %v2885 = vcvt.s32.f32 %v2883
          %v2886 = vcvt.s32.f32 %v2884
          %2887 = vmin.xlane.f32.xlu0 %v2886
          %v2888 = vpop.xlane.xlu0 %2887
          %vm2889 = vcmp.eq.f32.partialorder %v2886, %v2888
          %v2890 = vsel %vm2889, %v2885, inf
          %2891 = vmin.xlane.f32.xlu0 %v2890
          %v2892 = vpop.xlane.xlu0 %2891
          %v2893 = vcvt.f32.s32 %v2892
          %v2894 = vcvt.f32.s32 %v2888
          %v2895 = vshll.u32 %v2894, 16
          %v2896 = vadd.s32 %v2895, %v2893
          %vm2897 = vcmp.eq.s32.totalorder %v586, %v2686
          %vm2898 = vcmp.eq.s32.totalorder %v586, %v2700
          %vm2899 = vcmp.eq.s32.totalorder %v586, %v2714
          %vm2900 = vcmp.eq.s32.totalorder %v586, %v2728
          %vm2901 = vcmp.eq.s32.totalorder %v586, %v2742
          %vm2902 = vcmp.eq.s32.totalorder %v586, %v2756
          %vm2903 = vcmp.eq.s32.totalorder %v586, %v2770
          %vm2904 = vcmp.eq.s32.totalorder %v586, %v2784
          %vm2905 = vcmp.eq.s32.totalorder %v586, %v2798
          %vm2906 = vcmp.eq.s32.totalorder %v586, %v2812
          %vm2907 = vcmp.eq.s32.totalorder %v586, %v2826
          %vm2908 = vcmp.eq.s32.totalorder %v586, %v2840
          %vm2909 = vcmp.eq.s32.totalorder %v586, %v2854
          %vm2910 = vcmp.eq.s32.totalorder %v586, %v2868
          %vm2911 = vcmp.eq.s32.totalorder %v586, %v2882
          %vm2912 = vcmp.eq.s32.totalorder %v586, %v2896
          %v2913 = vsel %vm2897, -inf, %v2593
          %v2914 = vsel %vm2898, -inf, %v2594
          %v2915 = vsel %vm2899, -inf, %v2595
          %v2916 = vsel %vm2900, -inf, %v2596
          %v2917 = vsel %vm2901, -inf, %v2597
          %v2918 = vsel %vm2902, -inf, %v2598
          %v2919 = vsel %vm2903, -inf, %v2599
          %v2920 = vsel %vm2904, -inf, %v2600
          %v2921 = vsel %vm2905, -inf, %v2601
          %v2922 = vsel %vm2906, -inf, %v2602
          %v2923 = vsel %vm2907, -inf, %v2603
          %v2924 = vsel %vm2908, -inf, %v2604
          %v2925 = vsel %vm2909, -inf, %v2605
          %v2926 = vsel %vm2910, -inf, %v2606
          %v2927 = vsel %vm2911, -inf, %v2607
          %v2928 = vsel %vm2912, -inf, %v2608
          %2929 = vmax.xlane.f32.xlu0 %v2913
          %v2930 = vpop.xlane.xlu0 %2929
          %2931 = vmax.xlane.f32.xlu0 %v2914
          %v2932 = vpop.xlane.xlu0 %2931
          %2933 = vmax.xlane.f32.xlu0 %v2915
          %v2934 = vpop.xlane.xlu0 %2933
          %2935 = vmax.xlane.f32.xlu0 %v2916
          %v2936 = vpop.xlane.xlu0 %2935
          %2937 = vmax.xlane.f32.xlu0 %v2917
          %v2938 = vpop.xlane.xlu0 %2937
          %2939 = vmax.xlane.f32.xlu0 %v2918
          %v2940 = vpop.xlane.xlu0 %2939
          %2941 = vmax.xlane.f32.xlu0 %v2919
          %v2942 = vpop.xlane.xlu0 %2941
          %2943 = vmax.xlane.f32.xlu0 %v2920
          %v2944 = vpop.xlane.xlu0 %2943
          %2945 = vmax.xlane.f32.xlu0 %v2921
          %v2946 = vpop.xlane.xlu0 %2945
          %2947 = vmax.xlane.f32.xlu0 %v2922
          %v2948 = vpop.xlane.xlu0 %2947
          %2949 = vmax.xlane.f32.xlu0 %v2923
          %v2950 = vpop.xlane.xlu0 %2949
          %2951 = vmax.xlane.f32.xlu0 %v2924
          %v2952 = vpop.xlane.xlu0 %2951
          %2953 = vmax.xlane.f32.xlu0 %v2925
          %v2954 = vpop.xlane.xlu0 %2953
          %2955 = vmax.xlane.f32.xlu0 %v2926
          %v2956 = vpop.xlane.xlu0 %2955
          %2957 = vmax.xlane.f32.xlu0 %v2927
          %v2958 = vpop.xlane.xlu0 %2957
          %2959 = vmax.xlane.f32.xlu0 %v2928
          %v2960 = vpop.xlane.xlu0 %2959
          %vm2961 = vcmp.eq.f32.partialorder %v2913, %v2930
          %vm2962 = vcmp.eq.f32.partialorder %v2914, %v2932
          %vm2963 = vcmp.eq.f32.partialorder %v2915, %v2934
          %vm2964 = vcmp.eq.f32.partialorder %v2916, %v2936
          %vm2965 = vcmp.eq.f32.partialorder %v2917, %v2938
          %vm2966 = vcmp.eq.f32.partialorder %v2918, %v2940
          %vm2967 = vcmp.eq.f32.partialorder %v2919, %v2942
          %vm2968 = vcmp.eq.f32.partialorder %v2920, %v2944
          %vm2969 = vcmp.eq.f32.partialorder %v2921, %v2946
          %vm2970 = vcmp.eq.f32.partialorder %v2922, %v2948
          %vm2971 = vcmp.eq.f32.partialorder %v2923, %v2950
          %vm2972 = vcmp.eq.f32.partialorder %v2924, %v2952
          %vm2973 = vcmp.eq.f32.partialorder %v2925, %v2954
          %vm2974 = vcmp.eq.f32.partialorder %v2926, %v2956
          %vm2975 = vcmp.eq.f32.partialorder %v2927, %v2958
          %vm2976 = vcmp.eq.f32.partialorder %v2928, %v2960
          %v2977 = vsel %vm2961, %v586, 2147483647
          %v2978 = vsel %vm2962, %v586, 2147483647
          %v2979 = vsel %vm2963, %v586, 2147483647
          %v2980 = vsel %vm2964, %v586, 2147483647
          %v2981 = vsel %vm2965, %v586, 2147483647
          %v2982 = vsel %vm2966, %v586, 2147483647
          %v2983 = vsel %vm2967, %v586, 2147483647
          %v2984 = vsel %vm2968, %v586, 2147483647
          %v2985 = vsel %vm2969, %v586, 2147483647
          %v2986 = vsel %vm2970, %v586, 2147483647
          %v2987 = vsel %vm2971, %v586, 2147483647
          %v2988 = vsel %vm2972, %v586, 2147483647
          %v2989 = vsel %vm2973, %v586, 2147483647
          %v2990 = vsel %vm2974, %v586, 2147483647
          %v2991 = vsel %vm2975, %v586, 2147483647
          %v2992 = vsel %vm2976, %v586, 2147483647
          %v2993 = vand.u32 %v2977, 65535
          %v2994 = vshra.s32 %v2977, 16
          %v2995 = vcvt.s32.f32 %v2993
          %v2996 = vcvt.s32.f32 %v2994
          %2997 = vmin.xlane.f32.xlu0 %v2996
          %v2998 = vpop.xlane.xlu0 %2997
          %vm2999 = vcmp.eq.f32.partialorder %v2996, %v2998
          %v3000 = vsel %vm2999, %v2995, inf
          %3001 = vmin.xlane.f32.xlu0 %v3000
          %v3002 = vpop.xlane.xlu0 %3001
          %v3003 = vcvt.f32.s32 %v3002
          %v3004 = vcvt.f32.s32 %v2998
          %v3005 = vshll.u32 %v3004, 16
          %v3006 = vadd.s32 %v3005, %v3003
          %v3007 = vand.u32 %v2978, 65535
          %v3008 = vshra.s32 %v2978, 16
          %v3009 = vcvt.s32.f32 %v3007
          %v3010 = vcvt.s32.f32 %v3008
          %3011 = vmin.xlane.f32.xlu0 %v3010
          %v3012 = vpop.xlane.xlu0 %3011
          %vm3013 = vcmp.eq.f32.partialorder %v3010, %v3012
          %v3014 = vsel %vm3013, %v3009, inf
          %3015 = vmin.xlane.f32.xlu0 %v3014
          %v3016 = vpop.xlane.xlu0 %3015
          %v3017 = vcvt.f32.s32 %v3016
          %v3018 = vcvt.f32.s32 %v3012
          %v3019 = vshll.u32 %v3018, 16
          %v3020 = vadd.s32 %v3019, %v3017
          %v3021 = vand.u32 %v2979, 65535
          %v3022 = vshra.s32 %v2979, 16
          %v3023 = vcvt.s32.f32 %v3021
          %v3024 = vcvt.s32.f32 %v3022
          %3025 = vmin.xlane.f32.xlu0 %v3024
          %v3026 = vpop.xlane.xlu0 %3025
          %vm3027 = vcmp.eq.f32.partialorder %v3024, %v3026
          %v3028 = vsel %vm3027, %v3023, inf
          %3029 = vmin.xlane.f32.xlu0 %v3028
          %v3030 = vpop.xlane.xlu0 %3029
          %v3031 = vcvt.f32.s32 %v3030
          %v3032 = vcvt.f32.s32 %v3026
          %v3033 = vshll.u32 %v3032, 16
          %v3034 = vadd.s32 %v3033, %v3031
          %v3035 = vand.u32 %v2980, 65535
          %v3036 = vshra.s32 %v2980, 16
          %v3037 = vcvt.s32.f32 %v3035
          %v3038 = vcvt.s32.f32 %v3036
          %3039 = vmin.xlane.f32.xlu0 %v3038
          %v3040 = vpop.xlane.xlu0 %3039
          %vm3041 = vcmp.eq.f32.partialorder %v3038, %v3040
          %v3042 = vsel %vm3041, %v3037, inf
          %3043 = vmin.xlane.f32.xlu0 %v3042
          %v3044 = vpop.xlane.xlu0 %3043
          %v3045 = vcvt.f32.s32 %v3044
          %v3046 = vcvt.f32.s32 %v3040
          %v3047 = vshll.u32 %v3046, 16
          %v3048 = vadd.s32 %v3047, %v3045
          %v3049 = vand.u32 %v2981, 65535
          %v3050 = vshra.s32 %v2981, 16
          %v3051 = vcvt.s32.f32 %v3049
          %v3052 = vcvt.s32.f32 %v3050
          %3053 = vmin.xlane.f32.xlu0 %v3052
          %v3054 = vpop.xlane.xlu0 %3053
          %vm3055 = vcmp.eq.f32.partialorder %v3052, %v3054
          %v3056 = vsel %vm3055, %v3051, inf
          %3057 = vmin.xlane.f32.xlu0 %v3056
          %v3058 = vpop.xlane.xlu0 %3057
          %v3059 = vcvt.f32.s32 %v3058
          %v3060 = vcvt.f32.s32 %v3054
          %v3061 = vshll.u32 %v3060, 16
          %v3062 = vadd.s32 %v3061, %v3059
          %v3063 = vand.u32 %v2982, 65535
          %v3064 = vshra.s32 %v2982, 16
          %v3065 = vcvt.s32.f32 %v3063
          %v3066 = vcvt.s32.f32 %v3064
          %3067 = vmin.xlane.f32.xlu0 %v3066
          %v3068 = vpop.xlane.xlu0 %3067
          %vm3069 = vcmp.eq.f32.partialorder %v3066, %v3068
          %v3070 = vsel %vm3069, %v3065, inf
          %3071 = vmin.xlane.f32.xlu0 %v3070
          %v3072 = vpop.xlane.xlu0 %3071
          %v3073 = vcvt.f32.s32 %v3072
          %v3074 = vcvt.f32.s32 %v3068
          %v3075 = vshll.u32 %v3074, 16
          %v3076 = vadd.s32 %v3075, %v3073
          %v3077 = vand.u32 %v2983, 65535
          %v3078 = vshra.s32 %v2983, 16
          %v3079 = vcvt.s32.f32 %v3077
          %v3080 = vcvt.s32.f32 %v3078
          %3081 = vmin.xlane.f32.xlu0 %v3080
          %v3082 = vpop.xlane.xlu0 %3081
          %vm3083 = vcmp.eq.f32.partialorder %v3080, %v3082
          %v3084 = vsel %vm3083, %v3079, inf
          %3085 = vmin.xlane.f32.xlu0 %v3084
          %v3086 = vpop.xlane.xlu0 %3085
          %v3087 = vcvt.f32.s32 %v3086
          %v3088 = vcvt.f32.s32 %v3082
          %v3089 = vshll.u32 %v3088, 16
          %v3090 = vadd.s32 %v3089, %v3087
          %v3091 = vand.u32 %v2984, 65535
          %v3092 = vshra.s32 %v2984, 16
          %v3093 = vcvt.s32.f32 %v3091
          %v3094 = vcvt.s32.f32 %v3092
          %3095 = vmin.xlane.f32.xlu0 %v3094
          %v3096 = vpop.xlane.xlu0 %3095
          %vm3097 = vcmp.eq.f32.partialorder %v3094, %v3096
          %v3098 = vsel %vm3097, %v3093, inf
          %3099 = vmin.xlane.f32.xlu0 %v3098
          %v3100 = vpop.xlane.xlu0 %3099
          %v3101 = vcvt.f32.s32 %v3100
          %v3102 = vcvt.f32.s32 %v3096
          %v3103 = vshll.u32 %v3102, 16
          %v3104 = vadd.s32 %v3103, %v3101
          %v3105 = vand.u32 %v2985, 65535
          %v3106 = vshra.s32 %v2985, 16
          %v3107 = vcvt.s32.f32 %v3105
          %v3108 = vcvt.s32.f32 %v3106
          %3109 = vmin.xlane.f32.xlu0 %v3108
          %v3110 = vpop.xlane.xlu0 %3109
          %vm3111 = vcmp.eq.f32.partialorder %v3108, %v3110
          %v3112 = vsel %vm3111, %v3107, inf
          %3113 = vmin.xlane.f32.xlu0 %v3112
          %v3114 = vpop.xlane.xlu0 %3113
          %v3115 = vcvt.f32.s32 %v3114
          %v3116 = vcvt.f32.s32 %v3110
          %v3117 = vshll.u32 %v3116, 16
          %v3118 = vadd.s32 %v3117, %v3115
          %v3119 = vand.u32 %v2986, 65535
          %v3120 = vshra.s32 %v2986, 16
          %v3121 = vcvt.s32.f32 %v3119
          %v3122 = vcvt.s32.f32 %v3120
          %3123 = vmin.xlane.f32.xlu0 %v3122
          %v3124 = vpop.xlane.xlu0 %3123
          %vm3125 = vcmp.eq.f32.partialorder %v3122, %v3124
          %v3126 = vsel %vm3125, %v3121, inf
          %3127 = vmin.xlane.f32.xlu0 %v3126
          %v3128 = vpop.xlane.xlu0 %3127
          %v3129 = vcvt.f32.s32 %v3128
          %v3130 = vcvt.f32.s32 %v3124
          %v3131 = vshll.u32 %v3130, 16
          %v3132 = vadd.s32 %v3131, %v3129
          %v3133 = vand.u32 %v2987, 65535
          %v3134 = vshra.s32 %v2987, 16
          %v3135 = vcvt.s32.f32 %v3133
          %v3136 = vcvt.s32.f32 %v3134
          %3137 = vmin.xlane.f32.xlu0 %v3136
          %v3138 = vpop.xlane.xlu0 %3137
          %vm3139 = vcmp.eq.f32.partialorder %v3136, %v3138
          %v3140 = vsel %vm3139, %v3135, inf
          %3141 = vmin.xlane.f32.xlu0 %v3140
          %v3142 = vpop.xlane.xlu0 %3141
          %v3143 = vcvt.f32.s32 %v3142
          %v3144 = vcvt.f32.s32 %v3138
          %v3145 = vshll.u32 %v3144, 16
          %v3146 = vadd.s32 %v3145, %v3143
          %v3147 = vand.u32 %v2988, 65535
          %v3148 = vshra.s32 %v2988, 16
          %v3149 = vcvt.s32.f32 %v3147
          %v3150 = vcvt.s32.f32 %v3148
          %3151 = vmin.xlane.f32.xlu0 %v3150
          %v3152 = vpop.xlane.xlu0 %3151
          %vm3153 = vcmp.eq.f32.partialorder %v3150, %v3152
          %v3154 = vsel %vm3153, %v3149, inf
          %3155 = vmin.xlane.f32.xlu0 %v3154
          %v3156 = vpop.xlane.xlu0 %3155
          %v3157 = vcvt.f32.s32 %v3156
          %v3158 = vcvt.f32.s32 %v3152
          %v3159 = vshll.u32 %v3158, 16
          %v3160 = vadd.s32 %v3159, %v3157
          %v3161 = vand.u32 %v2989, 65535
          %v3162 = vshra.s32 %v2989, 16
          %v3163 = vcvt.s32.f32 %v3161
          %v3164 = vcvt.s32.f32 %v3162
          %3165 = vmin.xlane.f32.xlu0 %v3164
          %v3166 = vpop.xlane.xlu0 %3165
          %vm3167 = vcmp.eq.f32.partialorder %v3164, %v3166
          %v3168 = vsel %vm3167, %v3163, inf
          %3169 = vmin.xlane.f32.xlu0 %v3168
          %v3170 = vpop.xlane.xlu0 %3169
          %v3171 = vcvt.f32.s32 %v3170
          %v3172 = vcvt.f32.s32 %v3166
          %v3173 = vshll.u32 %v3172, 16
          %v3174 = vadd.s32 %v3173, %v3171
          %v3175 = vand.u32 %v2990, 65535
          %v3176 = vshra.s32 %v2990, 16
          %v3177 = vcvt.s32.f32 %v3175
          %v3178 = vcvt.s32.f32 %v3176
          %3179 = vmin.xlane.f32.xlu0 %v3178
          %v3180 = vpop.xlane.xlu0 %3179
          %vm3181 = vcmp.eq.f32.partialorder %v3178, %v3180
          %v3182 = vsel %vm3181, %v3177, inf
          %3183 = vmin.xlane.f32.xlu0 %v3182
          %v3184 = vpop.xlane.xlu0 %3183
          %v3185 = vcvt.f32.s32 %v3184
          %v3186 = vcvt.f32.s32 %v3180
          %v3187 = vshll.u32 %v3186, 16
          %v3188 = vadd.s32 %v3187, %v3185
          %v3189 = vand.u32 %v2991, 65535
          %v3190 = vshra.s32 %v2991, 16
          %v3191 = vcvt.s32.f32 %v3189
          %v3192 = vcvt.s32.f32 %v3190
          %3193 = vmin.xlane.f32.xlu0 %v3192
          %v3194 = vpop.xlane.xlu0 %3193
          %vm3195 = vcmp.eq.f32.partialorder %v3192, %v3194
          %v3196 = vsel %vm3195, %v3191, inf
          %3197 = vmin.xlane.f32.xlu0 %v3196
          %v3198 = vpop.xlane.xlu0 %3197
          %v3199 = vcvt.f32.s32 %v3198
          %v3200 = vcvt.f32.s32 %v3194
          %v3201 = vshll.u32 %v3200, 16
          %v3202 = vadd.s32 %v3201, %v3199
          %v3203 = vand.u32 %v2992, 65535
          %v3204 = vshra.s32 %v2992, 16
          %v3205 = vcvt.s32.f32 %v3203
          %v3206 = vcvt.s32.f32 %v3204
          %3207 = vmin.xlane.f32.xlu0 %v3206
          %v3208 = vpop.xlane.xlu0 %3207
          %vm3209 = vcmp.eq.f32.partialorder %v3206, %v3208
          %v3210 = vsel %vm3209, %v3205, inf
          %3211 = vmin.xlane.f32.xlu0 %v3210
          %v3212 = vpop.xlane.xlu0 %3211
          %v3213 = vcvt.f32.s32 %v3212
          %v3214 = vcvt.f32.s32 %v3208
          %v3215 = vshll.u32 %v3214, 16
          %v3216 = vadd.s32 %v3215, %v3213
          %vm3217 = vcmask 7168
          %v3218 = vsel %vm3217, %v690, %v1010
          %v3219 = vsel %vm3217, %v692, %v1012
          %v3220 = vsel %vm3217, %v694, %v1014
          %v3221 = vsel %vm3217, %v696, %v1016
          %v3222 = vsel %vm3217, %v698, %v1018
          %v3223 = vsel %vm3217, %v700, %v1020
          %v3224 = vsel %vm3217, %v702, %v1022
          %v3225 = vsel %vm3217, %v704, %v1024
          %v3226 = vsel %vm3217, %v706, %v1026
          %v3227 = vsel %vm3217, %v708, %v1028
          %v3228 = vsel %vm3217, %v710, %v1030
          %v3229 = vsel %vm3217, %v712, %v1032
          %v3230 = vsel %vm3217, %v714, %v1034
          %v3231 = vsel %vm3217, %v716, %v1036
          %v3232 = vsel %vm3217, %v718, %v1038
          %v3233 = vsel %vm3217, %v720, %v1040
          %vm3234 = vcmask 15360
          %v3235 = vsel %vm3234, %v3218, %v1330
          %v3236 = vsel %vm3234, %v3219, %v1332
          %v3237 = vsel %vm3234, %v3220, %v1334
          %v3238 = vsel %vm3234, %v3221, %v1336
          %v3239 = vsel %vm3234, %v3222, %v1338
          %v3240 = vsel %vm3234, %v3223, %v1340
          %v3241 = vsel %vm3234, %v3224, %v1342
          %v3242 = vsel %vm3234, %v3225, %v1344
          %v3243 = vsel %vm3234, %v3226, %v1346
          %v3244 = vsel %vm3234, %v3227, %v1348
          %v3245 = vsel %vm3234, %v3228, %v1350
          %v3246 = vsel %vm3234, %v3229, %v1352
          %v3247 = vsel %vm3234, %v3230, %v1354
          %v3248 = vsel %vm3234, %v3231, %v1356
          %v3249 = vsel %vm3234, %v3232, %v1358
          %v3250 = vsel %vm3234, %v3233, %v1360
          %vm3251 = vcmask 23552
          %v3252 = vsel %vm3251, %v3235, %v1650
          %v3253 = vsel %vm3251, %v3236, %v1652
          %v3254 = vsel %vm3251, %v3237, %v1654
          %v3255 = vsel %vm3251, %v3238, %v1656
          %v3256 = vsel %vm3251, %v3239, %v1658
          %v3257 = vsel %vm3251, %v3240, %v1660
          %v3258 = vsel %vm3251, %v3241, %v1662
          %v3259 = vsel %vm3251, %v3242, %v1664
          %v3260 = vsel %vm3251, %v3243, %v1666
          %v3261 = vsel %vm3251, %v3244, %v1668
          %v3262 = vsel %vm3251, %v3245, %v1670
          %v3263 = vsel %vm3251, %v3246, %v1672
          %v3264 = vsel %vm3251, %v3247, %v1674
          %v3265 = vsel %vm3251, %v3248, %v1676
          %v3266 = vsel %vm3251, %v3249, %v1678
          %v3267 = vsel %vm3251, %v3250, %v1680
          %vm3268 = vcmask 31744
          %v3269 = vsel %vm3268, %v3252, %v1970
          %v3270 = vsel %vm3268, %v3253, %v1972
          %v3271 = vsel %vm3268, %v3254, %v1974
          %v3272 = vsel %vm3268, %v3255, %v1976
          %v3273 = vsel %vm3268, %v3256, %v1978
          %v3274 = vsel %vm3268, %v3257, %v1980
          %v3275 = vsel %vm3268, %v3258, %v1982
          %v3276 = vsel %vm3268, %v3259, %v1984
          %v3277 = vsel %vm3268, %v3260, %v1986
          %v3278 = vsel %vm3268, %v3261, %v1988
          %v3279 = vsel %vm3268, %v3262, %v1990
          %v3280 = vsel %vm3268, %v3263, %v1992
          %v3281 = vsel %vm3268, %v3264, %v1994
          %v3282 = vsel %vm3268, %v3265, %v1996
          %v3283 = vsel %vm3268, %v3266, %v1998
          %v3284 = vsel %vm3268, %v3267, %v2000
          %vm3285 = vcmask 39936
          %v3286 = vsel %vm3285, %v3269, %v2290
          %v3287 = vsel %vm3285, %v3270, %v2292
          %v3288 = vsel %vm3285, %v3271, %v2294
          %v3289 = vsel %vm3285, %v3272, %v2296
          %v3290 = vsel %vm3285, %v3273, %v2298
          %v3291 = vsel %vm3285, %v3274, %v2300
          %v3292 = vsel %vm3285, %v3275, %v2302
          %v3293 = vsel %vm3285, %v3276, %v2304
          %v3294 = vsel %vm3285, %v3277, %v2306
          %v3295 = vsel %vm3285, %v3278, %v2308
          %v3296 = vsel %vm3285, %v3279, %v2310
          %v3297 = vsel %vm3285, %v3280, %v2312
          %v3298 = vsel %vm3285, %v3281, %v2314
          %v3299 = vsel %vm3285, %v3282, %v2316
          %v3300 = vsel %vm3285, %v3283, %v2318
          %v3301 = vsel %vm3285, %v3284, %v2320
          %vm3302 = vcmask 48128
          %v3303 = vsel %vm3302, %v3286, %v2610
          %v3304 = vsel %vm3302, %v3287, %v2612
          %v3305 = vsel %vm3302, %v3288, %v2614
          %v3306 = vsel %vm3302, %v3289, %v2616
          %v3307 = vsel %vm3302, %v3290, %v2618
          %v3308 = vsel %vm3302, %v3291, %v2620
          %v3309 = vsel %vm3302, %v3292, %v2622
          %v3310 = vsel %vm3302, %v3293, %v2624
          %v3311 = vsel %vm3302, %v3294, %v2626
          %v3312 = vsel %vm3302, %v3295, %v2628
          %v3313 = vsel %vm3302, %v3296, %v2630
          %v3314 = vsel %vm3302, %v3297, %v2632
          %v3315 = vsel %vm3302, %v3298, %v2634
          %v3316 = vsel %vm3302, %v3299, %v2636
          %v3317 = vsel %vm3302, %v3300, %v2638
          %v3318 = vsel %vm3302, %v3301, %v2640
          %vm3319 = vcmask 56320
          %v3320 = vsel %vm3319, %v3303, %v2930
          %v3321 = vsel %vm3319, %v3304, %v2932
          %v3322 = vsel %vm3319, %v3305, %v2934
          %v3323 = vsel %vm3319, %v3306, %v2936
          %v3324 = vsel %vm3319, %v3307, %v2938
          %v3325 = vsel %vm3319, %v3308, %v2940
          %v3326 = vsel %vm3319, %v3309, %v2942
          %v3327 = vsel %vm3319, %v3310, %v2944
          %v3328 = vsel %vm3319, %v3311, %v2946
          %v3329 = vsel %vm3319, %v3312, %v2948
          %v3330 = vsel %vm3319, %v3313, %v2950
          %v3331 = vsel %vm3319, %v3314, %v2952
          %v3332 = vsel %vm3319, %v3315, %v2954
          %v3333 = vsel %vm3319, %v3316, %v2956
          %v3334 = vsel %vm3319, %v3317, %v2958
          %v3335 = vsel %vm3319, %v3318, %v2960
          %v3336 = vsel %vm3217, %v766, %v1086
          %v3337 = vsel %vm3217, %v780, %v1100
          %v3338 = vsel %vm3217, %v794, %v1114
          %v3339 = vsel %vm3217, %v808, %v1128
          %v3340 = vsel %vm3217, %v822, %v1142
          %v3341 = vsel %vm3217, %v836, %v1156
          %v3342 = vsel %vm3217, %v850, %v1170
          %v3343 = vsel %vm3217, %v864, %v1184
          %v3344 = vsel %vm3217, %v878, %v1198
          %v3345 = vsel %vm3217, %v892, %v1212
          %v3346 = vsel %vm3217, %v906, %v1226
          %v3347 = vsel %vm3217, %v920, %v1240
          %v3348 = vsel %vm3217, %v934, %v1254
          %v3349 = vsel %vm3217, %v948, %v1268
          %v3350 = vsel %vm3217, %v962, %v1282
          %v3351 = vsel %vm3217, %v976, %v1296
          %v3352 = vsel %vm3234, %v3336, %v1406
          %v3353 = vsel %vm3234, %v3337, %v1420
          %v3354 = vsel %vm3234, %v3338, %v1434
          %v3355 = vsel %vm3234, %v3339, %v1448
          %v3356 = vsel %vm3234, %v3340, %v1462
          %v3357 = vsel %vm3234, %v3341, %v1476
          %v3358 = vsel %vm3234, %v3342, %v1490
          %v3359 = vsel %vm3234, %v3343, %v1504
          %v3360 = vsel %vm3234, %v3344, %v1518
          %v3361 = vsel %vm3234, %v3345, %v1532
          %v3362 = vsel %vm3234, %v3346, %v1546
          %v3363 = vsel %vm3234, %v3347, %v1560
          %v3364 = vsel %vm3234, %v3348, %v1574
          %v3365 = vsel %vm3234, %v3349, %v1588
          %v3366 = vsel %vm3234, %v3350, %v1602
          %v3367 = vsel %vm3234, %v3351, %v1616
          %v3368 = vsel %vm3251, %v3352, %v1726
          %v3369 = vsel %vm3251, %v3353, %v1740
          %v3370 = vsel %vm3251, %v3354, %v1754
          %v3371 = vsel %vm3251, %v3355, %v1768
          %v3372 = vsel %vm3251, %v3356, %v1782
          %v3373 = vsel %vm3251, %v3357, %v1796
          %v3374 = vsel %vm3251, %v3358, %v1810
          %v3375 = vsel %vm3251, %v3359, %v1824
          %v3376 = vsel %vm3251, %v3360, %v1838
          %v3377 = vsel %vm3251, %v3361, %v1852
          %v3378 = vsel %vm3251, %v3362, %v1866
          %v3379 = vsel %vm3251, %v3363, %v1880
          %v3380 = vsel %vm3251, %v3364, %v1894
          %v3381 = vsel %vm3251, %v3365, %v1908
          %v3382 = vsel %vm3251, %v3366, %v1922
          %v3383 = vsel %vm3251, %v3367, %v1936
          %v3384 = vsel %vm3268, %v3368, %v2046
          %v3385 = vsel %vm3268, %v3369, %v2060
          %v3386 = vsel %vm3268, %v3370, %v2074
          %v3387 = vsel %vm3268, %v3371, %v2088
          %v3388 = vsel %vm3268, %v3372, %v2102
          %v3389 = vsel %vm3268, %v3373, %v2116
          %v3390 = vsel %vm3268, %v3374, %v2130
          %v3391 = vsel %vm3268, %v3375, %v2144
          %v3392 = vsel %vm3268, %v3376, %v2158
          %v3393 = vsel %vm3268, %v3377, %v2172
          %v3394 = vsel %vm3268, %v3378, %v2186
          %v3395 = vsel %vm3268, %v3379, %v2200
          %v3396 = vsel %vm3268, %v3380, %v2214
          %v3397 = vsel %vm3268, %v3381, %v2228
          %v3398 = vsel %vm3268, %v3382, %v2242
          %v3399 = vsel %vm3268, %v3383, %v2256
          %v3400 = vsel %vm3285, %v3384, %v2366
          %v3401 = vsel %vm3285, %v3385, %v2380
          %v3402 = vsel %vm3285, %v3386, %v2394
          %v3403 = vsel %vm3285, %v3387, %v2408
          %v3404 = vsel %vm3285, %v3388, %v2422
          %v3405 = vsel %vm3285, %v3389, %v2436
          %v3406 = vsel %vm3285, %v3390, %v2450
          %v3407 = vsel %vm3285, %v3391, %v2464
          %v3408 = vsel %vm3285, %v3392, %v2478
          %v3409 = vsel %vm3285, %v3393, %v2492
          %v3410 = vsel %vm3285, %v3394, %v2506
          %v3411 = vsel %vm3285, %v3395, %v2520
          %v3412 = vsel %vm3285, %v3396, %v2534
          %v3413 = vsel %vm3285, %v3397, %v2548
          %v3414 = vsel %vm3285, %v3398, %v2562
          %v3415 = vsel %vm3285, %v3399, %v2576
          %v3416 = vsel %vm3302, %v3400, %v2686
          %v3417 = vsel %vm3302, %v3401, %v2700
          %v3418 = vsel %vm3302, %v3402, %v2714
          %v3419 = vsel %vm3302, %v3403, %v2728
          %v3420 = vsel %vm3302, %v3404, %v2742
          %v3421 = vsel %vm3302, %v3405, %v2756
          %v3422 = vsel %vm3302, %v3406, %v2770
          %v3423 = vsel %vm3302, %v3407, %v2784
          %v3424 = vsel %vm3302, %v3408, %v2798
          %v3425 = vsel %vm3302, %v3409, %v2812
          %v3426 = vsel %vm3302, %v3410, %v2826
          %v3427 = vsel %vm3302, %v3411, %v2840
          %v3428 = vsel %vm3302, %v3412, %v2854
          %v3429 = vsel %vm3302, %v3413, %v2868
          %v3430 = vsel %vm3302, %v3414, %v2882
          %v3431 = vsel %vm3302, %v3415, %v2896
          %v3432 = vsel %vm3319, %v3416, %v3006
          %v3433 = vsel %vm3319, %v3417, %v3020
          %v3434 = vsel %vm3319, %v3418, %v3034
          %v3435 = vsel %vm3319, %v3419, %v3048
          %v3436 = vsel %vm3319, %v3420, %v3062
          %v3437 = vsel %vm3319, %v3421, %v3076
          %v3438 = vsel %vm3319, %v3422, %v3090
          %v3439 = vsel %vm3319, %v3423, %v3104
          %v3440 = vsel %vm3319, %v3424, %v3118
          %v3441 = vsel %vm3319, %v3425, %v3132
          %v3442 = vsel %vm3319, %v3426, %v3146
          %v3443 = vsel %vm3319, %v3427, %v3160
          %v3444 = vsel %vm3319, %v3428, %v3174
          %v3445 = vsel %vm3319, %v3429, %v3188
          %v3446 = vsel %vm3319, %v3430, %v3202
          %v3447 = vsel %vm3319, %v3431, %v3216
          %v3448 = vld [vmem:[#allocation2] sm:$0xff]
          %v3449 = vld [vmem:[#allocation2 + $0x8] sm:$0xff]
          %v3450 = vld [vmem:[#allocation2 + $0x10] sm:$0xff]
          %v3451 = vld [vmem:[#allocation2 + $0x18] sm:$0xff]
          %v3452 = vld [vmem:[#allocation2 + $0x20] sm:$0xff]
          %v3453 = vld [vmem:[#allocation2 + $0x28] sm:$0xff]
          %v3454 = vld [vmem:[#allocation2 + $0x30] sm:$0xff]
          %v3455 = vld [vmem:[#allocation2 + $0x38] sm:$0xff]
          %v3456 = vld [vmem:[#allocation2 + $0x40] sm:$0xff]
          %v3457 = vld [vmem:[#allocation2 + $0x48] sm:$0xff]
          %v3458 = vld [vmem:[#allocation2 + $0x50] sm:$0xff]
          %v3459 = vld [vmem:[#allocation2 + $0x58] sm:$0xff]
          %v3460 = vld [vmem:[#allocation2 + $0x60] sm:$0xff]
          %v3461 = vld [vmem:[#allocation2 + $0x68] sm:$0xff]
          %v3462 = vld [vmem:[#allocation2 + $0x70] sm:$0xff]
          %v3463 = vld [vmem:[#allocation2 + $0x78] sm:$0xff]
          %3480 = vrot.lane.b32.xlu0 %v3320, 8
          %v3481 = vpop.permute.xlu0 %3480
          %3482 = vrot.lane.b32.xlu0 %v3321, 8
          %v3483 = vpop.permute.xlu0 %3482
          %3484 = vrot.lane.b32.xlu0 %v3322, 8
          %v3485 = vpop.permute.xlu0 %3484
          %3486 = vrot.lane.b32.xlu0 %v3323, 8
          %v3487 = vpop.permute.xlu0 %3486
          %3488 = vrot.lane.b32.xlu0 %v3324, 8
          %v3489 = vpop.permute.xlu0 %3488
          %3490 = vrot.lane.b32.xlu0 %v3325, 8
          %v3491 = vpop.permute.xlu0 %3490
          %3492 = vrot.lane.b32.xlu0 %v3326, 8
          %v3493 = vpop.permute.xlu0 %3492
          %3494 = vrot.lane.b32.xlu0 %v3327, 8
          %v3495 = vpop.permute.xlu0 %3494
          %3496 = vrot.lane.b32.xlu0 %v3328, 8
          %v3497 = vpop.permute.xlu0 %3496
          %3498 = vrot.lane.b32.xlu0 %v3329, 8
          %v3499 = vpop.permute.xlu0 %3498
          %3500 = vrot.lane.b32.xlu0 %v3330, 8
          %v3501 = vpop.permute.xlu0 %3500
          %3502 = vrot.lane.b32.xlu0 %v3331, 8
          %v3503 = vpop.permute.xlu0 %3502
          %3504 = vrot.lane.b32.xlu0 %v3332, 8
          %v3505 = vpop.permute.xlu0 %3504
          %3506 = vrot.lane.b32.xlu0 %v3333, 8
          %v3507 = vpop.permute.xlu0 %3506
          %3508 = vrot.lane.b32.xlu0 %v3334, 8
          %v3509 = vpop.permute.xlu0 %3508
          %3510 = vrot.lane.b32.xlu0 %v3335, 8
          %v3511 = vpop.permute.xlu0 %3510
          %v3528 = vsel %vm644, %v3448, %v3481
          %v3529 = vsel %vm644, %v3449, %v3483
          %v3530 = vsel %vm644, %v3450, %v3485
          %v3531 = vsel %vm644, %v3451, %v3487
          %v3532 = vsel %vm644, %v3452, %v3489
          %v3533 = vsel %vm644, %v3453, %v3491
          %v3534 = vsel %vm644, %v3454, %v3493
          %v3535 = vsel %vm644, %v3455, %v3495
          %v3536 = vsel %vm644, %v3456, %v3497
          %v3537 = vsel %vm644, %v3457, %v3499
          %v3538 = vsel %vm644, %v3458, %v3501
          %v3539 = vsel %vm644, %v3459, %v3503
          %v3540 = vsel %vm644, %v3460, %v3505
          %v3541 = vsel %vm644, %v3461, %v3507
          %v3542 = vsel %vm644, %v3462, %v3509
          %v3543 = vsel %vm644, %v3463, %v3511
          %v3544 = vld [vmem:[#allocation3] sm:$0xff]
          %v3545 = vld [vmem:[#allocation3 + $0x8] sm:$0xff]
          %v3546 = vld [vmem:[#allocation3 + $0x10] sm:$0xff]
          %v3547 = vld [vmem:[#allocation3 + $0x18] sm:$0xff]
          %v3548 = vld [vmem:[#allocation3 + $0x20] sm:$0xff]
          %v3549 = vld [vmem:[#allocation3 + $0x28] sm:$0xff]
          %v3550 = vld [vmem:[#allocation3 + $0x30] sm:$0xff]
          %v3551 = vld [vmem:[#allocation3 + $0x38] sm:$0xff]
          %v3552 = vld [vmem:[#allocation3 + $0x40] sm:$0xff]
          %v3553 = vld [vmem:[#allocation3 + $0x48] sm:$0xff]
          %v3554 = vld [vmem:[#allocation3 + $0x50] sm:$0xff]
          %v3555 = vld [vmem:[#allocation3 + $0x58] sm:$0xff]
          %v3556 = vld [vmem:[#allocation3 + $0x60] sm:$0xff]
          %v3557 = vld [vmem:[#allocation3 + $0x68] sm:$0xff]
          %v3558 = vld [vmem:[#allocation3 + $0x70] sm:$0xff]
          %v3559 = vld [vmem:[#allocation3 + $0x78] sm:$0xff]
          %3560 = vrot.lane.b32.xlu0 %v3432, 8
          %v3561 = vpop.permute.xlu0 %3560
          %3562 = vrot.lane.b32.xlu0 %v3433, 8
          %v3563 = vpop.permute.xlu0 %3562
          %3564 = vrot.lane.b32.xlu0 %v3434, 8
          %v3565 = vpop.permute.xlu0 %3564
          %3566 = vrot.lane.b32.xlu0 %v3435, 8
          %v3567 = vpop.permute.xlu0 %3566
          %3568 = vrot.lane.b32.xlu0 %v3436, 8
          %v3569 = vpop.permute.xlu0 %3568
          %3570 = vrot.lane.b32.xlu0 %v3437, 8
          %v3571 = vpop.permute.xlu0 %3570
          %3572 = vrot.lane.b32.xlu0 %v3438, 8
          %v3573 = vpop.permute.xlu0 %3572
          %3574 = vrot.lane.b32.xlu0 %v3439, 8
          %v3575 = vpop.permute.xlu0 %3574
          %3576 = vrot.lane.b32.xlu0 %v3440, 8
          %v3577 = vpop.permute.xlu0 %3576
          %3578 = vrot.lane.b32.xlu0 %v3441, 8
          %v3579 = vpop.permute.xlu0 %3578
          %3580 = vrot.lane.b32.xlu0 %v3442, 8
          %v3581 = vpop.permute.xlu0 %3580
          %3582 = vrot.lane.b32.xlu0 %v3443, 8
          %v3583 = vpop.permute.xlu0 %3582
          %3584 = vrot.lane.b32.xlu0 %v3444, 8
          %v3585 = vpop.permute.xlu0 %3584
          %3586 = vrot.lane.b32.xlu0 %v3445, 8
          %v3587 = vpop.permute.xlu0 %3586
          %3588 = vrot.lane.b32.xlu0 %v3446, 8
          %v3589 = vpop.permute.xlu0 %3588
          %3590 = vrot.lane.b32.xlu0 %v3447, 8
          %v3591 = vpop.permute.xlu0 %3590
          %v3592 = vsel %vm644, %v3544, %v3561
          %v3593 = vsel %vm644, %v3545, %v3563
          %v3594 = vsel %vm644, %v3546, %v3565
          %v3595 = vsel %vm644, %v3547, %v3567
          %v3596 = vsel %vm644, %v3548, %v3569
          %v3597 = vsel %vm644, %v3549, %v3571
          %v3598 = vsel %vm644, %v3550, %v3573
          %v3599 = vsel %vm644, %v3551, %v3575
          %v3600 = vsel %vm644, %v3552, %v3577
          %v3601 = vsel %vm644, %v3553, %v3579
          %v3602 = vsel %vm644, %v3554, %v3581
          %v3603 = vsel %vm644, %v3555, %v3583
          %v3604 = vsel %vm644, %v3556, %v3585
          %v3605 = vsel %vm644, %v3557, %v3587
          %v3606 = vsel %vm644, %v3558, %v3589
          %v3607 = vsel %vm644, %v3559, %v3591
          %vm3608 = vcmask 130048
          %v3609 = vsel %vm3608, %v3528, -inf
          %3610 = vmax.xlane.f32.xlu0 %v3609
          %v3611 = vpop.xlane.xlu0 %3610
          %v3612 = vsel %vm3608, %v3529, -inf
          %3613 = vmax.xlane.f32.xlu0 %v3612
          %v3614 = vpop.xlane.xlu0 %3613
          %v3615 = vsel %vm3608, %v3530, -inf
          %3616 = vmax.xlane.f32.xlu0 %v3615
          %v3617 = vpop.xlane.xlu0 %3616
          %v3618 = vsel %vm3608, %v3531, -inf
          %3619 = vmax.xlane.f32.xlu0 %v3618
          %v3620 = vpop.xlane.xlu0 %3619
          %v3621 = vsel %vm3608, %v3532, -inf
          %3622 = vmax.xlane.f32.xlu0 %v3621
          %v3623 = vpop.xlane.xlu0 %3622
          %v3624 = vsel %vm3608, %v3533, -inf
          %3625 = vmax.xlane.f32.xlu0 %v3624
          %v3626 = vpop.xlane.xlu0 %3625
          %v3627 = vsel %vm3608, %v3534, -inf
          %3628 = vmax.xlane.f32.xlu0 %v3627
          %v3629 = vpop.xlane.xlu0 %3628
          %v3630 = vsel %vm3608, %v3535, -inf
          %3631 = vmax.xlane.f32.xlu0 %v3630
          %v3632 = vpop.xlane.xlu0 %3631
          %v3633 = vsel %vm3608, %v3536, -inf
          %3634 = vmax.xlane.f32.xlu0 %v3633
          %v3635 = vpop.xlane.xlu0 %3634
          %v3636 = vsel %vm3608, %v3537, -inf
          %3637 = vmax.xlane.f32.xlu0 %v3636
          %v3638 = vpop.xlane.xlu0 %3637
          %v3639 = vsel %vm3608, %v3538, -inf
          %3640 = vmax.xlane.f32.xlu0 %v3639
          %v3641 = vpop.xlane.xlu0 %3640
          %v3642 = vsel %vm3608, %v3539, -inf
          %3643 = vmax.xlane.f32.xlu0 %v3642
          %v3644 = vpop.xlane.xlu0 %3643
          %v3645 = vsel %vm3608, %v3540, -inf
          %3646 = vmax.xlane.f32.xlu0 %v3645
          %v3647 = vpop.xlane.xlu0 %3646
          %v3648 = vsel %vm3608, %v3541, -inf
          %3649 = vmax.xlane.f32.xlu0 %v3648
          %v3650 = vpop.xlane.xlu0 %3649
          %v3651 = vsel %vm3608, %v3542, -inf
          %3652 = vmax.xlane.f32.xlu0 %v3651
          %v3653 = vpop.xlane.xlu0 %3652
          %v3654 = vsel %vm3608, %v3543, -inf
          %3655 = vmax.xlane.f32.xlu0 %v3654
          %v3656 = vpop.xlane.xlu0 %3655
          %vm3657 = vcmp.eq.f32.partialorder %v3528, %v3611
          %vm3658 = vcmp.eq.f32.partialorder %v3529, %v3614
          %vm3659 = vcmp.eq.f32.partialorder %v3530, %v3617
          %vm3660 = vcmp.eq.f32.partialorder %v3531, %v3620
          %vm3661 = vcmp.eq.f32.partialorder %v3532, %v3623
          %vm3662 = vcmp.eq.f32.partialorder %v3533, %v3626
          %vm3663 = vcmp.eq.f32.partialorder %v3534, %v3629
          %vm3664 = vcmp.eq.f32.partialorder %v3535, %v3632
          %vm3665 = vcmp.eq.f32.partialorder %v3536, %v3635
          %vm3666 = vcmp.eq.f32.partialorder %v3537, %v3638
          %vm3667 = vcmp.eq.f32.partialorder %v3538, %v3641
          %vm3668 = vcmp.eq.f32.partialorder %v3539, %v3644
          %vm3669 = vcmp.eq.f32.partialorder %v3540, %v3647
          %vm3670 = vcmp.eq.f32.partialorder %v3541, %v3650
          %vm3671 = vcmp.eq.f32.partialorder %v3542, %v3653
          %vm3672 = vcmp.eq.f32.partialorder %v3543, %v3656
          %v3673 = vsel %vm3657, %v3592, 2147483647
          %v3674 = vsel %vm3658, %v3593, 2147483647
          %v3675 = vsel %vm3659, %v3594, 2147483647
          %v3676 = vsel %vm3660, %v3595, 2147483647
          %v3677 = vsel %vm3661, %v3596, 2147483647
          %v3678 = vsel %vm3662, %v3597, 2147483647
          %v3679 = vsel %vm3663, %v3598, 2147483647
          %v3680 = vsel %vm3664, %v3599, 2147483647
          %v3681 = vsel %vm3665, %v3600, 2147483647
          %v3682 = vsel %vm3666, %v3601, 2147483647
          %v3683 = vsel %vm3667, %v3602, 2147483647
          %v3684 = vsel %vm3668, %v3603, 2147483647
          %v3685 = vsel %vm3669, %v3604, 2147483647
          %v3686 = vsel %vm3670, %v3605, 2147483647
          %v3687 = vsel %vm3671, %v3606, 2147483647
          %v3688 = vsel %vm3672, %v3607, 2147483647
          %v3689 = vsel %vm3608, %v3673, 2147483647
          %v3690 = vand.u32 %v3689, 65535
          %v3691 = vshra.s32 %v3689, 16
          %v3692 = vcvt.s32.f32 %v3690
          %v3693 = vcvt.s32.f32 %v3691
          %3694 = vmin.xlane.f32.xlu0 %v3693
          %v3695 = vpop.xlane.xlu0 %3694
          %vm3696 = vcmp.eq.f32.partialorder %v3693, %v3695
          %v3697 = vsel %vm3696, %v3692, inf
          %3698 = vmin.xlane.f32.xlu0 %v3697
          %v3699 = vpop.xlane.xlu0 %3698
          %v3700 = vcvt.f32.s32 %v3699
          %v3701 = vcvt.f32.s32 %v3695
          %v3702 = vshll.u32 %v3701, 16
          %v3703 = vadd.s32 %v3702, %v3700
          %v3704 = vsel %vm3608, %v3674, 2147483647
          %v3705 = vand.u32 %v3704, 65535
          %v3706 = vshra.s32 %v3704, 16
          %v3707 = vcvt.s32.f32 %v3705
          %v3708 = vcvt.s32.f32 %v3706
          %3709 = vmin.xlane.f32.xlu0 %v3708
          %v3710 = vpop.xlane.xlu0 %3709
          %vm3711 = vcmp.eq.f32.partialorder %v3708, %v3710
          %v3712 = vsel %vm3711, %v3707, inf
          %3713 = vmin.xlane.f32.xlu0 %v3712
          %v3714 = vpop.xlane.xlu0 %3713
          %v3715 = vcvt.f32.s32 %v3714
          %v3716 = vcvt.f32.s32 %v3710
          %v3717 = vshll.u32 %v3716, 16
          %v3718 = vadd.s32 %v3717, %v3715
          %v3719 = vsel %vm3608, %v3675, 2147483647
          %v3720 = vand.u32 %v3719, 65535
          %v3721 = vshra.s32 %v3719, 16
          %v3722 = vcvt.s32.f32 %v3720
          %v3723 = vcvt.s32.f32 %v3721
          %3724 = vmin.xlane.f32.xlu0 %v3723
          %v3725 = vpop.xlane.xlu0 %3724
          %vm3726 = vcmp.eq.f32.partialorder %v3723, %v3725
          %v3727 = vsel %vm3726, %v3722, inf
          %3728 = vmin.xlane.f32.xlu0 %v3727
          %v3729 = vpop.xlane.xlu0 %3728
          %v3730 = vcvt.f32.s32 %v3729
          %v3731 = vcvt.f32.s32 %v3725
          %v3732 = vshll.u32 %v3731, 16
          %v3733 = vadd.s32 %v3732, %v3730
          %v3734 = vsel %vm3608, %v3676, 2147483647
          %v3735 = vand.u32 %v3734, 65535
          %v3736 = vshra.s32 %v3734, 16
          %v3737 = vcvt.s32.f32 %v3735
          %v3738 = vcvt.s32.f32 %v3736
          %3739 = vmin.xlane.f32.xlu0 %v3738
          %v3740 = vpop.xlane.xlu0 %3739
          %vm3741 = vcmp.eq.f32.partialorder %v3738, %v3740
          %v3742 = vsel %vm3741, %v3737, inf
          %3743 = vmin.xlane.f32.xlu0 %v3742
          %v3744 = vpop.xlane.xlu0 %3743
          %v3745 = vcvt.f32.s32 %v3744
          %v3746 = vcvt.f32.s32 %v3740
          %v3747 = vshll.u32 %v3746, 16
          %v3748 = vadd.s32 %v3747, %v3745
          %v3749 = vsel %vm3608, %v3677, 2147483647
          %v3750 = vand.u32 %v3749, 65535
          %v3751 = vshra.s32 %v3749, 16
          %v3752 = vcvt.s32.f32 %v3750
          %v3753 = vcvt.s32.f32 %v3751
          %3754 = vmin.xlane.f32.xlu0 %v3753
          %v3755 = vpop.xlane.xlu0 %3754
          %vm3756 = vcmp.eq.f32.partialorder %v3753, %v3755
          %v3757 = vsel %vm3756, %v3752, inf
          %3758 = vmin.xlane.f32.xlu0 %v3757
          %v3759 = vpop.xlane.xlu0 %3758
          %v3760 = vcvt.f32.s32 %v3759
          %v3761 = vcvt.f32.s32 %v3755
          %v3762 = vshll.u32 %v3761, 16
          %v3763 = vadd.s32 %v3762, %v3760
          %v3764 = vsel %vm3608, %v3678, 2147483647
          %v3765 = vand.u32 %v3764, 65535
          %v3766 = vshra.s32 %v3764, 16
          %v3767 = vcvt.s32.f32 %v3765
          %v3768 = vcvt.s32.f32 %v3766
          %3769 = vmin.xlane.f32.xlu0 %v3768
          %v3770 = vpop.xlane.xlu0 %3769
          %vm3771 = vcmp.eq.f32.partialorder %v3768, %v3770
          %v3772 = vsel %vm3771, %v3767, inf
          %3773 = vmin.xlane.f32.xlu0 %v3772
          %v3774 = vpop.xlane.xlu0 %3773
          %v3775 = vcvt.f32.s32 %v3774
          %v3776 = vcvt.f32.s32 %v3770
          %v3777 = vshll.u32 %v3776, 16
          %v3778 = vadd.s32 %v3777, %v3775
          %v3779 = vsel %vm3608, %v3679, 2147483647
          %v3780 = vand.u32 %v3779, 65535
          %v3781 = vshra.s32 %v3779, 16
          %v3782 = vcvt.s32.f32 %v3780
          %v3783 = vcvt.s32.f32 %v3781
          %3784 = vmin.xlane.f32.xlu0 %v3783
          %v3785 = vpop.xlane.xlu0 %3784
          %vm3786 = vcmp.eq.f32.partialorder %v3783, %v3785
          %v3787 = vsel %vm3786, %v3782, inf
          %3788 = vmin.xlane.f32.xlu0 %v3787
          %v3789 = vpop.xlane.xlu0 %3788
          %v3790 = vcvt.f32.s32 %v3789
          %v3791 = vcvt.f32.s32 %v3785
          %v3792 = vshll.u32 %v3791, 16
          %v3793 = vadd.s32 %v3792, %v3790
          %v3794 = vsel %vm3608, %v3680, 2147483647
          %v3795 = vand.u32 %v3794, 65535
          %v3796 = vshra.s32 %v3794, 16
          %v3797 = vcvt.s32.f32 %v3795
          %v3798 = vcvt.s32.f32 %v3796
          %3799 = vmin.xlane.f32.xlu0 %v3798
          %v3800 = vpop.xlane.xlu0 %3799
          %vm3801 = vcmp.eq.f32.partialorder %v3798, %v3800
          %v3802 = vsel %vm3801, %v3797, inf
          %3803 = vmin.xlane.f32.xlu0 %v3802
          %v3804 = vpop.xlane.xlu0 %3803
          %v3805 = vcvt.f32.s32 %v3804
          %v3806 = vcvt.f32.s32 %v3800
          %v3807 = vshll.u32 %v3806, 16
          %v3808 = vadd.s32 %v3807, %v3805
          %v3809 = vsel %vm3608, %v3681, 2147483647
          %v3810 = vand.u32 %v3809, 65535
          %v3811 = vshra.s32 %v3809, 16
          %v3812 = vcvt.s32.f32 %v3810
          %v3813 = vcvt.s32.f32 %v3811
          %3814 = vmin.xlane.f32.xlu0 %v3813
          %v3815 = vpop.xlane.xlu0 %3814
          %vm3816 = vcmp.eq.f32.partialorder %v3813, %v3815
          %v3817 = vsel %vm3816, %v3812, inf
          %3818 = vmin.xlane.f32.xlu0 %v3817
          %v3819 = vpop.xlane.xlu0 %3818
          %v3820 = vcvt.f32.s32 %v3819
          %v3821 = vcvt.f32.s32 %v3815
          %v3822 = vshll.u32 %v3821, 16
          %v3823 = vadd.s32 %v3822, %v3820
          %v3824 = vsel %vm3608, %v3682, 2147483647
          %v3825 = vand.u32 %v3824, 65535
          %v3826 = vshra.s32 %v3824, 16
          %v3827 = vcvt.s32.f32 %v3825
          %v3828 = vcvt.s32.f32 %v3826
          %3829 = vmin.xlane.f32.xlu0 %v3828
          %v3830 = vpop.xlane.xlu0 %3829
          %vm3831 = vcmp.eq.f32.partialorder %v3828, %v3830
          %v3832 = vsel %vm3831, %v3827, inf
          %3833 = vmin.xlane.f32.xlu0 %v3832
          %v3834 = vpop.xlane.xlu0 %3833
          %v3835 = vcvt.f32.s32 %v3834
          %v3836 = vcvt.f32.s32 %v3830
          %v3837 = vshll.u32 %v3836, 16
          %v3838 = vadd.s32 %v3837, %v3835
          %v3839 = vsel %vm3608, %v3683, 2147483647
          %v3840 = vand.u32 %v3839, 65535
          %v3841 = vshra.s32 %v3839, 16
          %v3842 = vcvt.s32.f32 %v3840
          %v3843 = vcvt.s32.f32 %v3841
          %3844 = vmin.xlane.f32.xlu0 %v3843
          %v3845 = vpop.xlane.xlu0 %3844
          %vm3846 = vcmp.eq.f32.partialorder %v3843, %v3845
          %v3847 = vsel %vm3846, %v3842, inf
          %3848 = vmin.xlane.f32.xlu0 %v3847
          %v3849 = vpop.xlane.xlu0 %3848
          %v3850 = vcvt.f32.s32 %v3849
          %v3851 = vcvt.f32.s32 %v3845
          %v3852 = vshll.u32 %v3851, 16
          %v3853 = vadd.s32 %v3852, %v3850
          %v3854 = vsel %vm3608, %v3684, 2147483647
          %v3855 = vand.u32 %v3854, 65535
          %v3856 = vshra.s32 %v3854, 16
          %v3857 = vcvt.s32.f32 %v3855
          %v3858 = vcvt.s32.f32 %v3856
          %3859 = vmin.xlane.f32.xlu0 %v3858
          %v3860 = vpop.xlane.xlu0 %3859
          %vm3861 = vcmp.eq.f32.partialorder %v3858, %v3860
          %v3862 = vsel %vm3861, %v3857, inf
          %3863 = vmin.xlane.f32.xlu0 %v3862
          %v3864 = vpop.xlane.xlu0 %3863
          %v3865 = vcvt.f32.s32 %v3864
          %v3866 = vcvt.f32.s32 %v3860
          %v3867 = vshll.u32 %v3866, 16
          %v3868 = vadd.s32 %v3867, %v3865
          %v3869 = vsel %vm3608, %v3685, 2147483647
          %v3870 = vand.u32 %v3869, 65535
          %v3871 = vshra.s32 %v3869, 16
          %v3872 = vcvt.s32.f32 %v3870
          %v3873 = vcvt.s32.f32 %v3871
          %3874 = vmin.xlane.f32.xlu0 %v3873
          %v3875 = vpop.xlane.xlu0 %3874
          %vm3876 = vcmp.eq.f32.partialorder %v3873, %v3875
          %v3877 = vsel %vm3876, %v3872, inf
          %3878 = vmin.xlane.f32.xlu0 %v3877
          %v3879 = vpop.xlane.xlu0 %3878
          %v3880 = vcvt.f32.s32 %v3879
          %v3881 = vcvt.f32.s32 %v3875
          %v3882 = vshll.u32 %v3881, 16
          %v3883 = vadd.s32 %v3882, %v3880
          %v3884 = vsel %vm3608, %v3686, 2147483647
          %v3885 = vand.u32 %v3884, 65535
          %v3886 = vshra.s32 %v3884, 16
          %v3887 = vcvt.s32.f32 %v3885
          %v3888 = vcvt.s32.f32 %v3886
          %3889 = vmin.xlane.f32.xlu0 %v3888
          %v3890 = vpop.xlane.xlu0 %3889
          %vm3891 = vcmp.eq.f32.partialorder %v3888, %v3890
          %v3892 = vsel %vm3891, %v3887, inf
          %3893 = vmin.xlane.f32.xlu0 %v3892
          %v3894 = vpop.xlane.xlu0 %3893
          %v3895 = vcvt.f32.s32 %v3894
          %v3896 = vcvt.f32.s32 %v3890
          %v3897 = vshll.u32 %v3896, 16
          %v3898 = vadd.s32 %v3897, %v3895
          %v3899 = vsel %vm3608, %v3687, 2147483647
          %v3900 = vand.u32 %v3899, 65535
          %v3901 = vshra.s32 %v3899, 16
          %v3902 = vcvt.s32.f32 %v3900
          %v3903 = vcvt.s32.f32 %v3901
          %3904 = vmin.xlane.f32.xlu0 %v3903
          %v3905 = vpop.xlane.xlu0 %3904
          %vm3906 = vcmp.eq.f32.partialorder %v3903, %v3905
          %v3907 = vsel %vm3906, %v3902, inf
          %3908 = vmin.xlane.f32.xlu0 %v3907
          %v3909 = vpop.xlane.xlu0 %3908
          %v3910 = vcvt.f32.s32 %v3909
          %v3911 = vcvt.f32.s32 %v3905
          %v3912 = vshll.u32 %v3911, 16
          %v3913 = vadd.s32 %v3912, %v3910
          %v3914 = vsel %vm3608, %v3688, 2147483647
          %v3915 = vand.u32 %v3914, 65535
          %v3916 = vshra.s32 %v3914, 16
          %v3917 = vcvt.s32.f32 %v3915
          %v3918 = vcvt.s32.f32 %v3916
          %3919 = vmin.xlane.f32.xlu0 %v3918
          %v3920 = vpop.xlane.xlu0 %3919
          %vm3921 = vcmp.eq.f32.partialorder %v3918, %v3920
          %v3922 = vsel %vm3921, %v3917, inf
          %3923 = vmin.xlane.f32.xlu0 %v3922
          %v3924 = vpop.xlane.xlu0 %3923
          %v3925 = vcvt.f32.s32 %v3924
          %v3926 = vcvt.f32.s32 %v3920
          %v3927 = vshll.u32 %v3926, 16
          %v3928 = vadd.s32 %v3927, %v3925
          %vm3929 = vcmp.eq.s32.totalorder %v3592, %v3703
          %vm3930 = vcmp.eq.s32.totalorder %v3593, %v3718
          %vm3931 = vcmp.eq.s32.totalorder %v3594, %v3733
          %vm3932 = vcmp.eq.s32.totalorder %v3595, %v3748
          %vm3933 = vcmp.eq.s32.totalorder %v3596, %v3763
          %vm3934 = vcmp.eq.s32.totalorder %v3597, %v3778
          %vm3935 = vcmp.eq.s32.totalorder %v3598, %v3793
          %vm3936 = vcmp.eq.s32.totalorder %v3599, %v3808
          %vm3937 = vcmp.eq.s32.totalorder %v3600, %v3823
          %vm3938 = vcmp.eq.s32.totalorder %v3601, %v3838
          %vm3939 = vcmp.eq.s32.totalorder %v3602, %v3853
          %vm3940 = vcmp.eq.s32.totalorder %v3603, %v3868
          %vm3941 = vcmp.eq.s32.totalorder %v3604, %v3883
          %vm3942 = vcmp.eq.s32.totalorder %v3605, %v3898
          %vm3943 = vcmp.eq.s32.totalorder %v3606, %v3913
          %vm3944 = vcmp.eq.s32.totalorder %v3607, %v3928
          %v3945 = vsel %vm3929, -inf, %v3528
          %v3946 = vsel %vm3930, -inf, %v3529
          %v3947 = vsel %vm3931, -inf, %v3530
          %v3948 = vsel %vm3932, -inf, %v3531
          %v3949 = vsel %vm3933, -inf, %v3532
          %v3950 = vsel %vm3934, -inf, %v3533
          %v3951 = vsel %vm3935, -inf, %v3534
          %v3952 = vsel %vm3936, -inf, %v3535
          %v3953 = vsel %vm3937, -inf, %v3536
          %v3954 = vsel %vm3938, -inf, %v3537
          %v3955 = vsel %vm3939, -inf, %v3538
          %v3956 = vsel %vm3940, -inf, %v3539
          %v3957 = vsel %vm3941, -inf, %v3540
          %v3958 = vsel %vm3942, -inf, %v3541
          %v3959 = vsel %vm3943, -inf, %v3542
          %v3960 = vsel %vm3944, -inf, %v3543
          %v3961 = vsel %vm3608, %v3945, -inf
          %3962 = vmax.xlane.f32.xlu0 %v3961
          %v3963 = vpop.xlane.xlu0 %3962
          %v3964 = vsel %vm3608, %v3946, -inf
          %3965 = vmax.xlane.f32.xlu0 %v3964
          %v3966 = vpop.xlane.xlu0 %3965
          %v3967 = vsel %vm3608, %v3947, -inf
          %3968 = vmax.xlane.f32.xlu0 %v3967
          %v3969 = vpop.xlane.xlu0 %3968
          %v3970 = vsel %vm3608, %v3948, -inf
          %3971 = vmax.xlane.f32.xlu0 %v3970
          %v3972 = vpop.xlane.xlu0 %3971
          %v3973 = vsel %vm3608, %v3949, -inf
          %3974 = vmax.xlane.f32.xlu0 %v3973
          %v3975 = vpop.xlane.xlu0 %3974
          %v3976 = vsel %vm3608, %v3950, -inf
          %3977 = vmax.xlane.f32.xlu0 %v3976
          %v3978 = vpop.xlane.xlu0 %3977
          %v3979 = vsel %vm3608, %v3951, -inf
          %3980 = vmax.xlane.f32.xlu0 %v3979
          %v3981 = vpop.xlane.xlu0 %3980
          %v3982 = vsel %vm3608, %v3952, -inf
          %3983 = vmax.xlane.f32.xlu0 %v3982
          %v3984 = vpop.xlane.xlu0 %3983
          %v3985 = vsel %vm3608, %v3953, -inf
          %3986 = vmax.xlane.f32.xlu0 %v3985
          %v3987 = vpop.xlane.xlu0 %3986
          %v3988 = vsel %vm3608, %v3954, -inf
          %3989 = vmax.xlane.f32.xlu0 %v3988
          %v3990 = vpop.xlane.xlu0 %3989
          %v3991 = vsel %vm3608, %v3955, -inf
          %3992 = vmax.xlane.f32.xlu0 %v3991
          %v3993 = vpop.xlane.xlu0 %3992
          %v3994 = vsel %vm3608, %v3956, -inf
          %3995 = vmax.xlane.f32.xlu0 %v3994
          %v3996 = vpop.xlane.xlu0 %3995
          %v3997 = vsel %vm3608, %v3957, -inf
          %3998 = vmax.xlane.f32.xlu0 %v3997
          %v3999 = vpop.xlane.xlu0 %3998
          %v4000 = vsel %vm3608, %v3958, -inf
          %4001 = vmax.xlane.f32.xlu0 %v4000
          %v4002 = vpop.xlane.xlu0 %4001
          %v4003 = vsel %vm3608, %v3959, -inf
          %4004 = vmax.xlane.f32.xlu0 %v4003
          %v4005 = vpop.xlane.xlu0 %4004
          %v4006 = vsel %vm3608, %v3960, -inf
          %4007 = vmax.xlane.f32.xlu0 %v4006
          %v4008 = vpop.xlane.xlu0 %4007
          %vm4009 = vcmp.eq.f32.partialorder %v3945, %v3963
          %vm4010 = vcmp.eq.f32.partialorder %v3946, %v3966
          %vm4011 = vcmp.eq.f32.partialorder %v3947, %v3969
          %vm4012 = vcmp.eq.f32.partialorder %v3948, %v3972
          %vm4013 = vcmp.eq.f32.partialorder %v3949, %v3975
          %vm4014 = vcmp.eq.f32.partialorder %v3950, %v3978
          %vm4015 = vcmp.eq.f32.partialorder %v3951, %v3981
          %vm4016 = vcmp.eq.f32.partialorder %v3952, %v3984
          %vm4017 = vcmp.eq.f32.partialorder %v3953, %v3987
          %vm4018 = vcmp.eq.f32.partialorder %v3954, %v3990
          %vm4019 = vcmp.eq.f32.partialorder %v3955, %v3993
          %vm4020 = vcmp.eq.f32.partialorder %v3956, %v3996
          %vm4021 = vcmp.eq.f32.partialorder %v3957, %v3999
          %vm4022 = vcmp.eq.f32.partialorder %v3958, %v4002
          %vm4023 = vcmp.eq.f32.partialorder %v3959, %v4005
          %vm4024 = vcmp.eq.f32.partialorder %v3960, %v4008
          %v4025 = vsel %vm4009, %v3592, 2147483647
          %v4026 = vsel %vm4010, %v3593, 2147483647
          %v4027 = vsel %vm4011, %v3594, 2147483647
          %v4028 = vsel %vm4012, %v3595, 2147483647
          %v4029 = vsel %vm4013, %v3596, 2147483647
          %v4030 = vsel %vm4014, %v3597, 2147483647
          %v4031 = vsel %vm4015, %v3598, 2147483647
          %v4032 = vsel %vm4016, %v3599, 2147483647
          %v4033 = vsel %vm4017, %v3600, 2147483647
          %v4034 = vsel %vm4018, %v3601, 2147483647
          %v4035 = vsel %vm4019, %v3602, 2147483647
          %v4036 = vsel %vm4020, %v3603, 2147483647
          %v4037 = vsel %vm4021, %v3604, 2147483647
          %v4038 = vsel %vm4022, %v3605, 2147483647
          %v4039 = vsel %vm4023, %v3606, 2147483647
          %v4040 = vsel %vm4024, %v3607, 2147483647
          %v4041 = vsel %vm3608, %v4025, 2147483647
          %v4042 = vand.u32 %v4041, 65535
          %v4043 = vshra.s32 %v4041, 16
          %v4044 = vcvt.s32.f32 %v4042
          %v4045 = vcvt.s32.f32 %v4043
          %4046 = vmin.xlane.f32.xlu0 %v4045
          %v4047 = vpop.xlane.xlu0 %4046
          %vm4048 = vcmp.eq.f32.partialorder %v4045, %v4047
          %v4049 = vsel %vm4048, %v4044, inf
          %4050 = vmin.xlane.f32.xlu0 %v4049
          %v4051 = vpop.xlane.xlu0 %4050
          %v4052 = vcvt.f32.s32 %v4051
          %v4053 = vcvt.f32.s32 %v4047
          %v4054 = vshll.u32 %v4053, 16
          %v4055 = vadd.s32 %v4054, %v4052
          %v4056 = vsel %vm3608, %v4026, 2147483647
          %v4057 = vand.u32 %v4056, 65535
          %v4058 = vshra.s32 %v4056, 16
          %v4059 = vcvt.s32.f32 %v4057
          %v4060 = vcvt.s32.f32 %v4058
          %4061 = vmin.xlane.f32.xlu0 %v4060
          %v4062 = vpop.xlane.xlu0 %4061
          %vm4063 = vcmp.eq.f32.partialorder %v4060, %v4062
          %v4064 = vsel %vm4063, %v4059, inf
          %4065 = vmin.xlane.f32.xlu0 %v4064
          %v4066 = vpop.xlane.xlu0 %4065
          %v4067 = vcvt.f32.s32 %v4066
          %v4068 = vcvt.f32.s32 %v4062
          %v4069 = vshll.u32 %v4068, 16
          %v4070 = vadd.s32 %v4069, %v4067
          %v4071 = vsel %vm3608, %v4027, 2147483647
          %v4072 = vand.u32 %v4071, 65535
          %v4073 = vshra.s32 %v4071, 16
          %v4074 = vcvt.s32.f32 %v4072
          %v4075 = vcvt.s32.f32 %v4073
          %4076 = vmin.xlane.f32.xlu0 %v4075
          %v4077 = vpop.xlane.xlu0 %4076
          %vm4078 = vcmp.eq.f32.partialorder %v4075, %v4077
          %v4079 = vsel %vm4078, %v4074, inf
          %4080 = vmin.xlane.f32.xlu0 %v4079
          %v4081 = vpop.xlane.xlu0 %4080
          %v4082 = vcvt.f32.s32 %v4081
          %v4083 = vcvt.f32.s32 %v4077
          %v4084 = vshll.u32 %v4083, 16
          %v4085 = vadd.s32 %v4084, %v4082
          %v4086 = vsel %vm3608, %v4028, 2147483647
          %v4087 = vand.u32 %v4086, 65535
          %v4088 = vshra.s32 %v4086, 16
          %v4089 = vcvt.s32.f32 %v4087
          %v4090 = vcvt.s32.f32 %v4088
          %4091 = vmin.xlane.f32.xlu0 %v4090
          %v4092 = vpop.xlane.xlu0 %4091
          %vm4093 = vcmp.eq.f32.partialorder %v4090, %v4092
          %v4094 = vsel %vm4093, %v4089, inf
          %4095 = vmin.xlane.f32.xlu0 %v4094
          %v4096 = vpop.xlane.xlu0 %4095
          %v4097 = vcvt.f32.s32 %v4096
          %v4098 = vcvt.f32.s32 %v4092
          %v4099 = vshll.u32 %v4098, 16
          %v4100 = vadd.s32 %v4099, %v4097
          %v4101 = vsel %vm3608, %v4029, 2147483647
          %v4102 = vand.u32 %v4101, 65535
          %v4103 = vshra.s32 %v4101, 16
          %v4104 = vcvt.s32.f32 %v4102
          %v4105 = vcvt.s32.f32 %v4103
          %4106 = vmin.xlane.f32.xlu0 %v4105
          %v4107 = vpop.xlane.xlu0 %4106
          %vm4108 = vcmp.eq.f32.partialorder %v4105, %v4107
          %v4109 = vsel %vm4108, %v4104, inf
          %4110 = vmin.xlane.f32.xlu0 %v4109
          %v4111 = vpop.xlane.xlu0 %4110
          %v4112 = vcvt.f32.s32 %v4111
          %v4113 = vcvt.f32.s32 %v4107
          %v4114 = vshll.u32 %v4113, 16
          %v4115 = vadd.s32 %v4114, %v4112
          %v4116 = vsel %vm3608, %v4030, 2147483647
          %v4117 = vand.u32 %v4116, 65535
          %v4118 = vshra.s32 %v4116, 16
          %v4119 = vcvt.s32.f32 %v4117
          %v4120 = vcvt.s32.f32 %v4118
          %4121 = vmin.xlane.f32.xlu0 %v4120
          %v4122 = vpop.xlane.xlu0 %4121
          %vm4123 = vcmp.eq.f32.partialorder %v4120, %v4122
          %v4124 = vsel %vm4123, %v4119, inf
          %4125 = vmin.xlane.f32.xlu0 %v4124
          %v4126 = vpop.xlane.xlu0 %4125
          %v4127 = vcvt.f32.s32 %v4126
          %v4128 = vcvt.f32.s32 %v4122
          %v4129 = vshll.u32 %v4128, 16
          %v4130 = vadd.s32 %v4129, %v4127
          %v4131 = vsel %vm3608, %v4031, 2147483647
          %v4132 = vand.u32 %v4131, 65535
          %v4133 = vshra.s32 %v4131, 16
          %v4134 = vcvt.s32.f32 %v4132
          %v4135 = vcvt.s32.f32 %v4133
          %4136 = vmin.xlane.f32.xlu0 %v4135
          %v4137 = vpop.xlane.xlu0 %4136
          %vm4138 = vcmp.eq.f32.partialorder %v4135, %v4137
          %v4139 = vsel %vm4138, %v4134, inf
          %4140 = vmin.xlane.f32.xlu0 %v4139
          %v4141 = vpop.xlane.xlu0 %4140
          %v4142 = vcvt.f32.s32 %v4141
          %v4143 = vcvt.f32.s32 %v4137
          %v4144 = vshll.u32 %v4143, 16
          %v4145 = vadd.s32 %v4144, %v4142
          %v4146 = vsel %vm3608, %v4032, 2147483647
          %v4147 = vand.u32 %v4146, 65535
          %v4148 = vshra.s32 %v4146, 16
          %v4149 = vcvt.s32.f32 %v4147
          %v4150 = vcvt.s32.f32 %v4148
          %4151 = vmin.xlane.f32.xlu0 %v4150
          %v4152 = vpop.xlane.xlu0 %4151
          %vm4153 = vcmp.eq.f32.partialorder %v4150, %v4152
          %v4154 = vsel %vm4153, %v4149, inf
          %4155 = vmin.xlane.f32.xlu0 %v4154
          %v4156 = vpop.xlane.xlu0 %4155
          %v4157 = vcvt.f32.s32 %v4156
          %v4158 = vcvt.f32.s32 %v4152
          %v4159 = vshll.u32 %v4158, 16
          %v4160 = vadd.s32 %v4159, %v4157
          %v4161 = vsel %vm3608, %v4033, 2147483647
          %v4162 = vand.u32 %v4161, 65535
          %v4163 = vshra.s32 %v4161, 16
          %v4164 = vcvt.s32.f32 %v4162
          %v4165 = vcvt.s32.f32 %v4163
          %4166 = vmin.xlane.f32.xlu0 %v4165
          %v4167 = vpop.xlane.xlu0 %4166
          %vm4168 = vcmp.eq.f32.partialorder %v4165, %v4167
          %v4169 = vsel %vm4168, %v4164, inf
          %4170 = vmin.xlane.f32.xlu0 %v4169
          %v4171 = vpop.xlane.xlu0 %4170
          %v4172 = vcvt.f32.s32 %v4171
          %v4173 = vcvt.f32.s32 %v4167
          %v4174 = vshll.u32 %v4173, 16
          %v4175 = vadd.s32 %v4174, %v4172
          %v4176 = vsel %vm3608, %v4034, 2147483647
          %v4177 = vand.u32 %v4176, 65535
          %v4178 = vshra.s32 %v4176, 16
          %v4179 = vcvt.s32.f32 %v4177
          %v4180 = vcvt.s32.f32 %v4178
          %4181 = vmin.xlane.f32.xlu0 %v4180
          %v4182 = vpop.xlane.xlu0 %4181
          %vm4183 = vcmp.eq.f32.partialorder %v4180, %v4182
          %v4184 = vsel %vm4183, %v4179, inf
          %4185 = vmin.xlane.f32.xlu0 %v4184
          %v4186 = vpop.xlane.xlu0 %4185
          %v4187 = vcvt.f32.s32 %v4186
          %v4188 = vcvt.f32.s32 %v4182
          %v4189 = vshll.u32 %v4188, 16
          %v4190 = vadd.s32 %v4189, %v4187
          %v4191 = vsel %vm3608, %v4035, 2147483647
          %v4192 = vand.u32 %v4191, 65535
          %v4193 = vshra.s32 %v4191, 16
          %v4194 = vcvt.s32.f32 %v4192
          %v4195 = vcvt.s32.f32 %v4193
          %4196 = vmin.xlane.f32.xlu0 %v4195
          %v4197 = vpop.xlane.xlu0 %4196
          %vm4198 = vcmp.eq.f32.partialorder %v4195, %v4197
          %v4199 = vsel %vm4198, %v4194, inf
          %4200 = vmin.xlane.f32.xlu0 %v4199
          %v4201 = vpop.xlane.xlu0 %4200
          %v4202 = vcvt.f32.s32 %v4201
          %v4203 = vcvt.f32.s32 %v4197
          %v4204 = vshll.u32 %v4203, 16
          %v4205 = vadd.s32 %v4204, %v4202
          %v4206 = vsel %vm3608, %v4036, 2147483647
          %v4207 = vand.u32 %v4206, 65535
          %v4208 = vshra.s32 %v4206, 16
          %v4209 = vcvt.s32.f32 %v4207
          %v4210 = vcvt.s32.f32 %v4208
          %4211 = vmin.xlane.f32.xlu0 %v4210
          %v4212 = vpop.xlane.xlu0 %4211
          %vm4213 = vcmp.eq.f32.partialorder %v4210, %v4212
          %v4214 = vsel %vm4213, %v4209, inf
          %4215 = vmin.xlane.f32.xlu0 %v4214
          %v4216 = vpop.xlane.xlu0 %4215
          %v4217 = vcvt.f32.s32 %v4216
          %v4218 = vcvt.f32.s32 %v4212
          %v4219 = vshll.u32 %v4218, 16
          %v4220 = vadd.s32 %v4219, %v4217
          %v4221 = vsel %vm3608, %v4037, 2147483647
          %v4222 = vand.u32 %v4221, 65535
          %v4223 = vshra.s32 %v4221, 16
          %v4224 = vcvt.s32.f32 %v4222
          %v4225 = vcvt.s32.f32 %v4223
          %4226 = vmin.xlane.f32.xlu0 %v4225
          %v4227 = vpop.xlane.xlu0 %4226
          %vm4228 = vcmp.eq.f32.partialorder %v4225, %v4227
          %v4229 = vsel %vm4228, %v4224, inf
          %4230 = vmin.xlane.f32.xlu0 %v4229
          %v4231 = vpop.xlane.xlu0 %4230
          %v4232 = vcvt.f32.s32 %v4231
          %v4233 = vcvt.f32.s32 %v4227
          %v4234 = vshll.u32 %v4233, 16
          %v4235 = vadd.s32 %v4234, %v4232
          %v4236 = vsel %vm3608, %v4038, 2147483647
          %v4237 = vand.u32 %v4236, 65535
          %v4238 = vshra.s32 %v4236, 16
          %v4239 = vcvt.s32.f32 %v4237
          %v4240 = vcvt.s32.f32 %v4238
          %4241 = vmin.xlane.f32.xlu0 %v4240
          %v4242 = vpop.xlane.xlu0 %4241
          %vm4243 = vcmp.eq.f32.partialorder %v4240, %v4242
          %v4244 = vsel %vm4243, %v4239, inf
          %4245 = vmin.xlane.f32.xlu0 %v4244
          %v4246 = vpop.xlane.xlu0 %4245
          %v4247 = vcvt.f32.s32 %v4246
          %v4248 = vcvt.f32.s32 %v4242
          %v4249 = vshll.u32 %v4248, 16
          %v4250 = vadd.s32 %v4249, %v4247
          %v4251 = vsel %vm3608, %v4039, 2147483647
          %v4252 = vand.u32 %v4251, 65535
          %v4253 = vshra.s32 %v4251, 16
          %v4254 = vcvt.s32.f32 %v4252
          %v4255 = vcvt.s32.f32 %v4253
          %4256 = vmin.xlane.f32.xlu0 %v4255
          %v4257 = vpop.xlane.xlu0 %4256
          %vm4258 = vcmp.eq.f32.partialorder %v4255, %v4257
          %v4259 = vsel %vm4258, %v4254, inf
          %4260 = vmin.xlane.f32.xlu0 %v4259
          %v4261 = vpop.xlane.xlu0 %4260
          %v4262 = vcvt.f32.s32 %v4261
          %v4263 = vcvt.f32.s32 %v4257
          %v4264 = vshll.u32 %v4263, 16
          %v4265 = vadd.s32 %v4264, %v4262
          %v4266 = vsel %vm3608, %v4040, 2147483647
          %v4267 = vand.u32 %v4266, 65535
          %v4268 = vshra.s32 %v4266, 16
          %v4269 = vcvt.s32.f32 %v4267
          %v4270 = vcvt.s32.f32 %v4268
          %4271 = vmin.xlane.f32.xlu0 %v4270
          %v4272 = vpop.xlane.xlu0 %4271
          %vm4273 = vcmp.eq.f32.partialorder %v4270, %v4272
          %v4274 = vsel %vm4273, %v4269, inf
          %4275 = vmin.xlane.f32.xlu0 %v4274
          %v4276 = vpop.xlane.xlu0 %4275
          %v4277 = vcvt.f32.s32 %v4276
          %v4278 = vcvt.f32.s32 %v4272
          %v4279 = vshll.u32 %v4278, 16
          %v4280 = vadd.s32 %v4279, %v4277
          %vm4281 = vcmp.eq.s32.totalorder %v3592, %v4055
          %vm4282 = vcmp.eq.s32.totalorder %v3593, %v4070
          %vm4283 = vcmp.eq.s32.totalorder %v3594, %v4085
          %vm4284 = vcmp.eq.s32.totalorder %v3595, %v4100
          %vm4285 = vcmp.eq.s32.totalorder %v3596, %v4115
          %vm4286 = vcmp.eq.s32.totalorder %v3597, %v4130
          %vm4287 = vcmp.eq.s32.totalorder %v3598, %v4145
          %vm4288 = vcmp.eq.s32.totalorder %v3599, %v4160
          %vm4289 = vcmp.eq.s32.totalorder %v3600, %v4175
          %vm4290 = vcmp.eq.s32.totalorder %v3601, %v4190
          %vm4291 = vcmp.eq.s32.totalorder %v3602, %v4205
          %vm4292 = vcmp.eq.s32.totalorder %v3603, %v4220
          %vm4293 = vcmp.eq.s32.totalorder %v3604, %v4235
          %vm4294 = vcmp.eq.s32.totalorder %v3605, %v4250
          %vm4295 = vcmp.eq.s32.totalorder %v3606, %v4265
          %vm4296 = vcmp.eq.s32.totalorder %v3607, %v4280
          %v4297 = vsel %vm4281, -inf, %v3945
          %v4298 = vsel %vm4282, -inf, %v3946
          %v4299 = vsel %vm4283, -inf, %v3947
          %v4300 = vsel %vm4284, -inf, %v3948
          %v4301 = vsel %vm4285, -inf, %v3949
          %v4302 = vsel %vm4286, -inf, %v3950
          %v4303 = vsel %vm4287, -inf, %v3951
          %v4304 = vsel %vm4288, -inf, %v3952
          %v4305 = vsel %vm4289, -inf, %v3953
          %v4306 = vsel %vm4290, -inf, %v3954
          %v4307 = vsel %vm4291, -inf, %v3955
          %v4308 = vsel %vm4292, -inf, %v3956
          %v4309 = vsel %vm4293, -inf, %v3957
          %v4310 = vsel %vm4294, -inf, %v3958
          %v4311 = vsel %vm4295, -inf, %v3959
          %v4312 = vsel %vm4296, -inf, %v3960
          %v4313 = vsel %vm3608, %v4297, -inf
          %4314 = vmax.xlane.f32.xlu0 %v4313
          %v4315 = vpop.xlane.xlu0 %4314
          %v4316 = vsel %vm3608, %v4298, -inf
          %4317 = vmax.xlane.f32.xlu0 %v4316
          %v4318 = vpop.xlane.xlu0 %4317
          %v4319 = vsel %vm3608, %v4299, -inf
          %4320 = vmax.xlane.f32.xlu0 %v4319
          %v4321 = vpop.xlane.xlu0 %4320
          %v4322 = vsel %vm3608, %v4300, -inf
          %4323 = vmax.xlane.f32.xlu0 %v4322
          %v4324 = vpop.xlane.xlu0 %4323
          %v4325 = vsel %vm3608, %v4301, -inf
          %4326 = vmax.xlane.f32.xlu0 %v4325
          %v4327 = vpop.xlane.xlu0 %4326
          %v4328 = vsel %vm3608, %v4302, -inf
          %4329 = vmax.xlane.f32.xlu0 %v4328
          %v4330 = vpop.xlane.xlu0 %4329
          %v4331 = vsel %vm3608, %v4303, -inf
          %4332 = vmax.xlane.f32.xlu0 %v4331
          %v4333 = vpop.xlane.xlu0 %4332
          %v4334 = vsel %vm3608, %v4304, -inf
          %4335 = vmax.xlane.f32.xlu0 %v4334
          %v4336 = vpop.xlane.xlu0 %4335
          %v4337 = vsel %vm3608, %v4305, -inf
          %4338 = vmax.xlane.f32.xlu0 %v4337
          %v4339 = vpop.xlane.xlu0 %4338
          %v4340 = vsel %vm3608, %v4306, -inf
          %4341 = vmax.xlane.f32.xlu0 %v4340
          %v4342 = vpop.xlane.xlu0 %4341
          %v4343 = vsel %vm3608, %v4307, -inf
          %4344 = vmax.xlane.f32.xlu0 %v4343
          %v4345 = vpop.xlane.xlu0 %4344
          %v4346 = vsel %vm3608, %v4308, -inf
          %4347 = vmax.xlane.f32.xlu0 %v4346
          %v4348 = vpop.xlane.xlu0 %4347
          %v4349 = vsel %vm3608, %v4309, -inf
          %4350 = vmax.xlane.f32.xlu0 %v4349
          %v4351 = vpop.xlane.xlu0 %4350
          %v4352 = vsel %vm3608, %v4310, -inf
          %4353 = vmax.xlane.f32.xlu0 %v4352
          %v4354 = vpop.xlane.xlu0 %4353
          %v4355 = vsel %vm3608, %v4311, -inf
          %4356 = vmax.xlane.f32.xlu0 %v4355
          %v4357 = vpop.xlane.xlu0 %4356
          %v4358 = vsel %vm3608, %v4312, -inf
          %4359 = vmax.xlane.f32.xlu0 %v4358
          %v4360 = vpop.xlane.xlu0 %4359
          %vm4361 = vcmp.eq.f32.partialorder %v4297, %v4315
          %vm4362 = vcmp.eq.f32.partialorder %v4298, %v4318
          %vm4363 = vcmp.eq.f32.partialorder %v4299, %v4321
          %vm4364 = vcmp.eq.f32.partialorder %v4300, %v4324
          %vm4365 = vcmp.eq.f32.partialorder %v4301, %v4327
          %vm4366 = vcmp.eq.f32.partialorder %v4302, %v4330
          %vm4367 = vcmp.eq.f32.partialorder %v4303, %v4333
          %vm4368 = vcmp.eq.f32.partialorder %v4304, %v4336
          %vm4369 = vcmp.eq.f32.partialorder %v4305, %v4339
          %vm4370 = vcmp.eq.f32.partialorder %v4306, %v4342
          %vm4371 = vcmp.eq.f32.partialorder %v4307, %v4345
          %vm4372 = vcmp.eq.f32.partialorder %v4308, %v4348
          %vm4373 = vcmp.eq.f32.partialorder %v4309, %v4351
          %vm4374 = vcmp.eq.f32.partialorder %v4310, %v4354
          %vm4375 = vcmp.eq.f32.partialorder %v4311, %v4357
          %vm4376 = vcmp.eq.f32.partialorder %v4312, %v4360
          %v4377 = vsel %vm4361, %v3592, 2147483647
          %v4378 = vsel %vm4362, %v3593, 2147483647
          %v4379 = vsel %vm4363, %v3594, 2147483647
          %v4380 = vsel %vm4364, %v3595, 2147483647
          %v4381 = vsel %vm4365, %v3596, 2147483647
          %v4382 = vsel %vm4366, %v3597, 2147483647
          %v4383 = vsel %vm4367, %v3598, 2147483647
          %v4384 = vsel %vm4368, %v3599, 2147483647
          %v4385 = vsel %vm4369, %v3600, 2147483647
          %v4386 = vsel %vm4370, %v3601, 2147483647
          %v4387 = vsel %vm4371, %v3602, 2147483647
          %v4388 = vsel %vm4372, %v3603, 2147483647
          %v4389 = vsel %vm4373, %v3604, 2147483647
          %v4390 = vsel %vm4374, %v3605, 2147483647
          %v4391 = vsel %vm4375, %v3606, 2147483647
          %v4392 = vsel %vm4376, %v3607, 2147483647
          %v4393 = vsel %vm3608, %v4377, 2147483647
          %v4394 = vand.u32 %v4393, 65535
          %v4395 = vshra.s32 %v4393, 16
          %v4396 = vcvt.s32.f32 %v4394
          %v4397 = vcvt.s32.f32 %v4395
          %4398 = vmin.xlane.f32.xlu0 %v4397
          %v4399 = vpop.xlane.xlu0 %4398
          %vm4400 = vcmp.eq.f32.partialorder %v4397, %v4399
          %v4401 = vsel %vm4400, %v4396, inf
          %4402 = vmin.xlane.f32.xlu0 %v4401
          %v4403 = vpop.xlane.xlu0 %4402
          %v4404 = vcvt.f32.s32 %v4403
          %v4405 = vcvt.f32.s32 %v4399
          %v4406 = vshll.u32 %v4405, 16
          %v4407 = vadd.s32 %v4406, %v4404
          %v4408 = vsel %vm3608, %v4378, 2147483647
          %v4409 = vand.u32 %v4408, 65535
          %v4410 = vshra.s32 %v4408, 16
          %v4411 = vcvt.s32.f32 %v4409
          %v4412 = vcvt.s32.f32 %v4410
          %4413 = vmin.xlane.f32.xlu0 %v4412
          %v4414 = vpop.xlane.xlu0 %4413
          %vm4415 = vcmp.eq.f32.partialorder %v4412, %v4414
          %v4416 = vsel %vm4415, %v4411, inf
          %4417 = vmin.xlane.f32.xlu0 %v4416
          %v4418 = vpop.xlane.xlu0 %4417
          %v4419 = vcvt.f32.s32 %v4418
          %v4420 = vcvt.f32.s32 %v4414
          %v4421 = vshll.u32 %v4420, 16
          %v4422 = vadd.s32 %v4421, %v4419
          %v4423 = vsel %vm3608, %v4379, 2147483647
          %v4424 = vand.u32 %v4423, 65535
          %v4425 = vshra.s32 %v4423, 16
          %v4426 = vcvt.s32.f32 %v4424
          %v4427 = vcvt.s32.f32 %v4425
          %4428 = vmin.xlane.f32.xlu0 %v4427
          %v4429 = vpop.xlane.xlu0 %4428
          %vm4430 = vcmp.eq.f32.partialorder %v4427, %v4429
          %v4431 = vsel %vm4430, %v4426, inf
          %4432 = vmin.xlane.f32.xlu0 %v4431
          %v4433 = vpop.xlane.xlu0 %4432
          %v4434 = vcvt.f32.s32 %v4433
          %v4435 = vcvt.f32.s32 %v4429
          %v4436 = vshll.u32 %v4435, 16
          %v4437 = vadd.s32 %v4436, %v4434
          %v4438 = vsel %vm3608, %v4380, 2147483647
          %v4439 = vand.u32 %v4438, 65535
          %v4440 = vshra.s32 %v4438, 16
          %v4441 = vcvt.s32.f32 %v4439
          %v4442 = vcvt.s32.f32 %v4440
          %4443 = vmin.xlane.f32.xlu0 %v4442
          %v4444 = vpop.xlane.xlu0 %4443
          %vm4445 = vcmp.eq.f32.partialorder %v4442, %v4444
          %v4446 = vsel %vm4445, %v4441, inf
          %4447 = vmin.xlane.f32.xlu0 %v4446
          %v4448 = vpop.xlane.xlu0 %4447
          %v4449 = vcvt.f32.s32 %v4448
          %v4450 = vcvt.f32.s32 %v4444
          %v4451 = vshll.u32 %v4450, 16
          %v4452 = vadd.s32 %v4451, %v4449
          %v4453 = vsel %vm3608, %v4381, 2147483647
          %v4454 = vand.u32 %v4453, 65535
          %v4455 = vshra.s32 %v4453, 16
          %v4456 = vcvt.s32.f32 %v4454
          %v4457 = vcvt.s32.f32 %v4455
          %4458 = vmin.xlane.f32.xlu0 %v4457
          %v4459 = vpop.xlane.xlu0 %4458
          %vm4460 = vcmp.eq.f32.partialorder %v4457, %v4459
          %v4461 = vsel %vm4460, %v4456, inf
          %4462 = vmin.xlane.f32.xlu0 %v4461
          %v4463 = vpop.xlane.xlu0 %4462
          %v4464 = vcvt.f32.s32 %v4463
          %v4465 = vcvt.f32.s32 %v4459
          %v4466 = vshll.u32 %v4465, 16
          %v4467 = vadd.s32 %v4466, %v4464
          %v4468 = vsel %vm3608, %v4382, 2147483647
          %v4469 = vand.u32 %v4468, 65535
          %v4470 = vshra.s32 %v4468, 16
          %v4471 = vcvt.s32.f32 %v4469
          %v4472 = vcvt.s32.f32 %v4470
          %4473 = vmin.xlane.f32.xlu0 %v4472
          %v4474 = vpop.xlane.xlu0 %4473
          %vm4475 = vcmp.eq.f32.partialorder %v4472, %v4474
          %v4476 = vsel %vm4475, %v4471, inf
          %4477 = vmin.xlane.f32.xlu0 %v4476
          %v4478 = vpop.xlane.xlu0 %4477
          %v4479 = vcvt.f32.s32 %v4478
          %v4480 = vcvt.f32.s32 %v4474
          %v4481 = vshll.u32 %v4480, 16
          %v4482 = vadd.s32 %v4481, %v4479
          %v4483 = vsel %vm3608, %v4383, 2147483647
          %v4484 = vand.u32 %v4483, 65535
          %v4485 = vshra.s32 %v4483, 16
          %v4486 = vcvt.s32.f32 %v4484
          %v4487 = vcvt.s32.f32 %v4485
          %4488 = vmin.xlane.f32.xlu0 %v4487
          %v4489 = vpop.xlane.xlu0 %4488
          %vm4490 = vcmp.eq.f32.partialorder %v4487, %v4489
          %v4491 = vsel %vm4490, %v4486, inf
          %4492 = vmin.xlane.f32.xlu0 %v4491
          %v4493 = vpop.xlane.xlu0 %4492
          %v4494 = vcvt.f32.s32 %v4493
          %v4495 = vcvt.f32.s32 %v4489
          %v4496 = vshll.u32 %v4495, 16
          %v4497 = vadd.s32 %v4496, %v4494
          %v4498 = vsel %vm3608, %v4384, 2147483647
          %v4499 = vand.u32 %v4498, 65535
          %v4500 = vshra.s32 %v4498, 16
          %v4501 = vcvt.s32.f32 %v4499
          %v4502 = vcvt.s32.f32 %v4500
          %4503 = vmin.xlane.f32.xlu0 %v4502
          %v4504 = vpop.xlane.xlu0 %4503
          %vm4505 = vcmp.eq.f32.partialorder %v4502, %v4504
          %v4506 = vsel %vm4505, %v4501, inf
          %4507 = vmin.xlane.f32.xlu0 %v4506
          %v4508 = vpop.xlane.xlu0 %4507
          %v4509 = vcvt.f32.s32 %v4508
          %v4510 = vcvt.f32.s32 %v4504
          %v4511 = vshll.u32 %v4510, 16
          %v4512 = vadd.s32 %v4511, %v4509
          %v4513 = vsel %vm3608, %v4385, 2147483647
          %v4514 = vand.u32 %v4513, 65535
          %v4515 = vshra.s32 %v4513, 16
          %v4516 = vcvt.s32.f32 %v4514
          %v4517 = vcvt.s32.f32 %v4515
          %4518 = vmin.xlane.f32.xlu0 %v4517
          %v4519 = vpop.xlane.xlu0 %4518
          %vm4520 = vcmp.eq.f32.partialorder %v4517, %v4519
          %v4521 = vsel %vm4520, %v4516, inf
          %4522 = vmin.xlane.f32.xlu0 %v4521
          %v4523 = vpop.xlane.xlu0 %4522
          %v4524 = vcvt.f32.s32 %v4523
          %v4525 = vcvt.f32.s32 %v4519
          %v4526 = vshll.u32 %v4525, 16
          %v4527 = vadd.s32 %v4526, %v4524
          %v4528 = vsel %vm3608, %v4386, 2147483647
          %v4529 = vand.u32 %v4528, 65535
          %v4530 = vshra.s32 %v4528, 16
          %v4531 = vcvt.s32.f32 %v4529
          %v4532 = vcvt.s32.f32 %v4530
          %4533 = vmin.xlane.f32.xlu0 %v4532
          %v4534 = vpop.xlane.xlu0 %4533
          %vm4535 = vcmp.eq.f32.partialorder %v4532, %v4534
          %v4536 = vsel %vm4535, %v4531, inf
          %4537 = vmin.xlane.f32.xlu0 %v4536
          %v4538 = vpop.xlane.xlu0 %4537
          %v4539 = vcvt.f32.s32 %v4538
          %v4540 = vcvt.f32.s32 %v4534
          %v4541 = vshll.u32 %v4540, 16
          %v4542 = vadd.s32 %v4541, %v4539
          %v4543 = vsel %vm3608, %v4387, 2147483647
          %v4544 = vand.u32 %v4543, 65535
          %v4545 = vshra.s32 %v4543, 16
          %v4546 = vcvt.s32.f32 %v4544
          %v4547 = vcvt.s32.f32 %v4545
          %4548 = vmin.xlane.f32.xlu0 %v4547
          %v4549 = vpop.xlane.xlu0 %4548
          %vm4550 = vcmp.eq.f32.partialorder %v4547, %v4549
          %v4551 = vsel %vm4550, %v4546, inf
          %4552 = vmin.xlane.f32.xlu0 %v4551
          %v4553 = vpop.xlane.xlu0 %4552
          %v4554 = vcvt.f32.s32 %v4553
          %v4555 = vcvt.f32.s32 %v4549
          %v4556 = vshll.u32 %v4555, 16
          %v4557 = vadd.s32 %v4556, %v4554
          %v4558 = vsel %vm3608, %v4388, 2147483647
          %v4559 = vand.u32 %v4558, 65535
          %v4560 = vshra.s32 %v4558, 16
          %v4561 = vcvt.s32.f32 %v4559
          %v4562 = vcvt.s32.f32 %v4560
          %4563 = vmin.xlane.f32.xlu0 %v4562
          %v4564 = vpop.xlane.xlu0 %4563
          %vm4565 = vcmp.eq.f32.partialorder %v4562, %v4564
          %v4566 = vsel %vm4565, %v4561, inf
          %4567 = vmin.xlane.f32.xlu0 %v4566
          %v4568 = vpop.xlane.xlu0 %4567
          %v4569 = vcvt.f32.s32 %v4568
          %v4570 = vcvt.f32.s32 %v4564
          %v4571 = vshll.u32 %v4570, 16
          %v4572 = vadd.s32 %v4571, %v4569
          %v4573 = vsel %vm3608, %v4389, 2147483647
          %v4574 = vand.u32 %v4573, 65535
          %v4575 = vshra.s32 %v4573, 16
          %v4576 = vcvt.s32.f32 %v4574
          %v4577 = vcvt.s32.f32 %v4575
          %4578 = vmin.xlane.f32.xlu0 %v4577
          %v4579 = vpop.xlane.xlu0 %4578
          %vm4580 = vcmp.eq.f32.partialorder %v4577, %v4579
          %v4581 = vsel %vm4580, %v4576, inf
          %4582 = vmin.xlane.f32.xlu0 %v4581
          %v4583 = vpop.xlane.xlu0 %4582
          %v4584 = vcvt.f32.s32 %v4583
          %v4585 = vcvt.f32.s32 %v4579
          %v4586 = vshll.u32 %v4585, 16
          %v4587 = vadd.s32 %v4586, %v4584
          %v4588 = vsel %vm3608, %v4390, 2147483647
          %v4589 = vand.u32 %v4588, 65535
          %v4590 = vshra.s32 %v4588, 16
          %v4591 = vcvt.s32.f32 %v4589
          %v4592 = vcvt.s32.f32 %v4590
          %4593 = vmin.xlane.f32.xlu0 %v4592
          %v4594 = vpop.xlane.xlu0 %4593
          %vm4595 = vcmp.eq.f32.partialorder %v4592, %v4594
          %v4596 = vsel %vm4595, %v4591, inf
          %4597 = vmin.xlane.f32.xlu0 %v4596
          %v4598 = vpop.xlane.xlu0 %4597
          %v4599 = vcvt.f32.s32 %v4598
          %v4600 = vcvt.f32.s32 %v4594
          %v4601 = vshll.u32 %v4600, 16
          %v4602 = vadd.s32 %v4601, %v4599
          %v4603 = vsel %vm3608, %v4391, 2147483647
          %v4604 = vand.u32 %v4603, 65535
          %v4605 = vshra.s32 %v4603, 16
          %v4606 = vcvt.s32.f32 %v4604
          %v4607 = vcvt.s32.f32 %v4605
          %4608 = vmin.xlane.f32.xlu0 %v4607
          %v4609 = vpop.xlane.xlu0 %4608
          %vm4610 = vcmp.eq.f32.partialorder %v4607, %v4609
          %v4611 = vsel %vm4610, %v4606, inf
          %4612 = vmin.xlane.f32.xlu0 %v4611
          %v4613 = vpop.xlane.xlu0 %4612
          %v4614 = vcvt.f32.s32 %v4613
          %v4615 = vcvt.f32.s32 %v4609
          %v4616 = vshll.u32 %v4615, 16
          %v4617 = vadd.s32 %v4616, %v4614
          %v4618 = vsel %vm3608, %v4392, 2147483647
          %v4619 = vand.u32 %v4618, 65535
          %v4620 = vshra.s32 %v4618, 16
          %v4621 = vcvt.s32.f32 %v4619
          %v4622 = vcvt.s32.f32 %v4620
          %4623 = vmin.xlane.f32.xlu0 %v4622
          %v4624 = vpop.xlane.xlu0 %4623
          %vm4625 = vcmp.eq.f32.partialorder %v4622, %v4624
          %v4626 = vsel %vm4625, %v4621, inf
          %4627 = vmin.xlane.f32.xlu0 %v4626
          %v4628 = vpop.xlane.xlu0 %4627
          %v4629 = vcvt.f32.s32 %v4628
          %v4630 = vcvt.f32.s32 %v4624
          %v4631 = vshll.u32 %v4630, 16
          %v4632 = vadd.s32 %v4631, %v4629
          %vm4633 = vcmp.eq.s32.totalorder %v3592, %v4407
          %vm4634 = vcmp.eq.s32.totalorder %v3593, %v4422
          %vm4635 = vcmp.eq.s32.totalorder %v3594, %v4437
          %vm4636 = vcmp.eq.s32.totalorder %v3595, %v4452
          %vm4637 = vcmp.eq.s32.totalorder %v3596, %v4467
          %vm4638 = vcmp.eq.s32.totalorder %v3597, %v4482
          %vm4639 = vcmp.eq.s32.totalorder %v3598, %v4497
          %vm4640 = vcmp.eq.s32.totalorder %v3599, %v4512
          %vm4641 = vcmp.eq.s32.totalorder %v3600, %v4527
          %vm4642 = vcmp.eq.s32.totalorder %v3601, %v4542
          %vm4643 = vcmp.eq.s32.totalorder %v3602, %v4557
          %vm4644 = vcmp.eq.s32.totalorder %v3603, %v4572
          %vm4645 = vcmp.eq.s32.totalorder %v3604, %v4587
          %vm4646 = vcmp.eq.s32.totalorder %v3605, %v4602
          %vm4647 = vcmp.eq.s32.totalorder %v3606, %v4617
          %vm4648 = vcmp.eq.s32.totalorder %v3607, %v4632
          %v4649 = vsel %vm4633, -inf, %v4297
          %v4650 = vsel %vm4634, -inf, %v4298
          %v4651 = vsel %vm4635, -inf, %v4299
          %v4652 = vsel %vm4636, -inf, %v4300
          %v4653 = vsel %vm4637, -inf, %v4301
          %v4654 = vsel %vm4638, -inf, %v4302
          %v4655 = vsel %vm4639, -inf, %v4303
          %v4656 = vsel %vm4640, -inf, %v4304
          %v4657 = vsel %vm4641, -inf, %v4305
          %v4658 = vsel %vm4642, -inf, %v4306
          %v4659 = vsel %vm4643, -inf, %v4307
          %v4660 = vsel %vm4644, -inf, %v4308
          %v4661 = vsel %vm4645, -inf, %v4309
          %v4662 = vsel %vm4646, -inf, %v4310
          %v4663 = vsel %vm4647, -inf, %v4311
          %v4664 = vsel %vm4648, -inf, %v4312
          %v4665 = vsel %vm3608, %v4649, -inf
          %4666 = vmax.xlane.f32.xlu0 %v4665
          %v4667 = vpop.xlane.xlu0 %4666
          %v4668 = vsel %vm3608, %v4650, -inf
          %4669 = vmax.xlane.f32.xlu0 %v4668
          %v4670 = vpop.xlane.xlu0 %4669
          %v4671 = vsel %vm3608, %v4651, -inf
          %4672 = vmax.xlane.f32.xlu0 %v4671
          %v4673 = vpop.xlane.xlu0 %4672
          %v4674 = vsel %vm3608, %v4652, -inf
          %4675 = vmax.xlane.f32.xlu0 %v4674
          %v4676 = vpop.xlane.xlu0 %4675
          %v4677 = vsel %vm3608, %v4653, -inf
          %4678 = vmax.xlane.f32.xlu0 %v4677
          %v4679 = vpop.xlane.xlu0 %4678
          %v4680 = vsel %vm3608, %v4654, -inf
          %4681 = vmax.xlane.f32.xlu0 %v4680
          %v4682 = vpop.xlane.xlu0 %4681
          %v4683 = vsel %vm3608, %v4655, -inf
          %4684 = vmax.xlane.f32.xlu0 %v4683
          %v4685 = vpop.xlane.xlu0 %4684
          %v4686 = vsel %vm3608, %v4656, -inf
          %4687 = vmax.xlane.f32.xlu0 %v4686
          %v4688 = vpop.xlane.xlu0 %4687
          %v4689 = vsel %vm3608, %v4657, -inf
          %4690 = vmax.xlane.f32.xlu0 %v4689
          %v4691 = vpop.xlane.xlu0 %4690
          %v4692 = vsel %vm3608, %v4658, -inf
          %4693 = vmax.xlane.f32.xlu0 %v4692
          %v4694 = vpop.xlane.xlu0 %4693
          %v4695 = vsel %vm3608, %v4659, -inf
          %4696 = vmax.xlane.f32.xlu0 %v4695
          %v4697 = vpop.xlane.xlu0 %4696
          %v4698 = vsel %vm3608, %v4660, -inf
          %4699 = vmax.xlane.f32.xlu0 %v4698
          %v4700 = vpop.xlane.xlu0 %4699
          %v4701 = vsel %vm3608, %v4661, -inf
          %4702 = vmax.xlane.f32.xlu0 %v4701
          %v4703 = vpop.xlane.xlu0 %4702
          %v4704 = vsel %vm3608, %v4662, -inf
          %4705 = vmax.xlane.f32.xlu0 %v4704
          %v4706 = vpop.xlane.xlu0 %4705
          %v4707 = vsel %vm3608, %v4663, -inf
          %4708 = vmax.xlane.f32.xlu0 %v4707
          %v4709 = vpop.xlane.xlu0 %4708
          %v4710 = vsel %vm3608, %v4664, -inf
          %4711 = vmax.xlane.f32.xlu0 %v4710
          %v4712 = vpop.xlane.xlu0 %4711
          %vm4713 = vcmp.eq.f32.partialorder %v4649, %v4667
          %vm4714 = vcmp.eq.f32.partialorder %v4650, %v4670
          %vm4715 = vcmp.eq.f32.partialorder %v4651, %v4673
          %vm4716 = vcmp.eq.f32.partialorder %v4652, %v4676
          %vm4717 = vcmp.eq.f32.partialorder %v4653, %v4679
          %vm4718 = vcmp.eq.f32.partialorder %v4654, %v4682
          %vm4719 = vcmp.eq.f32.partialorder %v4655, %v4685
          %vm4720 = vcmp.eq.f32.partialorder %v4656, %v4688
          %vm4721 = vcmp.eq.f32.partialorder %v4657, %v4691
          %vm4722 = vcmp.eq.f32.partialorder %v4658, %v4694
          %vm4723 = vcmp.eq.f32.partialorder %v4659, %v4697
          %vm4724 = vcmp.eq.f32.partialorder %v4660, %v4700
          %vm4725 = vcmp.eq.f32.partialorder %v4661, %v4703
          %vm4726 = vcmp.eq.f32.partialorder %v4662, %v4706
          %vm4727 = vcmp.eq.f32.partialorder %v4663, %v4709
          %vm4728 = vcmp.eq.f32.partialorder %v4664, %v4712
          %v4729 = vsel %vm4713, %v3592, 2147483647
          %v4730 = vsel %vm4714, %v3593, 2147483647
          %v4731 = vsel %vm4715, %v3594, 2147483647
          %v4732 = vsel %vm4716, %v3595, 2147483647
          %v4733 = vsel %vm4717, %v3596, 2147483647
          %v4734 = vsel %vm4718, %v3597, 2147483647
          %v4735 = vsel %vm4719, %v3598, 2147483647
          %v4736 = vsel %vm4720, %v3599, 2147483647
          %v4737 = vsel %vm4721, %v3600, 2147483647
          %v4738 = vsel %vm4722, %v3601, 2147483647
          %v4739 = vsel %vm4723, %v3602, 2147483647
          %v4740 = vsel %vm4724, %v3603, 2147483647
          %v4741 = vsel %vm4725, %v3604, 2147483647
          %v4742 = vsel %vm4726, %v3605, 2147483647
          %v4743 = vsel %vm4727, %v3606, 2147483647
          %v4744 = vsel %vm4728, %v3607, 2147483647
          %v4745 = vsel %vm3608, %v4729, 2147483647
          %v4746 = vand.u32 %v4745, 65535
          %v4747 = vshra.s32 %v4745, 16
          %v4748 = vcvt.s32.f32 %v4746
          %v4749 = vcvt.s32.f32 %v4747
          %4750 = vmin.xlane.f32.xlu0 %v4749
          %v4751 = vpop.xlane.xlu0 %4750
          %vm4752 = vcmp.eq.f32.partialorder %v4749, %v4751
          %v4753 = vsel %vm4752, %v4748, inf
          %4754 = vmin.xlane.f32.xlu0 %v4753
          %v4755 = vpop.xlane.xlu0 %4754
          %v4756 = vcvt.f32.s32 %v4755
          %v4757 = vcvt.f32.s32 %v4751
          %v4758 = vshll.u32 %v4757, 16
          %v4759 = vadd.s32 %v4758, %v4756
          %v4760 = vsel %vm3608, %v4730, 2147483647
          %v4761 = vand.u32 %v4760, 65535
          %v4762 = vshra.s32 %v4760, 16
          %v4763 = vcvt.s32.f32 %v4761
          %v4764 = vcvt.s32.f32 %v4762
          %4765 = vmin.xlane.f32.xlu0 %v4764
          %v4766 = vpop.xlane.xlu0 %4765
          %vm4767 = vcmp.eq.f32.partialorder %v4764, %v4766
          %v4768 = vsel %vm4767, %v4763, inf
          %4769 = vmin.xlane.f32.xlu0 %v4768
          %v4770 = vpop.xlane.xlu0 %4769
          %v4771 = vcvt.f32.s32 %v4770
          %v4772 = vcvt.f32.s32 %v4766
          %v4773 = vshll.u32 %v4772, 16
          %v4774 = vadd.s32 %v4773, %v4771
          %v4775 = vsel %vm3608, %v4731, 2147483647
          %v4776 = vand.u32 %v4775, 65535
          %v4777 = vshra.s32 %v4775, 16
          %v4778 = vcvt.s32.f32 %v4776
          %v4779 = vcvt.s32.f32 %v4777
          %4780 = vmin.xlane.f32.xlu0 %v4779
          %v4781 = vpop.xlane.xlu0 %4780
          %vm4782 = vcmp.eq.f32.partialorder %v4779, %v4781
          %v4783 = vsel %vm4782, %v4778, inf
          %4784 = vmin.xlane.f32.xlu0 %v4783
          %v4785 = vpop.xlane.xlu0 %4784
          %v4786 = vcvt.f32.s32 %v4785
          %v4787 = vcvt.f32.s32 %v4781
          %v4788 = vshll.u32 %v4787, 16
          %v4789 = vadd.s32 %v4788, %v4786
          %v4790 = vsel %vm3608, %v4732, 2147483647
          %v4791 = vand.u32 %v4790, 65535
          %v4792 = vshra.s32 %v4790, 16
          %v4793 = vcvt.s32.f32 %v4791
          %v4794 = vcvt.s32.f32 %v4792
          %4795 = vmin.xlane.f32.xlu0 %v4794
          %v4796 = vpop.xlane.xlu0 %4795
          %vm4797 = vcmp.eq.f32.partialorder %v4794, %v4796
          %v4798 = vsel %vm4797, %v4793, inf
          %4799 = vmin.xlane.f32.xlu0 %v4798
          %v4800 = vpop.xlane.xlu0 %4799
          %v4801 = vcvt.f32.s32 %v4800
          %v4802 = vcvt.f32.s32 %v4796
          %v4803 = vshll.u32 %v4802, 16
          %v4804 = vadd.s32 %v4803, %v4801
          %v4805 = vsel %vm3608, %v4733, 2147483647
          %v4806 = vand.u32 %v4805, 65535
          %v4807 = vshra.s32 %v4805, 16
          %v4808 = vcvt.s32.f32 %v4806
          %v4809 = vcvt.s32.f32 %v4807
          %4810 = vmin.xlane.f32.xlu0 %v4809
          %v4811 = vpop.xlane.xlu0 %4810
          %vm4812 = vcmp.eq.f32.partialorder %v4809, %v4811
          %v4813 = vsel %vm4812, %v4808, inf
          %4814 = vmin.xlane.f32.xlu0 %v4813
          %v4815 = vpop.xlane.xlu0 %4814
          %v4816 = vcvt.f32.s32 %v4815
          %v4817 = vcvt.f32.s32 %v4811
          %v4818 = vshll.u32 %v4817, 16
          %v4819 = vadd.s32 %v4818, %v4816
          %v4820 = vsel %vm3608, %v4734, 2147483647
          %v4821 = vand.u32 %v4820, 65535
          %v4822 = vshra.s32 %v4820, 16
          %v4823 = vcvt.s32.f32 %v4821
          %v4824 = vcvt.s32.f32 %v4822
          %4825 = vmin.xlane.f32.xlu0 %v4824
          %v4826 = vpop.xlane.xlu0 %4825
          %vm4827 = vcmp.eq.f32.partialorder %v4824, %v4826
          %v4828 = vsel %vm4827, %v4823, inf
          %4829 = vmin.xlane.f32.xlu0 %v4828
          %v4830 = vpop.xlane.xlu0 %4829
          %v4831 = vcvt.f32.s32 %v4830
          %v4832 = vcvt.f32.s32 %v4826
          %v4833 = vshll.u32 %v4832, 16
          %v4834 = vadd.s32 %v4833, %v4831
          %v4835 = vsel %vm3608, %v4735, 2147483647
          %v4836 = vand.u32 %v4835, 65535
          %v4837 = vshra.s32 %v4835, 16
          %v4838 = vcvt.s32.f32 %v4836
          %v4839 = vcvt.s32.f32 %v4837
          %4840 = vmin.xlane.f32.xlu0 %v4839
          %v4841 = vpop.xlane.xlu0 %4840
          %vm4842 = vcmp.eq.f32.partialorder %v4839, %v4841
          %v4843 = vsel %vm4842, %v4838, inf
          %4844 = vmin.xlane.f32.xlu0 %v4843
          %v4845 = vpop.xlane.xlu0 %4844
          %v4846 = vcvt.f32.s32 %v4845
          %v4847 = vcvt.f32.s32 %v4841
          %v4848 = vshll.u32 %v4847, 16
          %v4849 = vadd.s32 %v4848, %v4846
          %v4850 = vsel %vm3608, %v4736, 2147483647
          %v4851 = vand.u32 %v4850, 65535
          %v4852 = vshra.s32 %v4850, 16
          %v4853 = vcvt.s32.f32 %v4851
          %v4854 = vcvt.s32.f32 %v4852
          %4855 = vmin.xlane.f32.xlu0 %v4854
          %v4856 = vpop.xlane.xlu0 %4855
          %vm4857 = vcmp.eq.f32.partialorder %v4854, %v4856
          %v4858 = vsel %vm4857, %v4853, inf
          %4859 = vmin.xlane.f32.xlu0 %v4858
          %v4860 = vpop.xlane.xlu0 %4859
          %v4861 = vcvt.f32.s32 %v4860
          %v4862 = vcvt.f32.s32 %v4856
          %v4863 = vshll.u32 %v4862, 16
          %v4864 = vadd.s32 %v4863, %v4861
          %v4865 = vsel %vm3608, %v4737, 2147483647
          %v4866 = vand.u32 %v4865, 65535
          %v4867 = vshra.s32 %v4865, 16
          %v4868 = vcvt.s32.f32 %v4866
          %v4869 = vcvt.s32.f32 %v4867
          %4870 = vmin.xlane.f32.xlu0 %v4869
          %v4871 = vpop.xlane.xlu0 %4870
          %vm4872 = vcmp.eq.f32.partialorder %v4869, %v4871
          %v4873 = vsel %vm4872, %v4868, inf
          %4874 = vmin.xlane.f32.xlu0 %v4873
          %v4875 = vpop.xlane.xlu0 %4874
          %v4876 = vcvt.f32.s32 %v4875
          %v4877 = vcvt.f32.s32 %v4871
          %v4878 = vshll.u32 %v4877, 16
          %v4879 = vadd.s32 %v4878, %v4876
          %v4880 = vsel %vm3608, %v4738, 2147483647
          %v4881 = vand.u32 %v4880, 65535
          %v4882 = vshra.s32 %v4880, 16
          %v4883 = vcvt.s32.f32 %v4881
          %v4884 = vcvt.s32.f32 %v4882
          %4885 = vmin.xlane.f32.xlu0 %v4884
          %v4886 = vpop.xlane.xlu0 %4885
          %vm4887 = vcmp.eq.f32.partialorder %v4884, %v4886
          %v4888 = vsel %vm4887, %v4883, inf
          %4889 = vmin.xlane.f32.xlu0 %v4888
          %v4890 = vpop.xlane.xlu0 %4889
          %v4891 = vcvt.f32.s32 %v4890
          %v4892 = vcvt.f32.s32 %v4886
          %v4893 = vshll.u32 %v4892, 16
          %v4894 = vadd.s32 %v4893, %v4891
          %v4895 = vsel %vm3608, %v4739, 2147483647
          %v4896 = vand.u32 %v4895, 65535
          %v4897 = vshra.s32 %v4895, 16
          %v4898 = vcvt.s32.f32 %v4896
          %v4899 = vcvt.s32.f32 %v4897
          %4900 = vmin.xlane.f32.xlu0 %v4899
          %v4901 = vpop.xlane.xlu0 %4900
          %vm4902 = vcmp.eq.f32.partialorder %v4899, %v4901
          %v4903 = vsel %vm4902, %v4898, inf
          %4904 = vmin.xlane.f32.xlu0 %v4903
          %v4905 = vpop.xlane.xlu0 %4904
          %v4906 = vcvt.f32.s32 %v4905
          %v4907 = vcvt.f32.s32 %v4901
          %v4908 = vshll.u32 %v4907, 16
          %v4909 = vadd.s32 %v4908, %v4906
          %v4910 = vsel %vm3608, %v4740, 2147483647
          %v4911 = vand.u32 %v4910, 65535
          %v4912 = vshra.s32 %v4910, 16
          %v4913 = vcvt.s32.f32 %v4911
          %v4914 = vcvt.s32.f32 %v4912
          %4915 = vmin.xlane.f32.xlu0 %v4914
          %v4916 = vpop.xlane.xlu0 %4915
          %vm4917 = vcmp.eq.f32.partialorder %v4914, %v4916
          %v4918 = vsel %vm4917, %v4913, inf
          %4919 = vmin.xlane.f32.xlu0 %v4918
          %v4920 = vpop.xlane.xlu0 %4919
          %v4921 = vcvt.f32.s32 %v4920
          %v4922 = vcvt.f32.s32 %v4916
          %v4923 = vshll.u32 %v4922, 16
          %v4924 = vadd.s32 %v4923, %v4921
          %v4925 = vsel %vm3608, %v4741, 2147483647
          %v4926 = vand.u32 %v4925, 65535
          %v4927 = vshra.s32 %v4925, 16
          %v4928 = vcvt.s32.f32 %v4926
          %v4929 = vcvt.s32.f32 %v4927
          %4930 = vmin.xlane.f32.xlu0 %v4929
          %v4931 = vpop.xlane.xlu0 %4930
          %vm4932 = vcmp.eq.f32.partialorder %v4929, %v4931
          %v4933 = vsel %vm4932, %v4928, inf
          %4934 = vmin.xlane.f32.xlu0 %v4933
          %v4935 = vpop.xlane.xlu0 %4934
          %v4936 = vcvt.f32.s32 %v4935
          %v4937 = vcvt.f32.s32 %v4931
          %v4938 = vshll.u32 %v4937, 16
          %v4939 = vadd.s32 %v4938, %v4936
          %v4940 = vsel %vm3608, %v4742, 2147483647
          %v4941 = vand.u32 %v4940, 65535
          %v4942 = vshra.s32 %v4940, 16
          %v4943 = vcvt.s32.f32 %v4941
          %v4944 = vcvt.s32.f32 %v4942
          %4945 = vmin.xlane.f32.xlu0 %v4944
          %v4946 = vpop.xlane.xlu0 %4945
          %vm4947 = vcmp.eq.f32.partialorder %v4944, %v4946
          %v4948 = vsel %vm4947, %v4943, inf
          %4949 = vmin.xlane.f32.xlu0 %v4948
          %v4950 = vpop.xlane.xlu0 %4949
          %v4951 = vcvt.f32.s32 %v4950
          %v4952 = vcvt.f32.s32 %v4946
          %v4953 = vshll.u32 %v4952, 16
          %v4954 = vadd.s32 %v4953, %v4951
          %v4955 = vsel %vm3608, %v4743, 2147483647
          %v4956 = vand.u32 %v4955, 65535
          %v4957 = vshra.s32 %v4955, 16
          %v4958 = vcvt.s32.f32 %v4956
          %v4959 = vcvt.s32.f32 %v4957
          %4960 = vmin.xlane.f32.xlu0 %v4959
          %v4961 = vpop.xlane.xlu0 %4960
          %vm4962 = vcmp.eq.f32.partialorder %v4959, %v4961
          %v4963 = vsel %vm4962, %v4958, inf
          %4964 = vmin.xlane.f32.xlu0 %v4963
          %v4965 = vpop.xlane.xlu0 %4964
          %v4966 = vcvt.f32.s32 %v4965
          %v4967 = vcvt.f32.s32 %v4961
          %v4968 = vshll.u32 %v4967, 16
          %v4969 = vadd.s32 %v4968, %v4966
          %v4970 = vsel %vm3608, %v4744, 2147483647
          %v4971 = vand.u32 %v4970, 65535
          %v4972 = vshra.s32 %v4970, 16
          %v4973 = vcvt.s32.f32 %v4971
          %v4974 = vcvt.s32.f32 %v4972
          %4975 = vmin.xlane.f32.xlu0 %v4974
          %v4976 = vpop.xlane.xlu0 %4975
          %vm4977 = vcmp.eq.f32.partialorder %v4974, %v4976
          %v4978 = vsel %vm4977, %v4973, inf
          %4979 = vmin.xlane.f32.xlu0 %v4978
          %v4980 = vpop.xlane.xlu0 %4979
          %v4981 = vcvt.f32.s32 %v4980
          %v4982 = vcvt.f32.s32 %v4976
          %v4983 = vshll.u32 %v4982, 16
          %v4984 = vadd.s32 %v4983, %v4981
          %vm4985 = vcmp.eq.s32.totalorder %v3592, %v4759
          %vm4986 = vcmp.eq.s32.totalorder %v3593, %v4774
          %vm4987 = vcmp.eq.s32.totalorder %v3594, %v4789
          %vm4988 = vcmp.eq.s32.totalorder %v3595, %v4804
          %vm4989 = vcmp.eq.s32.totalorder %v3596, %v4819
          %vm4990 = vcmp.eq.s32.totalorder %v3597, %v4834
          %vm4991 = vcmp.eq.s32.totalorder %v3598, %v4849
          %vm4992 = vcmp.eq.s32.totalorder %v3599, %v4864
          %vm4993 = vcmp.eq.s32.totalorder %v3600, %v4879
          %vm4994 = vcmp.eq.s32.totalorder %v3601, %v4894
          %vm4995 = vcmp.eq.s32.totalorder %v3602, %v4909
          %vm4996 = vcmp.eq.s32.totalorder %v3603, %v4924
          %vm4997 = vcmp.eq.s32.totalorder %v3604, %v4939
          %vm4998 = vcmp.eq.s32.totalorder %v3605, %v4954
          %vm4999 = vcmp.eq.s32.totalorder %v3606, %v4969
          %vm5000 = vcmp.eq.s32.totalorder %v3607, %v4984
          %v5001 = vsel %vm4985, -inf, %v4649
          %v5002 = vsel %vm4986, -inf, %v4650
          %v5003 = vsel %vm4987, -inf, %v4651
          %v5004 = vsel %vm4988, -inf, %v4652
          %v5005 = vsel %vm4989, -inf, %v4653
          %v5006 = vsel %vm4990, -inf, %v4654
          %v5007 = vsel %vm4991, -inf, %v4655
          %v5008 = vsel %vm4992, -inf, %v4656
          %v5009 = vsel %vm4993, -inf, %v4657
          %v5010 = vsel %vm4994, -inf, %v4658
          %v5011 = vsel %vm4995, -inf, %v4659
          %v5012 = vsel %vm4996, -inf, %v4660
          %v5013 = vsel %vm4997, -inf, %v4661
          %v5014 = vsel %vm4998, -inf, %v4662
          %v5015 = vsel %vm4999, -inf, %v4663
          %v5016 = vsel %vm5000, -inf, %v4664
          %v5017 = vsel %vm3608, %v5001, -inf
          %5018 = vmax.xlane.f32.xlu0 %v5017
          %v5019 = vpop.xlane.xlu0 %5018
          %v5020 = vsel %vm3608, %v5002, -inf
          %5021 = vmax.xlane.f32.xlu0 %v5020
          %v5022 = vpop.xlane.xlu0 %5021
          %v5023 = vsel %vm3608, %v5003, -inf
          %5024 = vmax.xlane.f32.xlu0 %v5023
          %v5025 = vpop.xlane.xlu0 %5024
          %v5026 = vsel %vm3608, %v5004, -inf
          %5027 = vmax.xlane.f32.xlu0 %v5026
          %v5028 = vpop.xlane.xlu0 %5027
          %v5029 = vsel %vm3608, %v5005, -inf
          %5030 = vmax.xlane.f32.xlu0 %v5029
          %v5031 = vpop.xlane.xlu0 %5030
          %v5032 = vsel %vm3608, %v5006, -inf
          %5033 = vmax.xlane.f32.xlu0 %v5032
          %v5034 = vpop.xlane.xlu0 %5033
          %v5035 = vsel %vm3608, %v5007, -inf
          %5036 = vmax.xlane.f32.xlu0 %v5035
          %v5037 = vpop.xlane.xlu0 %5036
          %v5038 = vsel %vm3608, %v5008, -inf
          %5039 = vmax.xlane.f32.xlu0 %v5038
          %v5040 = vpop.xlane.xlu0 %5039
          %v5041 = vsel %vm3608, %v5009, -inf
          %5042 = vmax.xlane.f32.xlu0 %v5041
          %v5043 = vpop.xlane.xlu0 %5042
          %v5044 = vsel %vm3608, %v5010, -inf
          %5045 = vmax.xlane.f32.xlu0 %v5044
          %v5046 = vpop.xlane.xlu0 %5045
          %v5047 = vsel %vm3608, %v5011, -inf
          %5048 = vmax.xlane.f32.xlu0 %v5047
          %v5049 = vpop.xlane.xlu0 %5048
          %v5050 = vsel %vm3608, %v5012, -inf
          %5051 = vmax.xlane.f32.xlu0 %v5050
          %v5052 = vpop.xlane.xlu0 %5051
          %v5053 = vsel %vm3608, %v5013, -inf
          %5054 = vmax.xlane.f32.xlu0 %v5053
          %v5055 = vpop.xlane.xlu0 %5054
          %v5056 = vsel %vm3608, %v5014, -inf
          %5057 = vmax.xlane.f32.xlu0 %v5056
          %v5058 = vpop.xlane.xlu0 %5057
          %v5059 = vsel %vm3608, %v5015, -inf
          %5060 = vmax.xlane.f32.xlu0 %v5059
          %v5061 = vpop.xlane.xlu0 %5060
          %v5062 = vsel %vm3608, %v5016, -inf
          %5063 = vmax.xlane.f32.xlu0 %v5062
          %v5064 = vpop.xlane.xlu0 %5063
          %vm5065 = vcmp.eq.f32.partialorder %v5001, %v5019
          %vm5066 = vcmp.eq.f32.partialorder %v5002, %v5022
          %vm5067 = vcmp.eq.f32.partialorder %v5003, %v5025
          %vm5068 = vcmp.eq.f32.partialorder %v5004, %v5028
          %vm5069 = vcmp.eq.f32.partialorder %v5005, %v5031
          %vm5070 = vcmp.eq.f32.partialorder %v5006, %v5034
          %vm5071 = vcmp.eq.f32.partialorder %v5007, %v5037
          %vm5072 = vcmp.eq.f32.partialorder %v5008, %v5040
          %vm5073 = vcmp.eq.f32.partialorder %v5009, %v5043
          %vm5074 = vcmp.eq.f32.partialorder %v5010, %v5046
          %vm5075 = vcmp.eq.f32.partialorder %v5011, %v5049
          %vm5076 = vcmp.eq.f32.partialorder %v5012, %v5052
          %vm5077 = vcmp.eq.f32.partialorder %v5013, %v5055
          %vm5078 = vcmp.eq.f32.partialorder %v5014, %v5058
          %vm5079 = vcmp.eq.f32.partialorder %v5015, %v5061
          %vm5080 = vcmp.eq.f32.partialorder %v5016, %v5064
          %v5081 = vsel %vm5065, %v3592, 2147483647
          %v5082 = vsel %vm5066, %v3593, 2147483647
          %v5083 = vsel %vm5067, %v3594, 2147483647
          %v5084 = vsel %vm5068, %v3595, 2147483647
          %v5085 = vsel %vm5069, %v3596, 2147483647
          %v5086 = vsel %vm5070, %v3597, 2147483647
          %v5087 = vsel %vm5071, %v3598, 2147483647
          %v5088 = vsel %vm5072, %v3599, 2147483647
          %v5089 = vsel %vm5073, %v3600, 2147483647
          %v5090 = vsel %vm5074, %v3601, 2147483647
          %v5091 = vsel %vm5075, %v3602, 2147483647
          %v5092 = vsel %vm5076, %v3603, 2147483647
          %v5093 = vsel %vm5077, %v3604, 2147483647
          %v5094 = vsel %vm5078, %v3605, 2147483647
          %v5095 = vsel %vm5079, %v3606, 2147483647
          %v5096 = vsel %vm5080, %v3607, 2147483647
          %v5097 = vsel %vm3608, %v5081, 2147483647
          %v5098 = vand.u32 %v5097, 65535
          %v5099 = vshra.s32 %v5097, 16
          %v5100 = vcvt.s32.f32 %v5098
          %v5101 = vcvt.s32.f32 %v5099
          %5102 = vmin.xlane.f32.xlu0 %v5101
          %v5103 = vpop.xlane.xlu0 %5102
          %vm5104 = vcmp.eq.f32.partialorder %v5101, %v5103
          %v5105 = vsel %vm5104, %v5100, inf
          %5106 = vmin.xlane.f32.xlu0 %v5105
          %v5107 = vpop.xlane.xlu0 %5106
          %v5108 = vcvt.f32.s32 %v5107
          %v5109 = vcvt.f32.s32 %v5103
          %v5110 = vshll.u32 %v5109, 16
          %v5111 = vadd.s32 %v5110, %v5108
          %v5112 = vsel %vm3608, %v5082, 2147483647
          %v5113 = vand.u32 %v5112, 65535
          %v5114 = vshra.s32 %v5112, 16
          %v5115 = vcvt.s32.f32 %v5113
          %v5116 = vcvt.s32.f32 %v5114
          %5117 = vmin.xlane.f32.xlu0 %v5116
          %v5118 = vpop.xlane.xlu0 %5117
          %vm5119 = vcmp.eq.f32.partialorder %v5116, %v5118
          %v5120 = vsel %vm5119, %v5115, inf
          %5121 = vmin.xlane.f32.xlu0 %v5120
          %v5122 = vpop.xlane.xlu0 %5121
          %v5123 = vcvt.f32.s32 %v5122
          %v5124 = vcvt.f32.s32 %v5118
          %v5125 = vshll.u32 %v5124, 16
          %v5126 = vadd.s32 %v5125, %v5123
          %v5127 = vsel %vm3608, %v5083, 2147483647
          %v5128 = vand.u32 %v5127, 65535
          %v5129 = vshra.s32 %v5127, 16
          %v5130 = vcvt.s32.f32 %v5128
          %v5131 = vcvt.s32.f32 %v5129
          %5132 = vmin.xlane.f32.xlu0 %v5131
          %v5133 = vpop.xlane.xlu0 %5132
          %vm5134 = vcmp.eq.f32.partialorder %v5131, %v5133
          %v5135 = vsel %vm5134, %v5130, inf
          %5136 = vmin.xlane.f32.xlu0 %v5135
          %v5137 = vpop.xlane.xlu0 %5136
          %v5138 = vcvt.f32.s32 %v5137
          %v5139 = vcvt.f32.s32 %v5133
          %v5140 = vshll.u32 %v5139, 16
          %v5141 = vadd.s32 %v5140, %v5138
          %v5142 = vsel %vm3608, %v5084, 2147483647
          %v5143 = vand.u32 %v5142, 65535
          %v5144 = vshra.s32 %v5142, 16
          %v5145 = vcvt.s32.f32 %v5143
          %v5146 = vcvt.s32.f32 %v5144
          %5147 = vmin.xlane.f32.xlu0 %v5146
          %v5148 = vpop.xlane.xlu0 %5147
          %vm5149 = vcmp.eq.f32.partialorder %v5146, %v5148
          %v5150 = vsel %vm5149, %v5145, inf
          %5151 = vmin.xlane.f32.xlu0 %v5150
          %v5152 = vpop.xlane.xlu0 %5151
          %v5153 = vcvt.f32.s32 %v5152
          %v5154 = vcvt.f32.s32 %v5148
          %v5155 = vshll.u32 %v5154, 16
          %v5156 = vadd.s32 %v5155, %v5153
          %v5157 = vsel %vm3608, %v5085, 2147483647
          %v5158 = vand.u32 %v5157, 65535
          %v5159 = vshra.s32 %v5157, 16
          %v5160 = vcvt.s32.f32 %v5158
          %v5161 = vcvt.s32.f32 %v5159
          %5162 = vmin.xlane.f32.xlu0 %v5161
          %v5163 = vpop.xlane.xlu0 %5162
          %vm5164 = vcmp.eq.f32.partialorder %v5161, %v5163
          %v5165 = vsel %vm5164, %v5160, inf
          %5166 = vmin.xlane.f32.xlu0 %v5165
          %v5167 = vpop.xlane.xlu0 %5166
          %v5168 = vcvt.f32.s32 %v5167
          %v5169 = vcvt.f32.s32 %v5163
          %v5170 = vshll.u32 %v5169, 16
          %v5171 = vadd.s32 %v5170, %v5168
          %v5172 = vsel %vm3608, %v5086, 2147483647
          %v5173 = vand.u32 %v5172, 65535
          %v5174 = vshra.s32 %v5172, 16
          %v5175 = vcvt.s32.f32 %v5173
          %v5176 = vcvt.s32.f32 %v5174
          %5177 = vmin.xlane.f32.xlu0 %v5176
          %v5178 = vpop.xlane.xlu0 %5177
          %vm5179 = vcmp.eq.f32.partialorder %v5176, %v5178
          %v5180 = vsel %vm5179, %v5175, inf
          %5181 = vmin.xlane.f32.xlu0 %v5180
          %v5182 = vpop.xlane.xlu0 %5181
          %v5183 = vcvt.f32.s32 %v5182
          %v5184 = vcvt.f32.s32 %v5178
          %v5185 = vshll.u32 %v5184, 16
          %v5186 = vadd.s32 %v5185, %v5183
          %v5187 = vsel %vm3608, %v5087, 2147483647
          %v5188 = vand.u32 %v5187, 65535
          %v5189 = vshra.s32 %v5187, 16
          %v5190 = vcvt.s32.f32 %v5188
          %v5191 = vcvt.s32.f32 %v5189
          %5192 = vmin.xlane.f32.xlu0 %v5191
          %v5193 = vpop.xlane.xlu0 %5192
          %vm5194 = vcmp.eq.f32.partialorder %v5191, %v5193
          %v5195 = vsel %vm5194, %v5190, inf
          %5196 = vmin.xlane.f32.xlu0 %v5195
          %v5197 = vpop.xlane.xlu0 %5196
          %v5198 = vcvt.f32.s32 %v5197
          %v5199 = vcvt.f32.s32 %v5193
          %v5200 = vshll.u32 %v5199, 16
          %v5201 = vadd.s32 %v5200, %v5198
          %v5202 = vsel %vm3608, %v5088, 2147483647
          %v5203 = vand.u32 %v5202, 65535
          %v5204 = vshra.s32 %v5202, 16
          %v5205 = vcvt.s32.f32 %v5203
          %v5206 = vcvt.s32.f32 %v5204
          %5207 = vmin.xlane.f32.xlu0 %v5206
          %v5208 = vpop.xlane.xlu0 %5207
          %vm5209 = vcmp.eq.f32.partialorder %v5206, %v5208
          %v5210 = vsel %vm5209, %v5205, inf
          %5211 = vmin.xlane.f32.xlu0 %v5210
          %v5212 = vpop.xlane.xlu0 %5211
          %v5213 = vcvt.f32.s32 %v5212
          %v5214 = vcvt.f32.s32 %v5208
          %v5215 = vshll.u32 %v5214, 16
          %v5216 = vadd.s32 %v5215, %v5213
          %v5217 = vsel %vm3608, %v5089, 2147483647
          %v5218 = vand.u32 %v5217, 65535
          %v5219 = vshra.s32 %v5217, 16
          %v5220 = vcvt.s32.f32 %v5218
          %v5221 = vcvt.s32.f32 %v5219
          %5222 = vmin.xlane.f32.xlu0 %v5221
          %v5223 = vpop.xlane.xlu0 %5222
          %vm5224 = vcmp.eq.f32.partialorder %v5221, %v5223
          %v5225 = vsel %vm5224, %v5220, inf
          %5226 = vmin.xlane.f32.xlu0 %v5225
          %v5227 = vpop.xlane.xlu0 %5226
          %v5228 = vcvt.f32.s32 %v5227
          %v5229 = vcvt.f32.s32 %v5223
          %v5230 = vshll.u32 %v5229, 16
          %v5231 = vadd.s32 %v5230, %v5228
          %v5232 = vsel %vm3608, %v5090, 2147483647
          %v5233 = vand.u32 %v5232, 65535
          %v5234 = vshra.s32 %v5232, 16
          %v5235 = vcvt.s32.f32 %v5233
          %v5236 = vcvt.s32.f32 %v5234
          %5237 = vmin.xlane.f32.xlu0 %v5236
          %v5238 = vpop.xlane.xlu0 %5237
          %vm5239 = vcmp.eq.f32.partialorder %v5236, %v5238
          %v5240 = vsel %vm5239, %v5235, inf
          %5241 = vmin.xlane.f32.xlu0 %v5240
          %v5242 = vpop.xlane.xlu0 %5241
          %v5243 = vcvt.f32.s32 %v5242
          %v5244 = vcvt.f32.s32 %v5238
          %v5245 = vshll.u32 %v5244, 16
          %v5246 = vadd.s32 %v5245, %v5243
          %v5247 = vsel %vm3608, %v5091, 2147483647
          %v5248 = vand.u32 %v5247, 65535
          %v5249 = vshra.s32 %v5247, 16
          %v5250 = vcvt.s32.f32 %v5248
          %v5251 = vcvt.s32.f32 %v5249
          %5252 = vmin.xlane.f32.xlu0 %v5251
          %v5253 = vpop.xlane.xlu0 %5252
          %vm5254 = vcmp.eq.f32.partialorder %v5251, %v5253
          %v5255 = vsel %vm5254, %v5250, inf
          %5256 = vmin.xlane.f32.xlu0 %v5255
          %v5257 = vpop.xlane.xlu0 %5256
          %v5258 = vcvt.f32.s32 %v5257
          %v5259 = vcvt.f32.s32 %v5253
          %v5260 = vshll.u32 %v5259, 16
          %v5261 = vadd.s32 %v5260, %v5258
          %v5262 = vsel %vm3608, %v5092, 2147483647
          %v5263 = vand.u32 %v5262, 65535
          %v5264 = vshra.s32 %v5262, 16
          %v5265 = vcvt.s32.f32 %v5263
          %v5266 = vcvt.s32.f32 %v5264
          %5267 = vmin.xlane.f32.xlu0 %v5266
          %v5268 = vpop.xlane.xlu0 %5267
          %vm5269 = vcmp.eq.f32.partialorder %v5266, %v5268
          %v5270 = vsel %vm5269, %v5265, inf
          %5271 = vmin.xlane.f32.xlu0 %v5270
          %v5272 = vpop.xlane.xlu0 %5271
          %v5273 = vcvt.f32.s32 %v5272
          %v5274 = vcvt.f32.s32 %v5268
          %v5275 = vshll.u32 %v5274, 16
          %v5276 = vadd.s32 %v5275, %v5273
          %v5277 = vsel %vm3608, %v5093, 2147483647
          %v5278 = vand.u32 %v5277, 65535
          %v5279 = vshra.s32 %v5277, 16
          %v5280 = vcvt.s32.f32 %v5278
          %v5281 = vcvt.s32.f32 %v5279
          %5282 = vmin.xlane.f32.xlu0 %v5281
          %v5283 = vpop.xlane.xlu0 %5282
          %vm5284 = vcmp.eq.f32.partialorder %v5281, %v5283
          %v5285 = vsel %vm5284, %v5280, inf
          %5286 = vmin.xlane.f32.xlu0 %v5285
          %v5287 = vpop.xlane.xlu0 %5286
          %v5288 = vcvt.f32.s32 %v5287
          %v5289 = vcvt.f32.s32 %v5283
          %v5290 = vshll.u32 %v5289, 16
          %v5291 = vadd.s32 %v5290, %v5288
          %v5292 = vsel %vm3608, %v5094, 2147483647
          %v5293 = vand.u32 %v5292, 65535
          %v5294 = vshra.s32 %v5292, 16
          %v5295 = vcvt.s32.f32 %v5293
          %v5296 = vcvt.s32.f32 %v5294
          %5297 = vmin.xlane.f32.xlu0 %v5296
          %v5298 = vpop.xlane.xlu0 %5297
          %vm5299 = vcmp.eq.f32.partialorder %v5296, %v5298
          %v5300 = vsel %vm5299, %v5295, inf
          %5301 = vmin.xlane.f32.xlu0 %v5300
          %v5302 = vpop.xlane.xlu0 %5301
          %v5303 = vcvt.f32.s32 %v5302
          %v5304 = vcvt.f32.s32 %v5298
          %v5305 = vshll.u32 %v5304, 16
          %v5306 = vadd.s32 %v5305, %v5303
          %v5307 = vsel %vm3608, %v5095, 2147483647
          %v5308 = vand.u32 %v5307, 65535
          %v5309 = vshra.s32 %v5307, 16
          %v5310 = vcvt.s32.f32 %v5308
          %v5311 = vcvt.s32.f32 %v5309
          %5312 = vmin.xlane.f32.xlu0 %v5311
          %v5313 = vpop.xlane.xlu0 %5312
          %vm5314 = vcmp.eq.f32.partialorder %v5311, %v5313
          %v5315 = vsel %vm5314, %v5310, inf
          %5316 = vmin.xlane.f32.xlu0 %v5315
          %v5317 = vpop.xlane.xlu0 %5316
          %v5318 = vcvt.f32.s32 %v5317
          %v5319 = vcvt.f32.s32 %v5313
          %v5320 = vshll.u32 %v5319, 16
          %v5321 = vadd.s32 %v5320, %v5318
          %v5322 = vsel %vm3608, %v5096, 2147483647
          %v5323 = vand.u32 %v5322, 65535
          %v5324 = vshra.s32 %v5322, 16
          %v5325 = vcvt.s32.f32 %v5323
          %v5326 = vcvt.s32.f32 %v5324
          %5327 = vmin.xlane.f32.xlu0 %v5326
          %v5328 = vpop.xlane.xlu0 %5327
          %vm5329 = vcmp.eq.f32.partialorder %v5326, %v5328
          %v5330 = vsel %vm5329, %v5325, inf
          %5331 = vmin.xlane.f32.xlu0 %v5330
          %v5332 = vpop.xlane.xlu0 %5331
          %v5333 = vcvt.f32.s32 %v5332
          %v5334 = vcvt.f32.s32 %v5328
          %v5335 = vshll.u32 %v5334, 16
          %v5336 = vadd.s32 %v5335, %v5333
          %vm5337 = vcmp.eq.s32.totalorder %v3592, %v5111
          %vm5338 = vcmp.eq.s32.totalorder %v3593, %v5126
          %vm5339 = vcmp.eq.s32.totalorder %v3594, %v5141
          %vm5340 = vcmp.eq.s32.totalorder %v3595, %v5156
          %vm5341 = vcmp.eq.s32.totalorder %v3596, %v5171
          %vm5342 = vcmp.eq.s32.totalorder %v3597, %v5186
          %vm5343 = vcmp.eq.s32.totalorder %v3598, %v5201
          %vm5344 = vcmp.eq.s32.totalorder %v3599, %v5216
          %vm5345 = vcmp.eq.s32.totalorder %v3600, %v5231
          %vm5346 = vcmp.eq.s32.totalorder %v3601, %v5246
          %vm5347 = vcmp.eq.s32.totalorder %v3602, %v5261
          %vm5348 = vcmp.eq.s32.totalorder %v3603, %v5276
          %vm5349 = vcmp.eq.s32.totalorder %v3604, %v5291
          %vm5350 = vcmp.eq.s32.totalorder %v3605, %v5306
          %vm5351 = vcmp.eq.s32.totalorder %v3606, %v5321
          %vm5352 = vcmp.eq.s32.totalorder %v3607, %v5336
          %v5353 = vsel %vm5337, -inf, %v5001
          %v5354 = vsel %vm5338, -inf, %v5002
          %v5355 = vsel %vm5339, -inf, %v5003
          %v5356 = vsel %vm5340, -inf, %v5004
          %v5357 = vsel %vm5341, -inf, %v5005
          %v5358 = vsel %vm5342, -inf, %v5006
          %v5359 = vsel %vm5343, -inf, %v5007
          %v5360 = vsel %vm5344, -inf, %v5008
          %v5361 = vsel %vm5345, -inf, %v5009
          %v5362 = vsel %vm5346, -inf, %v5010
          %v5363 = vsel %vm5347, -inf, %v5011
          %v5364 = vsel %vm5348, -inf, %v5012
          %v5365 = vsel %vm5349, -inf, %v5013
          %v5366 = vsel %vm5350, -inf, %v5014
          %v5367 = vsel %vm5351, -inf, %v5015
          %v5368 = vsel %vm5352, -inf, %v5016
          %v5369 = vsel %vm3608, %v5353, -inf
          %5370 = vmax.xlane.f32.xlu0 %v5369
          %v5371 = vpop.xlane.xlu0 %5370
          %v5372 = vsel %vm3608, %v5354, -inf
          %5373 = vmax.xlane.f32.xlu0 %v5372
          %v5374 = vpop.xlane.xlu0 %5373
          %v5375 = vsel %vm3608, %v5355, -inf
          %5376 = vmax.xlane.f32.xlu0 %v5375
          %v5377 = vpop.xlane.xlu0 %5376
          %v5378 = vsel %vm3608, %v5356, -inf
          %5379 = vmax.xlane.f32.xlu0 %v5378
          %v5380 = vpop.xlane.xlu0 %5379
          %v5381 = vsel %vm3608, %v5357, -inf
          %5382 = vmax.xlane.f32.xlu0 %v5381
          %v5383 = vpop.xlane.xlu0 %5382
          %v5384 = vsel %vm3608, %v5358, -inf
          %5385 = vmax.xlane.f32.xlu0 %v5384
          %v5386 = vpop.xlane.xlu0 %5385
          %v5387 = vsel %vm3608, %v5359, -inf
          %5388 = vmax.xlane.f32.xlu0 %v5387
          %v5389 = vpop.xlane.xlu0 %5388
          %v5390 = vsel %vm3608, %v5360, -inf
          %5391 = vmax.xlane.f32.xlu0 %v5390
          %v5392 = vpop.xlane.xlu0 %5391
          %v5393 = vsel %vm3608, %v5361, -inf
          %5394 = vmax.xlane.f32.xlu0 %v5393
          %v5395 = vpop.xlane.xlu0 %5394
          %v5396 = vsel %vm3608, %v5362, -inf
          %5397 = vmax.xlane.f32.xlu0 %v5396
          %v5398 = vpop.xlane.xlu0 %5397
          %v5399 = vsel %vm3608, %v5363, -inf
          %5400 = vmax.xlane.f32.xlu0 %v5399
          %v5401 = vpop.xlane.xlu0 %5400
          %v5402 = vsel %vm3608, %v5364, -inf
          %5403 = vmax.xlane.f32.xlu0 %v5402
          %v5404 = vpop.xlane.xlu0 %5403
          %v5405 = vsel %vm3608, %v5365, -inf
          %5406 = vmax.xlane.f32.xlu0 %v5405
          %v5407 = vpop.xlane.xlu0 %5406
          %v5408 = vsel %vm3608, %v5366, -inf
          %5409 = vmax.xlane.f32.xlu0 %v5408
          %v5410 = vpop.xlane.xlu0 %5409
          %v5411 = vsel %vm3608, %v5367, -inf
          %5412 = vmax.xlane.f32.xlu0 %v5411
          %v5413 = vpop.xlane.xlu0 %5412
          %v5414 = vsel %vm3608, %v5368, -inf
          %5415 = vmax.xlane.f32.xlu0 %v5414
          %v5416 = vpop.xlane.xlu0 %5415
          %vm5417 = vcmp.eq.f32.partialorder %v5353, %v5371
          %vm5418 = vcmp.eq.f32.partialorder %v5354, %v5374
          %vm5419 = vcmp.eq.f32.partialorder %v5355, %v5377
          %vm5420 = vcmp.eq.f32.partialorder %v5356, %v5380
          %vm5421 = vcmp.eq.f32.partialorder %v5357, %v5383
          %vm5422 = vcmp.eq.f32.partialorder %v5358, %v5386
          %vm5423 = vcmp.eq.f32.partialorder %v5359, %v5389
          %vm5424 = vcmp.eq.f32.partialorder %v5360, %v5392
          %vm5425 = vcmp.eq.f32.partialorder %v5361, %v5395
          %vm5426 = vcmp.eq.f32.partialorder %v5362, %v5398
          %vm5427 = vcmp.eq.f32.partialorder %v5363, %v5401
          %vm5428 = vcmp.eq.f32.partialorder %v5364, %v5404
          %vm5429 = vcmp.eq.f32.partialorder %v5365, %v5407
          %vm5430 = vcmp.eq.f32.partialorder %v5366, %v5410
          %vm5431 = vcmp.eq.f32.partialorder %v5367, %v5413
          %vm5432 = vcmp.eq.f32.partialorder %v5368, %v5416
          %v5433 = vsel %vm5417, %v3592, 2147483647
          %v5434 = vsel %vm5418, %v3593, 2147483647
          %v5435 = vsel %vm5419, %v3594, 2147483647
          %v5436 = vsel %vm5420, %v3595, 2147483647
          %v5437 = vsel %vm5421, %v3596, 2147483647
          %v5438 = vsel %vm5422, %v3597, 2147483647
          %v5439 = vsel %vm5423, %v3598, 2147483647
          %v5440 = vsel %vm5424, %v3599, 2147483647
          %v5441 = vsel %vm5425, %v3600, 2147483647
          %v5442 = vsel %vm5426, %v3601, 2147483647
          %v5443 = vsel %vm5427, %v3602, 2147483647
          %v5444 = vsel %vm5428, %v3603, 2147483647
          %v5445 = vsel %vm5429, %v3604, 2147483647
          %v5446 = vsel %vm5430, %v3605, 2147483647
          %v5447 = vsel %vm5431, %v3606, 2147483647
          %v5448 = vsel %vm5432, %v3607, 2147483647
          %v5449 = vsel %vm3608, %v5433, 2147483647
          %v5450 = vand.u32 %v5449, 65535
          %v5451 = vshra.s32 %v5449, 16
          %v5452 = vcvt.s32.f32 %v5450
          %v5453 = vcvt.s32.f32 %v5451
          %5454 = vmin.xlane.f32.xlu0 %v5453
          %v5455 = vpop.xlane.xlu0 %5454
          %vm5456 = vcmp.eq.f32.partialorder %v5453, %v5455
          %v5457 = vsel %vm5456, %v5452, inf
          %5458 = vmin.xlane.f32.xlu0 %v5457
          %v5459 = vpop.xlane.xlu0 %5458
          %v5460 = vcvt.f32.s32 %v5459
          %v5461 = vcvt.f32.s32 %v5455
          %v5462 = vshll.u32 %v5461, 16
          %v5463 = vadd.s32 %v5462, %v5460
          %v5464 = vsel %vm3608, %v5434, 2147483647
          %v5465 = vand.u32 %v5464, 65535
          %v5466 = vshra.s32 %v5464, 16
          %v5467 = vcvt.s32.f32 %v5465
          %v5468 = vcvt.s32.f32 %v5466
          %5469 = vmin.xlane.f32.xlu0 %v5468
          %v5470 = vpop.xlane.xlu0 %5469
          %vm5471 = vcmp.eq.f32.partialorder %v5468, %v5470
          %v5472 = vsel %vm5471, %v5467, inf
          %5473 = vmin.xlane.f32.xlu0 %v5472
          %v5474 = vpop.xlane.xlu0 %5473
          %v5475 = vcvt.f32.s32 %v5474
          %v5476 = vcvt.f32.s32 %v5470
          %v5477 = vshll.u32 %v5476, 16
          %v5478 = vadd.s32 %v5477, %v5475
          %v5479 = vsel %vm3608, %v5435, 2147483647
          %v5480 = vand.u32 %v5479, 65535
          %v5481 = vshra.s32 %v5479, 16
          %v5482 = vcvt.s32.f32 %v5480
          %v5483 = vcvt.s32.f32 %v5481
          %5484 = vmin.xlane.f32.xlu0 %v5483
          %v5485 = vpop.xlane.xlu0 %5484
          %vm5486 = vcmp.eq.f32.partialorder %v5483, %v5485
          %v5487 = vsel %vm5486, %v5482, inf
          %5488 = vmin.xlane.f32.xlu0 %v5487
          %v5489 = vpop.xlane.xlu0 %5488
          %v5490 = vcvt.f32.s32 %v5489
          %v5491 = vcvt.f32.s32 %v5485
          %v5492 = vshll.u32 %v5491, 16
          %v5493 = vadd.s32 %v5492, %v5490
          %v5494 = vsel %vm3608, %v5436, 2147483647
          %v5495 = vand.u32 %v5494, 65535
          %v5496 = vshra.s32 %v5494, 16
          %v5497 = vcvt.s32.f32 %v5495
          %v5498 = vcvt.s32.f32 %v5496
          %5499 = vmin.xlane.f32.xlu0 %v5498
          %v5500 = vpop.xlane.xlu0 %5499
          %vm5501 = vcmp.eq.f32.partialorder %v5498, %v5500
          %v5502 = vsel %vm5501, %v5497, inf
          %5503 = vmin.xlane.f32.xlu0 %v5502
          %v5504 = vpop.xlane.xlu0 %5503
          %v5505 = vcvt.f32.s32 %v5504
          %v5506 = vcvt.f32.s32 %v5500
          %v5507 = vshll.u32 %v5506, 16
          %v5508 = vadd.s32 %v5507, %v5505
          %v5509 = vsel %vm3608, %v5437, 2147483647
          %v5510 = vand.u32 %v5509, 65535
          %v5511 = vshra.s32 %v5509, 16
          %v5512 = vcvt.s32.f32 %v5510
          %v5513 = vcvt.s32.f32 %v5511
          %5514 = vmin.xlane.f32.xlu0 %v5513
          %v5515 = vpop.xlane.xlu0 %5514
          %vm5516 = vcmp.eq.f32.partialorder %v5513, %v5515
          %v5517 = vsel %vm5516, %v5512, inf
          %5518 = vmin.xlane.f32.xlu0 %v5517
          %v5519 = vpop.xlane.xlu0 %5518
          %v5520 = vcvt.f32.s32 %v5519
          %v5521 = vcvt.f32.s32 %v5515
          %v5522 = vshll.u32 %v5521, 16
          %v5523 = vadd.s32 %v5522, %v5520
          %v5524 = vsel %vm3608, %v5438, 2147483647
          %v5525 = vand.u32 %v5524, 65535
          %v5526 = vshra.s32 %v5524, 16
          %v5527 = vcvt.s32.f32 %v5525
          %v5528 = vcvt.s32.f32 %v5526
          %5529 = vmin.xlane.f32.xlu0 %v5528
          %v5530 = vpop.xlane.xlu0 %5529
          %vm5531 = vcmp.eq.f32.partialorder %v5528, %v5530
          %v5532 = vsel %vm5531, %v5527, inf
          %5533 = vmin.xlane.f32.xlu0 %v5532
          %v5534 = vpop.xlane.xlu0 %5533
          %v5535 = vcvt.f32.s32 %v5534
          %v5536 = vcvt.f32.s32 %v5530
          %v5537 = vshll.u32 %v5536, 16
          %v5538 = vadd.s32 %v5537, %v5535
          %v5539 = vsel %vm3608, %v5439, 2147483647
          %v5540 = vand.u32 %v5539, 65535
          %v5541 = vshra.s32 %v5539, 16
          %v5542 = vcvt.s32.f32 %v5540
          %v5543 = vcvt.s32.f32 %v5541
          %5544 = vmin.xlane.f32.xlu0 %v5543
          %v5545 = vpop.xlane.xlu0 %5544
          %vm5546 = vcmp.eq.f32.partialorder %v5543, %v5545
          %v5547 = vsel %vm5546, %v5542, inf
          %5548 = vmin.xlane.f32.xlu0 %v5547
          %v5549 = vpop.xlane.xlu0 %5548
          %v5550 = vcvt.f32.s32 %v5549
          %v5551 = vcvt.f32.s32 %v5545
          %v5552 = vshll.u32 %v5551, 16
          %v5553 = vadd.s32 %v5552, %v5550
          %v5554 = vsel %vm3608, %v5440, 2147483647
          %v5555 = vand.u32 %v5554, 65535
          %v5556 = vshra.s32 %v5554, 16
          %v5557 = vcvt.s32.f32 %v5555
          %v5558 = vcvt.s32.f32 %v5556
          %5559 = vmin.xlane.f32.xlu0 %v5558
          %v5560 = vpop.xlane.xlu0 %5559
          %vm5561 = vcmp.eq.f32.partialorder %v5558, %v5560
          %v5562 = vsel %vm5561, %v5557, inf
          %5563 = vmin.xlane.f32.xlu0 %v5562
          %v5564 = vpop.xlane.xlu0 %5563
          %v5565 = vcvt.f32.s32 %v5564
          %v5566 = vcvt.f32.s32 %v5560
          %v5567 = vshll.u32 %v5566, 16
          %v5568 = vadd.s32 %v5567, %v5565
          %v5569 = vsel %vm3608, %v5441, 2147483647
          %v5570 = vand.u32 %v5569, 65535
          %v5571 = vshra.s32 %v5569, 16
          %v5572 = vcvt.s32.f32 %v5570
          %v5573 = vcvt.s32.f32 %v5571
          %5574 = vmin.xlane.f32.xlu0 %v5573
          %v5575 = vpop.xlane.xlu0 %5574
          %vm5576 = vcmp.eq.f32.partialorder %v5573, %v5575
          %v5577 = vsel %vm5576, %v5572, inf
          %5578 = vmin.xlane.f32.xlu0 %v5577
          %v5579 = vpop.xlane.xlu0 %5578
          %v5580 = vcvt.f32.s32 %v5579
          %v5581 = vcvt.f32.s32 %v5575
          %v5582 = vshll.u32 %v5581, 16
          %v5583 = vadd.s32 %v5582, %v5580
          %v5584 = vsel %vm3608, %v5442, 2147483647
          %v5585 = vand.u32 %v5584, 65535
          %v5586 = vshra.s32 %v5584, 16
          %v5587 = vcvt.s32.f32 %v5585
          %v5588 = vcvt.s32.f32 %v5586
          %5589 = vmin.xlane.f32.xlu0 %v5588
          %v5590 = vpop.xlane.xlu0 %5589
          %vm5591 = vcmp.eq.f32.partialorder %v5588, %v5590
          %v5592 = vsel %vm5591, %v5587, inf
          %5593 = vmin.xlane.f32.xlu0 %v5592
          %v5594 = vpop.xlane.xlu0 %5593
          %v5595 = vcvt.f32.s32 %v5594
          %v5596 = vcvt.f32.s32 %v5590
          %v5597 = vshll.u32 %v5596, 16
          %v5598 = vadd.s32 %v5597, %v5595
          %v5599 = vsel %vm3608, %v5443, 2147483647
          %v5600 = vand.u32 %v5599, 65535
          %v5601 = vshra.s32 %v5599, 16
          %v5602 = vcvt.s32.f32 %v5600
          %v5603 = vcvt.s32.f32 %v5601
          %5604 = vmin.xlane.f32.xlu0 %v5603
          %v5605 = vpop.xlane.xlu0 %5604
          %vm5606 = vcmp.eq.f32.partialorder %v5603, %v5605
          %v5607 = vsel %vm5606, %v5602, inf
          %5608 = vmin.xlane.f32.xlu0 %v5607
          %v5609 = vpop.xlane.xlu0 %5608
          %v5610 = vcvt.f32.s32 %v5609
          %v5611 = vcvt.f32.s32 %v5605
          %v5612 = vshll.u32 %v5611, 16
          %v5613 = vadd.s32 %v5612, %v5610
          %v5614 = vsel %vm3608, %v5444, 2147483647
          %v5615 = vand.u32 %v5614, 65535
          %v5616 = vshra.s32 %v5614, 16
          %v5617 = vcvt.s32.f32 %v5615
          %v5618 = vcvt.s32.f32 %v5616
          %5619 = vmin.xlane.f32.xlu0 %v5618
          %v5620 = vpop.xlane.xlu0 %5619
          %vm5621 = vcmp.eq.f32.partialorder %v5618, %v5620
          %v5622 = vsel %vm5621, %v5617, inf
          %5623 = vmin.xlane.f32.xlu0 %v5622
          %v5624 = vpop.xlane.xlu0 %5623
          %v5625 = vcvt.f32.s32 %v5624
          %v5626 = vcvt.f32.s32 %v5620
          %v5627 = vshll.u32 %v5626, 16
          %v5628 = vadd.s32 %v5627, %v5625
          %v5629 = vsel %vm3608, %v5445, 2147483647
          %v5630 = vand.u32 %v5629, 65535
          %v5631 = vshra.s32 %v5629, 16
          %v5632 = vcvt.s32.f32 %v5630
          %v5633 = vcvt.s32.f32 %v5631
          %5634 = vmin.xlane.f32.xlu0 %v5633
          %v5635 = vpop.xlane.xlu0 %5634
          %vm5636 = vcmp.eq.f32.partialorder %v5633, %v5635
          %v5637 = vsel %vm5636, %v5632, inf
          %5638 = vmin.xlane.f32.xlu0 %v5637
          %v5639 = vpop.xlane.xlu0 %5638
          %v5640 = vcvt.f32.s32 %v5639
          %v5641 = vcvt.f32.s32 %v5635
          %v5642 = vshll.u32 %v5641, 16
          %v5643 = vadd.s32 %v5642, %v5640
          %v5644 = vsel %vm3608, %v5446, 2147483647
          %v5645 = vand.u32 %v5644, 65535
          %v5646 = vshra.s32 %v5644, 16
          %v5647 = vcvt.s32.f32 %v5645
          %v5648 = vcvt.s32.f32 %v5646
          %5649 = vmin.xlane.f32.xlu0 %v5648
          %v5650 = vpop.xlane.xlu0 %5649
          %vm5651 = vcmp.eq.f32.partialorder %v5648, %v5650
          %v5652 = vsel %vm5651, %v5647, inf
          %5653 = vmin.xlane.f32.xlu0 %v5652
          %v5654 = vpop.xlane.xlu0 %5653
          %v5655 = vcvt.f32.s32 %v5654
          %v5656 = vcvt.f32.s32 %v5650
          %v5657 = vshll.u32 %v5656, 16
          %v5658 = vadd.s32 %v5657, %v5655
          %v5659 = vsel %vm3608, %v5447, 2147483647
          %v5660 = vand.u32 %v5659, 65535
          %v5661 = vshra.s32 %v5659, 16
          %v5662 = vcvt.s32.f32 %v5660
          %v5663 = vcvt.s32.f32 %v5661
          %5664 = vmin.xlane.f32.xlu0 %v5663
          %v5665 = vpop.xlane.xlu0 %5664
          %vm5666 = vcmp.eq.f32.partialorder %v5663, %v5665
          %v5667 = vsel %vm5666, %v5662, inf
          %5668 = vmin.xlane.f32.xlu0 %v5667
          %v5669 = vpop.xlane.xlu0 %5668
          %v5670 = vcvt.f32.s32 %v5669
          %v5671 = vcvt.f32.s32 %v5665
          %v5672 = vshll.u32 %v5671, 16
          %v5673 = vadd.s32 %v5672, %v5670
          %v5674 = vsel %vm3608, %v5448, 2147483647
          %v5675 = vand.u32 %v5674, 65535
          %v5676 = vshra.s32 %v5674, 16
          %v5677 = vcvt.s32.f32 %v5675
          %v5678 = vcvt.s32.f32 %v5676
          %5679 = vmin.xlane.f32.xlu0 %v5678
          %v5680 = vpop.xlane.xlu0 %5679
          %vm5681 = vcmp.eq.f32.partialorder %v5678, %v5680
          %v5682 = vsel %vm5681, %v5677, inf
          %5683 = vmin.xlane.f32.xlu0 %v5682
          %v5684 = vpop.xlane.xlu0 %5683
          %v5685 = vcvt.f32.s32 %v5684
          %v5686 = vcvt.f32.s32 %v5680
          %v5687 = vshll.u32 %v5686, 16
          %v5688 = vadd.s32 %v5687, %v5685
          %vm5689 = vcmp.eq.s32.totalorder %v3592, %v5463
          %vm5690 = vcmp.eq.s32.totalorder %v3593, %v5478
          %vm5691 = vcmp.eq.s32.totalorder %v3594, %v5493
          %vm5692 = vcmp.eq.s32.totalorder %v3595, %v5508
          %vm5693 = vcmp.eq.s32.totalorder %v3596, %v5523
          %vm5694 = vcmp.eq.s32.totalorder %v3597, %v5538
          %vm5695 = vcmp.eq.s32.totalorder %v3598, %v5553
          %vm5696 = vcmp.eq.s32.totalorder %v3599, %v5568
          %vm5697 = vcmp.eq.s32.totalorder %v3600, %v5583
          %vm5698 = vcmp.eq.s32.totalorder %v3601, %v5598
          %vm5699 = vcmp.eq.s32.totalorder %v3602, %v5613
          %vm5700 = vcmp.eq.s32.totalorder %v3603, %v5628
          %vm5701 = vcmp.eq.s32.totalorder %v3604, %v5643
          %vm5702 = vcmp.eq.s32.totalorder %v3605, %v5658
          %vm5703 = vcmp.eq.s32.totalorder %v3606, %v5673
          %vm5704 = vcmp.eq.s32.totalorder %v3607, %v5688
          %v5705 = vsel %vm5689, -inf, %v5353
          %v5706 = vsel %vm5690, -inf, %v5354
          %v5707 = vsel %vm5691, -inf, %v5355
          %v5708 = vsel %vm5692, -inf, %v5356
          %v5709 = vsel %vm5693, -inf, %v5357
          %v5710 = vsel %vm5694, -inf, %v5358
          %v5711 = vsel %vm5695, -inf, %v5359
          %v5712 = vsel %vm5696, -inf, %v5360
          %v5713 = vsel %vm5697, -inf, %v5361
          %v5714 = vsel %vm5698, -inf, %v5362
          %v5715 = vsel %vm5699, -inf, %v5363
          %v5716 = vsel %vm5700, -inf, %v5364
          %v5717 = vsel %vm5701, -inf, %v5365
          %v5718 = vsel %vm5702, -inf, %v5366
          %v5719 = vsel %vm5703, -inf, %v5367
          %v5720 = vsel %vm5704, -inf, %v5368
          %v5721 = vsel %vm3608, %v5705, -inf
          %5722 = vmax.xlane.f32.xlu0 %v5721
          %v5723 = vpop.xlane.xlu0 %5722
          %v5724 = vsel %vm3608, %v5706, -inf
          %5725 = vmax.xlane.f32.xlu0 %v5724
          %v5726 = vpop.xlane.xlu0 %5725
          %v5727 = vsel %vm3608, %v5707, -inf
          %5728 = vmax.xlane.f32.xlu0 %v5727
          %v5729 = vpop.xlane.xlu0 %5728
          %v5730 = vsel %vm3608, %v5708, -inf
          %5731 = vmax.xlane.f32.xlu0 %v5730
          %v5732 = vpop.xlane.xlu0 %5731
          %v5733 = vsel %vm3608, %v5709, -inf
          %5734 = vmax.xlane.f32.xlu0 %v5733
          %v5735 = vpop.xlane.xlu0 %5734
          %v5736 = vsel %vm3608, %v5710, -inf
          %5737 = vmax.xlane.f32.xlu0 %v5736
          %v5738 = vpop.xlane.xlu0 %5737
          %v5739 = vsel %vm3608, %v5711, -inf
          %5740 = vmax.xlane.f32.xlu0 %v5739
          %v5741 = vpop.xlane.xlu0 %5740
          %v5742 = vsel %vm3608, %v5712, -inf
          %5743 = vmax.xlane.f32.xlu0 %v5742
          %v5744 = vpop.xlane.xlu0 %5743
          %v5745 = vsel %vm3608, %v5713, -inf
          %5746 = vmax.xlane.f32.xlu0 %v5745
          %v5747 = vpop.xlane.xlu0 %5746
          %v5748 = vsel %vm3608, %v5714, -inf
          %5749 = vmax.xlane.f32.xlu0 %v5748
          %v5750 = vpop.xlane.xlu0 %5749
          %v5751 = vsel %vm3608, %v5715, -inf
          %5752 = vmax.xlane.f32.xlu0 %v5751
          %v5753 = vpop.xlane.xlu0 %5752
          %v5754 = vsel %vm3608, %v5716, -inf
          %5755 = vmax.xlane.f32.xlu0 %v5754
          %v5756 = vpop.xlane.xlu0 %5755
          %v5757 = vsel %vm3608, %v5717, -inf
          %5758 = vmax.xlane.f32.xlu0 %v5757
          %v5759 = vpop.xlane.xlu0 %5758
          %v5760 = vsel %vm3608, %v5718, -inf
          %5761 = vmax.xlane.f32.xlu0 %v5760
          %v5762 = vpop.xlane.xlu0 %5761
          %v5763 = vsel %vm3608, %v5719, -inf
          %5764 = vmax.xlane.f32.xlu0 %v5763
          %v5765 = vpop.xlane.xlu0 %5764
          %v5766 = vsel %vm3608, %v5720, -inf
          %5767 = vmax.xlane.f32.xlu0 %v5766
          %v5768 = vpop.xlane.xlu0 %5767
          %vm5769 = vcmp.eq.f32.partialorder %v5705, %v5723
          %vm5770 = vcmp.eq.f32.partialorder %v5706, %v5726
          %vm5771 = vcmp.eq.f32.partialorder %v5707, %v5729
          %vm5772 = vcmp.eq.f32.partialorder %v5708, %v5732
          %vm5773 = vcmp.eq.f32.partialorder %v5709, %v5735
          %vm5774 = vcmp.eq.f32.partialorder %v5710, %v5738
          %vm5775 = vcmp.eq.f32.partialorder %v5711, %v5741
          %vm5776 = vcmp.eq.f32.partialorder %v5712, %v5744
          %vm5777 = vcmp.eq.f32.partialorder %v5713, %v5747
          %vm5778 = vcmp.eq.f32.partialorder %v5714, %v5750
          %vm5779 = vcmp.eq.f32.partialorder %v5715, %v5753
          %vm5780 = vcmp.eq.f32.partialorder %v5716, %v5756
          %vm5781 = vcmp.eq.f32.partialorder %v5717, %v5759
          %vm5782 = vcmp.eq.f32.partialorder %v5718, %v5762
          %vm5783 = vcmp.eq.f32.partialorder %v5719, %v5765
          %vm5784 = vcmp.eq.f32.partialorder %v5720, %v5768
          %v5785 = vsel %vm5769, %v3592, 2147483647
          %v5786 = vsel %vm5770, %v3593, 2147483647
          %v5787 = vsel %vm5771, %v3594, 2147483647
          %v5788 = vsel %vm5772, %v3595, 2147483647
          %v5789 = vsel %vm5773, %v3596, 2147483647
          %v5790 = vsel %vm5774, %v3597, 2147483647
          %v5791 = vsel %vm5775, %v3598, 2147483647
          %v5792 = vsel %vm5776, %v3599, 2147483647
          %v5793 = vsel %vm5777, %v3600, 2147483647
          %v5794 = vsel %vm5778, %v3601, 2147483647
          %v5795 = vsel %vm5779, %v3602, 2147483647
          %v5796 = vsel %vm5780, %v3603, 2147483647
          %v5797 = vsel %vm5781, %v3604, 2147483647
          %v5798 = vsel %vm5782, %v3605, 2147483647
          %v5799 = vsel %vm5783, %v3606, 2147483647
          %v5800 = vsel %vm5784, %v3607, 2147483647
          %v5801 = vsel %vm3608, %v5785, 2147483647
          %v5802 = vand.u32 %v5801, 65535
          %v5803 = vshra.s32 %v5801, 16
          %v5804 = vcvt.s32.f32 %v5802
          %v5805 = vcvt.s32.f32 %v5803
          %5806 = vmin.xlane.f32.xlu0 %v5805
          %v5807 = vpop.xlane.xlu0 %5806
          %vm5808 = vcmp.eq.f32.partialorder %v5805, %v5807
          %v5809 = vsel %vm5808, %v5804, inf
          %5810 = vmin.xlane.f32.xlu0 %v5809
          %v5811 = vpop.xlane.xlu0 %5810
          %v5812 = vcvt.f32.s32 %v5811
          %v5813 = vcvt.f32.s32 %v5807
          %v5814 = vshll.u32 %v5813, 16
          %v5815 = vadd.s32 %v5814, %v5812
          %v5816 = vsel %vm3608, %v5786, 2147483647
          %v5817 = vand.u32 %v5816, 65535
          %v5818 = vshra.s32 %v5816, 16
          %v5819 = vcvt.s32.f32 %v5817
          %v5820 = vcvt.s32.f32 %v5818
          %5821 = vmin.xlane.f32.xlu0 %v5820
          %v5822 = vpop.xlane.xlu0 %5821
          %vm5823 = vcmp.eq.f32.partialorder %v5820, %v5822
          %v5824 = vsel %vm5823, %v5819, inf
          %5825 = vmin.xlane.f32.xlu0 %v5824
          %v5826 = vpop.xlane.xlu0 %5825
          %v5827 = vcvt.f32.s32 %v5826
          %v5828 = vcvt.f32.s32 %v5822
          %v5829 = vshll.u32 %v5828, 16
          %v5830 = vadd.s32 %v5829, %v5827
          %v5831 = vsel %vm3608, %v5787, 2147483647
          %v5832 = vand.u32 %v5831, 65535
          %v5833 = vshra.s32 %v5831, 16
          %v5834 = vcvt.s32.f32 %v5832
          %v5835 = vcvt.s32.f32 %v5833
          %5836 = vmin.xlane.f32.xlu0 %v5835
          %v5837 = vpop.xlane.xlu0 %5836
          %vm5838 = vcmp.eq.f32.partialorder %v5835, %v5837
          %v5839 = vsel %vm5838, %v5834, inf
          %5840 = vmin.xlane.f32.xlu0 %v5839
          %v5841 = vpop.xlane.xlu0 %5840
          %v5842 = vcvt.f32.s32 %v5841
          %v5843 = vcvt.f32.s32 %v5837
          %v5844 = vshll.u32 %v5843, 16
          %v5845 = vadd.s32 %v5844, %v5842
          %v5846 = vsel %vm3608, %v5788, 2147483647
          %v5847 = vand.u32 %v5846, 65535
          %v5848 = vshra.s32 %v5846, 16
          %v5849 = vcvt.s32.f32 %v5847
          %v5850 = vcvt.s32.f32 %v5848
          %5851 = vmin.xlane.f32.xlu0 %v5850
          %v5852 = vpop.xlane.xlu0 %5851
          %vm5853 = vcmp.eq.f32.partialorder %v5850, %v5852
          %v5854 = vsel %vm5853, %v5849, inf
          %5855 = vmin.xlane.f32.xlu0 %v5854
          %v5856 = vpop.xlane.xlu0 %5855
          %v5857 = vcvt.f32.s32 %v5856
          %v5858 = vcvt.f32.s32 %v5852
          %v5859 = vshll.u32 %v5858, 16
          %v5860 = vadd.s32 %v5859, %v5857
          %v5861 = vsel %vm3608, %v5789, 2147483647
          %v5862 = vand.u32 %v5861, 65535
          %v5863 = vshra.s32 %v5861, 16
          %v5864 = vcvt.s32.f32 %v5862
          %v5865 = vcvt.s32.f32 %v5863
          %5866 = vmin.xlane.f32.xlu0 %v5865
          %v5867 = vpop.xlane.xlu0 %5866
          %vm5868 = vcmp.eq.f32.partialorder %v5865, %v5867
          %v5869 = vsel %vm5868, %v5864, inf
          %5870 = vmin.xlane.f32.xlu0 %v5869
          %v5871 = vpop.xlane.xlu0 %5870
          %v5872 = vcvt.f32.s32 %v5871
          %v5873 = vcvt.f32.s32 %v5867
          %v5874 = vshll.u32 %v5873, 16
          %v5875 = vadd.s32 %v5874, %v5872
          %v5876 = vsel %vm3608, %v5790, 2147483647
          %v5877 = vand.u32 %v5876, 65535
          %v5878 = vshra.s32 %v5876, 16
          %v5879 = vcvt.s32.f32 %v5877
          %v5880 = vcvt.s32.f32 %v5878
          %5881 = vmin.xlane.f32.xlu0 %v5880
          %v5882 = vpop.xlane.xlu0 %5881
          %vm5883 = vcmp.eq.f32.partialorder %v5880, %v5882
          %v5884 = vsel %vm5883, %v5879, inf
          %5885 = vmin.xlane.f32.xlu0 %v5884
          %v5886 = vpop.xlane.xlu0 %5885
          %v5887 = vcvt.f32.s32 %v5886
          %v5888 = vcvt.f32.s32 %v5882
          %v5889 = vshll.u32 %v5888, 16
          %v5890 = vadd.s32 %v5889, %v5887
          %v5891 = vsel %vm3608, %v5791, 2147483647
          %v5892 = vand.u32 %v5891, 65535
          %v5893 = vshra.s32 %v5891, 16
          %v5894 = vcvt.s32.f32 %v5892
          %v5895 = vcvt.s32.f32 %v5893
          %5896 = vmin.xlane.f32.xlu0 %v5895
          %v5897 = vpop.xlane.xlu0 %5896
          %vm5898 = vcmp.eq.f32.partialorder %v5895, %v5897
          %v5899 = vsel %vm5898, %v5894, inf
          %5900 = vmin.xlane.f32.xlu0 %v5899
          %v5901 = vpop.xlane.xlu0 %5900
          %v5902 = vcvt.f32.s32 %v5901
          %v5903 = vcvt.f32.s32 %v5897
          %v5904 = vshll.u32 %v5903, 16
          %v5905 = vadd.s32 %v5904, %v5902
          %v5906 = vsel %vm3608, %v5792, 2147483647
          %v5907 = vand.u32 %v5906, 65535
          %v5908 = vshra.s32 %v5906, 16
          %v5909 = vcvt.s32.f32 %v5907
          %v5910 = vcvt.s32.f32 %v5908
          %5911 = vmin.xlane.f32.xlu0 %v5910
          %v5912 = vpop.xlane.xlu0 %5911
          %vm5913 = vcmp.eq.f32.partialorder %v5910, %v5912
          %v5914 = vsel %vm5913, %v5909, inf
          %5915 = vmin.xlane.f32.xlu0 %v5914
          %v5916 = vpop.xlane.xlu0 %5915
          %v5917 = vcvt.f32.s32 %v5916
          %v5918 = vcvt.f32.s32 %v5912
          %v5919 = vshll.u32 %v5918, 16
          %v5920 = vadd.s32 %v5919, %v5917
          %v5921 = vsel %vm3608, %v5793, 2147483647
          %v5922 = vand.u32 %v5921, 65535
          %v5923 = vshra.s32 %v5921, 16
          %v5924 = vcvt.s32.f32 %v5922
          %v5925 = vcvt.s32.f32 %v5923
          %5926 = vmin.xlane.f32.xlu0 %v5925
          %v5927 = vpop.xlane.xlu0 %5926
          %vm5928 = vcmp.eq.f32.partialorder %v5925, %v5927
          %v5929 = vsel %vm5928, %v5924, inf
          %5930 = vmin.xlane.f32.xlu0 %v5929
          %v5931 = vpop.xlane.xlu0 %5930
          %v5932 = vcvt.f32.s32 %v5931
          %v5933 = vcvt.f32.s32 %v5927
          %v5934 = vshll.u32 %v5933, 16
          %v5935 = vadd.s32 %v5934, %v5932
          %v5936 = vsel %vm3608, %v5794, 2147483647
          %v5937 = vand.u32 %v5936, 65535
          %v5938 = vshra.s32 %v5936, 16
          %v5939 = vcvt.s32.f32 %v5937
          %v5940 = vcvt.s32.f32 %v5938
          %5941 = vmin.xlane.f32.xlu0 %v5940
          %v5942 = vpop.xlane.xlu0 %5941
          %vm5943 = vcmp.eq.f32.partialorder %v5940, %v5942
          %v5944 = vsel %vm5943, %v5939, inf
          %5945 = vmin.xlane.f32.xlu0 %v5944
          %v5946 = vpop.xlane.xlu0 %5945
          %v5947 = vcvt.f32.s32 %v5946
          %v5948 = vcvt.f32.s32 %v5942
          %v5949 = vshll.u32 %v5948, 16
          %v5950 = vadd.s32 %v5949, %v5947
          %v5951 = vsel %vm3608, %v5795, 2147483647
          %v5952 = vand.u32 %v5951, 65535
          %v5953 = vshra.s32 %v5951, 16
          %v5954 = vcvt.s32.f32 %v5952
          %v5955 = vcvt.s32.f32 %v5953
          %5956 = vmin.xlane.f32.xlu0 %v5955
          %v5957 = vpop.xlane.xlu0 %5956
          %vm5958 = vcmp.eq.f32.partialorder %v5955, %v5957
          %v5959 = vsel %vm5958, %v5954, inf
          %5960 = vmin.xlane.f32.xlu0 %v5959
          %v5961 = vpop.xlane.xlu0 %5960
          %v5962 = vcvt.f32.s32 %v5961
          %v5963 = vcvt.f32.s32 %v5957
          %v5964 = vshll.u32 %v5963, 16
          %v5965 = vadd.s32 %v5964, %v5962
          %v5966 = vsel %vm3608, %v5796, 2147483647
          %v5967 = vand.u32 %v5966, 65535
          %v5968 = vshra.s32 %v5966, 16
          %v5969 = vcvt.s32.f32 %v5967
          %v5970 = vcvt.s32.f32 %v5968
          %5971 = vmin.xlane.f32.xlu0 %v5970
          %v5972 = vpop.xlane.xlu0 %5971
          %vm5973 = vcmp.eq.f32.partialorder %v5970, %v5972
          %v5974 = vsel %vm5973, %v5969, inf
          %5975 = vmin.xlane.f32.xlu0 %v5974
          %v5976 = vpop.xlane.xlu0 %5975
          %v5977 = vcvt.f32.s32 %v5976
          %v5978 = vcvt.f32.s32 %v5972
          %v5979 = vshll.u32 %v5978, 16
          %v5980 = vadd.s32 %v5979, %v5977
          %v5981 = vsel %vm3608, %v5797, 2147483647
          %v5982 = vand.u32 %v5981, 65535
          %v5983 = vshra.s32 %v5981, 16
          %v5984 = vcvt.s32.f32 %v5982
          %v5985 = vcvt.s32.f32 %v5983
          %5986 = vmin.xlane.f32.xlu0 %v5985
          %v5987 = vpop.xlane.xlu0 %5986
          %vm5988 = vcmp.eq.f32.partialorder %v5985, %v5987
          %v5989 = vsel %vm5988, %v5984, inf
          %5990 = vmin.xlane.f32.xlu0 %v5989
          %v5991 = vpop.xlane.xlu0 %5990
          %v5992 = vcvt.f32.s32 %v5991
          %v5993 = vcvt.f32.s32 %v5987
          %v5994 = vshll.u32 %v5993, 16
          %v5995 = vadd.s32 %v5994, %v5992
          %v5996 = vsel %vm3608, %v5798, 2147483647
          %v5997 = vand.u32 %v5996, 65535
          %v5998 = vshra.s32 %v5996, 16
          %v5999 = vcvt.s32.f32 %v5997
          %v6000 = vcvt.s32.f32 %v5998
          %6001 = vmin.xlane.f32.xlu0 %v6000
          %v6002 = vpop.xlane.xlu0 %6001
          %vm6003 = vcmp.eq.f32.partialorder %v6000, %v6002
          %v6004 = vsel %vm6003, %v5999, inf
          %6005 = vmin.xlane.f32.xlu0 %v6004
          %v6006 = vpop.xlane.xlu0 %6005
          %v6007 = vcvt.f32.s32 %v6006
          %v6008 = vcvt.f32.s32 %v6002
          %v6009 = vshll.u32 %v6008, 16
          %v6010 = vadd.s32 %v6009, %v6007
          %v6011 = vsel %vm3608, %v5799, 2147483647
          %v6012 = vand.u32 %v6011, 65535
          %v6013 = vshra.s32 %v6011, 16
          %v6014 = vcvt.s32.f32 %v6012
          %v6015 = vcvt.s32.f32 %v6013
          %6016 = vmin.xlane.f32.xlu0 %v6015
          %v6017 = vpop.xlane.xlu0 %6016
          %vm6018 = vcmp.eq.f32.partialorder %v6015, %v6017
          %v6019 = vsel %vm6018, %v6014, inf
          %6020 = vmin.xlane.f32.xlu0 %v6019
          %v6021 = vpop.xlane.xlu0 %6020
          %v6022 = vcvt.f32.s32 %v6021
          %v6023 = vcvt.f32.s32 %v6017
          %v6024 = vshll.u32 %v6023, 16
          %v6025 = vadd.s32 %v6024, %v6022
          %v6026 = vsel %vm3608, %v5800, 2147483647
          %v6027 = vand.u32 %v6026, 65535
          %v6028 = vshra.s32 %v6026, 16
          %v6029 = vcvt.s32.f32 %v6027
          %v6030 = vcvt.s32.f32 %v6028
          %6031 = vmin.xlane.f32.xlu0 %v6030
          %v6032 = vpop.xlane.xlu0 %6031
          %vm6033 = vcmp.eq.f32.partialorder %v6030, %v6032
          %v6034 = vsel %vm6033, %v6029, inf
          %6035 = vmin.xlane.f32.xlu0 %v6034
          %v6036 = vpop.xlane.xlu0 %6035
          %v6037 = vcvt.f32.s32 %v6036
          %v6038 = vcvt.f32.s32 %v6032
          %v6039 = vshll.u32 %v6038, 16
          %v6040 = vadd.s32 %v6039, %v6037
          %vm6041 = vcmp.eq.s32.totalorder %v3592, %v5815
          %vm6042 = vcmp.eq.s32.totalorder %v3593, %v5830
          %vm6043 = vcmp.eq.s32.totalorder %v3594, %v5845
          %vm6044 = vcmp.eq.s32.totalorder %v3595, %v5860
          %vm6045 = vcmp.eq.s32.totalorder %v3596, %v5875
          %vm6046 = vcmp.eq.s32.totalorder %v3597, %v5890
          %vm6047 = vcmp.eq.s32.totalorder %v3598, %v5905
          %vm6048 = vcmp.eq.s32.totalorder %v3599, %v5920
          %vm6049 = vcmp.eq.s32.totalorder %v3600, %v5935
          %vm6050 = vcmp.eq.s32.totalorder %v3601, %v5950
          %vm6051 = vcmp.eq.s32.totalorder %v3602, %v5965
          %vm6052 = vcmp.eq.s32.totalorder %v3603, %v5980
          %vm6053 = vcmp.eq.s32.totalorder %v3604, %v5995
          %vm6054 = vcmp.eq.s32.totalorder %v3605, %v6010
          %vm6055 = vcmp.eq.s32.totalorder %v3606, %v6025
          %vm6056 = vcmp.eq.s32.totalorder %v3607, %v6040
          %v6057 = vsel %vm6041, -inf, %v5705
          %v6058 = vsel %vm6042, -inf, %v5706
          %v6059 = vsel %vm6043, -inf, %v5707
          %v6060 = vsel %vm6044, -inf, %v5708
          %v6061 = vsel %vm6045, -inf, %v5709
          %v6062 = vsel %vm6046, -inf, %v5710
          %v6063 = vsel %vm6047, -inf, %v5711
          %v6064 = vsel %vm6048, -inf, %v5712
          %v6065 = vsel %vm6049, -inf, %v5713
          %v6066 = vsel %vm6050, -inf, %v5714
          %v6067 = vsel %vm6051, -inf, %v5715
          %v6068 = vsel %vm6052, -inf, %v5716
          %v6069 = vsel %vm6053, -inf, %v5717
          %v6070 = vsel %vm6054, -inf, %v5718
          %v6071 = vsel %vm6055, -inf, %v5719
          %v6072 = vsel %vm6056, -inf, %v5720
          %v6073 = vsel %vm3608, %v6057, -inf
          %6074 = vmax.xlane.f32.xlu0 %v6073
          %v6075 = vpop.xlane.xlu0 %6074
          %v6076 = vsel %vm3608, %v6058, -inf
          %6077 = vmax.xlane.f32.xlu0 %v6076
          %v6078 = vpop.xlane.xlu0 %6077
          %v6079 = vsel %vm3608, %v6059, -inf
          %6080 = vmax.xlane.f32.xlu0 %v6079
          %v6081 = vpop.xlane.xlu0 %6080
          %v6082 = vsel %vm3608, %v6060, -inf
          %6083 = vmax.xlane.f32.xlu0 %v6082
          %v6084 = vpop.xlane.xlu0 %6083
          %v6085 = vsel %vm3608, %v6061, -inf
          %6086 = vmax.xlane.f32.xlu0 %v6085
          %v6087 = vpop.xlane.xlu0 %6086
          %v6088 = vsel %vm3608, %v6062, -inf
          %6089 = vmax.xlane.f32.xlu0 %v6088
          %v6090 = vpop.xlane.xlu0 %6089
          %v6091 = vsel %vm3608, %v6063, -inf
          %6092 = vmax.xlane.f32.xlu0 %v6091
          %v6093 = vpop.xlane.xlu0 %6092
          %v6094 = vsel %vm3608, %v6064, -inf
          %6095 = vmax.xlane.f32.xlu0 %v6094
          %v6096 = vpop.xlane.xlu0 %6095
          %v6097 = vsel %vm3608, %v6065, -inf
          %6098 = vmax.xlane.f32.xlu0 %v6097
          %v6099 = vpop.xlane.xlu0 %6098
          %v6100 = vsel %vm3608, %v6066, -inf
          %6101 = vmax.xlane.f32.xlu0 %v6100
          %v6102 = vpop.xlane.xlu0 %6101
          %v6103 = vsel %vm3608, %v6067, -inf
          %6104 = vmax.xlane.f32.xlu0 %v6103
          %v6105 = vpop.xlane.xlu0 %6104
          %v6106 = vsel %vm3608, %v6068, -inf
          %6107 = vmax.xlane.f32.xlu0 %v6106
          %v6108 = vpop.xlane.xlu0 %6107
          %v6109 = vsel %vm3608, %v6069, -inf
          %6110 = vmax.xlane.f32.xlu0 %v6109
          %v6111 = vpop.xlane.xlu0 %6110
          %v6112 = vsel %vm3608, %v6070, -inf
          %6113 = vmax.xlane.f32.xlu0 %v6112
          %v6114 = vpop.xlane.xlu0 %6113
          %v6115 = vsel %vm3608, %v6071, -inf
          %6116 = vmax.xlane.f32.xlu0 %v6115
          %v6117 = vpop.xlane.xlu0 %6116
          %v6118 = vsel %vm3608, %v6072, -inf
          %6119 = vmax.xlane.f32.xlu0 %v6118
          %v6120 = vpop.xlane.xlu0 %6119
          %vm6121 = vcmp.eq.f32.partialorder %v6057, %v6075
          %vm6122 = vcmp.eq.f32.partialorder %v6058, %v6078
          %vm6123 = vcmp.eq.f32.partialorder %v6059, %v6081
          %vm6124 = vcmp.eq.f32.partialorder %v6060, %v6084
          %vm6125 = vcmp.eq.f32.partialorder %v6061, %v6087
          %vm6126 = vcmp.eq.f32.partialorder %v6062, %v6090
          %vm6127 = vcmp.eq.f32.partialorder %v6063, %v6093
          %vm6128 = vcmp.eq.f32.partialorder %v6064, %v6096
          %vm6129 = vcmp.eq.f32.partialorder %v6065, %v6099
          %vm6130 = vcmp.eq.f32.partialorder %v6066, %v6102
          %vm6131 = vcmp.eq.f32.partialorder %v6067, %v6105
          %vm6132 = vcmp.eq.f32.partialorder %v6068, %v6108
          %vm6133 = vcmp.eq.f32.partialorder %v6069, %v6111
          %vm6134 = vcmp.eq.f32.partialorder %v6070, %v6114
          %vm6135 = vcmp.eq.f32.partialorder %v6071, %v6117
          %vm6136 = vcmp.eq.f32.partialorder %v6072, %v6120
          %v6137 = vsel %vm6121, %v3592, 2147483647
          %v6138 = vsel %vm6122, %v3593, 2147483647
          %v6139 = vsel %vm6123, %v3594, 2147483647
          %v6140 = vsel %vm6124, %v3595, 2147483647
          %v6141 = vsel %vm6125, %v3596, 2147483647
          %v6142 = vsel %vm6126, %v3597, 2147483647
          %v6143 = vsel %vm6127, %v3598, 2147483647
          %v6144 = vsel %vm6128, %v3599, 2147483647
          %v6145 = vsel %vm6129, %v3600, 2147483647
          %v6146 = vsel %vm6130, %v3601, 2147483647
          %v6147 = vsel %vm6131, %v3602, 2147483647
          %v6148 = vsel %vm6132, %v3603, 2147483647
          %v6149 = vsel %vm6133, %v3604, 2147483647
          %v6150 = vsel %vm6134, %v3605, 2147483647
          %v6151 = vsel %vm6135, %v3606, 2147483647
          %v6152 = vsel %vm6136, %v3607, 2147483647
          %v6153 = vsel %vm3608, %v6137, 2147483647
          %v6154 = vand.u32 %v6153, 65535
          %v6155 = vshra.s32 %v6153, 16
          %v6156 = vcvt.s32.f32 %v6154
          %v6157 = vcvt.s32.f32 %v6155
          %6158 = vmin.xlane.f32.xlu0 %v6157
          %v6159 = vpop.xlane.xlu0 %6158
          %vm6160 = vcmp.eq.f32.partialorder %v6157, %v6159
          %v6161 = vsel %vm6160, %v6156, inf
          %6162 = vmin.xlane.f32.xlu0 %v6161
          %v6163 = vpop.xlane.xlu0 %6162
          %v6164 = vcvt.f32.s32 %v6163
          %v6165 = vcvt.f32.s32 %v6159
          %v6166 = vshll.u32 %v6165, 16
          %v6167 = vadd.s32 %v6166, %v6164
          %v6168 = vsel %vm3608, %v6138, 2147483647
          %v6169 = vand.u32 %v6168, 65535
          %v6170 = vshra.s32 %v6168, 16
          %v6171 = vcvt.s32.f32 %v6169
          %v6172 = vcvt.s32.f32 %v6170
          %6173 = vmin.xlane.f32.xlu0 %v6172
          %v6174 = vpop.xlane.xlu0 %6173
          %vm6175 = vcmp.eq.f32.partialorder %v6172, %v6174
          %v6176 = vsel %vm6175, %v6171, inf
          %6177 = vmin.xlane.f32.xlu0 %v6176
          %v6178 = vpop.xlane.xlu0 %6177
          %v6179 = vcvt.f32.s32 %v6178
          %v6180 = vcvt.f32.s32 %v6174
          %v6181 = vshll.u32 %v6180, 16
          %v6182 = vadd.s32 %v6181, %v6179
          %v6183 = vsel %vm3608, %v6139, 2147483647
          %v6184 = vand.u32 %v6183, 65535
          %v6185 = vshra.s32 %v6183, 16
          %v6186 = vcvt.s32.f32 %v6184
          %v6187 = vcvt.s32.f32 %v6185
          %6188 = vmin.xlane.f32.xlu0 %v6187
          %v6189 = vpop.xlane.xlu0 %6188
          %vm6190 = vcmp.eq.f32.partialorder %v6187, %v6189
          %v6191 = vsel %vm6190, %v6186, inf
          %6192 = vmin.xlane.f32.xlu0 %v6191
          %v6193 = vpop.xlane.xlu0 %6192
          %v6194 = vcvt.f32.s32 %v6193
          %v6195 = vcvt.f32.s32 %v6189
          %v6196 = vshll.u32 %v6195, 16
          %v6197 = vadd.s32 %v6196, %v6194
          %v6198 = vsel %vm3608, %v6140, 2147483647
          %v6199 = vand.u32 %v6198, 65535
          %v6200 = vshra.s32 %v6198, 16
          %v6201 = vcvt.s32.f32 %v6199
          %v6202 = vcvt.s32.f32 %v6200
          %6203 = vmin.xlane.f32.xlu0 %v6202
          %v6204 = vpop.xlane.xlu0 %6203
          %vm6205 = vcmp.eq.f32.partialorder %v6202, %v6204
          %v6206 = vsel %vm6205, %v6201, inf
          %6207 = vmin.xlane.f32.xlu0 %v6206
          %v6208 = vpop.xlane.xlu0 %6207
          %v6209 = vcvt.f32.s32 %v6208
          %v6210 = vcvt.f32.s32 %v6204
          %v6211 = vshll.u32 %v6210, 16
          %v6212 = vadd.s32 %v6211, %v6209
          %v6213 = vsel %vm3608, %v6141, 2147483647
          %v6214 = vand.u32 %v6213, 65535
          %v6215 = vshra.s32 %v6213, 16
          %v6216 = vcvt.s32.f32 %v6214
          %v6217 = vcvt.s32.f32 %v6215
          %6218 = vmin.xlane.f32.xlu0 %v6217
          %v6219 = vpop.xlane.xlu0 %6218
          %vm6220 = vcmp.eq.f32.partialorder %v6217, %v6219
          %v6221 = vsel %vm6220, %v6216, inf
          %6222 = vmin.xlane.f32.xlu0 %v6221
          %v6223 = vpop.xlane.xlu0 %6222
          %v6224 = vcvt.f32.s32 %v6223
          %v6225 = vcvt.f32.s32 %v6219
          %v6226 = vshll.u32 %v6225, 16
          %v6227 = vadd.s32 %v6226, %v6224
          %v6228 = vsel %vm3608, %v6142, 2147483647
          %v6229 = vand.u32 %v6228, 65535
          %v6230 = vshra.s32 %v6228, 16
          %v6231 = vcvt.s32.f32 %v6229
          %v6232 = vcvt.s32.f32 %v6230
          %6233 = vmin.xlane.f32.xlu0 %v6232
          %v6234 = vpop.xlane.xlu0 %6233
          %vm6235 = vcmp.eq.f32.partialorder %v6232, %v6234
          %v6236 = vsel %vm6235, %v6231, inf
          %6237 = vmin.xlane.f32.xlu0 %v6236
          %v6238 = vpop.xlane.xlu0 %6237
          %v6239 = vcvt.f32.s32 %v6238
          %v6240 = vcvt.f32.s32 %v6234
          %v6241 = vshll.u32 %v6240, 16
          %v6242 = vadd.s32 %v6241, %v6239
          %v6243 = vsel %vm3608, %v6143, 2147483647
          %v6244 = vand.u32 %v6243, 65535
          %v6245 = vshra.s32 %v6243, 16
          %v6246 = vcvt.s32.f32 %v6244
          %v6247 = vcvt.s32.f32 %v6245
          %6248 = vmin.xlane.f32.xlu0 %v6247
          %v6249 = vpop.xlane.xlu0 %6248
          %vm6250 = vcmp.eq.f32.partialorder %v6247, %v6249
          %v6251 = vsel %vm6250, %v6246, inf
          %6252 = vmin.xlane.f32.xlu0 %v6251
          %v6253 = vpop.xlane.xlu0 %6252
          %v6254 = vcvt.f32.s32 %v6253
          %v6255 = vcvt.f32.s32 %v6249
          %v6256 = vshll.u32 %v6255, 16
          %v6257 = vadd.s32 %v6256, %v6254
          %v6258 = vsel %vm3608, %v6144, 2147483647
          %v6259 = vand.u32 %v6258, 65535
          %v6260 = vshra.s32 %v6258, 16
          %v6261 = vcvt.s32.f32 %v6259
          %v6262 = vcvt.s32.f32 %v6260
          %6263 = vmin.xlane.f32.xlu0 %v6262
          %v6264 = vpop.xlane.xlu0 %6263
          %vm6265 = vcmp.eq.f32.partialorder %v6262, %v6264
          %v6266 = vsel %vm6265, %v6261, inf
          %6267 = vmin.xlane.f32.xlu0 %v6266
          %v6268 = vpop.xlane.xlu0 %6267
          %v6269 = vcvt.f32.s32 %v6268
          %v6270 = vcvt.f32.s32 %v6264
          %v6271 = vshll.u32 %v6270, 16
          %v6272 = vadd.s32 %v6271, %v6269
          %v6273 = vsel %vm3608, %v6145, 2147483647
          %v6274 = vand.u32 %v6273, 65535
          %v6275 = vshra.s32 %v6273, 16
          %v6276 = vcvt.s32.f32 %v6274
          %v6277 = vcvt.s32.f32 %v6275
          %6278 = vmin.xlane.f32.xlu0 %v6277
          %v6279 = vpop.xlane.xlu0 %6278
          %vm6280 = vcmp.eq.f32.partialorder %v6277, %v6279
          %v6281 = vsel %vm6280, %v6276, inf
          %6282 = vmin.xlane.f32.xlu0 %v6281
          %v6283 = vpop.xlane.xlu0 %6282
          %v6284 = vcvt.f32.s32 %v6283
          %v6285 = vcvt.f32.s32 %v6279
          %v6286 = vshll.u32 %v6285, 16
          %v6287 = vadd.s32 %v6286, %v6284
          %v6288 = vsel %vm3608, %v6146, 2147483647
          %v6289 = vand.u32 %v6288, 65535
          %v6290 = vshra.s32 %v6288, 16
          %v6291 = vcvt.s32.f32 %v6289
          %v6292 = vcvt.s32.f32 %v6290
          %6293 = vmin.xlane.f32.xlu0 %v6292
          %v6294 = vpop.xlane.xlu0 %6293
          %vm6295 = vcmp.eq.f32.partialorder %v6292, %v6294
          %v6296 = vsel %vm6295, %v6291, inf
          %6297 = vmin.xlane.f32.xlu0 %v6296
          %v6298 = vpop.xlane.xlu0 %6297
          %v6299 = vcvt.f32.s32 %v6298
          %v6300 = vcvt.f32.s32 %v6294
          %v6301 = vshll.u32 %v6300, 16
          %v6302 = vadd.s32 %v6301, %v6299
          %v6303 = vsel %vm3608, %v6147, 2147483647
          %v6304 = vand.u32 %v6303, 65535
          %v6305 = vshra.s32 %v6303, 16
          %v6306 = vcvt.s32.f32 %v6304
          %v6307 = vcvt.s32.f32 %v6305
          %6308 = vmin.xlane.f32.xlu0 %v6307
          %v6309 = vpop.xlane.xlu0 %6308
          %vm6310 = vcmp.eq.f32.partialorder %v6307, %v6309
          %v6311 = vsel %vm6310, %v6306, inf
          %6312 = vmin.xlane.f32.xlu0 %v6311
          %v6313 = vpop.xlane.xlu0 %6312
          %v6314 = vcvt.f32.s32 %v6313
          %v6315 = vcvt.f32.s32 %v6309
          %v6316 = vshll.u32 %v6315, 16
          %v6317 = vadd.s32 %v6316, %v6314
          %v6318 = vsel %vm3608, %v6148, 2147483647
          %v6319 = vand.u32 %v6318, 65535
          %v6320 = vshra.s32 %v6318, 16
          %v6321 = vcvt.s32.f32 %v6319
          %v6322 = vcvt.s32.f32 %v6320
          %6323 = vmin.xlane.f32.xlu0 %v6322
          %v6324 = vpop.xlane.xlu0 %6323
          %vm6325 = vcmp.eq.f32.partialorder %v6322, %v6324
          %v6326 = vsel %vm6325, %v6321, inf
          %6327 = vmin.xlane.f32.xlu0 %v6326
          %v6328 = vpop.xlane.xlu0 %6327
          %v6329 = vcvt.f32.s32 %v6328
          %v6330 = vcvt.f32.s32 %v6324
          %v6331 = vshll.u32 %v6330, 16
          %v6332 = vadd.s32 %v6331, %v6329
          %v6333 = vsel %vm3608, %v6149, 2147483647
          %v6334 = vand.u32 %v6333, 65535
          %v6335 = vshra.s32 %v6333, 16
          %v6336 = vcvt.s32.f32 %v6334
          %v6337 = vcvt.s32.f32 %v6335
          %6338 = vmin.xlane.f32.xlu0 %v6337
          %v6339 = vpop.xlane.xlu0 %6338
          %vm6340 = vcmp.eq.f32.partialorder %v6337, %v6339
          %v6341 = vsel %vm6340, %v6336, inf
          %6342 = vmin.xlane.f32.xlu0 %v6341
          %v6343 = vpop.xlane.xlu0 %6342
          %v6344 = vcvt.f32.s32 %v6343
          %v6345 = vcvt.f32.s32 %v6339
          %v6346 = vshll.u32 %v6345, 16
          %v6347 = vadd.s32 %v6346, %v6344
          %v6348 = vsel %vm3608, %v6150, 2147483647
          %v6349 = vand.u32 %v6348, 65535
          %v6350 = vshra.s32 %v6348, 16
          %v6351 = vcvt.s32.f32 %v6349
          %v6352 = vcvt.s32.f32 %v6350
          %6353 = vmin.xlane.f32.xlu0 %v6352
          %v6354 = vpop.xlane.xlu0 %6353
          %vm6355 = vcmp.eq.f32.partialorder %v6352, %v6354
          %v6356 = vsel %vm6355, %v6351, inf
          %6357 = vmin.xlane.f32.xlu0 %v6356
          %v6358 = vpop.xlane.xlu0 %6357
          %v6359 = vcvt.f32.s32 %v6358
          %v6360 = vcvt.f32.s32 %v6354
          %v6361 = vshll.u32 %v6360, 16
          %v6362 = vadd.s32 %v6361, %v6359
          %v6363 = vsel %vm3608, %v6151, 2147483647
          %v6364 = vand.u32 %v6363, 65535
          %v6365 = vshra.s32 %v6363, 16
          %v6366 = vcvt.s32.f32 %v6364
          %v6367 = vcvt.s32.f32 %v6365
          %6368 = vmin.xlane.f32.xlu0 %v6367
          %v6369 = vpop.xlane.xlu0 %6368
          %vm6370 = vcmp.eq.f32.partialorder %v6367, %v6369
          %v6371 = vsel %vm6370, %v6366, inf
          %6372 = vmin.xlane.f32.xlu0 %v6371
          %v6373 = vpop.xlane.xlu0 %6372
          %v6374 = vcvt.f32.s32 %v6373
          %v6375 = vcvt.f32.s32 %v6369
          %v6376 = vshll.u32 %v6375, 16
          %v6377 = vadd.s32 %v6376, %v6374
          %v6378 = vsel %vm3608, %v6152, 2147483647
          %v6379 = vand.u32 %v6378, 65535
          %v6380 = vshra.s32 %v6378, 16
          %v6381 = vcvt.s32.f32 %v6379
          %v6382 = vcvt.s32.f32 %v6380
          %6383 = vmin.xlane.f32.xlu0 %v6382
          %v6384 = vpop.xlane.xlu0 %6383
          %vm6385 = vcmp.eq.f32.partialorder %v6382, %v6384
          %v6386 = vsel %vm6385, %v6381, inf
          %6387 = vmin.xlane.f32.xlu0 %v6386
          %v6388 = vpop.xlane.xlu0 %6387
          %v6389 = vcvt.f32.s32 %v6388
          %v6390 = vcvt.f32.s32 %v6384
          %v6391 = vshll.u32 %v6390, 16
          %v6392 = vadd.s32 %v6391, %v6389
          %v6393 = vsel %vm3217, %v3611, %v3963
          %v6394 = vsel %vm3217, %v3614, %v3966
          %v6395 = vsel %vm3217, %v3617, %v3969
          %v6396 = vsel %vm3217, %v3620, %v3972
          %v6397 = vsel %vm3217, %v3623, %v3975
          %v6398 = vsel %vm3217, %v3626, %v3978
          %v6399 = vsel %vm3217, %v3629, %v3981
          %v6400 = vsel %vm3217, %v3632, %v3984
          %v6401 = vsel %vm3217, %v3635, %v3987
          %v6402 = vsel %vm3217, %v3638, %v3990
          %v6403 = vsel %vm3217, %v3641, %v3993
          %v6404 = vsel %vm3217, %v3644, %v3996
          %v6405 = vsel %vm3217, %v3647, %v3999
          %v6406 = vsel %vm3217, %v3650, %v4002
          %v6407 = vsel %vm3217, %v3653, %v4005
          %v6408 = vsel %vm3217, %v3656, %v4008
          %v6409 = vsel %vm3234, %v6393, %v4315
          %v6410 = vsel %vm3234, %v6394, %v4318
          %v6411 = vsel %vm3234, %v6395, %v4321
          %v6412 = vsel %vm3234, %v6396, %v4324
          %v6413 = vsel %vm3234, %v6397, %v4327
          %v6414 = vsel %vm3234, %v6398, %v4330
          %v6415 = vsel %vm3234, %v6399, %v4333
          %v6416 = vsel %vm3234, %v6400, %v4336
          %v6417 = vsel %vm3234, %v6401, %v4339
          %v6418 = vsel %vm3234, %v6402, %v4342
          %v6419 = vsel %vm3234, %v6403, %v4345
          %v6420 = vsel %vm3234, %v6404, %v4348
          %v6421 = vsel %vm3234, %v6405, %v4351
          %v6422 = vsel %vm3234, %v6406, %v4354
          %v6423 = vsel %vm3234, %v6407, %v4357
          %v6424 = vsel %vm3234, %v6408, %v4360
          %v6425 = vsel %vm3251, %v6409, %v4667
          %v6426 = vsel %vm3251, %v6410, %v4670
          %v6427 = vsel %vm3251, %v6411, %v4673
          %v6428 = vsel %vm3251, %v6412, %v4676
          %v6429 = vsel %vm3251, %v6413, %v4679
          %v6430 = vsel %vm3251, %v6414, %v4682
          %v6431 = vsel %vm3251, %v6415, %v4685
          %v6432 = vsel %vm3251, %v6416, %v4688
          %v6433 = vsel %vm3251, %v6417, %v4691
          %v6434 = vsel %vm3251, %v6418, %v4694
          %v6435 = vsel %vm3251, %v6419, %v4697
          %v6436 = vsel %vm3251, %v6420, %v4700
          %v6437 = vsel %vm3251, %v6421, %v4703
          %v6438 = vsel %vm3251, %v6422, %v4706
          %v6439 = vsel %vm3251, %v6423, %v4709
          %v6440 = vsel %vm3251, %v6424, %v4712
          %v6441 = vsel %vm3268, %v6425, %v5019
          %v6442 = vsel %vm3268, %v6426, %v5022
          %v6443 = vsel %vm3268, %v6427, %v5025
          %v6444 = vsel %vm3268, %v6428, %v5028
          %v6445 = vsel %vm3268, %v6429, %v5031
          %v6446 = vsel %vm3268, %v6430, %v5034
          %v6447 = vsel %vm3268, %v6431, %v5037
          %v6448 = vsel %vm3268, %v6432, %v5040
          %v6449 = vsel %vm3268, %v6433, %v5043
          %v6450 = vsel %vm3268, %v6434, %v5046
          %v6451 = vsel %vm3268, %v6435, %v5049
          %v6452 = vsel %vm3268, %v6436, %v5052
          %v6453 = vsel %vm3268, %v6437, %v5055
          %v6454 = vsel %vm3268, %v6438, %v5058
          %v6455 = vsel %vm3268, %v6439, %v5061
          %v6456 = vsel %vm3268, %v6440, %v5064
          %v6457 = vsel %vm3285, %v6441, %v5371
          %v6458 = vsel %vm3285, %v6442, %v5374
          %v6459 = vsel %vm3285, %v6443, %v5377
          %v6460 = vsel %vm3285, %v6444, %v5380
          %v6461 = vsel %vm3285, %v6445, %v5383
          %v6462 = vsel %vm3285, %v6446, %v5386
          %v6463 = vsel %vm3285, %v6447, %v5389
          %v6464 = vsel %vm3285, %v6448, %v5392
          %v6465 = vsel %vm3285, %v6449, %v5395
          %v6466 = vsel %vm3285, %v6450, %v5398
          %v6467 = vsel %vm3285, %v6451, %v5401
          %v6468 = vsel %vm3285, %v6452, %v5404
          %v6469 = vsel %vm3285, %v6453, %v5407
          %v6470 = vsel %vm3285, %v6454, %v5410
          %v6471 = vsel %vm3285, %v6455, %v5413
          %v6472 = vsel %vm3285, %v6456, %v5416
          %v6473 = vsel %vm3302, %v6457, %v5723
          %v6474 = vsel %vm3302, %v6458, %v5726
          %v6475 = vsel %vm3302, %v6459, %v5729
          %v6476 = vsel %vm3302, %v6460, %v5732
          %v6477 = vsel %vm3302, %v6461, %v5735
          %v6478 = vsel %vm3302, %v6462, %v5738
          %v6479 = vsel %vm3302, %v6463, %v5741
          %v6480 = vsel %vm3302, %v6464, %v5744
          %v6481 = vsel %vm3302, %v6465, %v5747
          %v6482 = vsel %vm3302, %v6466, %v5750
          %v6483 = vsel %vm3302, %v6467, %v5753
          %v6484 = vsel %vm3302, %v6468, %v5756
          %v6485 = vsel %vm3302, %v6469, %v5759
          %v6486 = vsel %vm3302, %v6470, %v5762
          %v6487 = vsel %vm3302, %v6471, %v5765
          %v6488 = vsel %vm3302, %v6472, %v5768
          %v6489 = vsel %vm3319, %v6473, %v6075
          %v6490 = vsel %vm3319, %v6474, %v6078
          %v6491 = vsel %vm3319, %v6475, %v6081
          %v6492 = vsel %vm3319, %v6476, %v6084
          %v6493 = vsel %vm3319, %v6477, %v6087
          %v6494 = vsel %vm3319, %v6478, %v6090
          %v6495 = vsel %vm3319, %v6479, %v6093
          %v6496 = vsel %vm3319, %v6480, %v6096
          %v6497 = vsel %vm3319, %v6481, %v6099
          %v6498 = vsel %vm3319, %v6482, %v6102
          %v6499 = vsel %vm3319, %v6483, %v6105
          %v6500 = vsel %vm3319, %v6484, %v6108
          %v6501 = vsel %vm3319, %v6485, %v6111
          %v6502 = vsel %vm3319, %v6486, %v6114
          %v6503 = vsel %vm3319, %v6487, %v6117
          %v6504 = vsel %vm3319, %v6488, %v6120
          %6505 = vst.msk [vmem:[#allocation2] sm:$0xff] %vm644, %v6489
          %6506 = vst.msk [vmem:[#allocation2 + $0x8] sm:$0xff] %vm644, %v6490
          %6507 = vst.msk [vmem:[#allocation2 + $0x10] sm:$0xff] %vm644, %v6491
          %6508 = vst.msk [vmem:[#allocation2 + $0x18] sm:$0xff] %vm644, %v6492
          %6509 = vst.msk [vmem:[#allocation2 + $0x20] sm:$0xff] %vm644, %v6493
          %6510 = vst.msk [vmem:[#allocation2 + $0x28] sm:$0xff] %vm644, %v6494
          %6511 = vst.msk [vmem:[#allocation2 + $0x30] sm:$0xff] %vm644, %v6495
          %6512 = vst.msk [vmem:[#allocation2 + $0x38] sm:$0xff] %vm644, %v6496
          %6513 = vst.msk [vmem:[#allocation2 + $0x40] sm:$0xff] %vm644, %v6497
          %6514 = vst.msk [vmem:[#allocation2 + $0x48] sm:$0xff] %vm644, %v6498
          %6515 = vst.msk [vmem:[#allocation2 + $0x50] sm:$0xff] %vm644, %v6499
          %6516 = vst.msk [vmem:[#allocation2 + $0x58] sm:$0xff] %vm644, %v6500
          %6517 = vst.msk [vmem:[#allocation2 + $0x60] sm:$0xff] %vm644, %v6501
          %6518 = vst.msk [vmem:[#allocation2 + $0x68] sm:$0xff] %vm644, %v6502
          %6519 = vst.msk [vmem:[#allocation2 + $0x70] sm:$0xff] %vm644, %v6503
          %6520 = vst.msk [vmem:[#allocation2 + $0x78] sm:$0xff] %vm644, %v6504
          %v6521 = vsel %vm3217, %v3703, %v4055
          %v6522 = vsel %vm3217, %v3718, %v4070
          %v6523 = vsel %vm3217, %v3733, %v4085
          %v6524 = vsel %vm3217, %v3748, %v4100
          %v6525 = vsel %vm3217, %v3763, %v4115
          %v6526 = vsel %vm3217, %v3778, %v4130
          %v6527 = vsel %vm3217, %v3793, %v4145
          %v6528 = vsel %vm3217, %v3808, %v4160
          %v6529 = vsel %vm3217, %v3823, %v4175
          %v6530 = vsel %vm3217, %v3838, %v4190
          %v6531 = vsel %vm3217, %v3853, %v4205
          %v6532 = vsel %vm3217, %v3868, %v4220
          %v6533 = vsel %vm3217, %v3883, %v4235
          %v6534 = vsel %vm3217, %v3898, %v4250
          %v6535 = vsel %vm3217, %v3913, %v4265
          %v6536 = vsel %vm3217, %v3928, %v4280
          %v6537 = vsel %vm3234, %v6521, %v4407
          %v6538 = vsel %vm3234, %v6522, %v4422
          %v6539 = vsel %vm3234, %v6523, %v4437
          %v6540 = vsel %vm3234, %v6524, %v4452
          %v6541 = vsel %vm3234, %v6525, %v4467
          %v6542 = vsel %vm3234, %v6526, %v4482
          %v6543 = vsel %vm3234, %v6527, %v4497
          %v6544 = vsel %vm3234, %v6528, %v4512
          %v6545 = vsel %vm3234, %v6529, %v4527
          %v6546 = vsel %vm3234, %v6530, %v4542
          %v6547 = vsel %vm3234, %v6531, %v4557
          %v6548 = vsel %vm3234, %v6532, %v4572
          %v6549 = vsel %vm3234, %v6533, %v4587
          %v6550 = vsel %vm3234, %v6534, %v4602
          %v6551 = vsel %vm3234, %v6535, %v4617
          %v6552 = vsel %vm3234, %v6536, %v4632
          %v6553 = vsel %vm3251, %v6537, %v4759
          %v6554 = vsel %vm3251, %v6538, %v4774
          %v6555 = vsel %vm3251, %v6539, %v4789
          %v6556 = vsel %vm3251, %v6540, %v4804
          %v6557 = vsel %vm3251, %v6541, %v4819
          %v6558 = vsel %vm3251, %v6542, %v4834
          %v6559 = vsel %vm3251, %v6543, %v4849
          %v6560 = vsel %vm3251, %v6544, %v4864
          %v6561 = vsel %vm3251, %v6545, %v4879
          %v6562 = vsel %vm3251, %v6546, %v4894
          %v6563 = vsel %vm3251, %v6547, %v4909
          %v6564 = vsel %vm3251, %v6548, %v4924
          %v6565 = vsel %vm3251, %v6549, %v4939
          %v6566 = vsel %vm3251, %v6550, %v4954
          %v6567 = vsel %vm3251, %v6551, %v4969
          %v6568 = vsel %vm3251, %v6552, %v4984
          %v6569 = vsel %vm3268, %v6553, %v5111
          %v6570 = vsel %vm3268, %v6554, %v5126
          %v6571 = vsel %vm3268, %v6555, %v5141
          %v6572 = vsel %vm3268, %v6556, %v5156
          %v6573 = vsel %vm3268, %v6557, %v5171
          %v6574 = vsel %vm3268, %v6558, %v5186
          %v6575 = vsel %vm3268, %v6559, %v5201
          %v6576 = vsel %vm3268, %v6560, %v5216
          %v6577 = vsel %vm3268, %v6561, %v5231
          %v6578 = vsel %vm3268, %v6562, %v5246
          %v6579 = vsel %vm3268, %v6563, %v5261
          %v6580 = vsel %vm3268, %v6564, %v5276
          %v6581 = vsel %vm3268, %v6565, %v5291
          %v6582 = vsel %vm3268, %v6566, %v5306
          %v6583 = vsel %vm3268, %v6567, %v5321
          %v6584 = vsel %vm3268, %v6568, %v5336
          %v6585 = vsel %vm3285, %v6569, %v5463
          %v6586 = vsel %vm3285, %v6570, %v5478
          %v6587 = vsel %vm3285, %v6571, %v5493
          %v6588 = vsel %vm3285, %v6572, %v5508
          %v6589 = vsel %vm3285, %v6573, %v5523
          %v6590 = vsel %vm3285, %v6574, %v5538
          %v6591 = vsel %vm3285, %v6575, %v5553
          %v6592 = vsel %vm3285, %v6576, %v5568
          %v6593 = vsel %vm3285, %v6577, %v5583
          %v6594 = vsel %vm3285, %v6578, %v5598
          %v6595 = vsel %vm3285, %v6579, %v5613
          %v6596 = vsel %vm3285, %v6580, %v5628
          %v6597 = vsel %vm3285, %v6581, %v5643
          %v6598 = vsel %vm3285, %v6582, %v5658
          %v6599 = vsel %vm3285, %v6583, %v5673
          %v6600 = vsel %vm3285, %v6584, %v5688
          %v6601 = vsel %vm3302, %v6585, %v5815
          %v6602 = vsel %vm3302, %v6586, %v5830
          %v6603 = vsel %vm3302, %v6587, %v5845
          %v6604 = vsel %vm3302, %v6588, %v5860
          %v6605 = vsel %vm3302, %v6589, %v5875
          %v6606 = vsel %vm3302, %v6590, %v5890
          %v6607 = vsel %vm3302, %v6591, %v5905
          %v6608 = vsel %vm3302, %v6592, %v5920
          %v6609 = vsel %vm3302, %v6593, %v5935
          %v6610 = vsel %vm3302, %v6594, %v5950
          %v6611 = vsel %vm3302, %v6595, %v5965
          %v6612 = vsel %vm3302, %v6596, %v5980
          %v6613 = vsel %vm3302, %v6597, %v5995
          %v6614 = vsel %vm3302, %v6598, %v6010
          %v6615 = vsel %vm3302, %v6599, %v6025
          %v6616 = vsel %vm3302, %v6600, %v6040
          %v6617 = vsel %vm3319, %v6601, %v6167
          %v6618 = vsel %vm3319, %v6602, %v6182
          %v6619 = vsel %vm3319, %v6603, %v6197
          %v6620 = vsel %vm3319, %v6604, %v6212
          %v6621 = vsel %vm3319, %v6605, %v6227
          %v6622 = vsel %vm3319, %v6606, %v6242
          %v6623 = vsel %vm3319, %v6607, %v6257
          %v6624 = vsel %vm3319, %v6608, %v6272
          %v6625 = vsel %vm3319, %v6609, %v6287
          %v6626 = vsel %vm3319, %v6610, %v6302
          %v6627 = vsel %vm3319, %v6611, %v6317
          %v6628 = vsel %vm3319, %v6612, %v6332
          %v6629 = vsel %vm3319, %v6613, %v6347
          %v6630 = vsel %vm3319, %v6614, %v6362
          %v6631 = vsel %vm3319, %v6615, %v6377
          %v6632 = vsel %vm3319, %v6616, %v6392
          %6633 = vst.msk [vmem:[#allocation3] sm:$0xff] %vm644, %v6617
          %6634 = vst.msk [vmem:[#allocation3 + $0x8] sm:$0xff] %vm644, %v6618
          %6635 = vst.msk [vmem:[#allocation3 + $0x10] sm:$0xff] %vm644, %v6619
          %6636 = vst.msk [vmem:[#allocation3 + $0x18] sm:$0xff] %vm644, %v6620
          %6637 = vst.msk [vmem:[#allocation3 + $0x20] sm:$0xff] %vm644, %v6621
          %6638 = vst.msk [vmem:[#allocation3 + $0x28] sm:$0xff] %vm644, %v6622
          %6639 = vst.msk [vmem:[#allocation3 + $0x30] sm:$0xff] %vm644, %v6623
          %6640 = vst.msk [vmem:[#allocation3 + $0x38] sm:$0xff] %vm644, %v6624
          %6641 = vst.msk [vmem:[#allocation3 + $0x40] sm:$0xff] %vm644, %v6625
          %6642 = vst.msk [vmem:[#allocation3 + $0x48] sm:$0xff] %vm644, %v6626
          %6643 = vst.msk [vmem:[#allocation3 + $0x50] sm:$0xff] %vm644, %v6627
          %6644 = vst.msk [vmem:[#allocation3 + $0x58] sm:$0xff] %vm644, %v6628
          %6645 = vst.msk [vmem:[#allocation3 + $0x60] sm:$0xff] %vm644, %v6629
          %6646 = vst.msk [vmem:[#allocation3 + $0x68] sm:$0xff] %vm644, %v6630
          %6647 = vst.msk [vmem:[#allocation3 + $0x70] sm:$0xff] %vm644, %v6631
          %6648 = vst.msk [vmem:[#allocation3 + $0x78] sm:$0xff] %vm644, %v6632
        $region77: #{tpu_custom_call.1} parent=64 // pred_fallthru
          _
        %p6649 = scmp.eq.s32.totalorder %s22, 1
        // Predicated region
        $region78: #{tpu_custom_call.1} parent=64 // pred_check
          %p6650 = pneg %p6649
        $region79: #{tpu_custom_call.1} parent=64 // pred_check_branch
          %6652 = sbr.rel (%p6650) target = $region81
        $region80: #{tpu_custom_call.1} parent=64 // pred_region
          %v6653 = vld [vmem:[#allocation2] sm:$0xff]
          %v6654 = vld [vmem:[#allocation2 + $0x8] sm:$0xff]
          %v6655 = vld [vmem:[#allocation2 + $0x10] sm:$0xff]
          %v6656 = vld [vmem:[#allocation2 + $0x18] sm:$0xff]
          %v6657 = vld [vmem:[#allocation2 + $0x20] sm:$0xff]
          %v6658 = vld [vmem:[#allocation2 + $0x28] sm:$0xff]
          %v6659 = vld [vmem:[#allocation2 + $0x30] sm:$0xff]
          %v6660 = vld [vmem:[#allocation2 + $0x38] sm:$0xff]
          %v6661 = vld [vmem:[#allocation2 + $0x40] sm:$0xff]
          %v6662 = vld [vmem:[#allocation2 + $0x48] sm:$0xff]
          %v6663 = vld [vmem:[#allocation2 + $0x50] sm:$0xff]
          %v6664 = vld [vmem:[#allocation2 + $0x58] sm:$0xff]
          %v6665 = vld [vmem:[#allocation2 + $0x60] sm:$0xff]
          %v6666 = vld [vmem:[#allocation2 + $0x68] sm:$0xff]
          %v6667 = vld [vmem:[#allocation2 + $0x70] sm:$0xff]
          %v6668 = vld [vmem:[#allocation2 + $0x78] sm:$0xff]
          %v6669 = vmul.f32 %v6653, 0.125
          %v6670 = vmul.f32 %v6654, 0.125
          %v6671 = vmul.f32 %v6655, 0.125
          %v6672 = vmul.f32 %v6656, 0.125
          %v6673 = vmul.f32 %v6657, 0.125
          %v6674 = vmul.f32 %v6658, 0.125
          %v6675 = vmul.f32 %v6659, 0.125
          %v6676 = vmul.f32 %v6660, 0.125
          %v6677 = vmul.f32 %v6661, 0.125
          %v6678 = vmul.f32 %v6662, 0.125
          %v6679 = vmul.f32 %v6663, 0.125
          %v6680 = vmul.f32 %v6664, 0.125
          %v6681 = vmul.f32 %v6665, 0.125
          %v6682 = vmul.f32 %v6666, 0.125
          %v6683 = vmul.f32 %v6667, 0.125
          %v6684 = vmul.f32 %v6668, 0.125
          %6685 = vst.msk [vmem:[%s322] sm:$0xff] %vm644, %v6669
          %6686 = vst.msk [vmem:[%s322 + $0x8] sm:$0xff] %vm644, %v6670
          %6687 = vst.msk [vmem:[%s322 + $0x10] sm:$0xff] %vm644, %v6671
          %6688 = vst.msk [vmem:[%s322 + $0x18] sm:$0xff] %vm644, %v6672
          %6689 = vst.msk [vmem:[%s322 + $0x20] sm:$0xff] %vm644, %v6673
          %6690 = vst.msk [vmem:[%s322 + $0x28] sm:$0xff] %vm644, %v6674
          %6691 = vst.msk [vmem:[%s322 + $0x30] sm:$0xff] %vm644, %v6675
          %6692 = vst.msk [vmem:[%s322 + $0x38] sm:$0xff] %vm644, %v6676
          %6693 = vst.msk [vmem:[%s322 + $0x40] sm:$0xff] %vm644, %v6677
          %6694 = vst.msk [vmem:[%s322 + $0x48] sm:$0xff] %vm644, %v6678
          %6695 = vst.msk [vmem:[%s322 + $0x50] sm:$0xff] %vm644, %v6679
          %6696 = vst.msk [vmem:[%s322 + $0x58] sm:$0xff] %vm644, %v6680
          %6697 = vst.msk [vmem:[%s322 + $0x60] sm:$0xff] %vm644, %v6681
          %6698 = vst.msk [vmem:[%s322 + $0x68] sm:$0xff] %vm644, %v6682
          %6699 = vst.msk [vmem:[%s322 + $0x70] sm:$0xff] %vm644, %v6683
          %6700 = vst.msk [vmem:[%s322 + $0x78] sm:$0xff] %vm644, %v6684
          %v6701 = vld [vmem:[#allocation3] sm:$0xff]
          %v6702 = vld [vmem:[#allocation3 + $0x8] sm:$0xff]
          %v6703 = vld [vmem:[#allocation3 + $0x10] sm:$0xff]
          %v6704 = vld [vmem:[#allocation3 + $0x18] sm:$0xff]
          %v6705 = vld [vmem:[#allocation3 + $0x20] sm:$0xff]
          %v6706 = vld [vmem:[#allocation3 + $0x28] sm:$0xff]
          %v6707 = vld [vmem:[#allocation3 + $0x30] sm:$0xff]
          %v6708 = vld [vmem:[#allocation3 + $0x38] sm:$0xff]
          %v6709 = vld [vmem:[#allocation3 + $0x40] sm:$0xff]
          %v6710 = vld [vmem:[#allocation3 + $0x48] sm:$0xff]
          %v6711 = vld [vmem:[#allocation3 + $0x50] sm:$0xff]
          %v6712 = vld [vmem:[#allocation3 + $0x58] sm:$0xff]
          %v6713 = vld [vmem:[#allocation3 + $0x60] sm:$0xff]
          %v6714 = vld [vmem:[#allocation3 + $0x68] sm:$0xff]
          %v6715 = vld [vmem:[#allocation3 + $0x70] sm:$0xff]
          %v6716 = vld [vmem:[#allocation3 + $0x78] sm:$0xff]
          %6717 = vst.msk [vmem:[%s332] sm:$0xff] %vm644, %v6701
          %6718 = vst.msk [vmem:[%s332 + $0x8] sm:$0xff] %vm644, %v6702
          %6719 = vst.msk [vmem:[%s332 + $0x10] sm:$0xff] %vm644, %v6703
          %6720 = vst.msk [vmem:[%s332 + $0x18] sm:$0xff] %vm644, %v6704
          %6721 = vst.msk [vmem:[%s332 + $0x20] sm:$0xff] %vm644, %v6705
          %6722 = vst.msk [vmem:[%s332 + $0x28] sm:$0xff] %vm644, %v6706
          %6723 = vst.msk [vmem:[%s332 + $0x30] sm:$0xff] %vm644, %v6707
          %6724 = vst.msk [vmem:[%s332 + $0x38] sm:$0xff] %vm644, %v6708
          %6725 = vst.msk [vmem:[%s332 + $0x40] sm:$0xff] %vm644, %v6709
          %6726 = vst.msk [vmem:[%s332 + $0x48] sm:$0xff] %vm644, %v6710
          %6727 = vst.msk [vmem:[%s332 + $0x50] sm:$0xff] %vm644, %v6711
          %6728 = vst.msk [vmem:[%s332 + $0x58] sm:$0xff] %vm644, %v6712
          %6729 = vst.msk [vmem:[%s332 + $0x60] sm:$0xff] %vm644, %v6713
          %6730 = vst.msk [vmem:[%s332 + $0x68] sm:$0xff] %vm644, %v6714
          %6731 = vst.msk [vmem:[%s332 + $0x70] sm:$0xff] %vm644, %v6715
          %6732 = vst.msk [vmem:[%s332 + $0x78] sm:$0xff] %vm644, %v6716
        $region81: #{tpu_custom_call.1} parent=64 // pred_fallthru
          _
        %s6733 = smul.u32 16, %s21
        %p6734 = scmp.lt.s32.totalorder %s20, 1
        %s6735 = scalar_select %p6734, %s20, 1
        %p6736 = scmp.lt.s32.totalorder %s6733, 31
        %s6737 = scalar_select %p6736, %s6733, 31
        %s6738 = smul.addr %s6735, 32
        %s6739 = sadd.s32 %s6737, %s6738
        %s6740 = smul.addr %s6739, 8
        %s6741 = scalar_lea.vmem %s2, %s6740
        %s6742 = smul.u32 16, %s21
        %p6743 = scmp.lt.s32.totalorder %s20, 1
        %s6744 = scalar_select %p6743, %s20, 1
        %p6745 = scmp.lt.s32.totalorder %s6742, 31
        %s6746 = scalar_select %p6745, %s6742, 31
        %s6747 = smul.addr %s6744, 32
        %s6748 = sadd.s32 %s6746, %s6747
        %s6749 = smul.addr %s6748, 8
        %s6750 = scalar_lea.vmem %s3, %s6749
        // Predicated region
        $region82: #{tpu_custom_call.1} parent=64 // pred_check
          %p6751 = pneg %p110
        $region83: #{tpu_custom_call.1} parent=64 // pred_check_branch
          %6753 = sbr.rel (%p6751) target = $region85
        $region84: #{tpu_custom_call.1} parent=64 // pred_region
          %s6754 = smul.u32 16, %s21
        $region85: #{tpu_custom_call.1} parent=64 // pred_fallthru
          _
        // Predicated region
        $region86: #{tpu_custom_call.1} parent=64 // pred_check
          %p6755 = pneg %p138
        $region87: #{tpu_custom_call.1} parent=64 // pred_check_branch
          %6757 = sbr.rel (%p6755) target = $region89
        $region88: #{tpu_custom_call.1} parent=64 // pred_region
          %s6758 = smul.u32 16, %s21
        $region89: #{tpu_custom_call.1} parent=64 // pred_fallthru
          _
      $region65: #{tpu_custom_call.1} parent=5 // pred_fallthru
        _
      %p6759 = scmp.le.s32.totalorder 2, %s10
      // Predicated region
      $region90: #{tpu_custom_call.1} parent=5 // pred_check
        %p6760 = pneg %p6759
      $region91: #{tpu_custom_call.1} parent=5 // pred_check_branch
        %6762 = sbr.rel (%p6760) target = $region93
      $region92: #{tpu_custom_call.1} parent=5 // pred_region
        %s6763 = ssub.s32 %s10, 2
        // Predicated region
        $region94: #{tpu_custom_call.1} parent=92 // pred_check
          %p6764 = pneg %p116
        $region95: #{tpu_custom_call.1} parent=92 // pred_check_branch
          %6766 = sbr.rel (%p6764) target = $region97
        $region96: #{tpu_custom_call.1} parent=92 // pred_region
          %s6767 = smul.u32 16, %s24
          %p6768 = scmp.lt.s32.totalorder %s23, 1
          %s6769 = scalar_select %p6768, %s23, 1
          %p6770 = scmp.lt.s32.totalorder %s6767, 31
          %s6771 = scalar_select %p6770, %s6767, 31
          %s6772 = smul.addr %s6769, 32
          %s6773 = sadd.s32 %s6771, %s6772
          %s6774 = smul.addr %s6773, 8
          %s6775 = scalar_lea.vmem %s2, %s6774
        $region97: #{tpu_custom_call.1} parent=92 // pred_fallthru
          _
        // Predicated region
        $region98: #{tpu_custom_call.1} parent=92 // pred_check
          %p6776 = pneg %p144
        $region99: #{tpu_custom_call.1} parent=92 // pred_check_branch
          %6778 = sbr.rel (%p6776) target = $region101
        $region100: #{tpu_custom_call.1} parent=92 // pred_region
          %s6779 = smul.u32 16, %s24
          %p6780 = scmp.lt.s32.totalorder %s23, 1
          %s6781 = scalar_select %p6780, %s23, 1
          %p6782 = scmp.lt.s32.totalorder %s6779, 31
          %s6783 = scalar_select %p6782, %s6779, 31
          %s6784 = smul.addr %s6781, 32
          %s6785 = sadd.s32 %s6783, %s6784
          %s6786 = smul.addr %s6785, 8
          %s6787 = scalar_lea.vmem %s3, %s6786
        $region101: #{tpu_custom_call.1} parent=92 // pred_fallthru
          _
      $region93: #{tpu_custom_call.1} parent=5 // pred_fallthru
        _
    $region6: #{tpu_custom_call.1} parent=1 // loop_footer
      %s14 = sadd.s32 1, %s10
    $region7: #{tpu_custom_call.1} parent=1 // loop_footer_branch
      %9 = sbr.rel target = $region3
    $region8: #{tpu_custom_call.1} parent=1 // loop_exit
      _

</llo_original>
